<compile_context>
chip_gen: v7x
topology: tpu7x:2x2x1
jax: 0.10.0
libtpu: 0.0.40
codegen_flags: <defaults>
</compile_context>

<pallas_src>
import functools

import jax
import jax.numpy as jnp
from jax.experimental import pallas as pl
from jax.experimental.pallas import tpu as pltpu

# ---- small, self-consistent "opts" -----------------------------------------
N_ATTRIBUTES = 2
N_VALUES = 4
N_DIM = N_ATTRIBUTES * N_VALUES     # sender input width
HIDDEN = 32                         # opts.hidden
VOCAB = 10                          # opts.vocab_size
EMBED = 16                          # opts.sender_emb
MAX_LEN = 5                         # opts.max_len
BATCH = 2

_DEFAULT = jax.lax.Precision.DEFAULT
_HIGHEST = jax.lax.Precision.HIGHEST


def _default_batch_tile():
    """256 rows on v6e/v7x (256x256 MXU), 128 elsewhere (v5e 128x128 MXU)."""
    try:
        kind = jax.devices()[0].device_kind.lower()
    except Exception:
        return 128
    if "v6" in kind or "v7" in kind:
        return 256
    return 128


# ---- Pallas kernel: entire deterministic sender rollout ----------------------
def _sender_rollout_kernel(x_ref, winit_ref, binit_ref, gi0_ref, wtok_ref,
                           bih_ref, whh_ref, bhh_ref, wout_ref, bout_ref, out_ref):
    B = x_ref.shape[0]
    H, V, G = HIDDEN, VOCAB, 3 * HIDDEN

    # Fused prologue: one matmul gives h0 (first H lanes) and gh0 = h0 @ W_hh + b_hh
    # (remaining 3H lanes).  W_init is exactly 128 lanes -> one MXU pass on all gens.
    init = jnp.dot(x_ref[...], winit_ref[...], preferred_element_type=jnp.float32,
                   precision=_DEFAULT) + binit_ref[...]
    h = init[:, 0:H]
    gh = init[:, H:H + G]

    # First-step input gates come from the sos embedding (precomputed, batch-broadcast).
    gi = jnp.broadcast_to(gi0_ref[...], (B, G))

    col_ids = jax.lax.broadcasted_iota(jnp.int32, (B, V), 1)
    step_logits = []

    for step in range(MAX_LEN):                    # static unroll: max_len is small & fixed
        # --- PyTorch GRUCell ([reset|update|new] gate order) ---
        r = jax.nn.sigmoid(gi[:, 0:H] + gh[:, 0:H])
        z = jax.nn.sigmoid(gi[:, H:2 * H] + gh[:, H:2 * H])
        n = jnp.tanh(gi[:, 2 * H:G] + r * gh[:, 2 * H:G])
        h = n + z * (h - n)                        # == (1-z)*n + z*h, one fewer VPU op

        # Narrow logits pass issued first so the argmax/token path can start while the
        # wider gh pass is still draining on the MXU.
        logits = jnp.dot(h, wout_ref[...], preferred_element_type=jnp.float32,
                         precision=_DEFAULT) + bout_ref[...]
        step_logits.append(logits)                 # RAW logits: the module output

        if step + 1 < MAX_LEN:                     # last step needs no gh / token work
            gh = jnp.dot(h, whh_ref[...], preferred_element_type=jnp.float32,
                         precision=_DEFAULT) + bhh_ref[...]

            # Greedy token: argmax(log_softmax(l)) == argmax(l) (first index on ties).
            # Two small 10-lane XLU reduces; Mosaic has no fused value+index reduce.
            is_max = logits == jnp.max(logits, axis=1, keepdims=True)
            idx = jnp.min(jnp.where(is_max, col_ids, V), axis=1, keepdims=True)
            onehot = (col_ids == idx).astype(jnp.float32)
            # Embedding lookup folded into the input-gate matmul: W_tok = emb @ W_ih.
            gi = jnp.dot(onehot, wtok_ref[...], preferred_element_type=jnp.float32,
                         precision=_DEFAULT) + bih_ref[...]

    # Single lane-concatenated store: (B, MAX_LEN * V); reshaped to (B, MAX_LEN, V) outside.
    out_ref[...] = jnp.concatenate(step_logits, axis=1)


# ---- wrapper -----------------------------------------------------------------
@functools.partial(jax.jit, static_argnames=("b_tile",))
def orig_sender_deterministic_pallas(x, params, *, b_tile=128):
    w1, b1, wih, bih, whh, bhh, wout, bout, emb, sos = params
    B = x.shape[0]

    # One-time weight fusions; computed at full f32 precision (cheap, trace-time).
    w_init = jnp.concatenate([w1, jnp.dot(w1, whh, precision=_HIGHEST)], axis=1)        # (N_DIM, 4H) = (8, 128)
    b_init = jnp.concatenate([b1, jnp.dot(b1, whh, precision=_HIGHEST) + bhh], axis=1)  # (1, 128)
    gi0 = jnp.dot(sos, wih, precision=_HIGHEST) + bih                                   # (1, 3H)
    w_tok = jnp.dot(emb, wih, precision=_HIGHEST)                                       # (V, 3H) embedding fold

    # Pad batch to a multiple of the tile; grid over batch tiles.
    n_tiles = pl.cdiv(B, b_tile)
    b_pad = n_tiles * b_tile
    x_p = jnp.pad(x, ((0, b_pad - B), (0, 0)))

    def wspec(arr):
        # Full-shape block, always block (0, 0): weight stays VMEM-resident across tiles.
        return pl.BlockSpec(arr.shape, lambda i: (0, 0))

    flat = pl.pallas_call(
        _sender_rollout_kernel,
        out_shape=jax.ShapeDtypeStruct((b_pad, MAX_LEN * VOCAB), jnp.float32),
        grid=(n_tiles,),
        in_specs=[
            pl.BlockSpec((b_tile, N_DIM), lambda i: (i, 0)),          # x batch tile
            wspec(w_init), wspec(b_init), wspec(gi0), wspec(w_tok), wspec(bih),
            wspec(whh), wspec(bhh), wspec(wout), wspec(bout),
        ],
        out_specs=pl.BlockSpec((b_tile, MAX_LEN * VOCAB), lambda i: (i, 0)),
        compiler_params=pltpu.CompilerParams(dimension_semantics=("parallel",)),
    )(x_p, w_init, b_init, gi0, w_tok, bih, whh, bhh, wout, bout)

    sequence = flat[:B].reshape(B, MAX_LEN, VOCAB)     # (B, max_len, vocab) raw logits
    return sequence, None, None                        # matches RnnSenderDeterministic.forward


# ---- deterministic parameter init (shapes from the module __init__) -----------
def init_params(key):
    ks = jax.random.split(key, 10)

    def uni(k, shape, fan_in):
        bound = 1.0 / float(fan_in) ** 0.5
        return jax.random.uniform(k, shape, jnp.float32, -bound, bound)

    w1 = uni(ks[0], (N_DIM, HIDDEN), N_DIM)            # Sender.fc1 (weight^T)
    b1 = uni(ks[1], (1, HIDDEN), N_DIM)
    wih = uni(ks[2], (EMBED, 3 * HIDDEN), HIDDEN)      # GRUCell weight_ih^T
    bih = uni(ks[3], (1, 3 * HIDDEN), HIDDEN)
    whh = uni(ks[4], (HIDDEN, 3 * HIDDEN), HIDDEN)     # GRUCell weight_hh^T
    bhh = uni(ks[5], (1, 3 * HIDDEN), HIDDEN)
    wout = uni(ks[6], (HIDDEN, VOCAB), HIDDEN)         # hidden_to_output (weight^T)
    bout = uni(ks[7], (1, VOCAB), HIDDEN)
    emb = jax.random.normal(ks[8], (VOCAB, EMBED), jnp.float32)        # Embedding
    sos = 0.01 * jax.random.normal(ks[9], (1, EMBED), jnp.float32)     # sos_embedding
    return (w1, b1, wih, bih, whh, bhh, wout, bout, emb, sos)


# ---- pure-JAX reference (faithful to the PyTorch forward, eval mode) ----------
def orig_sender_deterministic_ref(x, params):
    w1, b1, wih, bih, whh, bhh, wout, bout, emb, sos = params
    B = x.shape[0]
    H = HIDDEN
    h = x @ w1 + b1
    e = jnp.broadcast_to(sos, (B, EMBED))
    seq = []
    for _ in range(MAX_LEN):
        gi = e @ wih + bih
        gh = h @ whh + bhh
        r = jax.nn.sigmoid(gi[:, :H] + gh[:, :H])
        z = jax.nn.sigmoid(gi[:, H:2 * H] + gh[:, H:2 * H])
        n = jnp.tanh(gi[:, 2 * H:] + r * gh[:, 2 * H:])
        h = (1.0 - z) * n + z * h
        logits = h @ wout + bout                      # raw logits appended to `sequence`
        step_logits = jax.nn.log_softmax(logits, axis=1)
        tok = jnp.argmax(step_logits, axis=1)         # eval-mode deterministic choice
        e = emb[tok]
        seq.append(logits)
    return jnp.stack(seq, axis=1), None, None


if __name__ == "__main__":
    key = jax.random.PRNGKey(0)
    k_in, k_p = jax.random.split(key)

    # Input: concatenated one-hot attribute/value encoding, shape (B, n_attr*n_vals).
    vals = jax.random.randint(k_in, (BATCH, N_ATTRIBUTES), 0, N_VALUES)
    x = jax.nn.one_hot(vals, N_VALUES).reshape(BATCH, N_DIM).astype(jnp.float32)

    params = init_params(k_p)
    b_tile = _default_batch_tile()

    seq, _, _ = orig_sender_deterministic_pallas(x, params, b_tile=b_tile)
    jax.block_until_ready(seq)

    seq_ref, _, _ = orig_sender_deterministic_ref(x, params)
    assert seq.shape == (BATCH, MAX_LEN, VOCAB)
    # Tolerance accounts for bf16 MXU passes (present in both paths) and the re-associated
    # one-time weight pre-fusions; greedy-token choice is verified implicitly (a flip would
    # diverge by O(1)).
    assert jnp.allclose(seq, seq_ref, rtol=1e-3, atol=1e-3), (seq, seq_ref)

    print("KERNEL_OK")
</pallas_src>

<mosaic_0001>
module attributes {stable_mosaic.version = 11 : i64} {
  func.func @_sender_rollout_kernel(%arg0: i32, %arg1: memref<128x8xf32, #tpu.memory_space<vmem>>, %arg2: memref<8x128xf32, #tpu.memory_space<vmem>>, %arg3: memref<1x128xf32, #tpu.memory_space<vmem>>, %arg4: memref<1x96xf32, #tpu.memory_space<vmem>>, %arg5: memref<10x96xf32, #tpu.memory_space<vmem>>, %arg6: memref<1x96xf32, #tpu.memory_space<vmem>>, %arg7: memref<32x96xf32, #tpu.memory_space<vmem>>, %arg8: memref<1x96xf32, #tpu.memory_space<vmem>>, %arg9: memref<32x10xf32, #tpu.memory_space<vmem>>, %arg10: memref<1x10xf32, #tpu.memory_space<vmem>>, %arg11: memref<128x50xf32, #tpu.memory_space<vmem>>) attributes {dimension_semantics = [#tpu.dimension_semantics<parallel>], iteration_bounds = array<i64: 1>, scalar_prefetch = 0 : i64, scratch_operands = 0 : i64, tpu.core_type = #tpu.core_type<tc>, window_params = [{transform_indices = @transform_0, window_bounds = array<i64: 128, 8>}, {pipeline_mode = #tpu.pipeline_mode<synchronous>, transform_indices = @transform_1, window_bounds = array<i64: 8, 128>}, {pipeline_mode = #tpu.pipeline_mode<synchronous>, transform_indices = @transform_2, window_bounds = array<i64: 1, 128>}, {pipeline_mode = #tpu.pipeline_mode<synchronous>, transform_indices = @transform_3, window_bounds = array<i64: 1, 96>}, {pipeline_mode = #tpu.pipeline_mode<synchronous>, transform_indices = @transform_4, window_bounds = array<i64: 10, 96>}, {pipeline_mode = #tpu.pipeline_mode<synchronous>, transform_indices = @transform_5, window_bounds = array<i64: 1, 96>}, {pipeline_mode = #tpu.pipeline_mode<synchronous>, transform_indices = @transform_6, window_bounds = array<i64: 32, 96>}, {pipeline_mode = #tpu.pipeline_mode<synchronous>, transform_indices = @transform_7, window_bounds = array<i64: 1, 96>}, {pipeline_mode = #tpu.pipeline_mode<synchronous>, transform_indices = @transform_8, window_bounds = array<i64: 32, 10>}, {pipeline_mode = #tpu.pipeline_mode<synchronous>, transform_indices = @transform_9, window_bounds = array<i64: 1, 10>}, {transform_indices = @transform_10, window_bounds = array<i64: 128, 50>}]} {
    %c0 = arith.constant 0 : index
    %c0_0 = arith.constant 0 : index
    %0 = vector.load %arg1[%c0, %c0_0] : memref<128x8xf32, #tpu.memory_space<vmem>>, vector<128x8xf32>
    %c0_1 = arith.constant 0 : index
    %c0_2 = arith.constant 0 : index
    %1 = vector.load %arg2[%c0_1, %c0_2] : memref<8x128xf32, #tpu.memory_space<vmem>>, vector<8x128xf32>
    %cst = arith.constant dense<0.000000e+00> : vector<128x128xf32>
    %2 = tpu.matmul %0, %1, %cst {dimension_numbers = #tpu.dot_dimension_numbers<[1], [0], [0], [1], [0, 0, 1, 1], [], []>} : vector<128x8xf32>, vector<8x128xf32>, vector<128x128xf32> -> vector<128x128xf32>
    %c0_3 = arith.constant 0 : index
    %c0_4 = arith.constant 0 : index
    %3 = vector.load %arg3[%c0_3, %c0_4] : memref<1x128xf32, #tpu.memory_space<vmem>>, vector<1x128xf32>
    %4 = vector.broadcast %3 : vector<1x128xf32> to vector<128x128xf32>
    %5 = arith.addf %2, %4 : vector<128x128xf32>
    %6 = vector.extract_strided_slice %5 {offsets = [0, 0], sizes = [128, 32], strides = [1, 1]} : vector<128x128xf32> to vector<128x32xf32>
    %7 = vector.extract_strided_slice %5 {offsets = [0, 32], sizes = [128, 96], strides = [1, 1]} : vector<128x128xf32> to vector<128x96xf32>
    %c0_5 = arith.constant 0 : index
    %c0_6 = arith.constant 0 : index
    %8 = vector.load %arg4[%c0_5, %c0_6] : memref<1x96xf32, #tpu.memory_space<vmem>>, vector<1x96xf32>
    %9 = vector.shape_cast %8 : vector<1x96xf32> to vector<1x96xf32>
    %10 = vector.broadcast %9 : vector<1x96xf32> to vector<128x96xf32>
    %11 = tpu.iota {dimensions = array<i32: 1>} : vector<128x10xi32>
    %12 = vector.extract_strided_slice %10 {offsets = [0, 0], sizes = [128, 32], strides = [1, 1]} : vector<128x96xf32> to vector<128x32xf32>
    %13 = vector.extract_strided_slice %7 {offsets = [0, 0], sizes = [128, 32], strides = [1, 1]} : vector<128x96xf32> to vector<128x32xf32>
    %14 = arith.addf %12, %13 : vector<128x32xf32>
    %15 = arith.negf %14 : vector<128x32xf32>
    %16 = math.exp %15 : vector<128x32xf32>
    %cst_7 = arith.constant 1.000000e+00 : f32
    %17 = vector.broadcast %cst_7 : f32 to vector<128x32xf32>
    %18 = arith.addf %17, %16 : vector<128x32xf32>
    %19 = arith.divf %17, %18 : vector<128x32xf32>
    %20 = vector.extract_strided_slice %10 {offsets = [0, 32], sizes = [128, 32], strides = [1, 1]} : vector<128x96xf32> to vector<128x32xf32>
    %21 = vector.extract_strided_slice %7 {offsets = [0, 32], sizes = [128, 32], strides = [1, 1]} : vector<128x96xf32> to vector<128x32xf32>
    %22 = arith.addf %20, %21 : vector<128x32xf32>
    %23 = arith.negf %22 : vector<128x32xf32>
    %24 = math.exp %23 : vector<128x32xf32>
    %cst_8 = arith.constant 1.000000e+00 : f32
    %25 = vector.broadcast %cst_8 : f32 to vector<128x32xf32>
    %26 = arith.addf %25, %24 : vector<128x32xf32>
    %27 = arith.divf %25, %26 : vector<128x32xf32>
    %28 = vector.extract_strided_slice %10 {offsets = [0, 64], sizes = [128, 32], strides = [1, 1]} : vector<128x96xf32> to vector<128x32xf32>
    %29 = vector.extract_strided_slice %7 {offsets = [0, 64], sizes = [128, 32], strides = [1, 1]} : vector<128x96xf32> to vector<128x32xf32>
    %30 = arith.mulf %19, %29 : vector<128x32xf32>
    %31 = arith.addf %28, %30 : vector<128x32xf32>
    %32 = math.tanh %31 : vector<128x32xf32>
    %33 = arith.subf %6, %32 : vector<128x32xf32>
    %34 = arith.mulf %27, %33 : vector<128x32xf32>
    %35 = arith.addf %32, %34 : vector<128x32xf32>
    %c0_9 = arith.constant 0 : index
    %c0_10 = arith.constant 0 : index
    %36 = vector.load %arg9[%c0_9, %c0_10] : memref<32x10xf32, #tpu.memory_space<vmem>>, vector<32x10xf32>
    %cst_11 = arith.constant dense<0.000000e+00> : vector<128x10xf32>
    %37 = tpu.matmul %35, %36, %cst_11 {dimension_numbers = #tpu.dot_dimension_numbers<[1], [0], [0], [1], [0, 0, 1, 1], [], []>} : vector<128x32xf32>, vector<32x10xf32>, vector<128x10xf32> -> vector<128x10xf32>
    %c0_12 = arith.constant 0 : index
    %c0_13 = arith.constant 0 : index
    %38 = vector.load %arg10[%c0_12, %c0_13] : memref<1x10xf32, #tpu.memory_space<vmem>>, vector<1x10xf32>
    %39 = vector.broadcast %38 : vector<1x10xf32> to vector<128x10xf32>
    %40 = arith.addf %37, %39 : vector<128x10xf32>
    %c0_14 = arith.constant 0 : index
    %c0_15 = arith.constant 0 : index
    %41 = vector.load %arg7[%c0_14, %c0_15] : memref<32x96xf32, #tpu.memory_space<vmem>>, vector<32x96xf32>
    %cst_16 = arith.constant dense<0.000000e+00> : vector<128x96xf32>
    %42 = tpu.matmul %35, %41, %cst_16 {dimension_numbers = #tpu.dot_dimension_numbers<[1], [0], [0], [1], [0, 0, 1, 1], [], []>} : vector<128x32xf32>, vector<32x96xf32>, vector<128x96xf32> -> vector<128x96xf32>
    %c0_17 = arith.constant 0 : index
    %c0_18 = arith.constant 0 : index
    %43 = vector.load %arg8[%c0_17, %c0_18] : memref<1x96xf32, #tpu.memory_space<vmem>>, vector<1x96xf32>
    %44 = vector.broadcast %43 : vector<1x96xf32> to vector<128x96xf32>
    %45 = arith.addf %42, %44 : vector<128x96xf32>
    %cst_19 = arith.constant dense<0xFF800000> : vector<128xf32>
    %46 = vector.multi_reduction <maximumf>, %40, %cst_19 [1] : vector<128x10xf32> to vector<128xf32>
    %47 = vector.shape_cast %46 : vector<128xf32> to vector<128x1xf32>
    %48 = vector.broadcast %47 : vector<128x1xf32> to vector<128x10xf32>
    %49 = arith.cmpf oeq, %40, %48 : vector<128x10xf32>
    %c10_i32 = arith.constant 10 : i32
    %50 = vector.broadcast %c10_i32 : i32 to vector<128x10xi32>
    %51 = arith.select %49, %11, %50 : vector<128x10xi1>, vector<128x10xi32>
    %cst_20 = arith.constant dense<2147483647> : vector<128xi32>
    %52 = vector.multi_reduction <minsi>, %51, %cst_20 [1] : vector<128x10xi32> to vector<128xi32>
    %53 = vector.shape_cast %52 : vector<128xi32> to vector<128x1xi32>
    %54 = vector.broadcast %53 : vector<128x1xi32> to vector<128x10xi32>
    %55 = arith.cmpi eq, %11, %54 : vector<128x10xi32>
    %56 = arith.extui %55 : vector<128x10xi1> to vector<128x10xi32>
    %57 = arith.sitofp %56 : vector<128x10xi32> to vector<128x10xf32>
    %c0_21 = arith.constant 0 : index
    %c0_22 = arith.constant 0 : index
    %58 = vector.load %arg5[%c0_21, %c0_22] : memref<10x96xf32, #tpu.memory_space<vmem>>, vector<10x96xf32>
    %cst_23 = arith.constant dense<0.000000e+00> : vector<128x96xf32>
    %59 = tpu.matmul %57, %58, %cst_23 {dimension_numbers = #tpu.dot_dimension_numbers<[1], [0], [0], [1], [0, 0, 1, 1], [], []>} : vector<128x10xf32>, vector<10x96xf32>, vector<128x96xf32> -> vector<128x96xf32>
    %c0_24 = arith.constant 0 : index
    %c0_25 = arith.constant 0 : index
    %60 = vector.load %arg6[%c0_24, %c0_25] : memref<1x96xf32, #tpu.memory_space<vmem>>, vector<1x96xf32>
    %61 = vector.broadcast %60 : vector<1x96xf32> to vector<128x96xf32>
    %62 = arith.addf %59, %61 : vector<128x96xf32>
    %63 = vector.extract_strided_slice %62 {offsets = [0, 0], sizes = [128, 32], strides = [1, 1]} : vector<128x96xf32> to vector<128x32xf32>
    %64 = vector.extract_strided_slice %45 {offsets = [0, 0], sizes = [128, 32], strides = [1, 1]} : vector<128x96xf32> to vector<128x32xf32>
    %65 = arith.addf %63, %64 : vector<128x32xf32>
    %66 = arith.negf %65 : vector<128x32xf32>
    %67 = math.exp %66 : vector<128x32xf32>
    %cst_26 = arith.constant 1.000000e+00 : f32
    %68 = vector.broadcast %cst_26 : f32 to vector<128x32xf32>
    %69 = arith.addf %68, %67 : vector<128x32xf32>
    %70 = arith.divf %68, %69 : vector<128x32xf32>
    %71 = vector.extract_strided_slice %62 {offsets = [0, 32], sizes = [128, 32], strides = [1, 1]} : vector<128x96xf32> to vector<128x32xf32>
    %72 = vector.extract_strided_slice %45 {offsets = [0, 32], sizes = [128, 32], strides = [1, 1]} : vector<128x96xf32> to vector<128x32xf32>
    %73 = arith.addf %71, %72 : vector<128x32xf32>
    %74 = arith.negf %73 : vector<128x32xf32>
    %75 = math.exp %74 : vector<128x32xf32>
    %cst_27 = arith.constant 1.000000e+00 : f32
    %76 = vector.broadcast %cst_27 : f32 to vector<128x32xf32>
    %77 = arith.addf %76, %75 : vector<128x32xf32>
    %78 = arith.divf %76, %77 : vector<128x32xf32>
    %79 = vector.extract_strided_slice %62 {offsets = [0, 64], sizes = [128, 32], strides = [1, 1]} : vector<128x96xf32> to vector<128x32xf32>
    %80 = vector.extract_strided_slice %45 {offsets = [0, 64], sizes = [128, 32], strides = [1, 1]} : vector<128x96xf32> to vector<128x32xf32>
    %81 = arith.mulf %70, %80 : vector<128x32xf32>
    %82 = arith.addf %79, %81 : vector<128x32xf32>
    %83 = math.tanh %82 : vector<128x32xf32>
    %84 = arith.subf %35, %83 : vector<128x32xf32>
    %85 = arith.mulf %78, %84 : vector<128x32xf32>
    %86 = arith.addf %83, %85 : vector<128x32xf32>
    %c0_28 = arith.constant 0 : index
    %c0_29 = arith.constant 0 : index
    %87 = vector.load %arg9[%c0_28, %c0_29] : memref<32x10xf32, #tpu.memory_space<vmem>>, vector<32x10xf32>
    %cst_30 = arith.constant dense<0.000000e+00> : vector<128x10xf32>
    %88 = tpu.matmul %86, %87, %cst_30 {dimension_numbers = #tpu.dot_dimension_numbers<[1], [0], [0], [1], [0, 0, 1, 1], [], []>} : vector<128x32xf32>, vector<32x10xf32>, vector<128x10xf32> -> vector<128x10xf32>
    %c0_31 = arith.constant 0 : index
    %c0_32 = arith.constant 0 : index
    %89 = vector.load %arg10[%c0_31, %c0_32] : memref<1x10xf32, #tpu.memory_space<vmem>>, vector<1x10xf32>
    %90 = vector.broadcast %89 : vector<1x10xf32> to vector<128x10xf32>
    %91 = arith.addf %88, %90 : vector<128x10xf32>
    %c0_33 = arith.constant 0 : index
    %c0_34 = arith.constant 0 : index
    %92 = vector.load %arg7[%c0_33, %c0_34] : memref<32x96xf32, #tpu.memory_space<vmem>>, vector<32x96xf32>
    %cst_35 = arith.constant dense<0.000000e+00> : vector<128x96xf32>
    %93 = tpu.matmul %86, %92, %cst_35 {dimension_numbers = #tpu.dot_dimension_numbers<[1], [0], [0], [1], [0, 0, 1, 1], [], []>} : vector<128x32xf32>, vector<32x96xf32>, vector<128x96xf32> -> vector<128x96xf32>
    %c0_36 = arith.constant 0 : index
    %c0_37 = arith.constant 0 : index
    %94 = vector.load %arg8[%c0_36, %c0_37] : memref<1x96xf32, #tpu.memory_space<vmem>>, vector<1x96xf32>
    %95 = vector.broadcast %94 : vector<1x96xf32> to vector<128x96xf32>
    %96 = arith.addf %93, %95 : vector<128x96xf32>
    %cst_38 = arith.constant dense<0xFF800000> : vector<128xf32>
    %97 = vector.multi_reduction <maximumf>, %91, %cst_38 [1] : vector<128x10xf32> to vector<128xf32>
    %98 = vector.shape_cast %97 : vector<128xf32> to vector<128x1xf32>
    %99 = vector.broadcast %98 : vector<128x1xf32> to vector<128x10xf32>
    %100 = arith.cmpf oeq, %91, %99 : vector<128x10xf32>
    %c10_i32_39 = arith.constant 10 : i32
    %101 = vector.broadcast %c10_i32_39 : i32 to vector<128x10xi32>
    %102 = arith.select %100, %11, %101 : vector<128x10xi1>, vector<128x10xi32>
    %cst_40 = arith.constant dense<2147483647> : vector<128xi32>
    %103 = vector.multi_reduction <minsi>, %102, %cst_40 [1] : vector<128x10xi32> to vector<128xi32>
    %104 = vector.shape_cast %103 : vector<128xi32> to vector<128x1xi32>
    %105 = vector.broadcast %104 : vector<128x1xi32> to vector<128x10xi32>
    %106 = arith.cmpi eq, %11, %105 : vector<128x10xi32>
    %107 = arith.extui %106 : vector<128x10xi1> to vector<128x10xi32>
    %108 = arith.sitofp %107 : vector<128x10xi32> to vector<128x10xf32>
    %c0_41 = arith.constant 0 : index
    %c0_42 = arith.constant 0 : index
    %109 = vector.load %arg5[%c0_41, %c0_42] : memref<10x96xf32, #tpu.memory_space<vmem>>, vector<10x96xf32>
    %cst_43 = arith.constant dense<0.000000e+00> : vector<128x96xf32>
    %110 = tpu.matmul %108, %109, %cst_43 {dimension_numbers = #tpu.dot_dimension_numbers<[1], [0], [0], [1], [0, 0, 1, 1], [], []>} : vector<128x10xf32>, vector<10x96xf32>, vector<128x96xf32> -> vector<128x96xf32>
    %c0_44 = arith.constant 0 : index
    %c0_45 = arith.constant 0 : index
    %111 = vector.load %arg6[%c0_44, %c0_45] : memref<1x96xf32, #tpu.memory_space<vmem>>, vector<1x96xf32>
    %112 = vector.broadcast %111 : vector<1x96xf32> to vector<128x96xf32>
    %113 = arith.addf %110, %112 : vector<128x96xf32>
    %114 = vector.extract_strided_slice %113 {offsets = [0, 0], sizes = [128, 32], strides = [1, 1]} : vector<128x96xf32> to vector<128x32xf32>
    %115 = vector.extract_strided_slice %96 {offsets = [0, 0], sizes = [128, 32], strides = [1, 1]} : vector<128x96xf32> to vector<128x32xf32>
    %116 = arith.addf %114, %115 : vector<128x32xf32>
    %117 = arith.negf %116 : vector<128x32xf32>
    %118 = math.exp %117 : vector<128x32xf32>
    %cst_46 = arith.constant 1.000000e+00 : f32
    %119 = vector.broadcast %cst_46 : f32 to vector<128x32xf32>
    %120 = arith.addf %119, %118 : vector<128x32xf32>
    %121 = arith.divf %119, %120 : vector<128x32xf32>
    %122 = vector.extract_strided_slice %113 {offsets = [0, 32], sizes = [128, 32], strides = [1, 1]} : vector<128x96xf32> to vector<128x32xf32>
    %123 = vector.extract_strided_slice %96 {offsets = [0, 32], sizes = [128, 32], strides = [1, 1]} : vector<128x96xf32> to vector<128x32xf32>
    %124 = arith.addf %122, %123 : vector<128x32xf32>
    %125 = arith.negf %124 : vector<128x32xf32>
    %126 = math.exp %125 : vector<128x32xf32>
    %cst_47 = arith.constant 1.000000e+00 : f32
    %127 = vector.broadcast %cst_47 : f32 to vector<128x32xf32>
    %128 = arith.addf %127, %126 : vector<128x32xf32>
    %129 = arith.divf %127, %128 : vector<128x32xf32>
    %130 = vector.extract_strided_slice %113 {offsets = [0, 64], sizes = [128, 32], strides = [1, 1]} : vector<128x96xf32> to vector<128x32xf32>
    %131 = vector.extract_strided_slice %96 {offsets = [0, 64], sizes = [128, 32], strides = [1, 1]} : vector<128x96xf32> to vector<128x32xf32>
    %132 = arith.mulf %121, %131 : vector<128x32xf32>
    %133 = arith.addf %130, %132 : vector<128x32xf32>
    %134 = math.tanh %133 : vector<128x32xf32>
    %135 = arith.subf %86, %134 : vector<128x32xf32>
    %136 = arith.mulf %129, %135 : vector<128x32xf32>
    %137 = arith.addf %134, %136 : vector<128x32xf32>
    %c0_48 = arith.constant 0 : index
    %c0_49 = arith.constant 0 : index
    %138 = vector.load %arg9[%c0_48, %c0_49] : memref<32x10xf32, #tpu.memory_space<vmem>>, vector<32x10xf32>
    %cst_50 = arith.constant dense<0.000000e+00> : vector<128x10xf32>
    %139 = tpu.matmul %137, %138, %cst_50 {dimension_numbers = #tpu.dot_dimension_numbers<[1], [0], [0], [1], [0, 0, 1, 1], [], []>} : vector<128x32xf32>, vector<32x10xf32>, vector<128x10xf32> -> vector<128x10xf32>
    %c0_51 = arith.constant 0 : index
    %c0_52 = arith.constant 0 : index
    %140 = vector.load %arg10[%c0_51, %c0_52] : memref<1x10xf32, #tpu.memory_space<vmem>>, vector<1x10xf32>
    %141 = vector.broadcast %140 : vector<1x10xf32> to vector<128x10xf32>
    %142 = arith.addf %139, %141 : vector<128x10xf32>
    %c0_53 = arith.constant 0 : index
    %c0_54 = arith.constant 0 : index
    %143 = vector.load %arg7[%c0_53, %c0_54] : memref<32x96xf32, #tpu.memory_space<vmem>>, vector<32x96xf32>
    %cst_55 = arith.constant dense<0.000000e+00> : vector<128x96xf32>
    %144 = tpu.matmul %137, %143, %cst_55 {dimension_numbers = #tpu.dot_dimension_numbers<[1], [0], [0], [1], [0, 0, 1, 1], [], []>} : vector<128x32xf32>, vector<32x96xf32>, vector<128x96xf32> -> vector<128x96xf32>
    %c0_56 = arith.constant 0 : index
    %c0_57 = arith.constant 0 : index
    %145 = vector.load %arg8[%c0_56, %c0_57] : memref<1x96xf32, #tpu.memory_space<vmem>>, vector<1x96xf32>
    %146 = vector.broadcast %145 : vector<1x96xf32> to vector<128x96xf32>
    %147 = arith.addf %144, %146 : vector<128x96xf32>
    %cst_58 = arith.constant dense<0xFF800000> : vector<128xf32>
    %148 = vector.multi_reduction <maximumf>, %142, %cst_58 [1] : vector<128x10xf32> to vector<128xf32>
    %149 = vector.shape_cast %148 : vector<128xf32> to vector<128x1xf32>
    %150 = vector.broadcast %149 : vector<128x1xf32> to vector<128x10xf32>
    %151 = arith.cmpf oeq, %142, %150 : vector<128x10xf32>
    %c10_i32_59 = arith.constant 10 : i32
    %152 = vector.broadcast %c10_i32_59 : i32 to vector<128x10xi32>
    %153 = arith.select %151, %11, %152 : vector<128x10xi1>, vector<128x10xi32>
    %cst_60 = arith.constant dense<2147483647> : vector<128xi32>
    %154 = vector.multi_reduction <minsi>, %153, %cst_60 [1] : vector<128x10xi32> to vector<128xi32>
    %155 = vector.shape_cast %154 : vector<128xi32> to vector<128x1xi32>
    %156 = vector.broadcast %155 : vector<128x1xi32> to vector<128x10xi32>
    %157 = arith.cmpi eq, %11, %156 : vector<128x10xi32>
    %158 = arith.extui %157 : vector<128x10xi1> to vector<128x10xi32>
    %159 = arith.sitofp %158 : vector<128x10xi32> to vector<128x10xf32>
    %c0_61 = arith.constant 0 : index
    %c0_62 = arith.constant 0 : index
    %160 = vector.load %arg5[%c0_61, %c0_62] : memref<10x96xf32, #tpu.memory_space<vmem>>, vector<10x96xf32>
    %cst_63 = arith.constant dense<0.000000e+00> : vector<128x96xf32>
    %161 = tpu.matmul %159, %160, %cst_63 {dimension_numbers = #tpu.dot_dimension_numbers<[1], [0], [0], [1], [0, 0, 1, 1], [], []>} : vector<128x10xf32>, vector<10x96xf32>, vector<128x96xf32> -> vector<128x96xf32>
    %c0_64 = arith.constant 0 : index
    %c0_65 = arith.constant 0 : index
    %162 = vector.load %arg6[%c0_64, %c0_65] : memref<1x96xf32, #tpu.memory_space<vmem>>, vector<1x96xf32>
    %163 = vector.broadcast %162 : vector<1x96xf32> to vector<128x96xf32>
    %164 = arith.addf %161, %163 : vector<128x96xf32>
    %165 = vector.extract_strided_slice %164 {offsets = [0, 0], sizes = [128, 32], strides = [1, 1]} : vector<128x96xf32> to vector<128x32xf32>
    %166 = vector.extract_strided_slice %147 {offsets = [0, 0], sizes = [128, 32], strides = [1, 1]} : vector<128x96xf32> to vector<128x32xf32>
    %167 = arith.addf %165, %166 : vector<128x32xf32>
    %168 = arith.negf %167 : vector<128x32xf32>
    %169 = math.exp %168 : vector<128x32xf32>
    %cst_66 = arith.constant 1.000000e+00 : f32
    %170 = vector.broadcast %cst_66 : f32 to vector<128x32xf32>
    %171 = arith.addf %170, %169 : vector<128x32xf32>
    %172 = arith.divf %170, %171 : vector<128x32xf32>
    %173 = vector.extract_strided_slice %164 {offsets = [0, 32], sizes = [128, 32], strides = [1, 1]} : vector<128x96xf32> to vector<128x32xf32>
    %174 = vector.extract_strided_slice %147 {offsets = [0, 32], sizes = [128, 32], strides = [1, 1]} : vector<128x96xf32> to vector<128x32xf32>
    %175 = arith.addf %173, %174 : vector<128x32xf32>
    %176 = arith.negf %175 : vector<128x32xf32>
    %177 = math.exp %176 : vector<128x32xf32>
    %cst_67 = arith.constant 1.000000e+00 : f32
    %178 = vector.broadcast %cst_67 : f32 to vector<128x32xf32>
    %179 = arith.addf %178, %177 : vector<128x32xf32>
    %180 = arith.divf %178, %179 : vector<128x32xf32>
    %181 = vector.extract_strided_slice %164 {offsets = [0, 64], sizes = [128, 32], strides = [1, 1]} : vector<128x96xf32> to vector<128x32xf32>
    %182 = vector.extract_strided_slice %147 {offsets = [0, 64], sizes = [128, 32], strides = [1, 1]} : vector<128x96xf32> to vector<128x32xf32>
    %183 = arith.mulf %172, %182 : vector<128x32xf32>
    %184 = arith.addf %181, %183 : vector<128x32xf32>
    %185 = math.tanh %184 : vector<128x32xf32>
    %186 = arith.subf %137, %185 : vector<128x32xf32>
    %187 = arith.mulf %180, %186 : vector<128x32xf32>
    %188 = arith.addf %185, %187 : vector<128x32xf32>
    %c0_68 = arith.constant 0 : index
    %c0_69 = arith.constant 0 : index
    %189 = vector.load %arg9[%c0_68, %c0_69] : memref<32x10xf32, #tpu.memory_space<vmem>>, vector<32x10xf32>
    %cst_70 = arith.constant dense<0.000000e+00> : vector<128x10xf32>
    %190 = tpu.matmul %188, %189, %cst_70 {dimension_numbers = #tpu.dot_dimension_numbers<[1], [0], [0], [1], [0, 0, 1, 1], [], []>} : vector<128x32xf32>, vector<32x10xf32>, vector<128x10xf32> -> vector<128x10xf32>
    %c0_71 = arith.constant 0 : index
    %c0_72 = arith.constant 0 : index
    %191 = vector.load %arg10[%c0_71, %c0_72] : memref<1x10xf32, #tpu.memory_space<vmem>>, vector<1x10xf32>
    %192 = vector.broadcast %191 : vector<1x10xf32> to vector<128x10xf32>
    %193 = arith.addf %190, %192 : vector<128x10xf32>
    %c0_73 = arith.constant 0 : index
    %c0_74 = arith.constant 0 : index
    %194 = vector.load %arg7[%c0_73, %c0_74] : memref<32x96xf32, #tpu.memory_space<vmem>>, vector<32x96xf32>
    %cst_75 = arith.constant dense<0.000000e+00> : vector<128x96xf32>
    %195 = tpu.matmul %188, %194, %cst_75 {dimension_numbers = #tpu.dot_dimension_numbers<[1], [0], [0], [1], [0, 0, 1, 1], [], []>} : vector<128x32xf32>, vector<32x96xf32>, vector<128x96xf32> -> vector<128x96xf32>
    %c0_76 = arith.constant 0 : index
    %c0_77 = arith.constant 0 : index
    %196 = vector.load %arg8[%c0_76, %c0_77] : memref<1x96xf32, #tpu.memory_space<vmem>>, vector<1x96xf32>
    %197 = vector.broadcast %196 : vector<1x96xf32> to vector<128x96xf32>
    %198 = arith.addf %195, %197 : vector<128x96xf32>
    %cst_78 = arith.constant dense<0xFF800000> : vector<128xf32>
    %199 = vector.multi_reduction <maximumf>, %193, %cst_78 [1] : vector<128x10xf32> to vector<128xf32>
    %200 = vector.shape_cast %199 : vector<128xf32> to vector<128x1xf32>
    %201 = vector.broadcast %200 : vector<128x1xf32> to vector<128x10xf32>
    %202 = arith.cmpf oeq, %193, %201 : vector<128x10xf32>
    %c10_i32_79 = arith.constant 10 : i32
    %203 = vector.broadcast %c10_i32_79 : i32 to vector<128x10xi32>
    %204 = arith.select %202, %11, %203 : vector<128x10xi1>, vector<128x10xi32>
    %cst_80 = arith.constant dense<2147483647> : vector<128xi32>
    %205 = vector.multi_reduction <minsi>, %204, %cst_80 [1] : vector<128x10xi32> to vector<128xi32>
    %206 = vector.shape_cast %205 : vector<128xi32> to vector<128x1xi32>
    %207 = vector.broadcast %206 : vector<128x1xi32> to vector<128x10xi32>
    %208 = arith.cmpi eq, %11, %207 : vector<128x10xi32>
    %209 = arith.extui %208 : vector<128x10xi1> to vector<128x10xi32>
    %210 = arith.sitofp %209 : vector<128x10xi32> to vector<128x10xf32>
    %c0_81 = arith.constant 0 : index
    %c0_82 = arith.constant 0 : index
    %211 = vector.load %arg5[%c0_81, %c0_82] : memref<10x96xf32, #tpu.memory_space<vmem>>, vector<10x96xf32>
    %cst_83 = arith.constant dense<0.000000e+00> : vector<128x96xf32>
    %212 = tpu.matmul %210, %211, %cst_83 {dimension_numbers = #tpu.dot_dimension_numbers<[1], [0], [0], [1], [0, 0, 1, 1], [], []>} : vector<128x10xf32>, vector<10x96xf32>, vector<128x96xf32> -> vector<128x96xf32>
    %c0_84 = arith.constant 0 : index
    %c0_85 = arith.constant 0 : index
    %213 = vector.load %arg6[%c0_84, %c0_85] : memref<1x96xf32, #tpu.memory_space<vmem>>, vector<1x96xf32>
    %214 = vector.broadcast %213 : vector<1x96xf32> to vector<128x96xf32>
    %215 = arith.addf %212, %214 : vector<128x96xf32>
    %216 = vector.extract_strided_slice %215 {offsets = [0, 0], sizes = [128, 32], strides = [1, 1]} : vector<128x96xf32> to vector<128x32xf32>
    %217 = vector.extract_strided_slice %198 {offsets = [0, 0], sizes = [128, 32], strides = [1, 1]} : vector<128x96xf32> to vector<128x32xf32>
    %218 = arith.addf %216, %217 : vector<128x32xf32>
    %219 = arith.negf %218 : vector<128x32xf32>
    %220 = math.exp %219 : vector<128x32xf32>
    %cst_86 = arith.constant 1.000000e+00 : f32
    %221 = vector.broadcast %cst_86 : f32 to vector<128x32xf32>
    %222 = arith.addf %221, %220 : vector<128x32xf32>
    %223 = arith.divf %221, %222 : vector<128x32xf32>
    %224 = vector.extract_strided_slice %215 {offsets = [0, 32], sizes = [128, 32], strides = [1, 1]} : vector<128x96xf32> to vector<128x32xf32>
    %225 = vector.extract_strided_slice %198 {offsets = [0, 32], sizes = [128, 32], strides = [1, 1]} : vector<128x96xf32> to vector<128x32xf32>
    %226 = arith.addf %224, %225 : vector<128x32xf32>
    %227 = arith.negf %226 : vector<128x32xf32>
    %228 = math.exp %227 : vector<128x32xf32>
    %cst_87 = arith.constant 1.000000e+00 : f32
    %229 = vector.broadcast %cst_87 : f32 to vector<128x32xf32>
    %230 = arith.addf %229, %228 : vector<128x32xf32>
    %231 = arith.divf %229, %230 : vector<128x32xf32>
    %232 = vector.extract_strided_slice %215 {offsets = [0, 64], sizes = [128, 32], strides = [1, 1]} : vector<128x96xf32> to vector<128x32xf32>
    %233 = vector.extract_strided_slice %198 {offsets = [0, 64], sizes = [128, 32], strides = [1, 1]} : vector<128x96xf32> to vector<128x32xf32>
    %234 = arith.mulf %223, %233 : vector<128x32xf32>
    %235 = arith.addf %232, %234 : vector<128x32xf32>
    %236 = math.tanh %235 : vector<128x32xf32>
    %237 = arith.subf %188, %236 : vector<128x32xf32>
    %238 = arith.mulf %231, %237 : vector<128x32xf32>
    %239 = arith.addf %236, %238 : vector<128x32xf32>
    %c0_88 = arith.constant 0 : index
    %c0_89 = arith.constant 0 : index
    %240 = vector.load %arg9[%c0_88, %c0_89] : memref<32x10xf32, #tpu.memory_space<vmem>>, vector<32x10xf32>
    %cst_90 = arith.constant dense<0.000000e+00> : vector<128x10xf32>
    %241 = tpu.matmul %239, %240, %cst_90 {dimension_numbers = #tpu.dot_dimension_numbers<[1], [0], [0], [1], [0, 0, 1, 1], [], []>} : vector<128x32xf32>, vector<32x10xf32>, vector<128x10xf32> -> vector<128x10xf32>
    %c0_91 = arith.constant 0 : index
    %c0_92 = arith.constant 0 : index
    %242 = vector.load %arg10[%c0_91, %c0_92] : memref<1x10xf32, #tpu.memory_space<vmem>>, vector<1x10xf32>
    %243 = vector.broadcast %242 : vector<1x10xf32> to vector<128x10xf32>
    %244 = arith.addf %241, %243 : vector<128x10xf32>
    %245 = tpu.concatenate %40, %91, %142, %193, %244 in 1 : vector<128x10xf32>, vector<128x10xf32>, vector<128x10xf32>, vector<128x10xf32>, vector<128x10xf32> -> vector<128x50xf32>
    %c0_93 = arith.constant 0 : index
    %c0_94 = arith.constant 0 : index
    %246 = vector.load %arg11[%c0_93, %c0_94] : memref<128x50xf32, #tpu.memory_space<vmem>>, vector<128x50xf32>
    tpu.vector_store %arg11[%c0_93, %c0_94], %245 {strides = array<i32>} : memref<128x50xf32, #tpu.memory_space<vmem>>, vector<128x50xf32>,
    return
  }
  func.func @transform_0(%arg0: i32) -> (i32, i32) {
    %c0_i32 = arith.constant 0 : i32
    %c0_i32_0 = arith.constant 0 : i32
    return %arg0, %c0_i32 : i32, i32
  }
  func.func @transform_1(%arg0: i32) -> (i32, i32) {
    %c0_i32 = arith.constant 0 : i32
    %c0_i32_0 = arith.constant 0 : i32
    %c0_i32_1 = arith.constant 0 : i32
    return %c0_i32, %c0_i32_0 : i32, i32
  }
  func.func @transform_2(%arg0: i32) -> (i32, i32) {
    %c0_i32 = arith.constant 0 : i32
    %c0_i32_0 = arith.constant 0 : i32
    %c0_i32_1 = arith.constant 0 : i32
    return %c0_i32, %c0_i32_0 : i32, i32
  }
  func.func @transform_3(%arg0: i32) -> (i32, i32) {
    %c0_i32 = arith.constant 0 : i32
    %c0_i32_0 = arith.constant 0 : i32
    %c0_i32_1 = arith.constant 0 : i32
    return %c0_i32, %c0_i32_0 : i32, i32
  }
  func.func @transform_4(%arg0: i32) -> (i32, i32) {
    %c0_i32 = arith.constant 0 : i32
    %c0_i32_0 = arith.constant 0 : i32
    %c0_i32_1 = arith.constant 0 : i32
    return %c0_i32, %c0_i32_0 : i32, i32
  }
  func.func @transform_5(%arg0: i32) -> (i32, i32) {
    %c0_i32 = arith.constant 0 : i32
    %c0_i32_0 = arith.constant 0 : i32
    %c0_i32_1 = arith.constant 0 : i32
    return %c0_i32, %c0_i32_0 : i32, i32
  }
  func.func @transform_6(%arg0: i32) -> (i32, i32) {
    %c0_i32 = arith.constant 0 : i32
    %c0_i32_0 = arith.constant 0 : i32
    %c0_i32_1 = arith.constant 0 : i32
    return %c0_i32, %c0_i32_0 : i32, i32
  }
  func.func @transform_7(%arg0: i32) -> (i32, i32) {
    %c0_i32 = arith.constant 0 : i32
    %c0_i32_0 = arith.constant 0 : i32
    %c0_i32_1 = arith.constant 0 : i32
    return %c0_i32, %c0_i32_0 : i32, i32
  }
  func.func @transform_8(%arg0: i32) -> (i32, i32) {
    %c0_i32 = arith.constant 0 : i32
    %c0_i32_0 = arith.constant 0 : i32
    %c0_i32_1 = arith.constant 0 : i32
    return %c0_i32, %c0_i32_0 : i32, i32
  }
  func.func @transform_9(%arg0: i32) -> (i32, i32) {
    %c0_i32 = arith.constant 0 : i32
    %c0_i32_0 = arith.constant 0 : i32
    %c0_i32_1 = arith.constant 0 : i32
    return %c0_i32, %c0_i32_0 : i32, i32
  }
  func.func @transform_10(%arg0: i32) -> (i32, i32) {
    %c0_i32 = arith.constant 0 : i32
    %c0_i32_0 = arith.constant 0 : i32
    return %arg0, %c0_i32 : i32, i32
  }
}

</mosaic_0001>

<llo_original>
// kernel: orig_sender_deterministic_pallas.1
$region0: #{orig_sender_deterministic_pallas.1}
  #allocation0 [shape = 'u32[]', space=smem, size = 0x4, offset = 0x4, fixed_abs, tag = 'smem constant byte address 0x4 - core index']
  #allocation1 [shape = 'u32[144,128]{1,0:T(1,128)}', space=vmem, size = 0x12000, scoped, tag = 'internal scratch']
  %s0 = inlined_call_operand.vmem [shape: f32[128,8], index: 0, kind: input, shape index: {}]
  %s1 = inlined_call_operand.vmem [shape: f32[8,128], index: 1, kind: input, shape index: {}]
  %s2 = inlined_call_operand.vmem [shape: f32[1,128], index: 2, kind: input, shape index: {}]
  %s3 = inlined_call_operand.vmem [shape: f32[1,96], index: 3, kind: input, shape index: {}]
  %s4 = inlined_call_operand.vmem [shape: f32[10,96], index: 4, kind: input, shape index: {}]
  %s5 = inlined_call_operand.vmem [shape: f32[1,96], index: 5, kind: input, shape index: {}]
  %s6 = inlined_call_operand.vmem [shape: f32[32,96], index: 6, kind: input, shape index: {}]
  %s7 = inlined_call_operand.vmem [shape: f32[1,96], index: 7, kind: input, shape index: {}]
  %s8 = inlined_call_operand.vmem [shape: f32[32,10], index: 8, kind: input, shape index: {}]
  %s9 = inlined_call_operand.vmem [shape: f32[1,10], index: 9, kind: input, shape index: {}]
  %s10 = inlined_call_operand.vmem [shape: f32[128,50], index: 10, kind: output, shape index: {}]
  %s11 = sld [smem:[#allocation0]]
  $region50: #{orig_sender_deterministic_pallas.1} parent=0
    _
  %s13 = ssub.s32 1, %s11
  %s14 = scalar_select 0, %s13, %s11
  // Predicated region
  $region2: #{orig_sender_deterministic_pallas.1} parent=0 // pred_check
    _
  $region3: #{orig_sender_deterministic_pallas.1} parent=0 // pred_check_branch
    %16 = sbr.rel (0) target = $region5
  $region4: #{orig_sender_deterministic_pallas.1} parent=0 // pred_region
    _
  $region5: #{orig_sender_deterministic_pallas.1} parent=0 // pred_fallthru
    _
  // Predicated region
  $region6: #{orig_sender_deterministic_pallas.1} parent=0 // pred_check
    _
  $region7: #{orig_sender_deterministic_pallas.1} parent=0 // pred_check_branch
    %18 = sbr.rel (0) target = $region9
  $region8: #{orig_sender_deterministic_pallas.1} parent=0 // pred_region
    _
  $region9: #{orig_sender_deterministic_pallas.1} parent=0 // pred_fallthru
    _
  // Predicated region
  $region10: #{orig_sender_deterministic_pallas.1} parent=0 // pred_check
    _
  $region11: #{orig_sender_deterministic_pallas.1} parent=0 // pred_check_branch
    %20 = sbr.rel (0) target = $region13
  $region12: #{orig_sender_deterministic_pallas.1} parent=0 // pred_region
    _
  $region13: #{orig_sender_deterministic_pallas.1} parent=0 // pred_fallthru
    _
  // Predicated region
  $region14: #{orig_sender_deterministic_pallas.1} parent=0 // pred_check
    _
  $region15: #{orig_sender_deterministic_pallas.1} parent=0 // pred_check_branch
    %22 = sbr.rel (0) target = $region17
  $region16: #{orig_sender_deterministic_pallas.1} parent=0 // pred_region
    _
  $region17: #{orig_sender_deterministic_pallas.1} parent=0 // pred_fallthru
    _
  // Predicated region
  $region18: #{orig_sender_deterministic_pallas.1} parent=0 // pred_check
    _
  $region19: #{orig_sender_deterministic_pallas.1} parent=0 // pred_check_branch
    %24 = sbr.rel (0) target = $region21
  $region20: #{orig_sender_deterministic_pallas.1} parent=0 // pred_region
    _
  $region21: #{orig_sender_deterministic_pallas.1} parent=0 // pred_fallthru
    _
  // Predicated region
  $region22: #{orig_sender_deterministic_pallas.1} parent=0 // pred_check
    _
  $region23: #{orig_sender_deterministic_pallas.1} parent=0 // pred_check_branch
    %26 = sbr.rel (0) target = $region25
  $region24: #{orig_sender_deterministic_pallas.1} parent=0 // pred_region
    _
  $region25: #{orig_sender_deterministic_pallas.1} parent=0 // pred_fallthru
    _
  // Predicated region
  $region26: #{orig_sender_deterministic_pallas.1} parent=0 // pred_check
    _
  $region27: #{orig_sender_deterministic_pallas.1} parent=0 // pred_check_branch
    %28 = sbr.rel (0) target = $region29
  $region28: #{orig_sender_deterministic_pallas.1} parent=0 // pred_region
    _
  $region29: #{orig_sender_deterministic_pallas.1} parent=0 // pred_fallthru
    _
  // Predicated region
  $region30: #{orig_sender_deterministic_pallas.1} parent=0 // pred_check
    _
  $region31: #{orig_sender_deterministic_pallas.1} parent=0 // pred_check_branch
    %30 = sbr.rel (0) target = $region33
  $region32: #{orig_sender_deterministic_pallas.1} parent=0 // pred_region
    _
  $region33: #{orig_sender_deterministic_pallas.1} parent=0 // pred_fallthru
    _
  // Predicated region
  $region34: #{orig_sender_deterministic_pallas.1} parent=0 // pred_check
    _
  $region35: #{orig_sender_deterministic_pallas.1} parent=0 // pred_check_branch
    %32 = sbr.rel (0) target = $region37
  $region36: #{orig_sender_deterministic_pallas.1} parent=0 // pred_region
    _
  $region37: #{orig_sender_deterministic_pallas.1} parent=0 // pred_fallthru
    _
  // Predicated region
  $region38: #{orig_sender_deterministic_pallas.1} parent=0 // pred_check
    _
  $region39: #{orig_sender_deterministic_pallas.1} parent=0 // pred_check_branch
    %34 = sbr.rel (0) target = $region41
  $region40: #{orig_sender_deterministic_pallas.1} parent=0 // pred_region
    _
  $region41: #{orig_sender_deterministic_pallas.1} parent=0 // pred_fallthru
    _
  %v35 = vld [vmem:[%s0] sm:$0xff]
  %v36 = vld [vmem:[%s0 + $0x8] sm:$0xff]
  %v37 = vld [vmem:[%s0 + $0x10] sm:$0xff]
  %v38 = vld [vmem:[%s0 + $0x18] sm:$0xff]
  %v39 = vld [vmem:[%s0 + $0x20] sm:$0xff]
  %v40 = vld [vmem:[%s0 + $0x28] sm:$0xff]
  %v41 = vld [vmem:[%s0 + $0x30] sm:$0xff]
  %v42 = vld [vmem:[%s0 + $0x38] sm:$0xff]
  %v43 = vld [vmem:[%s0 + $0x40] sm:$0xff]
  %v44 = vld [vmem:[%s0 + $0x48] sm:$0xff]
  %v45 = vld [vmem:[%s0 + $0x50] sm:$0xff]
  %v46 = vld [vmem:[%s0 + $0x58] sm:$0xff]
  %v47 = vld [vmem:[%s0 + $0x60] sm:$0xff]
  %v48 = vld [vmem:[%s0 + $0x68] sm:$0xff]
  %v49 = vld [vmem:[%s0 + $0x70] sm:$0xff]
  %v50 = vld [vmem:[%s0 + $0x78] sm:$0xff]
  %v51 = vld [vmem:[%s1] sm:$0xff]
  %v52 = vld [vmem:[%s2] sm:$0x1]
  %v54 = vlaneseq
  %v55 = vshrl.u32 %v54, 7
  %v56 = vsub.s32 0, %v55
  %v57 = vrot.slane %v52, %v56
  %vm59 = vcmask 64512
  %v61 = vsel %vm59, %v35, 0
  %v64 = vsel %vm59, %v36, 0
  %v67 = vsel %vm59, %v37, 0
  %v70 = vsel %vm59, %v38, 0
  %v73 = vsel %vm59, %v39, 0
  %v76 = vsel %vm59, %v40, 0
  %v79 = vsel %vm59, %v41, 0
  %v82 = vsel %vm59, %v42, 0
  %v85 = vsel %vm59, %v43, 0
  %v88 = vsel %vm59, %v44, 0
  %v91 = vsel %vm59, %v45, 0
  %v94 = vsel %vm59, %v46, 0
  %v97 = vsel %vm59, %v47, 0
  %v100 = vsel %vm59, %v48, 0
  %v103 = vsel %vm59, %v49, 0
  %v106 = vsel %vm59, %v50, 0
  %108 = vmatprep.subr.mxu0 0.0
  %109 = vmatpush1.msra.mxu0 %v51
  %110 = vmatprep.subr.mxu0 0.0
  %111 = vmatpush1.msra.mxu0 0.0
  %112 = vmatprep.subr.mxu0 0.0
  %113 = vmatpush1.msra.mxu0 0.0
  %114 = vmatprep.subr.mxu0 0.0
  %115 = vmatpush1.msra.mxu0 0.0
  %116 = vmatprep.subr.mxu0 0.0
  %117 = vmatpush1.msra.mxu0 0.0
  %118 = vmatprep.subr.mxu0 0.0
  %119 = vmatpush1.msra.mxu0 0.0
  %120 = vmatprep.subr.mxu0 0.0
  %121 = vmatpush1.msra.mxu0 0.0
  %122 = vmatprep.subr.mxu0 0.0
  %123 = vmatpush1.msra.mxu0 0.0
  %124 = vmatprep.subr.mxu0 0.0
  %125 = vmatpush1.msra.mxu0 0.0
  %126 = vmatprep.subr.mxu0 0.0
  %127 = vmatpush1.msra.mxu0 0.0
  %128 = vmatprep.subr.mxu0 0.0
  %129 = vmatpush1.msra.mxu0 0.0
  %130 = vmatprep.subr.mxu0 0.0
  %131 = vmatpush1.msra.mxu0 0.0
  %132 = vmatprep.subr.mxu0 0.0
  %133 = vmatpush1.msra.mxu0 0.0
  %134 = vmatprep.subr.mxu0 0.0
  %135 = vmatpush1.msra.mxu0 0.0
  %136 = vmatprep.subr.mxu0 0.0
  %137 = vmatpush1.msra.mxu0 0.0
  %138 = vmatprep.subr.mxu0 0.0
  %139 = vmatpush1.msra.mxu0 0.0
  %140 = vmatprep.subr.mxu0 0.0
  %141 = vmatpush1.msra.mxu0 0.0
  %142 = vmatprep.subr.mxu0 0.0
  %143 = vmatpush1.msra.mxu0 0.0
  %144 = vmatprep.subr.mxu0 0.0
  %145 = vmatpush1.msra.mxu0 0.0
  %146 = vmatprep.subr.mxu0 0.0
  %147 = vmatpush1.msra.mxu0 0.0
  %148 = vmatprep.subr.mxu0 0.0
  %149 = vmatpush1.msra.mxu0 0.0
  %150 = vmatprep.subr.mxu0 0.0
  %151 = vmatpush1.msra.mxu0 0.0
  %152 = vmatprep.subr.mxu0 0.0
  %153 = vmatpush1.msra.mxu0 0.0
  %154 = vmatprep.subr.mxu0 0.0
  %155 = vmatpush1.msra.mxu0 0.0
  %156 = vmatprep.subr.mxu0 0.0
  %157 = vmatpush1.msra.mxu0 0.0
  %158 = vmatprep.subr.mxu0 0.0
  %159 = vmatpush1.msra.mxu0 0.0
  %160 = vmatprep.subr.mxu0 0.0
  %161 = vmatpush1.msra.mxu0 0.0
  %162 = vmatprep.subr.mxu0 0.0
  %163 = vmatpush1.msra.mxu0 0.0
  %164 = vmatprep.subr.mxu0 0.0
  %165 = vmatpush1.msra.mxu0 0.0
  %166 = vmatprep.subr.mxu0 0.0
  %167 = vmatpush1.msra.mxu0 0.0
  %168 = vmatprep.subr.mxu0 0.0
  %169 = vmatpush1.msra.mxu0 0.0
  %170 = vmatprep.subr.mxu0 0.0
  %171 = vmatpush1.msra.mxu0 0.0
  %172 = vmatprep.mubr.f32.mxu0 0.0
  %173 = vmatmul.mubr.f32.gmra.mrb[0].mxu0 %v61
  %v174 = vpop.f32.mrb[0].mxu0
  %v175 = vadd.f32 %v57, %v174
  %v176 = vpop.f32.mrb[0].mxu0
  %177 = vmatprep.mubr.f32.mxu0 0.0
  %178 = vmatmul.mubr.f32.gmra.mrb[0].mxu0 %v64
  %v179 = vpop.f32.mrb[0].mxu0
  %v180 = vadd.f32 %v57, %v179
  %v181 = vpop.f32.mrb[0].mxu0
  %182 = vmatprep.mubr.f32.mxu0 0.0
  %183 = vmatmul.mubr.f32.gmra.mrb[0].mxu0 %v67
  %v184 = vpop.f32.mrb[0].mxu0
  %v185 = vadd.f32 %v57, %v184
  %v186 = vpop.f32.mrb[0].mxu0
  %187 = vmatprep.mubr.f32.mxu0 0.0
  %188 = vmatmul.mubr.f32.gmra.mrb[0].mxu0 %v70
  %v189 = vpop.f32.mrb[0].mxu0
  %v190 = vadd.f32 %v57, %v189
  %v191 = vpop.f32.mrb[0].mxu0
  %192 = vmatprep.mubr.f32.mxu0 0.0
  %193 = vmatmul.mubr.f32.gmra.mrb[0].mxu0 %v73
  %v194 = vpop.f32.mrb[0].mxu0
  %v195 = vadd.f32 %v57, %v194
  %v196 = vpop.f32.mrb[0].mxu0
  %197 = vmatprep.mubr.f32.mxu0 0.0
  %198 = vmatmul.mubr.f32.gmra.mrb[0].mxu0 %v76
  %v199 = vpop.f32.mrb[0].mxu0
  %v200 = vadd.f32 %v57, %v199
  %v201 = vpop.f32.mrb[0].mxu0
  %202 = vmatprep.mubr.f32.mxu0 0.0
  %203 = vmatmul.mubr.f32.gmra.mrb[0].mxu0 %v79
  %v204 = vpop.f32.mrb[0].mxu0
  %v205 = vadd.f32 %v57, %v204
  %v206 = vpop.f32.mrb[0].mxu0
  %207 = vmatprep.mubr.f32.mxu0 0.0
  %208 = vmatmul.mubr.f32.gmra.mrb[0].mxu0 %v82
  %v209 = vpop.f32.mrb[0].mxu0
  %v210 = vadd.f32 %v57, %v209
  %v211 = vpop.f32.mrb[0].mxu0
  %212 = vmatprep.mubr.f32.mxu0 0.0
  %213 = vmatmul.mubr.f32.gmra.mrb[0].mxu0 %v85
  %v214 = vpop.f32.mrb[0].mxu0
  %v215 = vadd.f32 %v57, %v214
  %v216 = vpop.f32.mrb[0].mxu0
  %217 = vmatprep.mubr.f32.mxu0 0.0
  %218 = vmatmul.mubr.f32.gmra.mrb[0].mxu0 %v88
  %v219 = vpop.f32.mrb[0].mxu0
  %v220 = vadd.f32 %v57, %v219
  %v221 = vpop.f32.mrb[0].mxu0
  %222 = vmatprep.mubr.f32.mxu0 0.0
  %223 = vmatmul.mubr.f32.gmra.mrb[0].mxu0 %v91
  %v224 = vpop.f32.mrb[0].mxu0
  %v225 = vadd.f32 %v57, %v224
  %v226 = vpop.f32.mrb[0].mxu0
  %227 = vmatprep.mubr.f32.mxu0 0.0
  %228 = vmatmul.mubr.f32.gmra.mrb[0].mxu0 %v94
  %v229 = vpop.f32.mrb[0].mxu0
  %v230 = vadd.f32 %v57, %v229
  %v231 = vpop.f32.mrb[0].mxu0
  %232 = vmatprep.mubr.f32.mxu0 0.0
  %233 = vmatmul.mubr.f32.gmra.mrb[0].mxu0 %v97
  %v234 = vpop.f32.mrb[0].mxu0
  %v235 = vadd.f32 %v57, %v234
  %v236 = vpop.f32.mrb[0].mxu0
  %237 = vmatprep.mubr.f32.mxu0 0.0
  %238 = vmatmul.mubr.f32.gmra.mrb[0].mxu0 %v100
  %v239 = vpop.f32.mrb[0].mxu0
  %v240 = vadd.f32 %v57, %v239
  %v241 = vpop.f32.mrb[0].mxu0
  %242 = vmatprep.mubr.f32.mxu0 0.0
  %243 = vmatmul.mubr.f32.gmra.mrb[0].mxu0 %v103
  %v244 = vpop.f32.mrb[0].mxu0
  %v245 = vadd.f32 %v57, %v244
  %v246 = vpop.f32.mrb[0].mxu0
  %247 = vmatprep.mubr.f32.mxu0 0.0
  %248 = vmatmul.mubr.f32.gmra.mrb[0].mxu0 %v106
  %v249 = vpop.f32.mrb[0].mxu0
  %v250 = vadd.f32 %v57, %v249
  %v251 = vpop.f32.mrb[0].mxu0
  %252 = vdwg.mxu0
  %v253 = vld [vmem:[%s3] sm:$0x1]
  %v254 = vlaneseq
  %v255 = vand.u32 %v254, 127
  %v257 = vlaneseq
  %v258 = vshrl.u32 %v257, 7
  %v259 = vsub.s32 0, %v258
  %v260 = vrot.slane %v253, %v259
  %278 = vrot.lane.b32.xlu0 %v175, 96
  %v279 = vpop.permute.xlu0 %278
  %280 = vrot.lane.b32.xlu0 %v180, 96
  %v281 = vpop.permute.xlu0 %280
  %282 = vrot.lane.b32.xlu0 %v185, 96
  %v283 = vpop.permute.xlu0 %282
  %284 = vrot.lane.b32.xlu0 %v190, 96
  %v285 = vpop.permute.xlu0 %284
  %286 = vrot.lane.b32.xlu0 %v195, 96
  %v287 = vpop.permute.xlu0 %286
  %288 = vrot.lane.b32.xlu0 %v200, 96
  %v289 = vpop.permute.xlu0 %288
  %290 = vrot.lane.b32.xlu0 %v205, 96
  %v291 = vpop.permute.xlu0 %290
  %292 = vrot.lane.b32.xlu0 %v210, 96
  %v293 = vpop.permute.xlu0 %292
  %294 = vrot.lane.b32.xlu0 %v215, 96
  %v295 = vpop.permute.xlu0 %294
  %296 = vrot.lane.b32.xlu0 %v220, 96
  %v297 = vpop.permute.xlu0 %296
  %298 = vrot.lane.b32.xlu0 %v225, 96
  %v299 = vpop.permute.xlu0 %298
  %300 = vrot.lane.b32.xlu0 %v230, 96
  %v301 = vpop.permute.xlu0 %300
  %302 = vrot.lane.b32.xlu0 %v235, 96
  %v303 = vpop.permute.xlu0 %302
  %304 = vrot.lane.b32.xlu0 %v240, 96
  %v305 = vpop.permute.xlu0 %304
  %306 = vrot.lane.b32.xlu0 %v245, 96
  %v307 = vpop.permute.xlu0 %306
  %308 = vrot.lane.b32.xlu0 %v250, 96
  %v309 = vpop.permute.xlu0 %308
  %v326 = vadd.f32 %v260, %v279
  %v327 = vadd.f32 %v260, %v281
  %v328 = vadd.f32 %v260, %v283
  %v329 = vadd.f32 %v260, %v285
  %v330 = vadd.f32 %v260, %v287
  %v331 = vadd.f32 %v260, %v289
  %v332 = vadd.f32 %v260, %v291
  %v333 = vadd.f32 %v260, %v293
  %v334 = vadd.f32 %v260, %v295
  %v335 = vadd.f32 %v260, %v297
  %v336 = vadd.f32 %v260, %v299
  %v337 = vadd.f32 %v260, %v301
  %v338 = vadd.f32 %v260, %v303
  %v339 = vadd.f32 %v260, %v305
  %v340 = vadd.f32 %v260, %v307
  %v341 = vadd.f32 %v260, %v309
  %v342 = vxor.u32 %v326, 2147483648
  %v343 = vxor.u32 %v327, 2147483648
  %v344 = vxor.u32 %v328, 2147483648
  %v345 = vxor.u32 %v329, 2147483648
  %v346 = vxor.u32 %v330, 2147483648
  %v347 = vxor.u32 %v331, 2147483648
  %v348 = vxor.u32 %v332, 2147483648
  %v349 = vxor.u32 %v333, 2147483648
  %v350 = vxor.u32 %v334, 2147483648
  %v351 = vxor.u32 %v335, 2147483648
  %v352 = vxor.u32 %v336, 2147483648
  %v353 = vxor.u32 %v337, 2147483648
  %v354 = vxor.u32 %v338, 2147483648
  %v355 = vxor.u32 %v339, 2147483648
  %v356 = vxor.u32 %v340, 2147483648
  %v357 = vxor.u32 %v341, 2147483648
  %v358 = vmul.f32 %v342, 1.442695
  %v359 = vpow.pop %v358
  %v360 = vmul.f32 %v343, 1.442695
  %v361 = vpow.pop %v360
  %v362 = vmul.f32 %v344, 1.442695
  %v363 = vpow.pop %v362
  %v364 = vmul.f32 %v345, 1.442695
  %v365 = vpow.pop %v364
  %v366 = vmul.f32 %v346, 1.442695
  %v367 = vpow.pop %v366
  %v368 = vmul.f32 %v347, 1.442695
  %v369 = vpow.pop %v368
  %v370 = vmul.f32 %v348, 1.442695
  %v371 = vpow.pop %v370
  %v372 = vmul.f32 %v349, 1.442695
  %v373 = vpow.pop %v372
  %v374 = vmul.f32 %v350, 1.442695
  %v375 = vpow.pop %v374
  %v376 = vmul.f32 %v351, 1.442695
  %v377 = vpow.pop %v376
  %v378 = vmul.f32 %v352, 1.442695
  %v379 = vpow.pop %v378
  %v380 = vmul.f32 %v353, 1.442695
  %v381 = vpow.pop %v380
  %v382 = vmul.f32 %v354, 1.442695
  %v383 = vpow.pop %v382
  %v384 = vmul.f32 %v355, 1.442695
  %v385 = vpow.pop %v384
  %v386 = vmul.f32 %v356, 1.442695
  %v387 = vpow.pop %v386
  %v388 = vmul.f32 %v357, 1.442695
  %v389 = vpow.pop %v388
  %v390 = vadd.f32 %v359, 1.0
  %v391 = vadd.f32 %v361, 1.0
  %v392 = vadd.f32 %v363, 1.0
  %v393 = vadd.f32 %v365, 1.0
  %v394 = vadd.f32 %v367, 1.0
  %v395 = vadd.f32 %v369, 1.0
  %v396 = vadd.f32 %v371, 1.0
  %v397 = vadd.f32 %v373, 1.0
  %v398 = vadd.f32 %v375, 1.0
  %v399 = vadd.f32 %v377, 1.0
  %v400 = vadd.f32 %v379, 1.0
  %v401 = vadd.f32 %v381, 1.0
  %v402 = vadd.f32 %v383, 1.0
  %v403 = vadd.f32 %v385, 1.0
  %v404 = vadd.f32 %v387, 1.0
  %v405 = vadd.f32 %v389, 1.0
  %v406 = vrcp.pop %v390
  %v407 = vmul.f32 1.0, %v406
  %v408 = vrcp.pop %v391
  %v409 = vmul.f32 1.0, %v408
  %v410 = vrcp.pop %v392
  %v411 = vmul.f32 1.0, %v410
  %v412 = vrcp.pop %v393
  %v413 = vmul.f32 1.0, %v412
  %v414 = vrcp.pop %v394
  %v415 = vmul.f32 1.0, %v414
  %v416 = vrcp.pop %v395
  %v417 = vmul.f32 1.0, %v416
  %v418 = vrcp.pop %v396
  %v419 = vmul.f32 1.0, %v418
  %v420 = vrcp.pop %v397
  %v421 = vmul.f32 1.0, %v420
  %v422 = vrcp.pop %v398
  %v423 = vmul.f32 1.0, %v422
  %v424 = vrcp.pop %v399
  %v425 = vmul.f32 1.0, %v424
  %v426 = vrcp.pop %v400
  %v427 = vmul.f32 1.0, %v426
  %v428 = vrcp.pop %v401
  %v429 = vmul.f32 1.0, %v428
  %v430 = vrcp.pop %v402
  %v431 = vmul.f32 1.0, %v430
  %v432 = vrcp.pop %v403
  %v433 = vmul.f32 1.0, %v432
  %v434 = vrcp.pop %v404
  %v435 = vmul.f32 1.0, %v434
  %v436 = vrcp.pop %v405
  %v437 = vmul.f32 1.0, %v436
  %438 = vrot.lane.b32.xlu0 %v175, 32
  %v439 = vpop.permute.xlu0 %438
  %440 = vrot.lane.b32.xlu0 %v180, 32
  %v441 = vpop.permute.xlu0 %440
  %442 = vrot.lane.b32.xlu0 %v185, 32
  %v443 = vpop.permute.xlu0 %442
  %444 = vrot.lane.b32.xlu0 %v190, 32
  %v445 = vpop.permute.xlu0 %444
  %446 = vrot.lane.b32.xlu0 %v195, 32
  %v447 = vpop.permute.xlu0 %446
  %448 = vrot.lane.b32.xlu0 %v200, 32
  %v449 = vpop.permute.xlu0 %448
  %450 = vrot.lane.b32.xlu0 %v205, 32
  %v451 = vpop.permute.xlu0 %450
  %452 = vrot.lane.b32.xlu0 %v210, 32
  %v453 = vpop.permute.xlu0 %452
  %454 = vrot.lane.b32.xlu0 %v215, 32
  %v455 = vpop.permute.xlu0 %454
  %456 = vrot.lane.b32.xlu0 %v220, 32
  %v457 = vpop.permute.xlu0 %456
  %458 = vrot.lane.b32.xlu0 %v225, 32
  %v459 = vpop.permute.xlu0 %458
  %460 = vrot.lane.b32.xlu0 %v230, 32
  %v461 = vpop.permute.xlu0 %460
  %462 = vrot.lane.b32.xlu0 %v235, 32
  %v463 = vpop.permute.xlu0 %462
  %464 = vrot.lane.b32.xlu0 %v240, 32
  %v465 = vpop.permute.xlu0 %464
  %466 = vrot.lane.b32.xlu0 %v245, 32
  %v467 = vpop.permute.xlu0 %466
  %468 = vrot.lane.b32.xlu0 %v250, 32
  %v469 = vpop.permute.xlu0 %468
  %v486 = vmul.f32 %v407, %v439
  %v487 = vmul.f32 %v409, %v441
  %v488 = vmul.f32 %v411, %v443
  %v489 = vmul.f32 %v413, %v445
  %v490 = vmul.f32 %v415, %v447
  %v491 = vmul.f32 %v417, %v449
  %v492 = vmul.f32 %v419, %v451
  %v493 = vmul.f32 %v421, %v453
  %v494 = vmul.f32 %v423, %v455
  %v495 = vmul.f32 %v425, %v457
  %v496 = vmul.f32 %v427, %v459
  %v497 = vmul.f32 %v429, %v461
  %v498 = vmul.f32 %v431, %v463
  %v499 = vmul.f32 %v433, %v465
  %v500 = vmul.f32 %v435, %v467
  %v501 = vmul.f32 %v437, %v469
  %518 = vrot.lane.b32.xlu0 %v486, 64
  %v519 = vpop.permute.xlu0 %518
  %520 = vrot.lane.b32.xlu0 %v487, 64
  %v521 = vpop.permute.xlu0 %520
  %522 = vrot.lane.b32.xlu0 %v488, 64
  %v523 = vpop.permute.xlu0 %522
  %524 = vrot.lane.b32.xlu0 %v489, 64
  %v525 = vpop.permute.xlu0 %524
  %526 = vrot.lane.b32.xlu0 %v490, 64
  %v527 = vpop.permute.xlu0 %526
  %528 = vrot.lane.b32.xlu0 %v491, 64
  %v529 = vpop.permute.xlu0 %528
  %530 = vrot.lane.b32.xlu0 %v492, 64
  %v531 = vpop.permute.xlu0 %530
  %532 = vrot.lane.b32.xlu0 %v493, 64
  %v533 = vpop.permute.xlu0 %532
  %534 = vrot.lane.b32.xlu0 %v494, 64
  %v535 = vpop.permute.xlu0 %534
  %536 = vrot.lane.b32.xlu0 %v495, 64
  %v537 = vpop.permute.xlu0 %536
  %538 = vrot.lane.b32.xlu0 %v496, 64
  %v539 = vpop.permute.xlu0 %538
  %540 = vrot.lane.b32.xlu0 %v497, 64
  %v541 = vpop.permute.xlu0 %540
  %542 = vrot.lane.b32.xlu0 %v498, 64
  %v543 = vpop.permute.xlu0 %542
  %544 = vrot.lane.b32.xlu0 %v499, 64
  %v545 = vpop.permute.xlu0 %544
  %546 = vrot.lane.b32.xlu0 %v500, 64
  %v547 = vpop.permute.xlu0 %546
  %548 = vrot.lane.b32.xlu0 %v501, 64
  %v549 = vpop.permute.xlu0 %548
  %v566 = vadd.f32 %v260, %v519
  %v567 = vadd.f32 %v260, %v521
  %v568 = vadd.f32 %v260, %v523
  %v569 = vadd.f32 %v260, %v525
  %v570 = vadd.f32 %v260, %v527
  %v571 = vadd.f32 %v260, %v529
  %v572 = vadd.f32 %v260, %v531
  %v573 = vadd.f32 %v260, %v533
  %v574 = vadd.f32 %v260, %v535
  %v575 = vadd.f32 %v260, %v537
  %v576 = vadd.f32 %v260, %v539
  %v577 = vadd.f32 %v260, %v541
  %v578 = vadd.f32 %v260, %v543
  %v579 = vadd.f32 %v260, %v545
  %v580 = vadd.f32 %v260, %v547
  %v581 = vadd.f32 %v260, %v549
  %v582 = vtanh.pop %v566
  %v583 = vtanh.pop %v567
  %v584 = vtanh.pop %v568
  %v585 = vtanh.pop %v569
  %v586 = vtanh.pop %v570
  %v587 = vtanh.pop %v571
  %v588 = vtanh.pop %v572
  %v589 = vtanh.pop %v573
  %v590 = vtanh.pop %v574
  %v591 = vtanh.pop %v575
  %v592 = vtanh.pop %v576
  %v593 = vtanh.pop %v577
  %v594 = vtanh.pop %v578
  %v595 = vtanh.pop %v579
  %v596 = vtanh.pop %v580
  %v597 = vtanh.pop %v581
  %614 = vrot.lane.b32.xlu0 %v582, 64
  %v615 = vpop.permute.xlu0 %614
  %616 = vrot.lane.b32.xlu0 %v583, 64
  %v617 = vpop.permute.xlu0 %616
  %618 = vrot.lane.b32.xlu0 %v584, 64
  %v619 = vpop.permute.xlu0 %618
  %620 = vrot.lane.b32.xlu0 %v585, 64
  %v621 = vpop.permute.xlu0 %620
  %622 = vrot.lane.b32.xlu0 %v586, 64
  %v623 = vpop.permute.xlu0 %622
  %624 = vrot.lane.b32.xlu0 %v587, 64
  %v625 = vpop.permute.xlu0 %624
  %626 = vrot.lane.b32.xlu0 %v588, 64
  %v627 = vpop.permute.xlu0 %626
  %628 = vrot.lane.b32.xlu0 %v589, 64
  %v629 = vpop.permute.xlu0 %628
  %630 = vrot.lane.b32.xlu0 %v590, 64
  %v631 = vpop.permute.xlu0 %630
  %632 = vrot.lane.b32.xlu0 %v591, 64
  %v633 = vpop.permute.xlu0 %632
  %634 = vrot.lane.b32.xlu0 %v592, 64
  %v635 = vpop.permute.xlu0 %634
  %636 = vrot.lane.b32.xlu0 %v593, 64
  %v637 = vpop.permute.xlu0 %636
  %638 = vrot.lane.b32.xlu0 %v594, 64
  %v639 = vpop.permute.xlu0 %638
  %640 = vrot.lane.b32.xlu0 %v595, 64
  %v641 = vpop.permute.xlu0 %640
  %642 = vrot.lane.b32.xlu0 %v596, 64
  %v643 = vpop.permute.xlu0 %642
  %644 = vrot.lane.b32.xlu0 %v597, 64
  %v645 = vpop.permute.xlu0 %644
  %v662 = vsub.f32 %v175, %v615
  %v663 = vsub.f32 %v180, %v617
  %v664 = vsub.f32 %v185, %v619
  %v665 = vsub.f32 %v190, %v621
  %v666 = vsub.f32 %v195, %v623
  %v667 = vsub.f32 %v200, %v625
  %v668 = vsub.f32 %v205, %v627
  %v669 = vsub.f32 %v210, %v629
  %v670 = vsub.f32 %v215, %v631
  %v671 = vsub.f32 %v220, %v633
  %v672 = vsub.f32 %v225, %v635
  %v673 = vsub.f32 %v230, %v637
  %v674 = vsub.f32 %v235, %v639
  %v675 = vsub.f32 %v240, %v641
  %v676 = vsub.f32 %v245, %v643
  %v677 = vsub.f32 %v250, %v645
  %694 = vrot.lane.b32.xlu0 %v662, 32
  %v695 = vpop.permute.xlu0 %694
  %696 = vrot.lane.b32.xlu0 %v663, 32
  %v697 = vpop.permute.xlu0 %696
  %698 = vrot.lane.b32.xlu0 %v664, 32
  %v699 = vpop.permute.xlu0 %698
  %700 = vrot.lane.b32.xlu0 %v665, 32
  %v701 = vpop.permute.xlu0 %700
  %702 = vrot.lane.b32.xlu0 %v666, 32
  %v703 = vpop.permute.xlu0 %702
  %704 = vrot.lane.b32.xlu0 %v667, 32
  %v705 = vpop.permute.xlu0 %704
  %706 = vrot.lane.b32.xlu0 %v668, 32
  %v707 = vpop.permute.xlu0 %706
  %708 = vrot.lane.b32.xlu0 %v669, 32
  %v709 = vpop.permute.xlu0 %708
  %710 = vrot.lane.b32.xlu0 %v670, 32
  %v711 = vpop.permute.xlu0 %710
  %712 = vrot.lane.b32.xlu0 %v671, 32
  %v713 = vpop.permute.xlu0 %712
  %714 = vrot.lane.b32.xlu0 %v672, 32
  %v715 = vpop.permute.xlu0 %714
  %716 = vrot.lane.b32.xlu0 %v673, 32
  %v717 = vpop.permute.xlu0 %716
  %718 = vrot.lane.b32.xlu0 %v674, 32
  %v719 = vpop.permute.xlu0 %718
  %720 = vrot.lane.b32.xlu0 %v675, 32
  %v721 = vpop.permute.xlu0 %720
  %722 = vrot.lane.b32.xlu0 %v676, 32
  %v723 = vpop.permute.xlu0 %722
  %724 = vrot.lane.b32.xlu0 %v677, 32
  %v725 = vpop.permute.xlu0 %724
  %v742 = vmul.f32 %v407, %v695
  %v743 = vmul.f32 %v409, %v697
  %v744 = vmul.f32 %v411, %v699
  %v745 = vmul.f32 %v413, %v701
  %v746 = vmul.f32 %v415, %v703
  %v747 = vmul.f32 %v417, %v705
  %v748 = vmul.f32 %v419, %v707
  %v749 = vmul.f32 %v421, %v709
  %v750 = vmul.f32 %v423, %v711
  %v751 = vmul.f32 %v425, %v713
  %v752 = vmul.f32 %v427, %v715
  %v753 = vmul.f32 %v429, %v717
  %v754 = vmul.f32 %v431, %v719
  %v755 = vmul.f32 %v433, %v721
  %v756 = vmul.f32 %v435, %v723
  %v757 = vmul.f32 %v437, %v725
  %774 = vrot.lane.b32.xlu0 %v742, 32
  %v775 = vpop.permute.xlu0 %774
  %776 = vrot.lane.b32.xlu0 %v743, 32
  %v777 = vpop.permute.xlu0 %776
  %778 = vrot.lane.b32.xlu0 %v744, 32
  %v779 = vpop.permute.xlu0 %778
  %780 = vrot.lane.b32.xlu0 %v745, 32
  %v781 = vpop.permute.xlu0 %780
  %782 = vrot.lane.b32.xlu0 %v746, 32
  %v783 = vpop.permute.xlu0 %782
  %784 = vrot.lane.b32.xlu0 %v747, 32
  %v785 = vpop.permute.xlu0 %784
  %786 = vrot.lane.b32.xlu0 %v748, 32
  %v787 = vpop.permute.xlu0 %786
  %788 = vrot.lane.b32.xlu0 %v749, 32
  %v789 = vpop.permute.xlu0 %788
  %790 = vrot.lane.b32.xlu0 %v750, 32
  %v791 = vpop.permute.xlu0 %790
  %792 = vrot.lane.b32.xlu0 %v751, 32
  %v793 = vpop.permute.xlu0 %792
  %794 = vrot.lane.b32.xlu0 %v752, 32
  %v795 = vpop.permute.xlu0 %794
  %796 = vrot.lane.b32.xlu0 %v753, 32
  %v797 = vpop.permute.xlu0 %796
  %798 = vrot.lane.b32.xlu0 %v754, 32
  %v799 = vpop.permute.xlu0 %798
  %800 = vrot.lane.b32.xlu0 %v755, 32
  %v801 = vpop.permute.xlu0 %800
  %802 = vrot.lane.b32.xlu0 %v756, 32
  %v803 = vpop.permute.xlu0 %802
  %804 = vrot.lane.b32.xlu0 %v757, 32
  %v805 = vpop.permute.xlu0 %804
  %v822 = vadd.f32 %v582, %v775
  %v823 = vadd.f32 %v583, %v777
  %v824 = vadd.f32 %v584, %v779
  %v825 = vadd.f32 %v585, %v781
  %v826 = vadd.f32 %v586, %v783
  %v827 = vadd.f32 %v587, %v785
  %v828 = vadd.f32 %v588, %v787
  %v829 = vadd.f32 %v589, %v789
  %v830 = vadd.f32 %v590, %v791
  %v831 = vadd.f32 %v591, %v793
  %v832 = vadd.f32 %v592, %v795
  %v833 = vadd.f32 %v593, %v797
  %v834 = vadd.f32 %v594, %v799
  %v835 = vadd.f32 %v595, %v801
  %v836 = vadd.f32 %v596, %v803
  %v837 = vadd.f32 %v597, %v805
  %v838 = vld [vmem:[%s8] sm:$0xff]
  %v839 = vld [vmem:[%s8 + $0x8] sm:$0xff]
  %v840 = vld [vmem:[%s8 + $0x10] sm:$0xff]
  %v841 = vld [vmem:[%s8 + $0x18] sm:$0xff]
  %v842 = vld [vmem:[%s9] sm:$0x1]
  %v844 = vlaneseq
  %v845 = vshrl.u32 %v844, 7
  %v846 = vsub.s32 0, %v845
  %v847 = vrot.slane %v842, %v846
  %865 = vrot.lane.b32.xlu0 %v822, 64
  %v866 = vpop.permute.xlu0 %865
  %867 = vrot.lane.b32.xlu0 %v823, 64
  %v868 = vpop.permute.xlu0 %867
  %869 = vrot.lane.b32.xlu0 %v824, 64
  %v870 = vpop.permute.xlu0 %869
  %871 = vrot.lane.b32.xlu0 %v825, 64
  %v872 = vpop.permute.xlu0 %871
  %873 = vrot.lane.b32.xlu0 %v826, 64
  %v874 = vpop.permute.xlu0 %873
  %875 = vrot.lane.b32.xlu0 %v827, 64
  %v876 = vpop.permute.xlu0 %875
  %877 = vrot.lane.b32.xlu0 %v828, 64
  %v878 = vpop.permute.xlu0 %877
  %879 = vrot.lane.b32.xlu0 %v829, 64
  %v880 = vpop.permute.xlu0 %879
  %881 = vrot.lane.b32.xlu0 %v830, 64
  %v882 = vpop.permute.xlu0 %881
  %883 = vrot.lane.b32.xlu0 %v831, 64
  %v884 = vpop.permute.xlu0 %883
  %885 = vrot.lane.b32.xlu0 %v832, 64
  %v886 = vpop.permute.xlu0 %885
  %887 = vrot.lane.b32.xlu0 %v833, 64
  %v888 = vpop.permute.xlu0 %887
  %889 = vrot.lane.b32.xlu0 %v834, 64
  %v890 = vpop.permute.xlu0 %889
  %891 = vrot.lane.b32.xlu0 %v835, 64
  %v892 = vpop.permute.xlu0 %891
  %893 = vrot.lane.b32.xlu0 %v836, 64
  %v894 = vpop.permute.xlu0 %893
  %895 = vrot.lane.b32.xlu0 %v837, 64
  %v896 = vpop.permute.xlu0 %895
  %vm897 = vcmask 261120
  %v898 = vsel %vm897, %v866, 0
  %v900 = vsel %vm897, %v868, 0
  %v902 = vsel %vm897, %v870, 0
  %v904 = vsel %vm897, %v872, 0
  %v906 = vsel %vm897, %v874, 0
  %v908 = vsel %vm897, %v876, 0
  %v910 = vsel %vm897, %v878, 0
  %v912 = vsel %vm897, %v880, 0
  %v914 = vsel %vm897, %v882, 0
  %v916 = vsel %vm897, %v884, 0
  %v918 = vsel %vm897, %v886, 0
  %v920 = vsel %vm897, %v888, 0
  %v922 = vsel %vm897, %v890, 0
  %v924 = vsel %vm897, %v892, 0
  %v926 = vsel %vm897, %v894, 0
  %v928 = vsel %vm897, %v896, 0
  %930 = vmatprep.subr.mxu0 0.0
  %931 = vmatpush1.msra.mxu0 %v838
  %932 = vmatprep.subr.mxu0 0.0
  %933 = vmatpush1.msra.mxu0 %v839
  %934 = vmatprep.subr.mxu0 0.0
  %935 = vmatpush1.msra.mxu0 %v840
  %936 = vmatprep.subr.mxu0 0.0
  %937 = vmatpush1.msra.mxu0 %v841
  %938 = vmatprep.subr.mxu0 0.0
  %939 = vmatpush1.msra.mxu0 0.0
  %940 = vmatprep.subr.mxu0 0.0
  %941 = vmatpush1.msra.mxu0 0.0
  %942 = vmatprep.subr.mxu0 0.0
  %943 = vmatpush1.msra.mxu0 0.0
  %944 = vmatprep.subr.mxu0 0.0
  %945 = vmatpush1.msra.mxu0 0.0
  %946 = vmatprep.subr.mxu0 0.0
  %947 = vmatpush1.msra.mxu0 0.0
  %948 = vmatprep.subr.mxu0 0.0
  %949 = vmatpush1.msra.mxu0 0.0
  %950 = vmatprep.subr.mxu0 0.0
  %951 = vmatpush1.msra.mxu0 0.0
  %952 = vmatprep.subr.mxu0 0.0
  %953 = vmatpush1.msra.mxu0 0.0
  %954 = vmatprep.subr.mxu0 0.0
  %955 = vmatpush1.msra.mxu0 0.0
  %956 = vmatprep.subr.mxu0 0.0
  %957 = vmatpush1.msra.mxu0 0.0
  %958 = vmatprep.subr.mxu0 0.0
  %959 = vmatpush1.msra.mxu0 0.0
  %960 = vmatprep.subr.mxu0 0.0
  %961 = vmatpush1.msra.mxu0 0.0
  %962 = vmatprep.subr.mxu0 0.0
  %963 = vmatpush1.msra.mxu0 0.0
  %964 = vmatprep.subr.mxu0 0.0
  %965 = vmatpush1.msra.mxu0 0.0
  %966 = vmatprep.subr.mxu0 0.0
  %967 = vmatpush1.msra.mxu0 0.0
  %968 = vmatprep.subr.mxu0 0.0
  %969 = vmatpush1.msra.mxu0 0.0
  %970 = vmatprep.subr.mxu0 0.0
  %971 = vmatpush1.msra.mxu0 0.0
  %972 = vmatprep.subr.mxu0 0.0
  %973 = vmatpush1.msra.mxu0 0.0
  %974 = vmatprep.subr.mxu0 0.0
  %975 = vmatpush1.msra.mxu0 0.0
  %976 = vmatprep.subr.mxu0 0.0
  %977 = vmatpush1.msra.mxu0 0.0
  %978 = vmatprep.subr.mxu0 0.0
  %979 = vmatpush1.msra.mxu0 0.0
  %980 = vmatprep.subr.mxu0 0.0
  %981 = vmatpush1.msra.mxu0 0.0
  %982 = vmatprep.subr.mxu0 0.0
  %983 = vmatpush1.msra.mxu0 0.0
  %984 = vmatprep.subr.mxu0 0.0
  %985 = vmatpush1.msra.mxu0 0.0
  %986 = vmatprep.subr.mxu0 0.0
  %987 = vmatpush1.msra.mxu0 0.0
  %988 = vmatprep.subr.mxu0 0.0
  %989 = vmatpush1.msra.mxu0 0.0
  %990 = vmatprep.subr.mxu0 0.0
  %991 = vmatpush1.msra.mxu0 0.0
  %992 = vmatprep.subr.mxu0 0.0
  %993 = vmatpush1.msra.mxu0 0.0
  %994 = vmatprep.mubr.f32.mxu0 0.0
  %995 = vmatmul.mubr.f32.gmra.mrb[0].mxu0 %v898
  %v996 = vpop.f32.mrb[0].mxu0
  %v997 = vadd.f32 %v847, %v996
  %v998 = vpop.f32.mrb[0].mxu0
  %999 = vmatprep.mubr.f32.mxu0 0.0
  %1000 = vmatmul.mubr.f32.gmra.mrb[0].mxu0 %v900
  %v1001 = vpop.f32.mrb[0].mxu0
  %v1002 = vadd.f32 %v847, %v1001
  %v1003 = vpop.f32.mrb[0].mxu0
  %1004 = vmatprep.mubr.f32.mxu0 0.0
  %1005 = vmatmul.mubr.f32.gmra.mrb[0].mxu0 %v902
  %v1006 = vpop.f32.mrb[0].mxu0
  %v1007 = vadd.f32 %v847, %v1006
  %v1008 = vpop.f32.mrb[0].mxu0
  %1009 = vmatprep.mubr.f32.mxu0 0.0
  %1010 = vmatmul.mubr.f32.gmra.mrb[0].mxu0 %v904
  %v1011 = vpop.f32.mrb[0].mxu0
  %v1012 = vadd.f32 %v847, %v1011
  %v1013 = vpop.f32.mrb[0].mxu0
  %1014 = vmatprep.mubr.f32.mxu0 0.0
  %1015 = vmatmul.mubr.f32.gmra.mrb[0].mxu0 %v906
  %v1016 = vpop.f32.mrb[0].mxu0
  %v1017 = vadd.f32 %v847, %v1016
  %v1018 = vpop.f32.mrb[0].mxu0
  %1019 = vmatprep.mubr.f32.mxu0 0.0
  %1020 = vmatmul.mubr.f32.gmra.mrb[0].mxu0 %v908
  %v1021 = vpop.f32.mrb[0].mxu0
  %v1022 = vadd.f32 %v847, %v1021
  %v1023 = vpop.f32.mrb[0].mxu0
  %1024 = vmatprep.mubr.f32.mxu0 0.0
  %1025 = vmatmul.mubr.f32.gmra.mrb[0].mxu0 %v910
  %v1026 = vpop.f32.mrb[0].mxu0
  %v1027 = vadd.f32 %v847, %v1026
  %v1028 = vpop.f32.mrb[0].mxu0
  %1029 = vmatprep.mubr.f32.mxu0 0.0
  %1030 = vmatmul.mubr.f32.gmra.mrb[0].mxu0 %v912
  %v1031 = vpop.f32.mrb[0].mxu0
  %v1032 = vadd.f32 %v847, %v1031
  %v1033 = vpop.f32.mrb[0].mxu0
  %1034 = vmatprep.mubr.f32.mxu0 0.0
  %1035 = vmatmul.mubr.f32.gmra.mrb[0].mxu0 %v914
  %v1036 = vpop.f32.mrb[0].mxu0
  %v1037 = vadd.f32 %v847, %v1036
  %v1038 = vpop.f32.mrb[0].mxu0
  %1039 = vmatprep.mubr.f32.mxu0 0.0
  %1040 = vmatmul.mubr.f32.gmra.mrb[0].mxu0 %v916
  %v1041 = vpop.f32.mrb[0].mxu0
  %v1042 = vadd.f32 %v847, %v1041
  %v1043 = vpop.f32.mrb[0].mxu0
  %1044 = vmatprep.mubr.f32.mxu0 0.0
  %1045 = vmatmul.mubr.f32.gmra.mrb[0].mxu0 %v918
  %v1046 = vpop.f32.mrb[0].mxu0
  %v1047 = vadd.f32 %v847, %v1046
  %v1048 = vpop.f32.mrb[0].mxu0
  %1049 = vmatprep.mubr.f32.mxu0 0.0
  %1050 = vmatmul.mubr.f32.gmra.mrb[0].mxu0 %v920
  %v1051 = vpop.f32.mrb[0].mxu0
  %v1052 = vadd.f32 %v847, %v1051
  %v1053 = vpop.f32.mrb[0].mxu0
  %1054 = vmatprep.mubr.f32.mxu0 0.0
  %1055 = vmatmul.mubr.f32.gmra.mrb[0].mxu0 %v922
  %v1056 = vpop.f32.mrb[0].mxu0
  %v1057 = vadd.f32 %v847, %v1056
  %v1058 = vpop.f32.mrb[0].mxu0
  %1059 = vmatprep.mubr.f32.mxu0 0.0
  %1060 = vmatmul.mubr.f32.gmra.mrb[0].mxu0 %v924
  %v1061 = vpop.f32.mrb[0].mxu0
  %v1062 = vadd.f32 %v847, %v1061
  %v1063 = vpop.f32.mrb[0].mxu0
  %1064 = vmatprep.mubr.f32.mxu0 0.0
  %1065 = vmatmul.mubr.f32.gmra.mrb[0].mxu0 %v926
  %v1066 = vpop.f32.mrb[0].mxu0
  %v1067 = vadd.f32 %v847, %v1066
  %v1068 = vpop.f32.mrb[0].mxu0
  %1069 = vmatprep.mubr.f32.mxu0 0.0
  %1070 = vmatmul.mubr.f32.gmra.mrb[0].mxu0 %v928
  %v1071 = vpop.f32.mrb[0].mxu0
  %v1072 = vadd.f32 %v847, %v1071
  %v1073 = vpop.f32.mrb[0].mxu0
  %1074 = vdwg.mxu0
  %v1075 = vld [vmem:[%s6] sm:$0xff]
  %v1076 = vld [vmem:[%s6 + $0x8] sm:$0xff]
  %v1077 = vld [vmem:[%s6 + $0x10] sm:$0xff]
  %v1078 = vld [vmem:[%s6 + $0x18] sm:$0xff]
  %v1079 = vld [vmem:[%s7] sm:$0x1]
  %v1081 = vlaneseq
  %v1082 = vshrl.u32 %v1081, 7
  %v1083 = vsub.s32 0, %v1082
  %v1084 = vrot.slane %v1079, %v1083
  %1086 = vmatprep.subr.mxu0 0.0
  %1087 = vmatpush1.msra.mxu0 %v1075
  %1088 = vmatprep.subr.mxu0 0.0
  %1089 = vmatpush1.msra.mxu0 %v1076
  %1090 = vmatprep.subr.mxu0 0.0
  %1091 = vmatpush1.msra.mxu0 %v1077
  %1092 = vmatprep.subr.mxu0 0.0
  %1093 = vmatpush1.msra.mxu0 %v1078
  %1094 = vmatprep.subr.mxu0 0.0
  %1095 = vmatpush1.msra.mxu0 0.0
  %1096 = vmatprep.subr.mxu0 0.0
  %1097 = vmatpush1.msra.mxu0 0.0
  %1098 = vmatprep.subr.mxu0 0.0
  %1099 = vmatpush1.msra.mxu0 0.0
  %1100 = vmatprep.subr.mxu0 0.0
  %1101 = vmatpush1.msra.mxu0 0.0
  %1102 = vmatprep.subr.mxu0 0.0
  %1103 = vmatpush1.msra.mxu0 0.0
  %1104 = vmatprep.subr.mxu0 0.0
  %1105 = vmatpush1.msra.mxu0 0.0
  %1106 = vmatprep.subr.mxu0 0.0
  %1107 = vmatpush1.msra.mxu0 0.0
  %1108 = vmatprep.subr.mxu0 0.0
  %1109 = vmatpush1.msra.mxu0 0.0
  %1110 = vmatprep.subr.mxu0 0.0
  %1111 = vmatpush1.msra.mxu0 0.0
  %1112 = vmatprep.subr.mxu0 0.0
  %1113 = vmatpush1.msra.mxu0 0.0
  %1114 = vmatprep.subr.mxu0 0.0
  %1115 = vmatpush1.msra.mxu0 0.0
  %1116 = vmatprep.subr.mxu0 0.0
  %1117 = vmatpush1.msra.mxu0 0.0
  %1118 = vmatprep.subr.mxu0 0.0
  %1119 = vmatpush1.msra.mxu0 0.0
  %1120 = vmatprep.subr.mxu0 0.0
  %1121 = vmatpush1.msra.mxu0 0.0
  %1122 = vmatprep.subr.mxu0 0.0
  %1123 = vmatpush1.msra.mxu0 0.0
  %1124 = vmatprep.subr.mxu0 0.0
  %1125 = vmatpush1.msra.mxu0 0.0
  %1126 = vmatprep.subr.mxu0 0.0
  %1127 = vmatpush1.msra.mxu0 0.0
  %1128 = vmatprep.subr.mxu0 0.0
  %1129 = vmatpush1.msra.mxu0 0.0
  %1130 = vmatprep.subr.mxu0 0.0
  %1131 = vmatpush1.msra.mxu0 0.0
  %1132 = vmatprep.subr.mxu0 0.0
  %1133 = vmatpush1.msra.mxu0 0.0
  %1134 = vmatprep.subr.mxu0 0.0
  %1135 = vmatpush1.msra.mxu0 0.0
  %1136 = vmatprep.subr.mxu0 0.0
  %1137 = vmatpush1.msra.mxu0 0.0
  %1138 = vmatprep.subr.mxu0 0.0
  %1139 = vmatpush1.msra.mxu0 0.0
  %1140 = vmatprep.subr.mxu0 0.0
  %1141 = vmatpush1.msra.mxu0 0.0
  %1142 = vmatprep.subr.mxu0 0.0
  %1143 = vmatpush1.msra.mxu0 0.0
  %1144 = vmatprep.subr.mxu0 0.0
  %1145 = vmatpush1.msra.mxu0 0.0
  %1146 = vmatprep.subr.mxu0 0.0
  %1147 = vmatpush1.msra.mxu0 0.0
  %1148 = vmatprep.subr.mxu0 0.0
  %1149 = vmatpush1.msra.mxu0 0.0
  %1150 = vmatprep.mubr.f32.mxu0 0.0
  %1151 = vmatmul.mubr.f32.gmra.mrb[0].mxu0 %v898
  %v1152 = vpop.f32.mrb[0].mxu0
  %v1153 = vadd.f32 %v1084, %v1152
  %v1154 = vpop.f32.mrb[0].mxu0
  %1155 = vmatprep.mubr.f32.mxu0 0.0
  %1156 = vmatmul.mubr.f32.gmra.mrb[0].mxu0 %v900
  %v1157 = vpop.f32.mrb[0].mxu0
  %v1158 = vadd.f32 %v1084, %v1157
  %v1159 = vpop.f32.mrb[0].mxu0
  %1160 = vmatprep.mubr.f32.mxu0 0.0
  %1161 = vmatmul.mubr.f32.gmra.mrb[0].mxu0 %v902
  %v1162 = vpop.f32.mrb[0].mxu0
  %v1163 = vadd.f32 %v1084, %v1162
  %v1164 = vpop.f32.mrb[0].mxu0
  %1165 = vmatprep.mubr.f32.mxu0 0.0
  %1166 = vmatmul.mubr.f32.gmra.mrb[0].mxu0 %v904
  %v1167 = vpop.f32.mrb[0].mxu0
  %v1168 = vadd.f32 %v1084, %v1167
  %v1169 = vpop.f32.mrb[0].mxu0
  %1170 = vmatprep.mubr.f32.mxu0 0.0
  %1171 = vmatmul.mubr.f32.gmra.mrb[0].mxu0 %v906
  %v1172 = vpop.f32.mrb[0].mxu0
  %v1173 = vadd.f32 %v1084, %v1172
  %v1174 = vpop.f32.mrb[0].mxu0
  %1175 = vmatprep.mubr.f32.mxu0 0.0
  %1176 = vmatmul.mubr.f32.gmra.mrb[0].mxu0 %v908
  %v1177 = vpop.f32.mrb[0].mxu0
  %v1178 = vadd.f32 %v1084, %v1177
  %v1179 = vpop.f32.mrb[0].mxu0
  %1180 = vmatprep.mubr.f32.mxu0 0.0
  %1181 = vmatmul.mubr.f32.gmra.mrb[0].mxu0 %v910
  %v1182 = vpop.f32.mrb[0].mxu0
  %v1183 = vadd.f32 %v1084, %v1182
  %v1184 = vpop.f32.mrb[0].mxu0
  %1185 = vmatprep.mubr.f32.mxu0 0.0
  %1186 = vmatmul.mubr.f32.gmra.mrb[0].mxu0 %v912
  %v1187 = vpop.f32.mrb[0].mxu0
  %v1188 = vadd.f32 %v1084, %v1187
  %v1189 = vpop.f32.mrb[0].mxu0
  %1190 = vmatprep.mubr.f32.mxu0 0.0
  %1191 = vmatmul.mubr.f32.gmra.mrb[0].mxu0 %v914
  %v1192 = vpop.f32.mrb[0].mxu0
  %v1193 = vadd.f32 %v1084, %v1192
  %v1194 = vpop.f32.mrb[0].mxu0
  %1195 = vmatprep.mubr.f32.mxu0 0.0
  %1196 = vmatmul.mubr.f32.gmra.mrb[0].mxu0 %v916
  %v1197 = vpop.f32.mrb[0].mxu0
  %v1198 = vadd.f32 %v1084, %v1197
  %v1199 = vpop.f32.mrb[0].mxu0
  %1200 = vmatprep.mubr.f32.mxu0 0.0
  %1201 = vmatmul.mubr.f32.gmra.mrb[0].mxu0 %v918
  %v1202 = vpop.f32.mrb[0].mxu0
  %v1203 = vadd.f32 %v1084, %v1202
  %v1204 = vpop.f32.mrb[0].mxu0
  %1205 = vmatprep.mubr.f32.mxu0 0.0
  %1206 = vmatmul.mubr.f32.gmra.mrb[0].mxu0 %v920
  %v1207 = vpop.f32.mrb[0].mxu0
  %v1208 = vadd.f32 %v1084, %v1207
  %v1209 = vpop.f32.mrb[0].mxu0
  %1210 = vmatprep.mubr.f32.mxu0 0.0
  %1211 = vmatmul.mubr.f32.gmra.mrb[0].mxu0 %v922
  %v1212 = vpop.f32.mrb[0].mxu0
  %v1213 = vadd.f32 %v1084, %v1212
  %v1214 = vpop.f32.mrb[0].mxu0
  %1215 = vmatprep.mubr.f32.mxu0 0.0
  %1216 = vmatmul.mubr.f32.gmra.mrb[0].mxu0 %v924
  %v1217 = vpop.f32.mrb[0].mxu0
  %v1218 = vadd.f32 %v1084, %v1217
  %v1219 = vpop.f32.mrb[0].mxu0
  %1220 = vmatprep.mubr.f32.mxu0 0.0
  %1221 = vmatmul.mubr.f32.gmra.mrb[0].mxu0 %v926
  %v1222 = vpop.f32.mrb[0].mxu0
  %v1223 = vadd.f32 %v1084, %v1222
  %v1224 = vpop.f32.mrb[0].mxu0
  %1225 = vmatprep.mubr.f32.mxu0 0.0
  %1226 = vmatmul.mubr.f32.gmra.mrb[0].mxu0 %v928
  %v1227 = vpop.f32.mrb[0].mxu0
  %v1228 = vadd.f32 %v1084, %v1227
  %v1229 = vpop.f32.mrb[0].mxu0
  %1230 = vdwg.mxu0
  %vm1231 = vcmask 80896
  %v1232 = vsel %vm1231, %v997, -inf
  %1233 = vmax.xlane.f32.xlu0 %v1232
  %v1234 = vpop.xlane.xlu0 %1233
  %v1235 = vsel %vm1231, %v1002, -inf
  %1236 = vmax.xlane.f32.xlu0 %v1235
  %v1237 = vpop.xlane.xlu0 %1236
  %v1238 = vsel %vm1231, %v1007, -inf
  %1239 = vmax.xlane.f32.xlu0 %v1238
  %v1240 = vpop.xlane.xlu0 %1239
  %v1241 = vsel %vm1231, %v1012, -inf
  %1242 = vmax.xlane.f32.xlu0 %v1241
  %v1243 = vpop.xlane.xlu0 %1242
  %v1244 = vsel %vm1231, %v1017, -inf
  %1245 = vmax.xlane.f32.xlu0 %v1244
  %v1246 = vpop.xlane.xlu0 %1245
  %v1247 = vsel %vm1231, %v1022, -inf
  %1248 = vmax.xlane.f32.xlu0 %v1247
  %v1249 = vpop.xlane.xlu0 %1248
  %v1250 = vsel %vm1231, %v1027, -inf
  %1251 = vmax.xlane.f32.xlu0 %v1250
  %v1252 = vpop.xlane.xlu0 %1251
  %v1253 = vsel %vm1231, %v1032, -inf
  %1254 = vmax.xlane.f32.xlu0 %v1253
  %v1255 = vpop.xlane.xlu0 %1254
  %v1256 = vsel %vm1231, %v1037, -inf
  %1257 = vmax.xlane.f32.xlu0 %v1256
  %v1258 = vpop.xlane.xlu0 %1257
  %v1259 = vsel %vm1231, %v1042, -inf
  %1260 = vmax.xlane.f32.xlu0 %v1259
  %v1261 = vpop.xlane.xlu0 %1260
  %v1262 = vsel %vm1231, %v1047, -inf
  %1263 = vmax.xlane.f32.xlu0 %v1262
  %v1264 = vpop.xlane.xlu0 %1263
  %v1265 = vsel %vm1231, %v1052, -inf
  %1266 = vmax.xlane.f32.xlu0 %v1265
  %v1267 = vpop.xlane.xlu0 %1266
  %v1268 = vsel %vm1231, %v1057, -inf
  %1269 = vmax.xlane.f32.xlu0 %v1268
  %v1270 = vpop.xlane.xlu0 %1269
  %v1271 = vsel %vm1231, %v1062, -inf
  %1272 = vmax.xlane.f32.xlu0 %v1271
  %v1273 = vpop.xlane.xlu0 %1272
  %v1274 = vsel %vm1231, %v1067, -inf
  %1275 = vmax.xlane.f32.xlu0 %v1274
  %v1276 = vpop.xlane.xlu0 %1275
  %v1277 = vsel %vm1231, %v1072, -inf
  %1278 = vmax.xlane.f32.xlu0 %v1277
  %v1279 = vpop.xlane.xlu0 %1278
  %vm1280 = vcmp.eq.f32.partialorder %v997, %v1234
  %vm1281 = vcmp.eq.f32.partialorder %v1002, %v1237
  %vm1282 = vcmp.eq.f32.partialorder %v1007, %v1240
  %vm1283 = vcmp.eq.f32.partialorder %v1012, %v1243
  %vm1284 = vcmp.eq.f32.partialorder %v1017, %v1246
  %vm1285 = vcmp.eq.f32.partialorder %v1022, %v1249
  %vm1286 = vcmp.eq.f32.partialorder %v1027, %v1252
  %vm1287 = vcmp.eq.f32.partialorder %v1032, %v1255
  %vm1288 = vcmp.eq.f32.partialorder %v1037, %v1258
  %vm1289 = vcmp.eq.f32.partialorder %v1042, %v1261
  %vm1290 = vcmp.eq.f32.partialorder %v1047, %v1264
  %vm1291 = vcmp.eq.f32.partialorder %v1052, %v1267
  %vm1292 = vcmp.eq.f32.partialorder %v1057, %v1270
  %vm1293 = vcmp.eq.f32.partialorder %v1062, %v1273
  %vm1294 = vcmp.eq.f32.partialorder %v1067, %v1276
  %vm1295 = vcmp.eq.f32.partialorder %v1072, %v1279
  %v1296 = vsel %vm1280, %v255, 10
  %v1297 = vsel %vm1281, %v255, 10
  %v1298 = vsel %vm1282, %v255, 10
  %v1299 = vsel %vm1283, %v255, 10
  %v1300 = vsel %vm1284, %v255, 10
  %v1301 = vsel %vm1285, %v255, 10
  %v1302 = vsel %vm1286, %v255, 10
  %v1303 = vsel %vm1287, %v255, 10
  %v1304 = vsel %vm1288, %v255, 10
  %v1305 = vsel %vm1289, %v255, 10
  %v1306 = vsel %vm1290, %v255, 10
  %v1307 = vsel %vm1291, %v255, 10
  %v1308 = vsel %vm1292, %v255, 10
  %v1309 = vsel %vm1293, %v255, 10
  %v1310 = vsel %vm1294, %v255, 10
  %v1311 = vsel %vm1295, %v255, 10
  %v1312 = vsel %vm1231, %v1296, 2147483647
  %v1313 = vand.u32 %v1312, 65535
  %v1314 = vshra.s32 %v1312, 16
  %v1315 = vcvt.s32.f32 %v1313
  %v1316 = vcvt.s32.f32 %v1314
  %1317 = vmin.xlane.f32.xlu0 %v1316
  %v1318 = vpop.xlane.xlu0 %1317
  %vm1319 = vcmp.eq.f32.partialorder %v1316, %v1318
  %v1320 = vsel %vm1319, %v1315, inf
  %1321 = vmin.xlane.f32.xlu0 %v1320
  %v1322 = vpop.xlane.xlu0 %1321
  %v1323 = vcvt.f32.s32 %v1322
  %v1324 = vcvt.f32.s32 %v1318
  %v1325 = vshll.u32 %v1324, 16
  %v1326 = vadd.s32 %v1325, %v1323
  %v1327 = vsel %vm1231, %v1297, 2147483647
  %v1328 = vand.u32 %v1327, 65535
  %v1329 = vshra.s32 %v1327, 16
  %v1330 = vcvt.s32.f32 %v1328
  %v1331 = vcvt.s32.f32 %v1329
  %1332 = vmin.xlane.f32.xlu0 %v1331
  %v1333 = vpop.xlane.xlu0 %1332
  %vm1334 = vcmp.eq.f32.partialorder %v1331, %v1333
  %v1335 = vsel %vm1334, %v1330, inf
  %1336 = vmin.xlane.f32.xlu0 %v1335
  %v1337 = vpop.xlane.xlu0 %1336
  %v1338 = vcvt.f32.s32 %v1337
  %v1339 = vcvt.f32.s32 %v1333
  %v1340 = vshll.u32 %v1339, 16
  %v1341 = vadd.s32 %v1340, %v1338
  %v1342 = vsel %vm1231, %v1298, 2147483647
  %v1343 = vand.u32 %v1342, 65535
  %v1344 = vshra.s32 %v1342, 16
  %v1345 = vcvt.s32.f32 %v1343
  %v1346 = vcvt.s32.f32 %v1344
  %1347 = vmin.xlane.f32.xlu0 %v1346
  %v1348 = vpop.xlane.xlu0 %1347
  %vm1349 = vcmp.eq.f32.partialorder %v1346, %v1348
  %v1350 = vsel %vm1349, %v1345, inf
  %1351 = vmin.xlane.f32.xlu0 %v1350
  %v1352 = vpop.xlane.xlu0 %1351
  %v1353 = vcvt.f32.s32 %v1352
  %v1354 = vcvt.f32.s32 %v1348
  %v1355 = vshll.u32 %v1354, 16
  %v1356 = vadd.s32 %v1355, %v1353
  %v1357 = vsel %vm1231, %v1299, 2147483647
  %v1358 = vand.u32 %v1357, 65535
  %v1359 = vshra.s32 %v1357, 16
  %v1360 = vcvt.s32.f32 %v1358
  %v1361 = vcvt.s32.f32 %v1359
  %1362 = vmin.xlane.f32.xlu0 %v1361
  %v1363 = vpop.xlane.xlu0 %1362
  %vm1364 = vcmp.eq.f32.partialorder %v1361, %v1363
  %v1365 = vsel %vm1364, %v1360, inf
  %1366 = vmin.xlane.f32.xlu0 %v1365
  %v1367 = vpop.xlane.xlu0 %1366
  %v1368 = vcvt.f32.s32 %v1367
  %v1369 = vcvt.f32.s32 %v1363
  %v1370 = vshll.u32 %v1369, 16
  %v1371 = vadd.s32 %v1370, %v1368
  %v1372 = vsel %vm1231, %v1300, 2147483647
  %v1373 = vand.u32 %v1372, 65535
  %v1374 = vshra.s32 %v1372, 16
  %v1375 = vcvt.s32.f32 %v1373
  %v1376 = vcvt.s32.f32 %v1374
  %1377 = vmin.xlane.f32.xlu0 %v1376
  %v1378 = vpop.xlane.xlu0 %1377
  %vm1379 = vcmp.eq.f32.partialorder %v1376, %v1378
  %v1380 = vsel %vm1379, %v1375, inf
  %1381 = vmin.xlane.f32.xlu0 %v1380
  %v1382 = vpop.xlane.xlu0 %1381
  %v1383 = vcvt.f32.s32 %v1382
  %v1384 = vcvt.f32.s32 %v1378
  %v1385 = vshll.u32 %v1384, 16
  %v1386 = vadd.s32 %v1385, %v1383
  %v1387 = vsel %vm1231, %v1301, 2147483647
  %v1388 = vand.u32 %v1387, 65535
  %v1389 = vshra.s32 %v1387, 16
  %v1390 = vcvt.s32.f32 %v1388
  %v1391 = vcvt.s32.f32 %v1389
  %1392 = vmin.xlane.f32.xlu0 %v1391
  %v1393 = vpop.xlane.xlu0 %1392
  %vm1394 = vcmp.eq.f32.partialorder %v1391, %v1393
  %v1395 = vsel %vm1394, %v1390, inf
  %1396 = vmin.xlane.f32.xlu0 %v1395
  %v1397 = vpop.xlane.xlu0 %1396
  %v1398 = vcvt.f32.s32 %v1397
  %v1399 = vcvt.f32.s32 %v1393
  %v1400 = vshll.u32 %v1399, 16
  %v1401 = vadd.s32 %v1400, %v1398
  %v1402 = vsel %vm1231, %v1302, 2147483647
  %v1403 = vand.u32 %v1402, 65535
  %v1404 = vshra.s32 %v1402, 16
  %v1405 = vcvt.s32.f32 %v1403
  %v1406 = vcvt.s32.f32 %v1404
  %1407 = vmin.xlane.f32.xlu0 %v1406
  %v1408 = vpop.xlane.xlu0 %1407
  %vm1409 = vcmp.eq.f32.partialorder %v1406, %v1408
  %v1410 = vsel %vm1409, %v1405, inf
  %1411 = vmin.xlane.f32.xlu0 %v1410
  %v1412 = vpop.xlane.xlu0 %1411
  %v1413 = vcvt.f32.s32 %v1412
  %v1414 = vcvt.f32.s32 %v1408
  %v1415 = vshll.u32 %v1414, 16
  %v1416 = vadd.s32 %v1415, %v1413
  %v1417 = vsel %vm1231, %v1303, 2147483647
  %v1418 = vand.u32 %v1417, 65535
  %v1419 = vshra.s32 %v1417, 16
  %v1420 = vcvt.s32.f32 %v1418
  %v1421 = vcvt.s32.f32 %v1419
  %1422 = vmin.xlane.f32.xlu0 %v1421
  %v1423 = vpop.xlane.xlu0 %1422
  %vm1424 = vcmp.eq.f32.partialorder %v1421, %v1423
  %v1425 = vsel %vm1424, %v1420, inf
  %1426 = vmin.xlane.f32.xlu0 %v1425
  %v1427 = vpop.xlane.xlu0 %1426
  %v1428 = vcvt.f32.s32 %v1427
  %v1429 = vcvt.f32.s32 %v1423
  %v1430 = vshll.u32 %v1429, 16
  %v1431 = vadd.s32 %v1430, %v1428
  %v1432 = vsel %vm1231, %v1304, 2147483647
  %v1433 = vand.u32 %v1432, 65535
  %v1434 = vshra.s32 %v1432, 16
  %v1435 = vcvt.s32.f32 %v1433
  %v1436 = vcvt.s32.f32 %v1434
  %1437 = vmin.xlane.f32.xlu0 %v1436
  %v1438 = vpop.xlane.xlu0 %1437
  %vm1439 = vcmp.eq.f32.partialorder %v1436, %v1438
  %v1440 = vsel %vm1439, %v1435, inf
  %1441 = vmin.xlane.f32.xlu0 %v1440
  %v1442 = vpop.xlane.xlu0 %1441
  %v1443 = vcvt.f32.s32 %v1442
  %v1444 = vcvt.f32.s32 %v1438
  %v1445 = vshll.u32 %v1444, 16
  %v1446 = vadd.s32 %v1445, %v1443
  %v1447 = vsel %vm1231, %v1305, 2147483647
  %v1448 = vand.u32 %v1447, 65535
  %v1449 = vshra.s32 %v1447, 16
  %v1450 = vcvt.s32.f32 %v1448
  %v1451 = vcvt.s32.f32 %v1449
  %1452 = vmin.xlane.f32.xlu0 %v1451
  %v1453 = vpop.xlane.xlu0 %1452
  %vm1454 = vcmp.eq.f32.partialorder %v1451, %v1453
  %v1455 = vsel %vm1454, %v1450, inf
  %1456 = vmin.xlane.f32.xlu0 %v1455
  %v1457 = vpop.xlane.xlu0 %1456
  %v1458 = vcvt.f32.s32 %v1457
  %v1459 = vcvt.f32.s32 %v1453
  %v1460 = vshll.u32 %v1459, 16
  %v1461 = vadd.s32 %v1460, %v1458
  %v1462 = vsel %vm1231, %v1306, 2147483647
  %v1463 = vand.u32 %v1462, 65535
  %v1464 = vshra.s32 %v1462, 16
  %v1465 = vcvt.s32.f32 %v1463
  %v1466 = vcvt.s32.f32 %v1464
  %1467 = vmin.xlane.f32.xlu0 %v1466
  %v1468 = vpop.xlane.xlu0 %1467
  %vm1469 = vcmp.eq.f32.partialorder %v1466, %v1468
  %v1470 = vsel %vm1469, %v1465, inf
  %1471 = vmin.xlane.f32.xlu0 %v1470
  %v1472 = vpop.xlane.xlu0 %1471
  %v1473 = vcvt.f32.s32 %v1472
  %v1474 = vcvt.f32.s32 %v1468
  %v1475 = vshll.u32 %v1474, 16
  %v1476 = vadd.s32 %v1475, %v1473
  %v1477 = vsel %vm1231, %v1307, 2147483647
  %v1478 = vand.u32 %v1477, 65535
  %v1479 = vshra.s32 %v1477, 16
  %v1480 = vcvt.s32.f32 %v1478
  %v1481 = vcvt.s32.f32 %v1479
  %1482 = vmin.xlane.f32.xlu0 %v1481
  %v1483 = vpop.xlane.xlu0 %1482
  %vm1484 = vcmp.eq.f32.partialorder %v1481, %v1483
  %v1485 = vsel %vm1484, %v1480, inf
  %1486 = vmin.xlane.f32.xlu0 %v1485
  %v1487 = vpop.xlane.xlu0 %1486
  %v1488 = vcvt.f32.s32 %v1487
  %v1489 = vcvt.f32.s32 %v1483
  %v1490 = vshll.u32 %v1489, 16
  %v1491 = vadd.s32 %v1490, %v1488
  %v1492 = vsel %vm1231, %v1308, 2147483647
  %v1493 = vand.u32 %v1492, 65535
  %v1494 = vshra.s32 %v1492, 16
  %v1495 = vcvt.s32.f32 %v1493
  %v1496 = vcvt.s32.f32 %v1494
  %1497 = vmin.xlane.f32.xlu0 %v1496
  %v1498 = vpop.xlane.xlu0 %1497
  %vm1499 = vcmp.eq.f32.partialorder %v1496, %v1498
  %v1500 = vsel %vm1499, %v1495, inf
  %1501 = vmin.xlane.f32.xlu0 %v1500
  %v1502 = vpop.xlane.xlu0 %1501
  %v1503 = vcvt.f32.s32 %v1502
  %v1504 = vcvt.f32.s32 %v1498
  %v1505 = vshll.u32 %v1504, 16
  %v1506 = vadd.s32 %v1505, %v1503
  %v1507 = vsel %vm1231, %v1309, 2147483647
  %v1508 = vand.u32 %v1507, 65535
  %v1509 = vshra.s32 %v1507, 16
  %v1510 = vcvt.s32.f32 %v1508
  %v1511 = vcvt.s32.f32 %v1509
  %1512 = vmin.xlane.f32.xlu0 %v1511
  %v1513 = vpop.xlane.xlu0 %1512
  %vm1514 = vcmp.eq.f32.partialorder %v1511, %v1513
  %v1515 = vsel %vm1514, %v1510, inf
  %1516 = vmin.xlane.f32.xlu0 %v1515
  %v1517 = vpop.xlane.xlu0 %1516
  %v1518 = vcvt.f32.s32 %v1517
  %v1519 = vcvt.f32.s32 %v1513
  %v1520 = vshll.u32 %v1519, 16
  %v1521 = vadd.s32 %v1520, %v1518
  %v1522 = vsel %vm1231, %v1310, 2147483647
  %v1523 = vand.u32 %v1522, 65535
  %v1524 = vshra.s32 %v1522, 16
  %v1525 = vcvt.s32.f32 %v1523
  %v1526 = vcvt.s32.f32 %v1524
  %1527 = vmin.xlane.f32.xlu0 %v1526
  %v1528 = vpop.xlane.xlu0 %1527
  %vm1529 = vcmp.eq.f32.partialorder %v1526, %v1528
  %v1530 = vsel %vm1529, %v1525, inf
  %1531 = vmin.xlane.f32.xlu0 %v1530
  %v1532 = vpop.xlane.xlu0 %1531
  %v1533 = vcvt.f32.s32 %v1532
  %v1534 = vcvt.f32.s32 %v1528
  %v1535 = vshll.u32 %v1534, 16
  %v1536 = vadd.s32 %v1535, %v1533
  %v1537 = vsel %vm1231, %v1311, 2147483647
  %v1538 = vand.u32 %v1537, 65535
  %v1539 = vshra.s32 %v1537, 16
  %v1540 = vcvt.s32.f32 %v1538
  %v1541 = vcvt.s32.f32 %v1539
  %1542 = vmin.xlane.f32.xlu0 %v1541
  %v1543 = vpop.xlane.xlu0 %1542
  %vm1544 = vcmp.eq.f32.partialorder %v1541, %v1543
  %v1545 = vsel %vm1544, %v1540, inf
  %1546 = vmin.xlane.f32.xlu0 %v1545
  %v1547 = vpop.xlane.xlu0 %1546
  %v1548 = vcvt.f32.s32 %v1547
  %v1549 = vcvt.f32.s32 %v1543
  %v1550 = vshll.u32 %v1549, 16
  %v1551 = vadd.s32 %v1550, %v1548
  %vm1552 = vcmp.eq.s32.totalorder %v255, %v1326
  %vm1553 = vcmp.eq.s32.totalorder %v255, %v1341
  %vm1554 = vcmp.eq.s32.totalorder %v255, %v1356
  %vm1555 = vcmp.eq.s32.totalorder %v255, %v1371
  %vm1556 = vcmp.eq.s32.totalorder %v255, %v1386
  %vm1557 = vcmp.eq.s32.totalorder %v255, %v1401
  %vm1558 = vcmp.eq.s32.totalorder %v255, %v1416
  %vm1559 = vcmp.eq.s32.totalorder %v255, %v1431
  %vm1560 = vcmp.eq.s32.totalorder %v255, %v1446
  %vm1561 = vcmp.eq.s32.totalorder %v255, %v1461
  %vm1562 = vcmp.eq.s32.totalorder %v255, %v1476
  %vm1563 = vcmp.eq.s32.totalorder %v255, %v1491
  %vm1564 = vcmp.eq.s32.totalorder %v255, %v1506
  %vm1565 = vcmp.eq.s32.totalorder %v255, %v1521
  %vm1566 = vcmp.eq.s32.totalorder %v255, %v1536
  %vm1567 = vcmp.eq.s32.totalorder %v255, %v1551
  %v1568 = vsel %vm1552, 1, 0
  %v1569 = vsel %vm1553, 1, 0
  %v1570 = vsel %vm1554, 1, 0
  %v1571 = vsel %vm1555, 1, 0
  %v1572 = vsel %vm1556, 1, 0
  %v1573 = vsel %vm1557, 1, 0
  %v1574 = vsel %vm1558, 1, 0
  %v1575 = vsel %vm1559, 1, 0
  %v1576 = vsel %vm1560, 1, 0
  %v1577 = vsel %vm1561, 1, 0
  %v1578 = vsel %vm1562, 1, 0
  %v1579 = vsel %vm1563, 1, 0
  %v1580 = vsel %vm1564, 1, 0
  %v1581 = vsel %vm1565, 1, 0
  %v1582 = vsel %vm1566, 1, 0
  %v1583 = vsel %vm1567, 1, 0
  %v1584 = vcvt.s32.f32 %v1568
  %v1585 = vcvt.s32.f32 %v1569
  %v1586 = vcvt.s32.f32 %v1570
  %v1587 = vcvt.s32.f32 %v1571
  %v1588 = vcvt.s32.f32 %v1572
  %v1589 = vcvt.s32.f32 %v1573
  %v1590 = vcvt.s32.f32 %v1574
  %v1591 = vcvt.s32.f32 %v1575
  %v1592 = vcvt.s32.f32 %v1576
  %v1593 = vcvt.s32.f32 %v1577
  %v1594 = vcvt.s32.f32 %v1578
  %v1595 = vcvt.s32.f32 %v1579
  %v1596 = vcvt.s32.f32 %v1580
  %v1597 = vcvt.s32.f32 %v1581
  %v1598 = vcvt.s32.f32 %v1582
  %v1599 = vcvt.s32.f32 %v1583
  %v1600 = vld [vmem:[%s4] sm:$0xff]
  %v1601 = vld [vmem:[%s4 + $0x8] sm:$0x3]
  %v1602 = vld [vmem:[%s5] sm:$0x1]
  %v1604 = vlaneseq
  %v1605 = vshrl.u32 %v1604, 7
  %v1606 = vsub.s32 0, %v1605
  %v1607 = vrot.slane %v1602, %v1606
  %v1610 = vsel %vm1231, %v1584, 0
  %v1613 = vsel %vm1231, %v1585, 0
  %v1616 = vsel %vm1231, %v1586, 0
  %v1619 = vsel %vm1231, %v1587, 0
  %v1622 = vsel %vm1231, %v1588, 0
  %v1625 = vsel %vm1231, %v1589, 0
  %v1628 = vsel %vm1231, %v1590, 0
  %v1631 = vsel %vm1231, %v1591, 0
  %v1634 = vsel %vm1231, %v1592, 0
  %v1637 = vsel %vm1231, %v1593, 0
  %v1640 = vsel %vm1231, %v1594, 0
  %v1643 = vsel %vm1231, %v1595, 0
  %v1646 = vsel %vm1231, %v1596, 0
  %v1649 = vsel %vm1231, %v1597, 0
  %v1652 = vsel %vm1231, %v1598, 0
  %v1655 = vsel %vm1231, %v1599, 0
  %vm1657 = vcmask 1041408
  %v1659 = vsel %vm1657, %v1601, 0
  %1661 = vmatprep.subr.mxu0 0.0
  %1662 = vmatpush1.msra.mxu0 %v1600
  %1663 = vmatprep.subr.mxu0 0.0
  %1664 = vmatpush1.msra.mxu0 %v1659
  %1665 = vmatprep.subr.mxu0 0.0
  %1666 = vmatpush1.msra.mxu0 0.0
  %1667 = vmatprep.subr.mxu0 0.0
  %1668 = vmatpush1.msra.mxu0 0.0
  %1669 = vmatprep.subr.mxu0 0.0
  %1670 = vmatpush1.msra.mxu0 0.0
  %1671 = vmatprep.subr.mxu0 0.0
  %1672 = vmatpush1.msra.mxu0 0.0
  %1673 = vmatprep.subr.mxu0 0.0
  %1674 = vmatpush1.msra.mxu0 0.0
  %1675 = vmatprep.subr.mxu0 0.0
  %1676 = vmatpush1.msra.mxu0 0.0
  %1677 = vmatprep.subr.mxu0 0.0
  %1678 = vmatpush1.msra.mxu0 0.0
  %1679 = vmatprep.subr.mxu0 0.0
  %1680 = vmatpush1.msra.mxu0 0.0
  %1681 = vmatprep.subr.mxu0 0.0
  %1682 = vmatpush1.msra.mxu0 0.0
  %1683 = vmatprep.subr.mxu0 0.0
  %1684 = vmatpush1.msra.mxu0 0.0
  %1685 = vmatprep.subr.mxu0 0.0
  %1686 = vmatpush1.msra.mxu0 0.0
  %1687 = vmatprep.subr.mxu0 0.0
  %1688 = vmatpush1.msra.mxu0 0.0
  %1689 = vmatprep.subr.mxu0 0.0
  %1690 = vmatpush1.msra.mxu0 0.0
  %1691 = vmatprep.subr.mxu0 0.0
  %1692 = vmatpush1.msra.mxu0 0.0
  %1693 = vmatprep.subr.mxu0 0.0
  %1694 = vmatpush1.msra.mxu0 0.0
  %1695 = vmatprep.subr.mxu0 0.0
  %1696 = vmatpush1.msra.mxu0 0.0
  %1697 = vmatprep.subr.mxu0 0.0
  %1698 = vmatpush1.msra.mxu0 0.0
  %1699 = vmatprep.subr.mxu0 0.0
  %1700 = vmatpush1.msra.mxu0 0.0
  %1701 = vmatprep.subr.mxu0 0.0
  %1702 = vmatpush1.msra.mxu0 0.0
  %1703 = vmatprep.subr.mxu0 0.0
  %1704 = vmatpush1.msra.mxu0 0.0
  %1705 = vmatprep.subr.mxu0 0.0
  %1706 = vmatpush1.msra.mxu0 0.0
  %1707 = vmatprep.subr.mxu0 0.0
  %1708 = vmatpush1.msra.mxu0 0.0
  %1709 = vmatprep.subr.mxu0 0.0
  %1710 = vmatpush1.msra.mxu0 0.0
  %1711 = vmatprep.subr.mxu0 0.0
  %1712 = vmatpush1.msra.mxu0 0.0
  %1713 = vmatprep.subr.mxu0 0.0
  %1714 = vmatpush1.msra.mxu0 0.0
  %1715 = vmatprep.subr.mxu0 0.0
  %1716 = vmatpush1.msra.mxu0 0.0
  %1717 = vmatprep.subr.mxu0 0.0
  %1718 = vmatpush1.msra.mxu0 0.0
  %1719 = vmatprep.subr.mxu0 0.0
  %1720 = vmatpush1.msra.mxu0 0.0
  %1721 = vmatprep.subr.mxu0 0.0
  %1722 = vmatpush1.msra.mxu0 0.0
  %1723 = vmatprep.subr.mxu0 0.0
  %1724 = vmatpush1.msra.mxu0 0.0
  %1725 = vmatprep.mubr.f32.mxu0 0.0
  %1726 = vmatmul.mubr.f32.gmra.mrb[0].mxu0 %v1610
  %v1727 = vpop.f32.mrb[0].mxu0
  %v1728 = vadd.f32 %v1607, %v1727
  %v1729 = vpop.f32.mrb[0].mxu0
  %1730 = vmatprep.mubr.f32.mxu0 0.0
  %1731 = vmatmul.mubr.f32.gmra.mrb[0].mxu0 %v1613
  %v1732 = vpop.f32.mrb[0].mxu0
  %v1733 = vadd.f32 %v1607, %v1732
  %v1734 = vpop.f32.mrb[0].mxu0
  %1735 = vmatprep.mubr.f32.mxu0 0.0
  %1736 = vmatmul.mubr.f32.gmra.mrb[0].mxu0 %v1616
  %v1737 = vpop.f32.mrb[0].mxu0
  %v1738 = vadd.f32 %v1607, %v1737
  %v1739 = vpop.f32.mrb[0].mxu0
  %1740 = vmatprep.mubr.f32.mxu0 0.0
  %1741 = vmatmul.mubr.f32.gmra.mrb[0].mxu0 %v1619
  %v1742 = vpop.f32.mrb[0].mxu0
  %v1743 = vadd.f32 %v1607, %v1742
  %v1744 = vpop.f32.mrb[0].mxu0
  %1745 = vmatprep.mubr.f32.mxu0 0.0
  %1746 = vmatmul.mubr.f32.gmra.mrb[0].mxu0 %v1622
  %v1747 = vpop.f32.mrb[0].mxu0
  %v1748 = vadd.f32 %v1607, %v1747
  %v1749 = vpop.f32.mrb[0].mxu0
  %1750 = vmatprep.mubr.f32.mxu0 0.0
  %1751 = vmatmul.mubr.f32.gmra.mrb[0].mxu0 %v1625
  %v1752 = vpop.f32.mrb[0].mxu0
  %v1753 = vadd.f32 %v1607, %v1752
  %v1754 = vpop.f32.mrb[0].mxu0
  %1755 = vmatprep.mubr.f32.mxu0 0.0
  %1756 = vmatmul.mubr.f32.gmra.mrb[0].mxu0 %v1628
  %v1757 = vpop.f32.mrb[0].mxu0
  %v1758 = vadd.f32 %v1607, %v1757
  %v1759 = vpop.f32.mrb[0].mxu0
  %1760 = vmatprep.mubr.f32.mxu0 0.0
  %1761 = vmatmul.mubr.f32.gmra.mrb[0].mxu0 %v1631
  %v1762 = vpop.f32.mrb[0].mxu0
  %v1763 = vadd.f32 %v1607, %v1762
  %v1764 = vpop.f32.mrb[0].mxu0
  %1765 = vmatprep.mubr.f32.mxu0 0.0
  %1766 = vmatmul.mubr.f32.gmra.mrb[0].mxu0 %v1634
  %v1767 = vpop.f32.mrb[0].mxu0
  %v1768 = vadd.f32 %v1607, %v1767
  %v1769 = vpop.f32.mrb[0].mxu0
  %1770 = vmatprep.mubr.f32.mxu0 0.0
  %1771 = vmatmul.mubr.f32.gmra.mrb[0].mxu0 %v1637
  %v1772 = vpop.f32.mrb[0].mxu0
  %v1773 = vadd.f32 %v1607, %v1772
  %v1774 = vpop.f32.mrb[0].mxu0
  %1775 = vmatprep.mubr.f32.mxu0 0.0
  %1776 = vmatmul.mubr.f32.gmra.mrb[0].mxu0 %v1640
  %v1777 = vpop.f32.mrb[0].mxu0
  %v1778 = vadd.f32 %v1607, %v1777
  %v1779 = vpop.f32.mrb[0].mxu0
  %1780 = vmatprep.mubr.f32.mxu0 0.0
  %1781 = vmatmul.mubr.f32.gmra.mrb[0].mxu0 %v1643
  %v1782 = vpop.f32.mrb[0].mxu0
  %v1783 = vadd.f32 %v1607, %v1782
  %v1784 = vpop.f32.mrb[0].mxu0
  %1785 = vmatprep.mubr.f32.mxu0 0.0
  %1786 = vmatmul.mubr.f32.gmra.mrb[0].mxu0 %v1646
  %v1787 = vpop.f32.mrb[0].mxu0
  %v1788 = vadd.f32 %v1607, %v1787
  %v1789 = vpop.f32.mrb[0].mxu0
  %1790 = vmatprep.mubr.f32.mxu0 0.0
  %1791 = vmatmul.mubr.f32.gmra.mrb[0].mxu0 %v1649
  %v1792 = vpop.f32.mrb[0].mxu0
  %v1793 = vadd.f32 %v1607, %v1792
  %v1794 = vpop.f32.mrb[0].mxu0
  %1795 = vmatprep.mubr.f32.mxu0 0.0
  %1796 = vmatmul.mubr.f32.gmra.mrb[0].mxu0 %v1652
  %v1797 = vpop.f32.mrb[0].mxu0
  %v1798 = vadd.f32 %v1607, %v1797
  %v1799 = vpop.f32.mrb[0].mxu0
  %1800 = vmatprep.mubr.f32.mxu0 0.0
  %1801 = vmatmul.mubr.f32.gmra.mrb[0].mxu0 %v1655
  %v1802 = vpop.f32.mrb[0].mxu0
  %v1803 = vadd.f32 %v1607, %v1802
  %v1804 = vpop.f32.mrb[0].mxu0
  %1805 = vdwg.mxu0
  %v1806 = vadd.f32 %v1728, %v1153
  %v1807 = vadd.f32 %v1733, %v1158
  %v1808 = vadd.f32 %v1738, %v1163
  %v1809 = vadd.f32 %v1743, %v1168
  %v1810 = vadd.f32 %v1748, %v1173
  %v1811 = vadd.f32 %v1753, %v1178
  %v1812 = vadd.f32 %v1758, %v1183
  %v1813 = vadd.f32 %v1763, %v1188
  %v1814 = vadd.f32 %v1768, %v1193
  %v1815 = vadd.f32 %v1773, %v1198
  %v1816 = vadd.f32 %v1778, %v1203
  %v1817 = vadd.f32 %v1783, %v1208
  %v1818 = vadd.f32 %v1788, %v1213
  %v1819 = vadd.f32 %v1793, %v1218
  %v1820 = vadd.f32 %v1798, %v1223
  %v1821 = vadd.f32 %v1803, %v1228
  %v1822 = vxor.u32 %v1806, 2147483648
  %v1823 = vxor.u32 %v1807, 2147483648
  %v1824 = vxor.u32 %v1808, 2147483648
  %v1825 = vxor.u32 %v1809, 2147483648
  %v1826 = vxor.u32 %v1810, 2147483648
  %v1827 = vxor.u32 %v1811, 2147483648
  %v1828 = vxor.u32 %v1812, 2147483648
  %v1829 = vxor.u32 %v1813, 2147483648
  %v1830 = vxor.u32 %v1814, 2147483648
  %v1831 = vxor.u32 %v1815, 2147483648
  %v1832 = vxor.u32 %v1816, 2147483648
  %v1833 = vxor.u32 %v1817, 2147483648
  %v1834 = vxor.u32 %v1818, 2147483648
  %v1835 = vxor.u32 %v1819, 2147483648
  %v1836 = vxor.u32 %v1820, 2147483648
  %v1837 = vxor.u32 %v1821, 2147483648
  %v1838 = vmul.f32 %v1822, 1.442695
  %v1839 = vpow.pop %v1838
  %v1840 = vmul.f32 %v1823, 1.442695
  %v1841 = vpow.pop %v1840
  %v1842 = vmul.f32 %v1824, 1.442695
  %v1843 = vpow.pop %v1842
  %v1844 = vmul.f32 %v1825, 1.442695
  %v1845 = vpow.pop %v1844
  %v1846 = vmul.f32 %v1826, 1.442695
  %v1847 = vpow.pop %v1846
  %v1848 = vmul.f32 %v1827, 1.442695
  %v1849 = vpow.pop %v1848
  %v1850 = vmul.f32 %v1828, 1.442695
  %v1851 = vpow.pop %v1850
  %v1852 = vmul.f32 %v1829, 1.442695
  %v1853 = vpow.pop %v1852
  %v1854 = vmul.f32 %v1830, 1.442695
  %v1855 = vpow.pop %v1854
  %v1856 = vmul.f32 %v1831, 1.442695
  %v1857 = vpow.pop %v1856
  %v1858 = vmul.f32 %v1832, 1.442695
  %v1859 = vpow.pop %v1858
  %v1860 = vmul.f32 %v1833, 1.442695
  %v1861 = vpow.pop %v1860
  %v1862 = vmul.f32 %v1834, 1.442695
  %v1863 = vpow.pop %v1862
  %v1864 = vmul.f32 %v1835, 1.442695
  %v1865 = vpow.pop %v1864
  %v1866 = vmul.f32 %v1836, 1.442695
  %v1867 = vpow.pop %v1866
  %v1868 = vmul.f32 %v1837, 1.442695
  %v1869 = vpow.pop %v1868
  %v1870 = vadd.f32 %v1839, 1.0
  %v1871 = vadd.f32 %v1841, 1.0
  %v1872 = vadd.f32 %v1843, 1.0
  %v1873 = vadd.f32 %v1845, 1.0
  %v1874 = vadd.f32 %v1847, 1.0
  %v1875 = vadd.f32 %v1849, 1.0
  %v1876 = vadd.f32 %v1851, 1.0
  %v1877 = vadd.f32 %v1853, 1.0
  %v1878 = vadd.f32 %v1855, 1.0
  %v1879 = vadd.f32 %v1857, 1.0
  %v1880 = vadd.f32 %v1859, 1.0
  %v1881 = vadd.f32 %v1861, 1.0
  %v1882 = vadd.f32 %v1863, 1.0
  %v1883 = vadd.f32 %v1865, 1.0
  %v1884 = vadd.f32 %v1867, 1.0
  %v1885 = vadd.f32 %v1869, 1.0
  %v1886 = vrcp.pop %v1870
  %v1887 = vmul.f32 1.0, %v1886
  %v1888 = vrcp.pop %v1871
  %v1889 = vmul.f32 1.0, %v1888
  %v1890 = vrcp.pop %v1872
  %v1891 = vmul.f32 1.0, %v1890
  %v1892 = vrcp.pop %v1873
  %v1893 = vmul.f32 1.0, %v1892
  %v1894 = vrcp.pop %v1874
  %v1895 = vmul.f32 1.0, %v1894
  %v1896 = vrcp.pop %v1875
  %v1897 = vmul.f32 1.0, %v1896
  %v1898 = vrcp.pop %v1876
  %v1899 = vmul.f32 1.0, %v1898
  %v1900 = vrcp.pop %v1877
  %v1901 = vmul.f32 1.0, %v1900
  %v1902 = vrcp.pop %v1878
  %v1903 = vmul.f32 1.0, %v1902
  %v1904 = vrcp.pop %v1879
  %v1905 = vmul.f32 1.0, %v1904
  %v1906 = vrcp.pop %v1880
  %v1907 = vmul.f32 1.0, %v1906
  %v1908 = vrcp.pop %v1881
  %v1909 = vmul.f32 1.0, %v1908
  %v1910 = vrcp.pop %v1882
  %v1911 = vmul.f32 1.0, %v1910
  %v1912 = vrcp.pop %v1883
  %v1913 = vmul.f32 1.0, %v1912
  %v1914 = vrcp.pop %v1884
  %v1915 = vmul.f32 1.0, %v1914
  %v1916 = vrcp.pop %v1885
  %v1917 = vmul.f32 1.0, %v1916
  %1934 = vrot.lane.b32.xlu0 %v1153, 64
  %v1935 = vpop.permute.xlu0 %1934
  %1936 = vrot.lane.b32.xlu0 %v1158, 64
  %v1937 = vpop.permute.xlu0 %1936
  %1938 = vrot.lane.b32.xlu0 %v1163, 64
  %v1939 = vpop.permute.xlu0 %1938
  %1940 = vrot.lane.b32.xlu0 %v1168, 64
  %v1941 = vpop.permute.xlu0 %1940
  %1942 = vrot.lane.b32.xlu0 %v1173, 64
  %v1943 = vpop.permute.xlu0 %1942
  %1944 = vrot.lane.b32.xlu0 %v1178, 64
  %v1945 = vpop.permute.xlu0 %1944
  %1946 = vrot.lane.b32.xlu0 %v1183, 64
  %v1947 = vpop.permute.xlu0 %1946
  %1948 = vrot.lane.b32.xlu0 %v1188, 64
  %v1949 = vpop.permute.xlu0 %1948
  %1950 = vrot.lane.b32.xlu0 %v1193, 64
  %v1951 = vpop.permute.xlu0 %1950
  %1952 = vrot.lane.b32.xlu0 %v1198, 64
  %v1953 = vpop.permute.xlu0 %1952
  %1954 = vrot.lane.b32.xlu0 %v1203, 64
  %v1955 = vpop.permute.xlu0 %1954
  %1956 = vrot.lane.b32.xlu0 %v1208, 64
  %v1957 = vpop.permute.xlu0 %1956
  %1958 = vrot.lane.b32.xlu0 %v1213, 64
  %v1959 = vpop.permute.xlu0 %1958
  %1960 = vrot.lane.b32.xlu0 %v1218, 64
  %v1961 = vpop.permute.xlu0 %1960
  %1962 = vrot.lane.b32.xlu0 %v1223, 64
  %v1963 = vpop.permute.xlu0 %1962
  %1964 = vrot.lane.b32.xlu0 %v1228, 64
  %v1965 = vpop.permute.xlu0 %1964
  %v1982 = vmul.f32 %v1887, %v1935
  %v1983 = vmul.f32 %v1889, %v1937
  %v1984 = vmul.f32 %v1891, %v1939
  %v1985 = vmul.f32 %v1893, %v1941
  %v1986 = vmul.f32 %v1895, %v1943
  %v1987 = vmul.f32 %v1897, %v1945
  %v1988 = vmul.f32 %v1899, %v1947
  %v1989 = vmul.f32 %v1901, %v1949
  %v1990 = vmul.f32 %v1903, %v1951
  %v1991 = vmul.f32 %v1905, %v1953
  %v1992 = vmul.f32 %v1907, %v1955
  %v1993 = vmul.f32 %v1909, %v1957
  %v1994 = vmul.f32 %v1911, %v1959
  %v1995 = vmul.f32 %v1913, %v1961
  %v1996 = vmul.f32 %v1915, %v1963
  %v1997 = vmul.f32 %v1917, %v1965
  %2014 = vrot.lane.b32.xlu0 %v1982, 64
  %v2015 = vpop.permute.xlu0 %2014
  %2016 = vrot.lane.b32.xlu0 %v1983, 64
  %v2017 = vpop.permute.xlu0 %2016
  %2018 = vrot.lane.b32.xlu0 %v1984, 64
  %v2019 = vpop.permute.xlu0 %2018
  %2020 = vrot.lane.b32.xlu0 %v1985, 64
  %v2021 = vpop.permute.xlu0 %2020
  %2022 = vrot.lane.b32.xlu0 %v1986, 64
  %v2023 = vpop.permute.xlu0 %2022
  %2024 = vrot.lane.b32.xlu0 %v1987, 64
  %v2025 = vpop.permute.xlu0 %2024
  %2026 = vrot.lane.b32.xlu0 %v1988, 64
  %v2027 = vpop.permute.xlu0 %2026
  %2028 = vrot.lane.b32.xlu0 %v1989, 64
  %v2029 = vpop.permute.xlu0 %2028
  %2030 = vrot.lane.b32.xlu0 %v1990, 64
  %v2031 = vpop.permute.xlu0 %2030
  %2032 = vrot.lane.b32.xlu0 %v1991, 64
  %v2033 = vpop.permute.xlu0 %2032
  %2034 = vrot.lane.b32.xlu0 %v1992, 64
  %v2035 = vpop.permute.xlu0 %2034
  %2036 = vrot.lane.b32.xlu0 %v1993, 64
  %v2037 = vpop.permute.xlu0 %2036
  %2038 = vrot.lane.b32.xlu0 %v1994, 64
  %v2039 = vpop.permute.xlu0 %2038
  %2040 = vrot.lane.b32.xlu0 %v1995, 64
  %v2041 = vpop.permute.xlu0 %2040
  %2042 = vrot.lane.b32.xlu0 %v1996, 64
  %v2043 = vpop.permute.xlu0 %2042
  %2044 = vrot.lane.b32.xlu0 %v1997, 64
  %v2045 = vpop.permute.xlu0 %2044
  %v2062 = vadd.f32 %v1728, %v2015
  %v2063 = vadd.f32 %v1733, %v2017
  %v2064 = vadd.f32 %v1738, %v2019
  %v2065 = vadd.f32 %v1743, %v2021
  %v2066 = vadd.f32 %v1748, %v2023
  %v2067 = vadd.f32 %v1753, %v2025
  %v2068 = vadd.f32 %v1758, %v2027
  %v2069 = vadd.f32 %v1763, %v2029
  %v2070 = vadd.f32 %v1768, %v2031
  %v2071 = vadd.f32 %v1773, %v2033
  %v2072 = vadd.f32 %v1778, %v2035
  %v2073 = vadd.f32 %v1783, %v2037
  %v2074 = vadd.f32 %v1788, %v2039
  %v2075 = vadd.f32 %v1793, %v2041
  %v2076 = vadd.f32 %v1798, %v2043
  %v2077 = vadd.f32 %v1803, %v2045
  %v2078 = vtanh.pop %v2062
  %v2079 = vtanh.pop %v2063
  %v2080 = vtanh.pop %v2064
  %v2081 = vtanh.pop %v2065
  %v2082 = vtanh.pop %v2066
  %v2083 = vtanh.pop %v2067
  %v2084 = vtanh.pop %v2068
  %v2085 = vtanh.pop %v2069
  %v2086 = vtanh.pop %v2070
  %v2087 = vtanh.pop %v2071
  %v2088 = vtanh.pop %v2072
  %v2089 = vtanh.pop %v2073
  %v2090 = vtanh.pop %v2074
  %v2091 = vtanh.pop %v2075
  %v2092 = vtanh.pop %v2076
  %v2093 = vtanh.pop %v2077
  %v2094 = vsub.f32 %v822, %v2078
  %v2095 = vsub.f32 %v823, %v2079
  %v2096 = vsub.f32 %v824, %v2080
  %v2097 = vsub.f32 %v825, %v2081
  %v2098 = vsub.f32 %v826, %v2082
  %v2099 = vsub.f32 %v827, %v2083
  %v2100 = vsub.f32 %v828, %v2084
  %v2101 = vsub.f32 %v829, %v2085
  %v2102 = vsub.f32 %v830, %v2086
  %v2103 = vsub.f32 %v831, %v2087
  %v2104 = vsub.f32 %v832, %v2088
  %v2105 = vsub.f32 %v833, %v2089
  %v2106 = vsub.f32 %v834, %v2090
  %v2107 = vsub.f32 %v835, %v2091
  %v2108 = vsub.f32 %v836, %v2092
  %v2109 = vsub.f32 %v837, %v2093
  %2126 = vrot.lane.b32.xlu0 %v2094, 96
  %v2127 = vpop.permute.xlu0 %2126
  %2128 = vrot.lane.b32.xlu0 %v2095, 96
  %v2129 = vpop.permute.xlu0 %2128
  %2130 = vrot.lane.b32.xlu0 %v2096, 96
  %v2131 = vpop.permute.xlu0 %2130
  %2132 = vrot.lane.b32.xlu0 %v2097, 96
  %v2133 = vpop.permute.xlu0 %2132
  %2134 = vrot.lane.b32.xlu0 %v2098, 96
  %v2135 = vpop.permute.xlu0 %2134
  %2136 = vrot.lane.b32.xlu0 %v2099, 96
  %v2137 = vpop.permute.xlu0 %2136
  %2138 = vrot.lane.b32.xlu0 %v2100, 96
  %v2139 = vpop.permute.xlu0 %2138
  %2140 = vrot.lane.b32.xlu0 %v2101, 96
  %v2141 = vpop.permute.xlu0 %2140
  %2142 = vrot.lane.b32.xlu0 %v2102, 96
  %v2143 = vpop.permute.xlu0 %2142
  %2144 = vrot.lane.b32.xlu0 %v2103, 96
  %v2145 = vpop.permute.xlu0 %2144
  %2146 = vrot.lane.b32.xlu0 %v2104, 96
  %v2147 = vpop.permute.xlu0 %2146
  %2148 = vrot.lane.b32.xlu0 %v2105, 96
  %v2149 = vpop.permute.xlu0 %2148
  %2150 = vrot.lane.b32.xlu0 %v2106, 96
  %v2151 = vpop.permute.xlu0 %2150
  %2152 = vrot.lane.b32.xlu0 %v2107, 96
  %v2153 = vpop.permute.xlu0 %2152
  %2154 = vrot.lane.b32.xlu0 %v2108, 96
  %v2155 = vpop.permute.xlu0 %2154
  %2156 = vrot.lane.b32.xlu0 %v2109, 96
  %v2157 = vpop.permute.xlu0 %2156
  %v2174 = vmul.f32 %v1887, %v2127
  %v2175 = vmul.f32 %v1889, %v2129
  %v2176 = vmul.f32 %v1891, %v2131
  %v2177 = vmul.f32 %v1893, %v2133
  %v2178 = vmul.f32 %v1895, %v2135
  %v2179 = vmul.f32 %v1897, %v2137
  %v2180 = vmul.f32 %v1899, %v2139
  %v2181 = vmul.f32 %v1901, %v2141
  %v2182 = vmul.f32 %v1903, %v2143
  %v2183 = vmul.f32 %v1905, %v2145
  %v2184 = vmul.f32 %v1907, %v2147
  %v2185 = vmul.f32 %v1909, %v2149
  %v2186 = vmul.f32 %v1911, %v2151
  %v2187 = vmul.f32 %v1913, %v2153
  %v2188 = vmul.f32 %v1915, %v2155
  %v2189 = vmul.f32 %v1917, %v2157
  %2206 = vrot.lane.b32.xlu0 %v2174, 32
  %v2207 = vpop.permute.xlu0 %2206
  %2208 = vrot.lane.b32.xlu0 %v2175, 32
  %v2209 = vpop.permute.xlu0 %2208
  %2210 = vrot.lane.b32.xlu0 %v2176, 32
  %v2211 = vpop.permute.xlu0 %2210
  %2212 = vrot.lane.b32.xlu0 %v2177, 32
  %v2213 = vpop.permute.xlu0 %2212
  %2214 = vrot.lane.b32.xlu0 %v2178, 32
  %v2215 = vpop.permute.xlu0 %2214
  %2216 = vrot.lane.b32.xlu0 %v2179, 32
  %v2217 = vpop.permute.xlu0 %2216
  %2218 = vrot.lane.b32.xlu0 %v2180, 32
  %v2219 = vpop.permute.xlu0 %2218
  %2220 = vrot.lane.b32.xlu0 %v2181, 32
  %v2221 = vpop.permute.xlu0 %2220
  %2222 = vrot.lane.b32.xlu0 %v2182, 32
  %v2223 = vpop.permute.xlu0 %2222
  %2224 = vrot.lane.b32.xlu0 %v2183, 32
  %v2225 = vpop.permute.xlu0 %2224
  %2226 = vrot.lane.b32.xlu0 %v2184, 32
  %v2227 = vpop.permute.xlu0 %2226
  %2228 = vrot.lane.b32.xlu0 %v2185, 32
  %v2229 = vpop.permute.xlu0 %2228
  %2230 = vrot.lane.b32.xlu0 %v2186, 32
  %v2231 = vpop.permute.xlu0 %2230
  %2232 = vrot.lane.b32.xlu0 %v2187, 32
  %v2233 = vpop.permute.xlu0 %2232
  %2234 = vrot.lane.b32.xlu0 %v2188, 32
  %v2235 = vpop.permute.xlu0 %2234
  %2236 = vrot.lane.b32.xlu0 %v2189, 32
  %v2237 = vpop.permute.xlu0 %2236
  %v2254 = vadd.f32 %v2078, %v2207
  %v2255 = vadd.f32 %v2079, %v2209
  %v2256 = vadd.f32 %v2080, %v2211
  %v2257 = vadd.f32 %v2081, %v2213
  %v2258 = vadd.f32 %v2082, %v2215
  %v2259 = vadd.f32 %v2083, %v2217
  %v2260 = vadd.f32 %v2084, %v2219
  %v2261 = vadd.f32 %v2085, %v2221
  %v2262 = vadd.f32 %v2086, %v2223
  %v2263 = vadd.f32 %v2087, %v2225
  %v2264 = vadd.f32 %v2088, %v2227
  %v2265 = vadd.f32 %v2089, %v2229
  %v2266 = vadd.f32 %v2090, %v2231
  %v2267 = vadd.f32 %v2091, %v2233
  %v2268 = vadd.f32 %v2092, %v2235
  %v2269 = vadd.f32 %v2093, %v2237
  %2286 = vrot.lane.b32.xlu0 %v2254, 64
  %v2287 = vpop.permute.xlu0 %2286
  %2288 = vrot.lane.b32.xlu0 %v2255, 64
  %v2289 = vpop.permute.xlu0 %2288
  %2290 = vrot.lane.b32.xlu0 %v2256, 64
  %v2291 = vpop.permute.xlu0 %2290
  %2292 = vrot.lane.b32.xlu0 %v2257, 64
  %v2293 = vpop.permute.xlu0 %2292
  %2294 = vrot.lane.b32.xlu0 %v2258, 64
  %v2295 = vpop.permute.xlu0 %2294
  %2296 = vrot.lane.b32.xlu0 %v2259, 64
  %v2297 = vpop.permute.xlu0 %2296
  %2298 = vrot.lane.b32.xlu0 %v2260, 64
  %v2299 = vpop.permute.xlu0 %2298
  %2300 = vrot.lane.b32.xlu0 %v2261, 64
  %v2301 = vpop.permute.xlu0 %2300
  %2302 = vrot.lane.b32.xlu0 %v2262, 64
  %v2303 = vpop.permute.xlu0 %2302
  %2304 = vrot.lane.b32.xlu0 %v2263, 64
  %v2305 = vpop.permute.xlu0 %2304
  %2306 = vrot.lane.b32.xlu0 %v2264, 64
  %v2307 = vpop.permute.xlu0 %2306
  %2308 = vrot.lane.b32.xlu0 %v2265, 64
  %v2309 = vpop.permute.xlu0 %2308
  %2310 = vrot.lane.b32.xlu0 %v2266, 64
  %v2311 = vpop.permute.xlu0 %2310
  %2312 = vrot.lane.b32.xlu0 %v2267, 64
  %v2313 = vpop.permute.xlu0 %2312
  %2314 = vrot.lane.b32.xlu0 %v2268, 64
  %v2315 = vpop.permute.xlu0 %2314
  %2316 = vrot.lane.b32.xlu0 %v2269, 64
  %v2317 = vpop.permute.xlu0 %2316
  %v2318 = vsel %vm897, %v2287, 0
  %v2320 = vsel %vm897, %v2289, 0
  %v2322 = vsel %vm897, %v2291, 0
  %v2324 = vsel %vm897, %v2293, 0
  %v2326 = vsel %vm897, %v2295, 0
  %v2328 = vsel %vm897, %v2297, 0
  %v2330 = vsel %vm897, %v2299, 0
  %v2332 = vsel %vm897, %v2301, 0
  %v2334 = vsel %vm897, %v2303, 0
  %v2336 = vsel %vm897, %v2305, 0
  %v2338 = vsel %vm897, %v2307, 0
  %v2340 = vsel %vm897, %v2309, 0
  %v2342 = vsel %vm897, %v2311, 0
  %v2344 = vsel %vm897, %v2313, 0
  %v2346 = vsel %vm897, %v2315, 0
  %v2348 = vsel %vm897, %v2317, 0
  %2350 = vmatprep.subr.mxu0 0.0
  %2351 = vmatpush1.msra.mxu0 %v838
  %2352 = vmatprep.subr.mxu0 0.0
  %2353 = vmatpush1.msra.mxu0 %v839
  %2354 = vmatprep.subr.mxu0 0.0
  %2355 = vmatpush1.msra.mxu0 %v840
  %2356 = vmatprep.subr.mxu0 0.0
  %2357 = vmatpush1.msra.mxu0 %v841
  %2358 = vmatprep.subr.mxu0 0.0
  %2359 = vmatpush1.msra.mxu0 0.0
  %2360 = vmatprep.subr.mxu0 0.0
  %2361 = vmatpush1.msra.mxu0 0.0
  %2362 = vmatprep.subr.mxu0 0.0
  %2363 = vmatpush1.msra.mxu0 0.0
  %2364 = vmatprep.subr.mxu0 0.0
  %2365 = vmatpush1.msra.mxu0 0.0
  %2366 = vmatprep.subr.mxu0 0.0
  %2367 = vmatpush1.msra.mxu0 0.0
  %2368 = vmatprep.subr.mxu0 0.0
  %2369 = vmatpush1.msra.mxu0 0.0
  %2370 = vmatprep.subr.mxu0 0.0
  %2371 = vmatpush1.msra.mxu0 0.0
  %2372 = vmatprep.subr.mxu0 0.0
  %2373 = vmatpush1.msra.mxu0 0.0
  %2374 = vmatprep.subr.mxu0 0.0
  %2375 = vmatpush1.msra.mxu0 0.0
  %2376 = vmatprep.subr.mxu0 0.0
  %2377 = vmatpush1.msra.mxu0 0.0
  %2378 = vmatprep.subr.mxu0 0.0
  %2379 = vmatpush1.msra.mxu0 0.0
  %2380 = vmatprep.subr.mxu0 0.0
  %2381 = vmatpush1.msra.mxu0 0.0
  %2382 = vmatprep.subr.mxu0 0.0
  %2383 = vmatpush1.msra.mxu0 0.0
  %2384 = vmatprep.subr.mxu0 0.0
  %2385 = vmatpush1.msra.mxu0 0.0
  %2386 = vmatprep.subr.mxu0 0.0
  %2387 = vmatpush1.msra.mxu0 0.0
  %2388 = vmatprep.subr.mxu0 0.0
  %2389 = vmatpush1.msra.mxu0 0.0
  %2390 = vmatprep.subr.mxu0 0.0
  %2391 = vmatpush1.msra.mxu0 0.0
  %2392 = vmatprep.subr.mxu0 0.0
  %2393 = vmatpush1.msra.mxu0 0.0
  %2394 = vmatprep.subr.mxu0 0.0
  %2395 = vmatpush1.msra.mxu0 0.0
  %2396 = vmatprep.subr.mxu0 0.0
  %2397 = vmatpush1.msra.mxu0 0.0
  %2398 = vmatprep.subr.mxu0 0.0
  %2399 = vmatpush1.msra.mxu0 0.0
  %2400 = vmatprep.subr.mxu0 0.0
  %2401 = vmatpush1.msra.mxu0 0.0
  %2402 = vmatprep.subr.mxu0 0.0
  %2403 = vmatpush1.msra.mxu0 0.0
  %2404 = vmatprep.subr.mxu0 0.0
  %2405 = vmatpush1.msra.mxu0 0.0
  %2406 = vmatprep.subr.mxu0 0.0
  %2407 = vmatpush1.msra.mxu0 0.0
  %2408 = vmatprep.subr.mxu0 0.0
  %2409 = vmatpush1.msra.mxu0 0.0
  %2410 = vmatprep.subr.mxu0 0.0
  %2411 = vmatpush1.msra.mxu0 0.0
  %2412 = vmatprep.subr.mxu0 0.0
  %2413 = vmatpush1.msra.mxu0 0.0
  %2414 = vmatprep.mubr.f32.mxu0 0.0
  %2415 = vmatmul.mubr.f32.gmra.mrb[0].mxu0 %v2318
  %v2416 = vpop.f32.mrb[0].mxu0
  %v2417 = vadd.f32 %v847, %v2416
  %v2418 = vpop.f32.mrb[0].mxu0
  %2419 = vmatprep.mubr.f32.mxu0 0.0
  %2420 = vmatmul.mubr.f32.gmra.mrb[0].mxu0 %v2320
  %v2421 = vpop.f32.mrb[0].mxu0
  %v2422 = vadd.f32 %v847, %v2421
  %v2423 = vpop.f32.mrb[0].mxu0
  %2424 = vmatprep.mubr.f32.mxu0 0.0
  %2425 = vmatmul.mubr.f32.gmra.mrb[0].mxu0 %v2322
  %v2426 = vpop.f32.mrb[0].mxu0
  %v2427 = vadd.f32 %v847, %v2426
  %v2428 = vpop.f32.mrb[0].mxu0
  %2429 = vmatprep.mubr.f32.mxu0 0.0
  %2430 = vmatmul.mubr.f32.gmra.mrb[0].mxu0 %v2324
  %v2431 = vpop.f32.mrb[0].mxu0
  %v2432 = vadd.f32 %v847, %v2431
  %v2433 = vpop.f32.mrb[0].mxu0
  %2434 = vmatprep.mubr.f32.mxu0 0.0
  %2435 = vmatmul.mubr.f32.gmra.mrb[0].mxu0 %v2326
  %v2436 = vpop.f32.mrb[0].mxu0
  %v2437 = vadd.f32 %v847, %v2436
  %v2438 = vpop.f32.mrb[0].mxu0
  %2439 = vmatprep.mubr.f32.mxu0 0.0
  %2440 = vmatmul.mubr.f32.gmra.mrb[0].mxu0 %v2328
  %v2441 = vpop.f32.mrb[0].mxu0
  %v2442 = vadd.f32 %v847, %v2441
  %v2443 = vpop.f32.mrb[0].mxu0
  %2444 = vmatprep.mubr.f32.mxu0 0.0
  %2445 = vmatmul.mubr.f32.gmra.mrb[0].mxu0 %v2330
  %v2446 = vpop.f32.mrb[0].mxu0
  %v2447 = vadd.f32 %v847, %v2446
  %v2448 = vpop.f32.mrb[0].mxu0
  %2449 = vmatprep.mubr.f32.mxu0 0.0
  %2450 = vmatmul.mubr.f32.gmra.mrb[0].mxu0 %v2332
  %v2451 = vpop.f32.mrb[0].mxu0
  %v2452 = vadd.f32 %v847, %v2451
  %v2453 = vpop.f32.mrb[0].mxu0
  %2454 = vmatprep.mubr.f32.mxu0 0.0
  %2455 = vmatmul.mubr.f32.gmra.mrb[0].mxu0 %v2334
  %v2456 = vpop.f32.mrb[0].mxu0
  %v2457 = vadd.f32 %v847, %v2456
  %v2458 = vpop.f32.mrb[0].mxu0
  %2459 = vmatprep.mubr.f32.mxu0 0.0
  %2460 = vmatmul.mubr.f32.gmra.mrb[0].mxu0 %v2336
  %v2461 = vpop.f32.mrb[0].mxu0
  %v2462 = vadd.f32 %v847, %v2461
  %v2463 = vpop.f32.mrb[0].mxu0
  %2464 = vmatprep.mubr.f32.mxu0 0.0
  %2465 = vmatmul.mubr.f32.gmra.mrb[0].mxu0 %v2338
  %v2466 = vpop.f32.mrb[0].mxu0
  %v2467 = vadd.f32 %v847, %v2466
  %v2468 = vpop.f32.mrb[0].mxu0
  %2469 = vmatprep.mubr.f32.mxu0 0.0
  %2470 = vmatmul.mubr.f32.gmra.mrb[0].mxu0 %v2340
  %v2471 = vpop.f32.mrb[0].mxu0
  %v2472 = vadd.f32 %v847, %v2471
  %v2473 = vpop.f32.mrb[0].mxu0
  %2474 = vmatprep.mubr.f32.mxu0 0.0
  %2475 = vmatmul.mubr.f32.gmra.mrb[0].mxu0 %v2342
  %v2476 = vpop.f32.mrb[0].mxu0
  %v2477 = vadd.f32 %v847, %v2476
  %v2478 = vpop.f32.mrb[0].mxu0
  %2479 = vmatprep.mubr.f32.mxu0 0.0
  %2480 = vmatmul.mubr.f32.gmra.mrb[0].mxu0 %v2344
  %v2481 = vpop.f32.mrb[0].mxu0
  %v2482 = vadd.f32 %v847, %v2481
  %v2483 = vpop.f32.mrb[0].mxu0
  %2484 = vmatprep.mubr.f32.mxu0 0.0
  %2485 = vmatmul.mubr.f32.gmra.mrb[0].mxu0 %v2346
  %v2486 = vpop.f32.mrb[0].mxu0
  %v2487 = vadd.f32 %v847, %v2486
  %v2488 = vpop.f32.mrb[0].mxu0
  %2489 = vmatprep.mubr.f32.mxu0 0.0
  %2490 = vmatmul.mubr.f32.gmra.mrb[0].mxu0 %v2348
  %v2491 = vpop.f32.mrb[0].mxu0
  %v2492 = vadd.f32 %v847, %v2491
  %v2493 = vpop.f32.mrb[0].mxu0
  %2494 = vdwg.mxu0
  %2495 = vmatprep.subr.mxu0 0.0
  %2496 = vmatpush1.msra.mxu0 %v1075
  %2497 = vmatprep.subr.mxu0 0.0
  %2498 = vmatpush1.msra.mxu0 %v1076
  %2499 = vmatprep.subr.mxu0 0.0
  %2500 = vmatpush1.msra.mxu0 %v1077
  %2501 = vmatprep.subr.mxu0 0.0
  %2502 = vmatpush1.msra.mxu0 %v1078
  %2503 = vmatprep.subr.mxu0 0.0
  %2504 = vmatpush1.msra.mxu0 0.0
  %2505 = vmatprep.subr.mxu0 0.0
  %2506 = vmatpush1.msra.mxu0 0.0
  %2507 = vmatprep.subr.mxu0 0.0
  %2508 = vmatpush1.msra.mxu0 0.0
  %2509 = vmatprep.subr.mxu0 0.0
  %2510 = vmatpush1.msra.mxu0 0.0
  %2511 = vmatprep.subr.mxu0 0.0
  %2512 = vmatpush1.msra.mxu0 0.0
  %2513 = vmatprep.subr.mxu0 0.0
  %2514 = vmatpush1.msra.mxu0 0.0
  %2515 = vmatprep.subr.mxu0 0.0
  %2516 = vmatpush1.msra.mxu0 0.0
  %2517 = vmatprep.subr.mxu0 0.0
  %2518 = vmatpush1.msra.mxu0 0.0
  %2519 = vmatprep.subr.mxu0 0.0
  %2520 = vmatpush1.msra.mxu0 0.0
  %2521 = vmatprep.subr.mxu0 0.0
  %2522 = vmatpush1.msra.mxu0 0.0
  %2523 = vmatprep.subr.mxu0 0.0
  %2524 = vmatpush1.msra.mxu0 0.0
  %2525 = vmatprep.subr.mxu0 0.0
  %2526 = vmatpush1.msra.mxu0 0.0
  %2527 = vmatprep.subr.mxu0 0.0
  %2528 = vmatpush1.msra.mxu0 0.0
  %2529 = vmatprep.subr.mxu0 0.0
  %2530 = vmatpush1.msra.mxu0 0.0
  %2531 = vmatprep.subr.mxu0 0.0
  %2532 = vmatpush1.msra.mxu0 0.0
  %2533 = vmatprep.subr.mxu0 0.0
  %2534 = vmatpush1.msra.mxu0 0.0
  %2535 = vmatprep.subr.mxu0 0.0
  %2536 = vmatpush1.msra.mxu0 0.0
  %2537 = vmatprep.subr.mxu0 0.0
  %2538 = vmatpush1.msra.mxu0 0.0
  %2539 = vmatprep.subr.mxu0 0.0
  %2540 = vmatpush1.msra.mxu0 0.0
  %2541 = vmatprep.subr.mxu0 0.0
  %2542 = vmatpush1.msra.mxu0 0.0
  %2543 = vmatprep.subr.mxu0 0.0
  %2544 = vmatpush1.msra.mxu0 0.0
  %2545 = vmatprep.subr.mxu0 0.0
  %2546 = vmatpush1.msra.mxu0 0.0
  %2547 = vmatprep.subr.mxu0 0.0
  %2548 = vmatpush1.msra.mxu0 0.0
  %2549 = vmatprep.subr.mxu0 0.0
  %2550 = vmatpush1.msra.mxu0 0.0
  %2551 = vmatprep.subr.mxu0 0.0
  %2552 = vmatpush1.msra.mxu0 0.0
  %2553 = vmatprep.subr.mxu0 0.0
  %2554 = vmatpush1.msra.mxu0 0.0
  %2555 = vmatprep.subr.mxu0 0.0
  %2556 = vmatpush1.msra.mxu0 0.0
  %2557 = vmatprep.subr.mxu0 0.0
  %2558 = vmatpush1.msra.mxu0 0.0
  %2559 = vmatprep.mubr.f32.mxu0 0.0
  %2560 = vmatmul.mubr.f32.gmra.mrb[0].mxu0 %v2318
  %v2561 = vpop.f32.mrb[0].mxu0
  %v2562 = vadd.f32 %v1084, %v2561
  %v2563 = vpop.f32.mrb[0].mxu0
  %2564 = vmatprep.mubr.f32.mxu0 0.0
  %2565 = vmatmul.mubr.f32.gmra.mrb[0].mxu0 %v2320
  %v2566 = vpop.f32.mrb[0].mxu0
  %v2567 = vadd.f32 %v1084, %v2566
  %v2568 = vpop.f32.mrb[0].mxu0
  %2569 = vmatprep.mubr.f32.mxu0 0.0
  %2570 = vmatmul.mubr.f32.gmra.mrb[0].mxu0 %v2322
  %v2571 = vpop.f32.mrb[0].mxu0
  %v2572 = vadd.f32 %v1084, %v2571
  %v2573 = vpop.f32.mrb[0].mxu0
  %2574 = vmatprep.mubr.f32.mxu0 0.0
  %2575 = vmatmul.mubr.f32.gmra.mrb[0].mxu0 %v2324
  %v2576 = vpop.f32.mrb[0].mxu0
  %v2577 = vadd.f32 %v1084, %v2576
  %v2578 = vpop.f32.mrb[0].mxu0
  %2579 = vmatprep.mubr.f32.mxu0 0.0
  %2580 = vmatmul.mubr.f32.gmra.mrb[0].mxu0 %v2326
  %v2581 = vpop.f32.mrb[0].mxu0
  %v2582 = vadd.f32 %v1084, %v2581
  %v2583 = vpop.f32.mrb[0].mxu0
  %2584 = vmatprep.mubr.f32.mxu0 0.0
  %2585 = vmatmul.mubr.f32.gmra.mrb[0].mxu0 %v2328
  %v2586 = vpop.f32.mrb[0].mxu0
  %v2587 = vadd.f32 %v1084, %v2586
  %v2588 = vpop.f32.mrb[0].mxu0
  %2589 = vmatprep.mubr.f32.mxu0 0.0
  %2590 = vmatmul.mubr.f32.gmra.mrb[0].mxu0 %v2330
  %v2591 = vpop.f32.mrb[0].mxu0
  %v2592 = vadd.f32 %v1084, %v2591
  %v2593 = vpop.f32.mrb[0].mxu0
  %2594 = vmatprep.mubr.f32.mxu0 0.0
  %2595 = vmatmul.mubr.f32.gmra.mrb[0].mxu0 %v2332
  %v2596 = vpop.f32.mrb[0].mxu0
  %v2597 = vadd.f32 %v1084, %v2596
  %v2598 = vpop.f32.mrb[0].mxu0
  %2599 = vmatprep.mubr.f32.mxu0 0.0
  %2600 = vmatmul.mubr.f32.gmra.mrb[0].mxu0 %v2334
  %v2601 = vpop.f32.mrb[0].mxu0
  %v2602 = vadd.f32 %v1084, %v2601
  %v2603 = vpop.f32.mrb[0].mxu0
  %2604 = vmatprep.mubr.f32.mxu0 0.0
  %2605 = vmatmul.mubr.f32.gmra.mrb[0].mxu0 %v2336
  %v2606 = vpop.f32.mrb[0].mxu0
  %v2607 = vadd.f32 %v1084, %v2606
  %v2608 = vpop.f32.mrb[0].mxu0
  %2609 = vmatprep.mubr.f32.mxu0 0.0
  %2610 = vmatmul.mubr.f32.gmra.mrb[0].mxu0 %v2338
  %v2611 = vpop.f32.mrb[0].mxu0
  %v2612 = vadd.f32 %v1084, %v2611
  %v2613 = vpop.f32.mrb[0].mxu0
  %2614 = vmatprep.mubr.f32.mxu0 0.0
  %2615 = vmatmul.mubr.f32.gmra.mrb[0].mxu0 %v2340
  %v2616 = vpop.f32.mrb[0].mxu0
  %v2617 = vadd.f32 %v1084, %v2616
  %v2618 = vpop.f32.mrb[0].mxu0
  %2619 = vmatprep.mubr.f32.mxu0 0.0
  %2620 = vmatmul.mubr.f32.gmra.mrb[0].mxu0 %v2342
  %v2621 = vpop.f32.mrb[0].mxu0
  %v2622 = vadd.f32 %v1084, %v2621
  %v2623 = vpop.f32.mrb[0].mxu0
  %2624 = vmatprep.mubr.f32.mxu0 0.0
  %2625 = vmatmul.mubr.f32.gmra.mrb[0].mxu0 %v2344
  %v2626 = vpop.f32.mrb[0].mxu0
  %v2627 = vadd.f32 %v1084, %v2626
  %v2628 = vpop.f32.mrb[0].mxu0
  %2629 = vmatprep.mubr.f32.mxu0 0.0
  %2630 = vmatmul.mubr.f32.gmra.mrb[0].mxu0 %v2346
  %v2631 = vpop.f32.mrb[0].mxu0
  %v2632 = vadd.f32 %v1084, %v2631
  %v2633 = vpop.f32.mrb[0].mxu0
  %2634 = vmatprep.mubr.f32.mxu0 0.0
  %2635 = vmatmul.mubr.f32.gmra.mrb[0].mxu0 %v2348
  %v2636 = vpop.f32.mrb[0].mxu0
  %v2637 = vadd.f32 %v1084, %v2636
  %v2638 = vpop.f32.mrb[0].mxu0
  %2639 = vdwg.mxu0
  %v2640 = vsel %vm1231, %v2417, -inf
  %2641 = vmax.xlane.f32.xlu0 %v2640
  %v2642 = vpop.xlane.xlu0 %2641
  %v2643 = vsel %vm1231, %v2422, -inf
  %2644 = vmax.xlane.f32.xlu0 %v2643
  %v2645 = vpop.xlane.xlu0 %2644
  %v2646 = vsel %vm1231, %v2427, -inf
  %2647 = vmax.xlane.f32.xlu0 %v2646
  %v2648 = vpop.xlane.xlu0 %2647
  %v2649 = vsel %vm1231, %v2432, -inf
  %2650 = vmax.xlane.f32.xlu0 %v2649
  %v2651 = vpop.xlane.xlu0 %2650
  %v2652 = vsel %vm1231, %v2437, -inf
  %2653 = vmax.xlane.f32.xlu0 %v2652
  %v2654 = vpop.xlane.xlu0 %2653
  %v2655 = vsel %vm1231, %v2442, -inf
  %2656 = vmax.xlane.f32.xlu0 %v2655
  %v2657 = vpop.xlane.xlu0 %2656
  %v2658 = vsel %vm1231, %v2447, -inf
  %2659 = vmax.xlane.f32.xlu0 %v2658
  %v2660 = vpop.xlane.xlu0 %2659
  %v2661 = vsel %vm1231, %v2452, -inf
  %2662 = vmax.xlane.f32.xlu0 %v2661
  %v2663 = vpop.xlane.xlu0 %2662
  %v2664 = vsel %vm1231, %v2457, -inf
  %2665 = vmax.xlane.f32.xlu0 %v2664
  %v2666 = vpop.xlane.xlu0 %2665
  %v2667 = vsel %vm1231, %v2462, -inf
  %2668 = vmax.xlane.f32.xlu0 %v2667
  %v2669 = vpop.xlane.xlu0 %2668
  %v2670 = vsel %vm1231, %v2467, -inf
  %2671 = vmax.xlane.f32.xlu0 %v2670
  %v2672 = vpop.xlane.xlu0 %2671
  %v2673 = vsel %vm1231, %v2472, -inf
  %2674 = vmax.xlane.f32.xlu0 %v2673
  %v2675 = vpop.xlane.xlu0 %2674
  %v2676 = vsel %vm1231, %v2477, -inf
  %2677 = vmax.xlane.f32.xlu0 %v2676
  %v2678 = vpop.xlane.xlu0 %2677
  %v2679 = vsel %vm1231, %v2482, -inf
  %2680 = vmax.xlane.f32.xlu0 %v2679
  %v2681 = vpop.xlane.xlu0 %2680
  %v2682 = vsel %vm1231, %v2487, -inf
  %2683 = vmax.xlane.f32.xlu0 %v2682
  %v2684 = vpop.xlane.xlu0 %2683
  %v2685 = vsel %vm1231, %v2492, -inf
  %2686 = vmax.xlane.f32.xlu0 %v2685
  %v2687 = vpop.xlane.xlu0 %2686
  %vm2688 = vcmp.eq.f32.partialorder %v2417, %v2642
  %vm2689 = vcmp.eq.f32.partialorder %v2422, %v2645
  %vm2690 = vcmp.eq.f32.partialorder %v2427, %v2648
  %vm2691 = vcmp.eq.f32.partialorder %v2432, %v2651
  %vm2692 = vcmp.eq.f32.partialorder %v2437, %v2654
  %vm2693 = vcmp.eq.f32.partialorder %v2442, %v2657
  %vm2694 = vcmp.eq.f32.partialorder %v2447, %v2660
  %vm2695 = vcmp.eq.f32.partialorder %v2452, %v2663
  %vm2696 = vcmp.eq.f32.partialorder %v2457, %v2666
  %vm2697 = vcmp.eq.f32.partialorder %v2462, %v2669
  %vm2698 = vcmp.eq.f32.partialorder %v2467, %v2672
  %vm2699 = vcmp.eq.f32.partialorder %v2472, %v2675
  %vm2700 = vcmp.eq.f32.partialorder %v2477, %v2678
  %vm2701 = vcmp.eq.f32.partialorder %v2482, %v2681
  %vm2702 = vcmp.eq.f32.partialorder %v2487, %v2684
  %vm2703 = vcmp.eq.f32.partialorder %v2492, %v2687
  %v2704 = vsel %vm2688, %v255, 10
  %v2705 = vsel %vm2689, %v255, 10
  %v2706 = vsel %vm2690, %v255, 10
  %v2707 = vsel %vm2691, %v255, 10
  %v2708 = vsel %vm2692, %v255, 10
  %v2709 = vsel %vm2693, %v255, 10
  %v2710 = vsel %vm2694, %v255, 10
  %v2711 = vsel %vm2695, %v255, 10
  %v2712 = vsel %vm2696, %v255, 10
  %v2713 = vsel %vm2697, %v255, 10
  %v2714 = vsel %vm2698, %v255, 10
  %v2715 = vsel %vm2699, %v255, 10
  %v2716 = vsel %vm2700, %v255, 10
  %v2717 = vsel %vm2701, %v255, 10
  %v2718 = vsel %vm2702, %v255, 10
  %v2719 = vsel %vm2703, %v255, 10
  %v2720 = vsel %vm1231, %v2704, 2147483647
  %v2721 = vand.u32 %v2720, 65535
  %v2722 = vshra.s32 %v2720, 16
  %v2723 = vcvt.s32.f32 %v2721
  %v2724 = vcvt.s32.f32 %v2722
  %2725 = vmin.xlane.f32.xlu0 %v2724
  %v2726 = vpop.xlane.xlu0 %2725
  %vm2727 = vcmp.eq.f32.partialorder %v2724, %v2726
  %v2728 = vsel %vm2727, %v2723, inf
  %2729 = vmin.xlane.f32.xlu0 %v2728
  %v2730 = vpop.xlane.xlu0 %2729
  %v2731 = vcvt.f32.s32 %v2730
  %v2732 = vcvt.f32.s32 %v2726
  %v2733 = vshll.u32 %v2732, 16
  %v2734 = vadd.s32 %v2733, %v2731
  %v2735 = vsel %vm1231, %v2705, 2147483647
  %v2736 = vand.u32 %v2735, 65535
  %v2737 = vshra.s32 %v2735, 16
  %v2738 = vcvt.s32.f32 %v2736
  %v2739 = vcvt.s32.f32 %v2737
  %2740 = vmin.xlane.f32.xlu0 %v2739
  %v2741 = vpop.xlane.xlu0 %2740
  %vm2742 = vcmp.eq.f32.partialorder %v2739, %v2741
  %v2743 = vsel %vm2742, %v2738, inf
  %2744 = vmin.xlane.f32.xlu0 %v2743
  %v2745 = vpop.xlane.xlu0 %2744
  %v2746 = vcvt.f32.s32 %v2745
  %v2747 = vcvt.f32.s32 %v2741
  %v2748 = vshll.u32 %v2747, 16
  %v2749 = vadd.s32 %v2748, %v2746
  %v2750 = vsel %vm1231, %v2706, 2147483647
  %v2751 = vand.u32 %v2750, 65535
  %v2752 = vshra.s32 %v2750, 16
  %v2753 = vcvt.s32.f32 %v2751
  %v2754 = vcvt.s32.f32 %v2752
  %2755 = vmin.xlane.f32.xlu0 %v2754
  %v2756 = vpop.xlane.xlu0 %2755
  %vm2757 = vcmp.eq.f32.partialorder %v2754, %v2756
  %v2758 = vsel %vm2757, %v2753, inf
  %2759 = vmin.xlane.f32.xlu0 %v2758
  %v2760 = vpop.xlane.xlu0 %2759
  %v2761 = vcvt.f32.s32 %v2760
  %v2762 = vcvt.f32.s32 %v2756
  %v2763 = vshll.u32 %v2762, 16
  %v2764 = vadd.s32 %v2763, %v2761
  %v2765 = vsel %vm1231, %v2707, 2147483647
  %v2766 = vand.u32 %v2765, 65535
  %v2767 = vshra.s32 %v2765, 16
  %v2768 = vcvt.s32.f32 %v2766
  %v2769 = vcvt.s32.f32 %v2767
  %2770 = vmin.xlane.f32.xlu0 %v2769
  %v2771 = vpop.xlane.xlu0 %2770
  %vm2772 = vcmp.eq.f32.partialorder %v2769, %v2771
  %v2773 = vsel %vm2772, %v2768, inf
  %2774 = vmin.xlane.f32.xlu0 %v2773
  %v2775 = vpop.xlane.xlu0 %2774
  %v2776 = vcvt.f32.s32 %v2775
  %v2777 = vcvt.f32.s32 %v2771
  %v2778 = vshll.u32 %v2777, 16
  %v2779 = vadd.s32 %v2778, %v2776
  %v2780 = vsel %vm1231, %v2708, 2147483647
  %v2781 = vand.u32 %v2780, 65535
  %v2782 = vshra.s32 %v2780, 16
  %v2783 = vcvt.s32.f32 %v2781
  %v2784 = vcvt.s32.f32 %v2782
  %2785 = vmin.xlane.f32.xlu0 %v2784
  %v2786 = vpop.xlane.xlu0 %2785
  %vm2787 = vcmp.eq.f32.partialorder %v2784, %v2786
  %v2788 = vsel %vm2787, %v2783, inf
  %2789 = vmin.xlane.f32.xlu0 %v2788
  %v2790 = vpop.xlane.xlu0 %2789
  %v2791 = vcvt.f32.s32 %v2790
  %v2792 = vcvt.f32.s32 %v2786
  %v2793 = vshll.u32 %v2792, 16
  %v2794 = vadd.s32 %v2793, %v2791
  %v2795 = vsel %vm1231, %v2709, 2147483647
  %v2796 = vand.u32 %v2795, 65535
  %v2797 = vshra.s32 %v2795, 16
  %v2798 = vcvt.s32.f32 %v2796
  %v2799 = vcvt.s32.f32 %v2797
  %2800 = vmin.xlane.f32.xlu0 %v2799
  %v2801 = vpop.xlane.xlu0 %2800
  %vm2802 = vcmp.eq.f32.partialorder %v2799, %v2801
  %v2803 = vsel %vm2802, %v2798, inf
  %2804 = vmin.xlane.f32.xlu0 %v2803
  %v2805 = vpop.xlane.xlu0 %2804
  %v2806 = vcvt.f32.s32 %v2805
  %v2807 = vcvt.f32.s32 %v2801
  %v2808 = vshll.u32 %v2807, 16
  %v2809 = vadd.s32 %v2808, %v2806
  %v2810 = vsel %vm1231, %v2710, 2147483647
  %v2811 = vand.u32 %v2810, 65535
  %v2812 = vshra.s32 %v2810, 16
  %v2813 = vcvt.s32.f32 %v2811
  %v2814 = vcvt.s32.f32 %v2812
  %2815 = vmin.xlane.f32.xlu0 %v2814
  %v2816 = vpop.xlane.xlu0 %2815
  %vm2817 = vcmp.eq.f32.partialorder %v2814, %v2816
  %v2818 = vsel %vm2817, %v2813, inf
  %2819 = vmin.xlane.f32.xlu0 %v2818
  %v2820 = vpop.xlane.xlu0 %2819
  %v2821 = vcvt.f32.s32 %v2820
  %v2822 = vcvt.f32.s32 %v2816
  %v2823 = vshll.u32 %v2822, 16
  %v2824 = vadd.s32 %v2823, %v2821
  %v2825 = vsel %vm1231, %v2711, 2147483647
  %v2826 = vand.u32 %v2825, 65535
  %v2827 = vshra.s32 %v2825, 16
  %v2828 = vcvt.s32.f32 %v2826
  %v2829 = vcvt.s32.f32 %v2827
  %2830 = vmin.xlane.f32.xlu0 %v2829
  %v2831 = vpop.xlane.xlu0 %2830
  %vm2832 = vcmp.eq.f32.partialorder %v2829, %v2831
  %v2833 = vsel %vm2832, %v2828, inf
  %2834 = vmin.xlane.f32.xlu0 %v2833
  %v2835 = vpop.xlane.xlu0 %2834
  %v2836 = vcvt.f32.s32 %v2835
  %v2837 = vcvt.f32.s32 %v2831
  %v2838 = vshll.u32 %v2837, 16
  %v2839 = vadd.s32 %v2838, %v2836
  %v2840 = vsel %vm1231, %v2712, 2147483647
  %v2841 = vand.u32 %v2840, 65535
  %v2842 = vshra.s32 %v2840, 16
  %v2843 = vcvt.s32.f32 %v2841
  %v2844 = vcvt.s32.f32 %v2842
  %2845 = vmin.xlane.f32.xlu0 %v2844
  %v2846 = vpop.xlane.xlu0 %2845
  %vm2847 = vcmp.eq.f32.partialorder %v2844, %v2846
  %v2848 = vsel %vm2847, %v2843, inf
  %2849 = vmin.xlane.f32.xlu0 %v2848
  %v2850 = vpop.xlane.xlu0 %2849
  %v2851 = vcvt.f32.s32 %v2850
  %v2852 = vcvt.f32.s32 %v2846
  %v2853 = vshll.u32 %v2852, 16
  %v2854 = vadd.s32 %v2853, %v2851
  %v2855 = vsel %vm1231, %v2713, 2147483647
  %v2856 = vand.u32 %v2855, 65535
  %v2857 = vshra.s32 %v2855, 16
  %v2858 = vcvt.s32.f32 %v2856
  %v2859 = vcvt.s32.f32 %v2857
  %2860 = vmin.xlane.f32.xlu0 %v2859
  %v2861 = vpop.xlane.xlu0 %2860
  %vm2862 = vcmp.eq.f32.partialorder %v2859, %v2861
  %v2863 = vsel %vm2862, %v2858, inf
  %2864 = vmin.xlane.f32.xlu0 %v2863
  %v2865 = vpop.xlane.xlu0 %2864
  %v2866 = vcvt.f32.s32 %v2865
  %v2867 = vcvt.f32.s32 %v2861
  %v2868 = vshll.u32 %v2867, 16
  %v2869 = vadd.s32 %v2868, %v2866
  %v2870 = vsel %vm1231, %v2714, 2147483647
  %v2871 = vand.u32 %v2870, 65535
  %v2872 = vshra.s32 %v2870, 16
  %v2873 = vcvt.s32.f32 %v2871
  %v2874 = vcvt.s32.f32 %v2872
  %2875 = vmin.xlane.f32.xlu0 %v2874
  %v2876 = vpop.xlane.xlu0 %2875
  %vm2877 = vcmp.eq.f32.partialorder %v2874, %v2876
  %v2878 = vsel %vm2877, %v2873, inf
  %2879 = vmin.xlane.f32.xlu0 %v2878
  %v2880 = vpop.xlane.xlu0 %2879
  %v2881 = vcvt.f32.s32 %v2880
  %v2882 = vcvt.f32.s32 %v2876
  %v2883 = vshll.u32 %v2882, 16
  %v2884 = vadd.s32 %v2883, %v2881
  %v2885 = vsel %vm1231, %v2715, 2147483647
  %v2886 = vand.u32 %v2885, 65535
  %v2887 = vshra.s32 %v2885, 16
  %v2888 = vcvt.s32.f32 %v2886
  %v2889 = vcvt.s32.f32 %v2887
  %2890 = vmin.xlane.f32.xlu0 %v2889
  %v2891 = vpop.xlane.xlu0 %2890
  %vm2892 = vcmp.eq.f32.partialorder %v2889, %v2891
  %v2893 = vsel %vm2892, %v2888, inf
  %2894 = vmin.xlane.f32.xlu0 %v2893
  %v2895 = vpop.xlane.xlu0 %2894
  %v2896 = vcvt.f32.s32 %v2895
  %v2897 = vcvt.f32.s32 %v2891
  %v2898 = vshll.u32 %v2897, 16
  %v2899 = vadd.s32 %v2898, %v2896
  %v2900 = vsel %vm1231, %v2716, 2147483647
  %v2901 = vand.u32 %v2900, 65535
  %v2902 = vshra.s32 %v2900, 16
  %v2903 = vcvt.s32.f32 %v2901
  %v2904 = vcvt.s32.f32 %v2902
  %2905 = vmin.xlane.f32.xlu0 %v2904
  %v2906 = vpop.xlane.xlu0 %2905
  %vm2907 = vcmp.eq.f32.partialorder %v2904, %v2906
  %v2908 = vsel %vm2907, %v2903, inf
  %2909 = vmin.xlane.f32.xlu0 %v2908
  %v2910 = vpop.xlane.xlu0 %2909
  %v2911 = vcvt.f32.s32 %v2910
  %v2912 = vcvt.f32.s32 %v2906
  %v2913 = vshll.u32 %v2912, 16
  %v2914 = vadd.s32 %v2913, %v2911
  %v2915 = vsel %vm1231, %v2717, 2147483647
  %v2916 = vand.u32 %v2915, 65535
  %v2917 = vshra.s32 %v2915, 16
  %v2918 = vcvt.s32.f32 %v2916
  %v2919 = vcvt.s32.f32 %v2917
  %2920 = vmin.xlane.f32.xlu0 %v2919
  %v2921 = vpop.xlane.xlu0 %2920
  %vm2922 = vcmp.eq.f32.partialorder %v2919, %v2921
  %v2923 = vsel %vm2922, %v2918, inf
  %2924 = vmin.xlane.f32.xlu0 %v2923
  %v2925 = vpop.xlane.xlu0 %2924
  %v2926 = vcvt.f32.s32 %v2925
  %v2927 = vcvt.f32.s32 %v2921
  %v2928 = vshll.u32 %v2927, 16
  %v2929 = vadd.s32 %v2928, %v2926
  %v2930 = vsel %vm1231, %v2718, 2147483647
  %v2931 = vand.u32 %v2930, 65535
  %v2932 = vshra.s32 %v2930, 16
  %v2933 = vcvt.s32.f32 %v2931
  %v2934 = vcvt.s32.f32 %v2932
  %2935 = vmin.xlane.f32.xlu0 %v2934
  %v2936 = vpop.xlane.xlu0 %2935
  %vm2937 = vcmp.eq.f32.partialorder %v2934, %v2936
  %v2938 = vsel %vm2937, %v2933, inf
  %2939 = vmin.xlane.f32.xlu0 %v2938
  %v2940 = vpop.xlane.xlu0 %2939
  %v2941 = vcvt.f32.s32 %v2940
  %v2942 = vcvt.f32.s32 %v2936
  %v2943 = vshll.u32 %v2942, 16
  %v2944 = vadd.s32 %v2943, %v2941
  %v2945 = vsel %vm1231, %v2719, 2147483647
  %v2946 = vand.u32 %v2945, 65535
  %v2947 = vshra.s32 %v2945, 16
  %v2948 = vcvt.s32.f32 %v2946
  %v2949 = vcvt.s32.f32 %v2947
  %2950 = vmin.xlane.f32.xlu0 %v2949
  %v2951 = vpop.xlane.xlu0 %2950
  %vm2952 = vcmp.eq.f32.partialorder %v2949, %v2951
  %v2953 = vsel %vm2952, %v2948, inf
  %2954 = vmin.xlane.f32.xlu0 %v2953
  %v2955 = vpop.xlane.xlu0 %2954
  %v2956 = vcvt.f32.s32 %v2955
  %v2957 = vcvt.f32.s32 %v2951
  %v2958 = vshll.u32 %v2957, 16
  %v2959 = vadd.s32 %v2958, %v2956
  %vm2960 = vcmp.eq.s32.totalorder %v255, %v2734
  %vm2961 = vcmp.eq.s32.totalorder %v255, %v2749
  %vm2962 = vcmp.eq.s32.totalorder %v255, %v2764
  %vm2963 = vcmp.eq.s32.totalorder %v255, %v2779
  %vm2964 = vcmp.eq.s32.totalorder %v255, %v2794
  %vm2965 = vcmp.eq.s32.totalorder %v255, %v2809
  %vm2966 = vcmp.eq.s32.totalorder %v255, %v2824
  %vm2967 = vcmp.eq.s32.totalorder %v255, %v2839
  %vm2968 = vcmp.eq.s32.totalorder %v255, %v2854
  %vm2969 = vcmp.eq.s32.totalorder %v255, %v2869
  %vm2970 = vcmp.eq.s32.totalorder %v255, %v2884
  %vm2971 = vcmp.eq.s32.totalorder %v255, %v2899
  %vm2972 = vcmp.eq.s32.totalorder %v255, %v2914
  %vm2973 = vcmp.eq.s32.totalorder %v255, %v2929
  %vm2974 = vcmp.eq.s32.totalorder %v255, %v2944
  %vm2975 = vcmp.eq.s32.totalorder %v255, %v2959
  %v2976 = vsel %vm2960, 1, 0
  %v2977 = vsel %vm2961, 1, 0
  %v2978 = vsel %vm2962, 1, 0
  %v2979 = vsel %vm2963, 1, 0
  %v2980 = vsel %vm2964, 1, 0
  %v2981 = vsel %vm2965, 1, 0
  %v2982 = vsel %vm2966, 1, 0
  %v2983 = vsel %vm2967, 1, 0
  %v2984 = vsel %vm2968, 1, 0
  %v2985 = vsel %vm2969, 1, 0
  %v2986 = vsel %vm2970, 1, 0
  %v2987 = vsel %vm2971, 1, 0
  %v2988 = vsel %vm2972, 1, 0
  %v2989 = vsel %vm2973, 1, 0
  %v2990 = vsel %vm2974, 1, 0
  %v2991 = vsel %vm2975, 1, 0
  %v2992 = vcvt.s32.f32 %v2976
  %v2993 = vcvt.s32.f32 %v2977
  %v2994 = vcvt.s32.f32 %v2978
  %v2995 = vcvt.s32.f32 %v2979
  %v2996 = vcvt.s32.f32 %v2980
  %v2997 = vcvt.s32.f32 %v2981
  %v2998 = vcvt.s32.f32 %v2982
  %v2999 = vcvt.s32.f32 %v2983
  %v3000 = vcvt.s32.f32 %v2984
  %v3001 = vcvt.s32.f32 %v2985
  %v3002 = vcvt.s32.f32 %v2986
  %v3003 = vcvt.s32.f32 %v2987
  %v3004 = vcvt.s32.f32 %v2988
  %v3005 = vcvt.s32.f32 %v2989
  %v3006 = vcvt.s32.f32 %v2990
  %v3007 = vcvt.s32.f32 %v2991
  %v3009 = vsel %vm1231, %v2992, 0
  %v3012 = vsel %vm1231, %v2993, 0
  %v3015 = vsel %vm1231, %v2994, 0
  %v3018 = vsel %vm1231, %v2995, 0
  %v3021 = vsel %vm1231, %v2996, 0
  %v3024 = vsel %vm1231, %v2997, 0
  %v3027 = vsel %vm1231, %v2998, 0
  %v3030 = vsel %vm1231, %v2999, 0
  %v3033 = vsel %vm1231, %v3000, 0
  %v3036 = vsel %vm1231, %v3001, 0
  %v3039 = vsel %vm1231, %v3002, 0
  %v3042 = vsel %vm1231, %v3003, 0
  %v3045 = vsel %vm1231, %v3004, 0
  %v3048 = vsel %vm1231, %v3005, 0
  %v3051 = vsel %vm1231, %v3006, 0
  %v3054 = vsel %vm1231, %v3007, 0
  %3056 = vmatprep.subr.mxu0 0.0
  %3057 = vmatpush1.msra.mxu0 %v1600
  %3058 = vmatprep.subr.mxu0 0.0
  %3059 = vmatpush1.msra.mxu0 %v1659
  %3060 = vmatprep.subr.mxu0 0.0
  %3061 = vmatpush1.msra.mxu0 0.0
  %3062 = vmatprep.subr.mxu0 0.0
  %3063 = vmatpush1.msra.mxu0 0.0
  %3064 = vmatprep.subr.mxu0 0.0
  %3065 = vmatpush1.msra.mxu0 0.0
  %3066 = vmatprep.subr.mxu0 0.0
  %3067 = vmatpush1.msra.mxu0 0.0
  %3068 = vmatprep.subr.mxu0 0.0
  %3069 = vmatpush1.msra.mxu0 0.0
  %3070 = vmatprep.subr.mxu0 0.0
  %3071 = vmatpush1.msra.mxu0 0.0
  %3072 = vmatprep.subr.mxu0 0.0
  %3073 = vmatpush1.msra.mxu0 0.0
  %3074 = vmatprep.subr.mxu0 0.0
  %3075 = vmatpush1.msra.mxu0 0.0
  %3076 = vmatprep.subr.mxu0 0.0
  %3077 = vmatpush1.msra.mxu0 0.0
  %3078 = vmatprep.subr.mxu0 0.0
  %3079 = vmatpush1.msra.mxu0 0.0
  %3080 = vmatprep.subr.mxu0 0.0
  %3081 = vmatpush1.msra.mxu0 0.0
  %3082 = vmatprep.subr.mxu0 0.0
  %3083 = vmatpush1.msra.mxu0 0.0
  %3084 = vmatprep.subr.mxu0 0.0
  %3085 = vmatpush1.msra.mxu0 0.0
  %3086 = vmatprep.subr.mxu0 0.0
  %3087 = vmatpush1.msra.mxu0 0.0
  %3088 = vmatprep.subr.mxu0 0.0
  %3089 = vmatpush1.msra.mxu0 0.0
  %3090 = vmatprep.subr.mxu0 0.0
  %3091 = vmatpush1.msra.mxu0 0.0
  %3092 = vmatprep.subr.mxu0 0.0
  %3093 = vmatpush1.msra.mxu0 0.0
  %3094 = vmatprep.subr.mxu0 0.0
  %3095 = vmatpush1.msra.mxu0 0.0
  %3096 = vmatprep.subr.mxu0 0.0
  %3097 = vmatpush1.msra.mxu0 0.0
  %3098 = vmatprep.subr.mxu0 0.0
  %3099 = vmatpush1.msra.mxu0 0.0
  %3100 = vmatprep.subr.mxu0 0.0
  %3101 = vmatpush1.msra.mxu0 0.0
  %3102 = vmatprep.subr.mxu0 0.0
  %3103 = vmatpush1.msra.mxu0 0.0
  %3104 = vmatprep.subr.mxu0 0.0
  %3105 = vmatpush1.msra.mxu0 0.0
  %3106 = vmatprep.subr.mxu0 0.0
  %3107 = vmatpush1.msra.mxu0 0.0
  %3108 = vmatprep.subr.mxu0 0.0
  %3109 = vmatpush1.msra.mxu0 0.0
  %3110 = vmatprep.subr.mxu0 0.0
  %3111 = vmatpush1.msra.mxu0 0.0
  %3112 = vmatprep.subr.mxu0 0.0
  %3113 = vmatpush1.msra.mxu0 0.0
  %3114 = vmatprep.subr.mxu0 0.0
  %3115 = vmatpush1.msra.mxu0 0.0
  %3116 = vmatprep.subr.mxu0 0.0
  %3117 = vmatpush1.msra.mxu0 0.0
  %3118 = vmatprep.subr.mxu0 0.0
  %3119 = vmatpush1.msra.mxu0 0.0
  %3120 = vmatprep.mubr.f32.mxu0 0.0
  %3121 = vmatmul.mubr.f32.gmra.mrb[0].mxu0 %v3009
  %v3122 = vpop.f32.mrb[0].mxu0
  %v3123 = vadd.f32 %v1607, %v3122
  %v3124 = vpop.f32.mrb[0].mxu0
  %3125 = vmatprep.mubr.f32.mxu0 0.0
  %3126 = vmatmul.mubr.f32.gmra.mrb[0].mxu0 %v3012
  %v3127 = vpop.f32.mrb[0].mxu0
  %v3128 = vadd.f32 %v1607, %v3127
  %v3129 = vpop.f32.mrb[0].mxu0
  %3130 = vmatprep.mubr.f32.mxu0 0.0
  %3131 = vmatmul.mubr.f32.gmra.mrb[0].mxu0 %v3015
  %v3132 = vpop.f32.mrb[0].mxu0
  %v3133 = vadd.f32 %v1607, %v3132
  %v3134 = vpop.f32.mrb[0].mxu0
  %3135 = vmatprep.mubr.f32.mxu0 0.0
  %3136 = vmatmul.mubr.f32.gmra.mrb[0].mxu0 %v3018
  %v3137 = vpop.f32.mrb[0].mxu0
  %v3138 = vadd.f32 %v1607, %v3137
  %v3139 = vpop.f32.mrb[0].mxu0
  %3140 = vmatprep.mubr.f32.mxu0 0.0
  %3141 = vmatmul.mubr.f32.gmra.mrb[0].mxu0 %v3021
  %v3142 = vpop.f32.mrb[0].mxu0
  %v3143 = vadd.f32 %v1607, %v3142
  %v3144 = vpop.f32.mrb[0].mxu0
  %3145 = vmatprep.mubr.f32.mxu0 0.0
  %3146 = vmatmul.mubr.f32.gmra.mrb[0].mxu0 %v3024
  %v3147 = vpop.f32.mrb[0].mxu0
  %v3148 = vadd.f32 %v1607, %v3147
  %v3149 = vpop.f32.mrb[0].mxu0
  %3150 = vmatprep.mubr.f32.mxu0 0.0
  %3151 = vmatmul.mubr.f32.gmra.mrb[0].mxu0 %v3027
  %v3152 = vpop.f32.mrb[0].mxu0
  %v3153 = vadd.f32 %v1607, %v3152
  %v3154 = vpop.f32.mrb[0].mxu0
  %3155 = vmatprep.mubr.f32.mxu0 0.0
  %3156 = vmatmul.mubr.f32.gmra.mrb[0].mxu0 %v3030
  %v3157 = vpop.f32.mrb[0].mxu0
  %v3158 = vadd.f32 %v1607, %v3157
  %v3159 = vpop.f32.mrb[0].mxu0
  %3160 = vmatprep.mubr.f32.mxu0 0.0
  %3161 = vmatmul.mubr.f32.gmra.mrb[0].mxu0 %v3033
  %v3162 = vpop.f32.mrb[0].mxu0
  %v3163 = vadd.f32 %v1607, %v3162
  %v3164 = vpop.f32.mrb[0].mxu0
  %3165 = vmatprep.mubr.f32.mxu0 0.0
  %3166 = vmatmul.mubr.f32.gmra.mrb[0].mxu0 %v3036
  %v3167 = vpop.f32.mrb[0].mxu0
  %v3168 = vadd.f32 %v1607, %v3167
  %v3169 = vpop.f32.mrb[0].mxu0
  %3170 = vmatprep.mubr.f32.mxu0 0.0
  %3171 = vmatmul.mubr.f32.gmra.mrb[0].mxu0 %v3039
  %v3172 = vpop.f32.mrb[0].mxu0
  %v3173 = vadd.f32 %v1607, %v3172
  %v3174 = vpop.f32.mrb[0].mxu0
  %3175 = vmatprep.mubr.f32.mxu0 0.0
  %3176 = vmatmul.mubr.f32.gmra.mrb[0].mxu0 %v3042
  %v3177 = vpop.f32.mrb[0].mxu0
  %v3178 = vadd.f32 %v1607, %v3177
  %v3179 = vpop.f32.mrb[0].mxu0
  %3180 = vmatprep.mubr.f32.mxu0 0.0
  %3181 = vmatmul.mubr.f32.gmra.mrb[0].mxu0 %v3045
  %v3182 = vpop.f32.mrb[0].mxu0
  %v3183 = vadd.f32 %v1607, %v3182
  %v3184 = vpop.f32.mrb[0].mxu0
  %3185 = vmatprep.mubr.f32.mxu0 0.0
  %3186 = vmatmul.mubr.f32.gmra.mrb[0].mxu0 %v3048
  %v3187 = vpop.f32.mrb[0].mxu0
  %v3188 = vadd.f32 %v1607, %v3187
  %v3189 = vpop.f32.mrb[0].mxu0
  %3190 = vmatprep.mubr.f32.mxu0 0.0
  %3191 = vmatmul.mubr.f32.gmra.mrb[0].mxu0 %v3051
  %v3192 = vpop.f32.mrb[0].mxu0
  %v3193 = vadd.f32 %v1607, %v3192
  %v3194 = vpop.f32.mrb[0].mxu0
  %3195 = vmatprep.mubr.f32.mxu0 0.0
  %3196 = vmatmul.mubr.f32.gmra.mrb[0].mxu0 %v3054
  %v3197 = vpop.f32.mrb[0].mxu0
  %v3198 = vadd.f32 %v1607, %v3197
  %v3199 = vpop.f32.mrb[0].mxu0
  %3200 = vdwg.mxu0
  %v3201 = vadd.f32 %v3123, %v2562
  %v3202 = vadd.f32 %v3128, %v2567
  %v3203 = vadd.f32 %v3133, %v2572
  %v3204 = vadd.f32 %v3138, %v2577
  %v3205 = vadd.f32 %v3143, %v2582
  %v3206 = vadd.f32 %v3148, %v2587
  %v3207 = vadd.f32 %v3153, %v2592
  %v3208 = vadd.f32 %v3158, %v2597
  %v3209 = vadd.f32 %v3163, %v2602
  %v3210 = vadd.f32 %v3168, %v2607
  %v3211 = vadd.f32 %v3173, %v2612
  %v3212 = vadd.f32 %v3178, %v2617
  %v3213 = vadd.f32 %v3183, %v2622
  %v3214 = vadd.f32 %v3188, %v2627
  %v3215 = vadd.f32 %v3193, %v2632
  %v3216 = vadd.f32 %v3198, %v2637
  %v3217 = vxor.u32 %v3201, 2147483648
  %v3218 = vxor.u32 %v3202, 2147483648
  %v3219 = vxor.u32 %v3203, 2147483648
  %v3220 = vxor.u32 %v3204, 2147483648
  %v3221 = vxor.u32 %v3205, 2147483648
  %v3222 = vxor.u32 %v3206, 2147483648
  %v3223 = vxor.u32 %v3207, 2147483648
  %v3224 = vxor.u32 %v3208, 2147483648
  %v3225 = vxor.u32 %v3209, 2147483648
  %v3226 = vxor.u32 %v3210, 2147483648
  %v3227 = vxor.u32 %v3211, 2147483648
  %v3228 = vxor.u32 %v3212, 2147483648
  %v3229 = vxor.u32 %v3213, 2147483648
  %v3230 = vxor.u32 %v3214, 2147483648
  %v3231 = vxor.u32 %v3215, 2147483648
  %v3232 = vxor.u32 %v3216, 2147483648
  %v3233 = vmul.f32 %v3217, 1.442695
  %v3234 = vpow.pop %v3233
  %v3235 = vmul.f32 %v3218, 1.442695
  %v3236 = vpow.pop %v3235
  %v3237 = vmul.f32 %v3219, 1.442695
  %v3238 = vpow.pop %v3237
  %v3239 = vmul.f32 %v3220, 1.442695
  %v3240 = vpow.pop %v3239
  %v3241 = vmul.f32 %v3221, 1.442695
  %v3242 = vpow.pop %v3241
  %v3243 = vmul.f32 %v3222, 1.442695
  %v3244 = vpow.pop %v3243
  %v3245 = vmul.f32 %v3223, 1.442695
  %v3246 = vpow.pop %v3245
  %v3247 = vmul.f32 %v3224, 1.442695
  %v3248 = vpow.pop %v3247
  %v3249 = vmul.f32 %v3225, 1.442695
  %v3250 = vpow.pop %v3249
  %v3251 = vmul.f32 %v3226, 1.442695
  %v3252 = vpow.pop %v3251
  %v3253 = vmul.f32 %v3227, 1.442695
  %v3254 = vpow.pop %v3253
  %v3255 = vmul.f32 %v3228, 1.442695
  %v3256 = vpow.pop %v3255
  %v3257 = vmul.f32 %v3229, 1.442695
  %v3258 = vpow.pop %v3257
  %v3259 = vmul.f32 %v3230, 1.442695
  %v3260 = vpow.pop %v3259
  %v3261 = vmul.f32 %v3231, 1.442695
  %v3262 = vpow.pop %v3261
  %v3263 = vmul.f32 %v3232, 1.442695
  %v3264 = vpow.pop %v3263
  %v3265 = vadd.f32 %v3234, 1.0
  %v3266 = vadd.f32 %v3236, 1.0
  %v3267 = vadd.f32 %v3238, 1.0
  %v3268 = vadd.f32 %v3240, 1.0
  %v3269 = vadd.f32 %v3242, 1.0
  %v3270 = vadd.f32 %v3244, 1.0
  %v3271 = vadd.f32 %v3246, 1.0
  %v3272 = vadd.f32 %v3248, 1.0
  %v3273 = vadd.f32 %v3250, 1.0
  %v3274 = vadd.f32 %v3252, 1.0
  %v3275 = vadd.f32 %v3254, 1.0
  %v3276 = vadd.f32 %v3256, 1.0
  %v3277 = vadd.f32 %v3258, 1.0
  %v3278 = vadd.f32 %v3260, 1.0
  %v3279 = vadd.f32 %v3262, 1.0
  %v3280 = vadd.f32 %v3264, 1.0
  %v3281 = vrcp.pop %v3265
  %v3282 = vmul.f32 1.0, %v3281
  %v3283 = vrcp.pop %v3266
  %v3284 = vmul.f32 1.0, %v3283
  %v3285 = vrcp.pop %v3267
  %v3286 = vmul.f32 1.0, %v3285
  %v3287 = vrcp.pop %v3268
  %v3288 = vmul.f32 1.0, %v3287
  %v3289 = vrcp.pop %v3269
  %v3290 = vmul.f32 1.0, %v3289
  %v3291 = vrcp.pop %v3270
  %v3292 = vmul.f32 1.0, %v3291
  %v3293 = vrcp.pop %v3271
  %v3294 = vmul.f32 1.0, %v3293
  %v3295 = vrcp.pop %v3272
  %v3296 = vmul.f32 1.0, %v3295
  %v3297 = vrcp.pop %v3273
  %v3298 = vmul.f32 1.0, %v3297
  %v3299 = vrcp.pop %v3274
  %v3300 = vmul.f32 1.0, %v3299
  %v3301 = vrcp.pop %v3275
  %v3302 = vmul.f32 1.0, %v3301
  %v3303 = vrcp.pop %v3276
  %v3304 = vmul.f32 1.0, %v3303
  %v3305 = vrcp.pop %v3277
  %v3306 = vmul.f32 1.0, %v3305
  %v3307 = vrcp.pop %v3278
  %v3308 = vmul.f32 1.0, %v3307
  %v3309 = vrcp.pop %v3279
  %v3310 = vmul.f32 1.0, %v3309
  %v3311 = vrcp.pop %v3280
  %v3312 = vmul.f32 1.0, %v3311
  %3329 = vrot.lane.b32.xlu0 %v2562, 64
  %v3330 = vpop.permute.xlu0 %3329
  %3331 = vrot.lane.b32.xlu0 %v2567, 64
  %v3332 = vpop.permute.xlu0 %3331
  %3333 = vrot.lane.b32.xlu0 %v2572, 64
  %v3334 = vpop.permute.xlu0 %3333
  %3335 = vrot.lane.b32.xlu0 %v2577, 64
  %v3336 = vpop.permute.xlu0 %3335
  %3337 = vrot.lane.b32.xlu0 %v2582, 64
  %v3338 = vpop.permute.xlu0 %3337
  %3339 = vrot.lane.b32.xlu0 %v2587, 64
  %v3340 = vpop.permute.xlu0 %3339
  %3341 = vrot.lane.b32.xlu0 %v2592, 64
  %v3342 = vpop.permute.xlu0 %3341
  %3343 = vrot.lane.b32.xlu0 %v2597, 64
  %v3344 = vpop.permute.xlu0 %3343
  %3345 = vrot.lane.b32.xlu0 %v2602, 64
  %v3346 = vpop.permute.xlu0 %3345
  %3347 = vrot.lane.b32.xlu0 %v2607, 64
  %v3348 = vpop.permute.xlu0 %3347
  %3349 = vrot.lane.b32.xlu0 %v2612, 64
  %v3350 = vpop.permute.xlu0 %3349
  %3351 = vrot.lane.b32.xlu0 %v2617, 64
  %v3352 = vpop.permute.xlu0 %3351
  %3353 = vrot.lane.b32.xlu0 %v2622, 64
  %v3354 = vpop.permute.xlu0 %3353
  %3355 = vrot.lane.b32.xlu0 %v2627, 64
  %v3356 = vpop.permute.xlu0 %3355
  %3357 = vrot.lane.b32.xlu0 %v2632, 64
  %v3358 = vpop.permute.xlu0 %3357
  %3359 = vrot.lane.b32.xlu0 %v2637, 64
  %v3360 = vpop.permute.xlu0 %3359
  %v3377 = vmul.f32 %v3282, %v3330
  %v3378 = vmul.f32 %v3284, %v3332
  %v3379 = vmul.f32 %v3286, %v3334
  %v3380 = vmul.f32 %v3288, %v3336
  %v3381 = vmul.f32 %v3290, %v3338
  %v3382 = vmul.f32 %v3292, %v3340
  %v3383 = vmul.f32 %v3294, %v3342
  %v3384 = vmul.f32 %v3296, %v3344
  %v3385 = vmul.f32 %v3298, %v3346
  %v3386 = vmul.f32 %v3300, %v3348
  %v3387 = vmul.f32 %v3302, %v3350
  %v3388 = vmul.f32 %v3304, %v3352
  %v3389 = vmul.f32 %v3306, %v3354
  %v3390 = vmul.f32 %v3308, %v3356
  %v3391 = vmul.f32 %v3310, %v3358
  %v3392 = vmul.f32 %v3312, %v3360
  %3409 = vrot.lane.b32.xlu0 %v3377, 64
  %v3410 = vpop.permute.xlu0 %3409
  %3411 = vrot.lane.b32.xlu0 %v3378, 64
  %v3412 = vpop.permute.xlu0 %3411
  %3413 = vrot.lane.b32.xlu0 %v3379, 64
  %v3414 = vpop.permute.xlu0 %3413
  %3415 = vrot.lane.b32.xlu0 %v3380, 64
  %v3416 = vpop.permute.xlu0 %3415
  %3417 = vrot.lane.b32.xlu0 %v3381, 64
  %v3418 = vpop.permute.xlu0 %3417
  %3419 = vrot.lane.b32.xlu0 %v3382, 64
  %v3420 = vpop.permute.xlu0 %3419
  %3421 = vrot.lane.b32.xlu0 %v3383, 64
  %v3422 = vpop.permute.xlu0 %3421
  %3423 = vrot.lane.b32.xlu0 %v3384, 64
  %v3424 = vpop.permute.xlu0 %3423
  %3425 = vrot.lane.b32.xlu0 %v3385, 64
  %v3426 = vpop.permute.xlu0 %3425
  %3427 = vrot.lane.b32.xlu0 %v3386, 64
  %v3428 = vpop.permute.xlu0 %3427
  %3429 = vrot.lane.b32.xlu0 %v3387, 64
  %v3430 = vpop.permute.xlu0 %3429
  %3431 = vrot.lane.b32.xlu0 %v3388, 64
  %v3432 = vpop.permute.xlu0 %3431
  %3433 = vrot.lane.b32.xlu0 %v3389, 64
  %v3434 = vpop.permute.xlu0 %3433
  %3435 = vrot.lane.b32.xlu0 %v3390, 64
  %v3436 = vpop.permute.xlu0 %3435
  %3437 = vrot.lane.b32.xlu0 %v3391, 64
  %v3438 = vpop.permute.xlu0 %3437
  %3439 = vrot.lane.b32.xlu0 %v3392, 64
  %v3440 = vpop.permute.xlu0 %3439
  %v3457 = vadd.f32 %v3123, %v3410
  %v3458 = vadd.f32 %v3128, %v3412
  %v3459 = vadd.f32 %v3133, %v3414
  %v3460 = vadd.f32 %v3138, %v3416
  %v3461 = vadd.f32 %v3143, %v3418
  %v3462 = vadd.f32 %v3148, %v3420
  %v3463 = vadd.f32 %v3153, %v3422
  %v3464 = vadd.f32 %v3158, %v3424
  %v3465 = vadd.f32 %v3163, %v3426
  %v3466 = vadd.f32 %v3168, %v3428
  %v3467 = vadd.f32 %v3173, %v3430
  %v3468 = vadd.f32 %v3178, %v3432
  %v3469 = vadd.f32 %v3183, %v3434
  %v3470 = vadd.f32 %v3188, %v3436
  %v3471 = vadd.f32 %v3193, %v3438
  %v3472 = vadd.f32 %v3198, %v3440
  %v3473 = vtanh.pop %v3457
  %v3474 = vtanh.pop %v3458
  %v3475 = vtanh.pop %v3459
  %v3476 = vtanh.pop %v3460
  %v3477 = vtanh.pop %v3461
  %v3478 = vtanh.pop %v3462
  %v3479 = vtanh.pop %v3463
  %v3480 = vtanh.pop %v3464
  %v3481 = vtanh.pop %v3465
  %v3482 = vtanh.pop %v3466
  %v3483 = vtanh.pop %v3467
  %v3484 = vtanh.pop %v3468
  %v3485 = vtanh.pop %v3469
  %v3486 = vtanh.pop %v3470
  %v3487 = vtanh.pop %v3471
  %v3488 = vtanh.pop %v3472
  %v3489 = vsub.f32 %v2254, %v3473
  %v3490 = vsub.f32 %v2255, %v3474
  %v3491 = vsub.f32 %v2256, %v3475
  %v3492 = vsub.f32 %v2257, %v3476
  %v3493 = vsub.f32 %v2258, %v3477
  %v3494 = vsub.f32 %v2259, %v3478
  %v3495 = vsub.f32 %v2260, %v3479
  %v3496 = vsub.f32 %v2261, %v3480
  %v3497 = vsub.f32 %v2262, %v3481
  %v3498 = vsub.f32 %v2263, %v3482
  %v3499 = vsub.f32 %v2264, %v3483
  %v3500 = vsub.f32 %v2265, %v3484
  %v3501 = vsub.f32 %v2266, %v3485
  %v3502 = vsub.f32 %v2267, %v3486
  %v3503 = vsub.f32 %v2268, %v3487
  %v3504 = vsub.f32 %v2269, %v3488
  %3521 = vrot.lane.b32.xlu0 %v3489, 96
  %v3522 = vpop.permute.xlu0 %3521
  %3523 = vrot.lane.b32.xlu0 %v3490, 96
  %v3524 = vpop.permute.xlu0 %3523
  %3525 = vrot.lane.b32.xlu0 %v3491, 96
  %v3526 = vpop.permute.xlu0 %3525
  %3527 = vrot.lane.b32.xlu0 %v3492, 96
  %v3528 = vpop.permute.xlu0 %3527
  %3529 = vrot.lane.b32.xlu0 %v3493, 96
  %v3530 = vpop.permute.xlu0 %3529
  %3531 = vrot.lane.b32.xlu0 %v3494, 96
  %v3532 = vpop.permute.xlu0 %3531
  %3533 = vrot.lane.b32.xlu0 %v3495, 96
  %v3534 = vpop.permute.xlu0 %3533
  %3535 = vrot.lane.b32.xlu0 %v3496, 96
  %v3536 = vpop.permute.xlu0 %3535
  %3537 = vrot.lane.b32.xlu0 %v3497, 96
  %v3538 = vpop.permute.xlu0 %3537
  %3539 = vrot.lane.b32.xlu0 %v3498, 96
  %v3540 = vpop.permute.xlu0 %3539
  %3541 = vrot.lane.b32.xlu0 %v3499, 96
  %v3542 = vpop.permute.xlu0 %3541
  %3543 = vrot.lane.b32.xlu0 %v3500, 96
  %v3544 = vpop.permute.xlu0 %3543
  %3545 = vrot.lane.b32.xlu0 %v3501, 96
  %v3546 = vpop.permute.xlu0 %3545
  %3547 = vrot.lane.b32.xlu0 %v3502, 96
  %v3548 = vpop.permute.xlu0 %3547
  %3549 = vrot.lane.b32.xlu0 %v3503, 96
  %v3550 = vpop.permute.xlu0 %3549
  %3551 = vrot.lane.b32.xlu0 %v3504, 96
  %v3552 = vpop.permute.xlu0 %3551
  %v3569 = vmul.f32 %v3282, %v3522
  %v3570 = vmul.f32 %v3284, %v3524
  %v3571 = vmul.f32 %v3286, %v3526
  %v3572 = vmul.f32 %v3288, %v3528
  %v3573 = vmul.f32 %v3290, %v3530
  %v3574 = vmul.f32 %v3292, %v3532
  %v3575 = vmul.f32 %v3294, %v3534
  %v3576 = vmul.f32 %v3296, %v3536
  %v3577 = vmul.f32 %v3298, %v3538
  %v3578 = vmul.f32 %v3300, %v3540
  %v3579 = vmul.f32 %v3302, %v3542
  %v3580 = vmul.f32 %v3304, %v3544
  %v3581 = vmul.f32 %v3306, %v3546
  %v3582 = vmul.f32 %v3308, %v3548
  %v3583 = vmul.f32 %v3310, %v3550
  %v3584 = vmul.f32 %v3312, %v3552
  %3601 = vrot.lane.b32.xlu0 %v3569, 32
  %v3602 = vpop.permute.xlu0 %3601
  %3603 = vrot.lane.b32.xlu0 %v3570, 32
  %v3604 = vpop.permute.xlu0 %3603
  %3605 = vrot.lane.b32.xlu0 %v3571, 32
  %v3606 = vpop.permute.xlu0 %3605
  %3607 = vrot.lane.b32.xlu0 %v3572, 32
  %v3608 = vpop.permute.xlu0 %3607
  %3609 = vrot.lane.b32.xlu0 %v3573, 32
  %v3610 = vpop.permute.xlu0 %3609
  %3611 = vrot.lane.b32.xlu0 %v3574, 32
  %v3612 = vpop.permute.xlu0 %3611
  %3613 = vrot.lane.b32.xlu0 %v3575, 32
  %v3614 = vpop.permute.xlu0 %3613
  %3615 = vrot.lane.b32.xlu0 %v3576, 32
  %v3616 = vpop.permute.xlu0 %3615
  %3617 = vrot.lane.b32.xlu0 %v3577, 32
  %v3618 = vpop.permute.xlu0 %3617
  %3619 = vrot.lane.b32.xlu0 %v3578, 32
  %v3620 = vpop.permute.xlu0 %3619
  %3621 = vrot.lane.b32.xlu0 %v3579, 32
  %v3622 = vpop.permute.xlu0 %3621
  %3623 = vrot.lane.b32.xlu0 %v3580, 32
  %v3624 = vpop.permute.xlu0 %3623
  %3625 = vrot.lane.b32.xlu0 %v3581, 32
  %v3626 = vpop.permute.xlu0 %3625
  %3627 = vrot.lane.b32.xlu0 %v3582, 32
  %v3628 = vpop.permute.xlu0 %3627
  %3629 = vrot.lane.b32.xlu0 %v3583, 32
  %v3630 = vpop.permute.xlu0 %3629
  %3631 = vrot.lane.b32.xlu0 %v3584, 32
  %v3632 = vpop.permute.xlu0 %3631
  %v3649 = vadd.f32 %v3473, %v3602
  %v3650 = vadd.f32 %v3474, %v3604
  %v3651 = vadd.f32 %v3475, %v3606
  %v3652 = vadd.f32 %v3476, %v3608
  %v3653 = vadd.f32 %v3477, %v3610
  %v3654 = vadd.f32 %v3478, %v3612
  %v3655 = vadd.f32 %v3479, %v3614
  %v3656 = vadd.f32 %v3480, %v3616
  %v3657 = vadd.f32 %v3481, %v3618
  %v3658 = vadd.f32 %v3482, %v3620
  %v3659 = vadd.f32 %v3483, %v3622
  %v3660 = vadd.f32 %v3484, %v3624
  %v3661 = vadd.f32 %v3485, %v3626
  %v3662 = vadd.f32 %v3486, %v3628
  %v3663 = vadd.f32 %v3487, %v3630
  %v3664 = vadd.f32 %v3488, %v3632
  %3681 = vrot.lane.b32.xlu0 %v3649, 64
  %v3682 = vpop.permute.xlu0 %3681
  %3683 = vrot.lane.b32.xlu0 %v3650, 64
  %v3684 = vpop.permute.xlu0 %3683
  %3685 = vrot.lane.b32.xlu0 %v3651, 64
  %v3686 = vpop.permute.xlu0 %3685
  %3687 = vrot.lane.b32.xlu0 %v3652, 64
  %v3688 = vpop.permute.xlu0 %3687
  %3689 = vrot.lane.b32.xlu0 %v3653, 64
  %v3690 = vpop.permute.xlu0 %3689
  %3691 = vrot.lane.b32.xlu0 %v3654, 64
  %v3692 = vpop.permute.xlu0 %3691
  %3693 = vrot.lane.b32.xlu0 %v3655, 64
  %v3694 = vpop.permute.xlu0 %3693
  %3695 = vrot.lane.b32.xlu0 %v3656, 64
  %v3696 = vpop.permute.xlu0 %3695
  %3697 = vrot.lane.b32.xlu0 %v3657, 64
  %v3698 = vpop.permute.xlu0 %3697
  %3699 = vrot.lane.b32.xlu0 %v3658, 64
  %v3700 = vpop.permute.xlu0 %3699
  %3701 = vrot.lane.b32.xlu0 %v3659, 64
  %v3702 = vpop.permute.xlu0 %3701
  %3703 = vrot.lane.b32.xlu0 %v3660, 64
  %v3704 = vpop.permute.xlu0 %3703
  %3705 = vrot.lane.b32.xlu0 %v3661, 64
  %v3706 = vpop.permute.xlu0 %3705
  %3707 = vrot.lane.b32.xlu0 %v3662, 64
  %v3708 = vpop.permute.xlu0 %3707
  %3709 = vrot.lane.b32.xlu0 %v3663, 64
  %v3710 = vpop.permute.xlu0 %3709
  %3711 = vrot.lane.b32.xlu0 %v3664, 64
  %v3712 = vpop.permute.xlu0 %3711
  %v3713 = vsel %vm897, %v3682, 0
  %v3715 = vsel %vm897, %v3684, 0
  %v3717 = vsel %vm897, %v3686, 0
  %v3719 = vsel %vm897, %v3688, 0
  %v3721 = vsel %vm897, %v3690, 0
  %v3723 = vsel %vm897, %v3692, 0
  %v3725 = vsel %vm897, %v3694, 0
  %v3727 = vsel %vm897, %v3696, 0
  %v3729 = vsel %vm897, %v3698, 0
  %v3731 = vsel %vm897, %v3700, 0
  %v3733 = vsel %vm897, %v3702, 0
  %v3735 = vsel %vm897, %v3704, 0
  %v3737 = vsel %vm897, %v3706, 0
  %v3739 = vsel %vm897, %v3708, 0
  %v3741 = vsel %vm897, %v3710, 0
  %v3743 = vsel %vm897, %v3712, 0
  %3745 = vmatprep.subr.mxu0 0.0
  %3746 = vmatpush1.msra.mxu0 %v838
  %3747 = vmatprep.subr.mxu0 0.0
  %3748 = vmatpush1.msra.mxu0 %v839
  %3749 = vmatprep.subr.mxu0 0.0
  %3750 = vmatpush1.msra.mxu0 %v840
  %3751 = vmatprep.subr.mxu0 0.0
  %3752 = vmatpush1.msra.mxu0 %v841
  %3753 = vmatprep.subr.mxu0 0.0
  %3754 = vmatpush1.msra.mxu0 0.0
  %3755 = vmatprep.subr.mxu0 0.0
  %3756 = vmatpush1.msra.mxu0 0.0
  %3757 = vmatprep.subr.mxu0 0.0
  %3758 = vmatpush1.msra.mxu0 0.0
  %3759 = vmatprep.subr.mxu0 0.0
  %3760 = vmatpush1.msra.mxu0 0.0
  %3761 = vmatprep.subr.mxu0 0.0
  %3762 = vmatpush1.msra.mxu0 0.0
  %3763 = vmatprep.subr.mxu0 0.0
  %3764 = vmatpush1.msra.mxu0 0.0
  %3765 = vmatprep.subr.mxu0 0.0
  %3766 = vmatpush1.msra.mxu0 0.0
  %3767 = vmatprep.subr.mxu0 0.0
  %3768 = vmatpush1.msra.mxu0 0.0
  %3769 = vmatprep.subr.mxu0 0.0
  %3770 = vmatpush1.msra.mxu0 0.0
  %3771 = vmatprep.subr.mxu0 0.0
  %3772 = vmatpush1.msra.mxu0 0.0
  %3773 = vmatprep.subr.mxu0 0.0
  %3774 = vmatpush1.msra.mxu0 0.0
  %3775 = vmatprep.subr.mxu0 0.0
  %3776 = vmatpush1.msra.mxu0 0.0
  %3777 = vmatprep.subr.mxu0 0.0
  %3778 = vmatpush1.msra.mxu0 0.0
  %3779 = vmatprep.subr.mxu0 0.0
  %3780 = vmatpush1.msra.mxu0 0.0
  %3781 = vmatprep.subr.mxu0 0.0
  %3782 = vmatpush1.msra.mxu0 0.0
  %3783 = vmatprep.subr.mxu0 0.0
  %3784 = vmatpush1.msra.mxu0 0.0
  %3785 = vmatprep.subr.mxu0 0.0
  %3786 = vmatpush1.msra.mxu0 0.0
  %3787 = vmatprep.subr.mxu0 0.0
  %3788 = vmatpush1.msra.mxu0 0.0
  %3789 = vmatprep.subr.mxu0 0.0
  %3790 = vmatpush1.msra.mxu0 0.0
  %3791 = vmatprep.subr.mxu0 0.0
  %3792 = vmatpush1.msra.mxu0 0.0
  %3793 = vmatprep.subr.mxu0 0.0
  %3794 = vmatpush1.msra.mxu0 0.0
  %3795 = vmatprep.subr.mxu0 0.0
  %3796 = vmatpush1.msra.mxu0 0.0
  %3797 = vmatprep.subr.mxu0 0.0
  %3798 = vmatpush1.msra.mxu0 0.0
  %3799 = vmatprep.subr.mxu0 0.0
  %3800 = vmatpush1.msra.mxu0 0.0
  %3801 = vmatprep.subr.mxu0 0.0
  %3802 = vmatpush1.msra.mxu0 0.0
  %3803 = vmatprep.subr.mxu0 0.0
  %3804 = vmatpush1.msra.mxu0 0.0
  %3805 = vmatprep.subr.mxu0 0.0
  %3806 = vmatpush1.msra.mxu0 0.0
  %3807 = vmatprep.subr.mxu0 0.0
  %3808 = vmatpush1.msra.mxu0 0.0
  %3809 = vmatprep.mubr.f32.mxu0 0.0
  %3810 = vmatmul.mubr.f32.gmra.mrb[0].mxu0 %v3713
  %v3811 = vpop.f32.mrb[0].mxu0
  %v3812 = vadd.f32 %v847, %v3811
  %v3813 = vpop.f32.mrb[0].mxu0
  %3814 = vmatprep.mubr.f32.mxu0 0.0
  %3815 = vmatmul.mubr.f32.gmra.mrb[0].mxu0 %v3715
  %v3816 = vpop.f32.mrb[0].mxu0
  %v3817 = vadd.f32 %v847, %v3816
  %v3818 = vpop.f32.mrb[0].mxu0
  %3819 = vmatprep.mubr.f32.mxu0 0.0
  %3820 = vmatmul.mubr.f32.gmra.mrb[0].mxu0 %v3717
  %v3821 = vpop.f32.mrb[0].mxu0
  %v3822 = vadd.f32 %v847, %v3821
  %v3823 = vpop.f32.mrb[0].mxu0
  %3824 = vmatprep.mubr.f32.mxu0 0.0
  %3825 = vmatmul.mubr.f32.gmra.mrb[0].mxu0 %v3719
  %v3826 = vpop.f32.mrb[0].mxu0
  %v3827 = vadd.f32 %v847, %v3826
  %v3828 = vpop.f32.mrb[0].mxu0
  %3829 = vmatprep.mubr.f32.mxu0 0.0
  %3830 = vmatmul.mubr.f32.gmra.mrb[0].mxu0 %v3721
  %v3831 = vpop.f32.mrb[0].mxu0
  %v3832 = vadd.f32 %v847, %v3831
  %v3833 = vpop.f32.mrb[0].mxu0
  %3834 = vmatprep.mubr.f32.mxu0 0.0
  %3835 = vmatmul.mubr.f32.gmra.mrb[0].mxu0 %v3723
  %v3836 = vpop.f32.mrb[0].mxu0
  %v3837 = vadd.f32 %v847, %v3836
  %v3838 = vpop.f32.mrb[0].mxu0
  %3839 = vmatprep.mubr.f32.mxu0 0.0
  %3840 = vmatmul.mubr.f32.gmra.mrb[0].mxu0 %v3725
  %v3841 = vpop.f32.mrb[0].mxu0
  %v3842 = vadd.f32 %v847, %v3841
  %v3843 = vpop.f32.mrb[0].mxu0
  %3844 = vmatprep.mubr.f32.mxu0 0.0
  %3845 = vmatmul.mubr.f32.gmra.mrb[0].mxu0 %v3727
  %v3846 = vpop.f32.mrb[0].mxu0
  %v3847 = vadd.f32 %v847, %v3846
  %v3848 = vpop.f32.mrb[0].mxu0
  %3849 = vmatprep.mubr.f32.mxu0 0.0
  %3850 = vmatmul.mubr.f32.gmra.mrb[0].mxu0 %v3729
  %v3851 = vpop.f32.mrb[0].mxu0
  %v3852 = vadd.f32 %v847, %v3851
  %v3853 = vpop.f32.mrb[0].mxu0
  %3854 = vmatprep.mubr.f32.mxu0 0.0
  %3855 = vmatmul.mubr.f32.gmra.mrb[0].mxu0 %v3731
  %v3856 = vpop.f32.mrb[0].mxu0
  %v3857 = vadd.f32 %v847, %v3856
  %v3858 = vpop.f32.mrb[0].mxu0
  %3859 = vmatprep.mubr.f32.mxu0 0.0
  %3860 = vmatmul.mubr.f32.gmra.mrb[0].mxu0 %v3733
  %v3861 = vpop.f32.mrb[0].mxu0
  %v3862 = vadd.f32 %v847, %v3861
  %v3863 = vpop.f32.mrb[0].mxu0
  %3864 = vmatprep.mubr.f32.mxu0 0.0
  %3865 = vmatmul.mubr.f32.gmra.mrb[0].mxu0 %v3735
  %v3866 = vpop.f32.mrb[0].mxu0
  %v3867 = vadd.f32 %v847, %v3866
  %v3868 = vpop.f32.mrb[0].mxu0
  %3869 = vmatprep.mubr.f32.mxu0 0.0
  %3870 = vmatmul.mubr.f32.gmra.mrb[0].mxu0 %v3737
  %v3871 = vpop.f32.mrb[0].mxu0
  %v3872 = vadd.f32 %v847, %v3871
  %v3873 = vpop.f32.mrb[0].mxu0
  %3874 = vmatprep.mubr.f32.mxu0 0.0
  %3875 = vmatmul.mubr.f32.gmra.mrb[0].mxu0 %v3739
  %v3876 = vpop.f32.mrb[0].mxu0
  %v3877 = vadd.f32 %v847, %v3876
  %v3878 = vpop.f32.mrb[0].mxu0
  %3879 = vmatprep.mubr.f32.mxu0 0.0
  %3880 = vmatmul.mubr.f32.gmra.mrb[0].mxu0 %v3741
  %v3881 = vpop.f32.mrb[0].mxu0
  %v3882 = vadd.f32 %v847, %v3881
  %v3883 = vpop.f32.mrb[0].mxu0
  %3884 = vmatprep.mubr.f32.mxu0 0.0
  %3885 = vmatmul.mubr.f32.gmra.mrb[0].mxu0 %v3743
  %v3886 = vpop.f32.mrb[0].mxu0
  %v3887 = vadd.f32 %v847, %v3886
  %v3888 = vpop.f32.mrb[0].mxu0
  %3889 = vdwg.mxu0
  %3890 = vmatprep.subr.mxu0 0.0
  %3891 = vmatpush1.msra.mxu0 %v1075
  %3892 = vmatprep.subr.mxu0 0.0
  %3893 = vmatpush1.msra.mxu0 %v1076
  %3894 = vmatprep.subr.mxu0 0.0
  %3895 = vmatpush1.msra.mxu0 %v1077
  %3896 = vmatprep.subr.mxu0 0.0
  %3897 = vmatpush1.msra.mxu0 %v1078
  %3898 = vmatprep.subr.mxu0 0.0
  %3899 = vmatpush1.msra.mxu0 0.0
  %3900 = vmatprep.subr.mxu0 0.0
  %3901 = vmatpush1.msra.mxu0 0.0
  %3902 = vmatprep.subr.mxu0 0.0
  %3903 = vmatpush1.msra.mxu0 0.0
  %3904 = vmatprep.subr.mxu0 0.0
  %3905 = vmatpush1.msra.mxu0 0.0
  %3906 = vmatprep.subr.mxu0 0.0
  %3907 = vmatpush1.msra.mxu0 0.0
  %3908 = vmatprep.subr.mxu0 0.0
  %3909 = vmatpush1.msra.mxu0 0.0
  %3910 = vmatprep.subr.mxu0 0.0
  %3911 = vmatpush1.msra.mxu0 0.0
  %3912 = vmatprep.subr.mxu0 0.0
  %3913 = vmatpush1.msra.mxu0 0.0
  %3914 = vmatprep.subr.mxu0 0.0
  %3915 = vmatpush1.msra.mxu0 0.0
  %3916 = vmatprep.subr.mxu0 0.0
  %3917 = vmatpush1.msra.mxu0 0.0
  %3918 = vmatprep.subr.mxu0 0.0
  %3919 = vmatpush1.msra.mxu0 0.0
  %3920 = vmatprep.subr.mxu0 0.0
  %3921 = vmatpush1.msra.mxu0 0.0
  %3922 = vmatprep.subr.mxu0 0.0
  %3923 = vmatpush1.msra.mxu0 0.0
  %3924 = vmatprep.subr.mxu0 0.0
  %3925 = vmatpush1.msra.mxu0 0.0
  %3926 = vmatprep.subr.mxu0 0.0
  %3927 = vmatpush1.msra.mxu0 0.0
  %3928 = vmatprep.subr.mxu0 0.0
  %3929 = vmatpush1.msra.mxu0 0.0
  %3930 = vmatprep.subr.mxu0 0.0
  %3931 = vmatpush1.msra.mxu0 0.0
  %3932 = vmatprep.subr.mxu0 0.0
  %3933 = vmatpush1.msra.mxu0 0.0
  %3934 = vmatprep.subr.mxu0 0.0
  %3935 = vmatpush1.msra.mxu0 0.0
  %3936 = vmatprep.subr.mxu0 0.0
  %3937 = vmatpush1.msra.mxu0 0.0
  %3938 = vmatprep.subr.mxu0 0.0
  %3939 = vmatpush1.msra.mxu0 0.0
  %3940 = vmatprep.subr.mxu0 0.0
  %3941 = vmatpush1.msra.mxu0 0.0
  %3942 = vmatprep.subr.mxu0 0.0
  %3943 = vmatpush1.msra.mxu0 0.0
  %3944 = vmatprep.subr.mxu0 0.0
  %3945 = vmatpush1.msra.mxu0 0.0
  %3946 = vmatprep.subr.mxu0 0.0
  %3947 = vmatpush1.msra.mxu0 0.0
  %3948 = vmatprep.subr.mxu0 0.0
  %3949 = vmatpush1.msra.mxu0 0.0
  %3950 = vmatprep.subr.mxu0 0.0
  %3951 = vmatpush1.msra.mxu0 0.0
  %3952 = vmatprep.subr.mxu0 0.0
  %3953 = vmatpush1.msra.mxu0 0.0
  %3954 = vmatprep.mubr.f32.mxu0 0.0
  %3955 = vmatmul.mubr.f32.gmra.mrb[0].mxu0 %v3713
  %v3956 = vpop.f32.mrb[0].mxu0
  %v3957 = vadd.f32 %v1084, %v3956
  %v3958 = vpop.f32.mrb[0].mxu0
  %3959 = vmatprep.mubr.f32.mxu0 0.0
  %3960 = vmatmul.mubr.f32.gmra.mrb[0].mxu0 %v3715
  %v3961 = vpop.f32.mrb[0].mxu0
  %v3962 = vadd.f32 %v1084, %v3961
  %v3963 = vpop.f32.mrb[0].mxu0
  %3964 = vmatprep.mubr.f32.mxu0 0.0
  %3965 = vmatmul.mubr.f32.gmra.mrb[0].mxu0 %v3717
  %v3966 = vpop.f32.mrb[0].mxu0
  %v3967 = vadd.f32 %v1084, %v3966
  %v3968 = vpop.f32.mrb[0].mxu0
  %3969 = vmatprep.mubr.f32.mxu0 0.0
  %3970 = vmatmul.mubr.f32.gmra.mrb[0].mxu0 %v3719
  %v3971 = vpop.f32.mrb[0].mxu0
  %v3972 = vadd.f32 %v1084, %v3971
  %v3973 = vpop.f32.mrb[0].mxu0
  %3974 = vmatprep.mubr.f32.mxu0 0.0
  %3975 = vmatmul.mubr.f32.gmra.mrb[0].mxu0 %v3721
  %v3976 = vpop.f32.mrb[0].mxu0
  %v3977 = vadd.f32 %v1084, %v3976
  %v3978 = vpop.f32.mrb[0].mxu0
  %3979 = vmatprep.mubr.f32.mxu0 0.0
  %3980 = vmatmul.mubr.f32.gmra.mrb[0].mxu0 %v3723
  %v3981 = vpop.f32.mrb[0].mxu0
  %v3982 = vadd.f32 %v1084, %v3981
  %v3983 = vpop.f32.mrb[0].mxu0
  %3984 = vmatprep.mubr.f32.mxu0 0.0
  %3985 = vmatmul.mubr.f32.gmra.mrb[0].mxu0 %v3725
  %v3986 = vpop.f32.mrb[0].mxu0
  %v3987 = vadd.f32 %v1084, %v3986
  %v3988 = vpop.f32.mrb[0].mxu0
  %3989 = vmatprep.mubr.f32.mxu0 0.0
  %3990 = vmatmul.mubr.f32.gmra.mrb[0].mxu0 %v3727
  %v3991 = vpop.f32.mrb[0].mxu0
  %v3992 = vadd.f32 %v1084, %v3991
  %v3993 = vpop.f32.mrb[0].mxu0
  %3994 = vmatprep.mubr.f32.mxu0 0.0
  %3995 = vmatmul.mubr.f32.gmra.mrb[0].mxu0 %v3729
  %v3996 = vpop.f32.mrb[0].mxu0
  %v3997 = vadd.f32 %v1084, %v3996
  %v3998 = vpop.f32.mrb[0].mxu0
  %3999 = vmatprep.mubr.f32.mxu0 0.0
  %4000 = vmatmul.mubr.f32.gmra.mrb[0].mxu0 %v3731
  %v4001 = vpop.f32.mrb[0].mxu0
  %v4002 = vadd.f32 %v1084, %v4001
  %v4003 = vpop.f32.mrb[0].mxu0
  %4004 = vmatprep.mubr.f32.mxu0 0.0
  %4005 = vmatmul.mubr.f32.gmra.mrb[0].mxu0 %v3733
  %v4006 = vpop.f32.mrb[0].mxu0
  %v4007 = vadd.f32 %v1084, %v4006
  %v4008 = vpop.f32.mrb[0].mxu0
  %4009 = vmatprep.mubr.f32.mxu0 0.0
  %4010 = vmatmul.mubr.f32.gmra.mrb[0].mxu0 %v3735
  %v4011 = vpop.f32.mrb[0].mxu0
  %v4012 = vadd.f32 %v1084, %v4011
  %v4013 = vpop.f32.mrb[0].mxu0
  %4014 = vmatprep.mubr.f32.mxu0 0.0
  %4015 = vmatmul.mubr.f32.gmra.mrb[0].mxu0 %v3737
  %v4016 = vpop.f32.mrb[0].mxu0
  %v4017 = vadd.f32 %v1084, %v4016
  %v4018 = vpop.f32.mrb[0].mxu0
  %4019 = vmatprep.mubr.f32.mxu0 0.0
  %4020 = vmatmul.mubr.f32.gmra.mrb[0].mxu0 %v3739
  %v4021 = vpop.f32.mrb[0].mxu0
  %v4022 = vadd.f32 %v1084, %v4021
  %v4023 = vpop.f32.mrb[0].mxu0
  %4024 = vmatprep.mubr.f32.mxu0 0.0
  %4025 = vmatmul.mubr.f32.gmra.mrb[0].mxu0 %v3741
  %v4026 = vpop.f32.mrb[0].mxu0
  %v4027 = vadd.f32 %v1084, %v4026
  %v4028 = vpop.f32.mrb[0].mxu0
  %4029 = vmatprep.mubr.f32.mxu0 0.0
  %4030 = vmatmul.mubr.f32.gmra.mrb[0].mxu0 %v3743
  %v4031 = vpop.f32.mrb[0].mxu0
  %v4032 = vadd.f32 %v1084, %v4031
  %v4033 = vpop.f32.mrb[0].mxu0
  %4034 = vdwg.mxu0
  %v4035 = vsel %vm1231, %v3812, -inf
  %4036 = vmax.xlane.f32.xlu0 %v4035
  %v4037 = vpop.xlane.xlu0 %4036
  %v4038 = vsel %vm1231, %v3817, -inf
  %4039 = vmax.xlane.f32.xlu0 %v4038
  %v4040 = vpop.xlane.xlu0 %4039
  %v4041 = vsel %vm1231, %v3822, -inf
  %4042 = vmax.xlane.f32.xlu0 %v4041
  %v4043 = vpop.xlane.xlu0 %4042
  %v4044 = vsel %vm1231, %v3827, -inf
  %4045 = vmax.xlane.f32.xlu0 %v4044
  %v4046 = vpop.xlane.xlu0 %4045
  %v4047 = vsel %vm1231, %v3832, -inf
  %4048 = vmax.xlane.f32.xlu0 %v4047
  %v4049 = vpop.xlane.xlu0 %4048
  %v4050 = vsel %vm1231, %v3837, -inf
  %4051 = vmax.xlane.f32.xlu0 %v4050
  %v4052 = vpop.xlane.xlu0 %4051
  %v4053 = vsel %vm1231, %v3842, -inf
  %4054 = vmax.xlane.f32.xlu0 %v4053
  %v4055 = vpop.xlane.xlu0 %4054
  %v4056 = vsel %vm1231, %v3847, -inf
  %4057 = vmax.xlane.f32.xlu0 %v4056
  %v4058 = vpop.xlane.xlu0 %4057
  %v4059 = vsel %vm1231, %v3852, -inf
  %4060 = vmax.xlane.f32.xlu0 %v4059
  %v4061 = vpop.xlane.xlu0 %4060
  %v4062 = vsel %vm1231, %v3857, -inf
  %4063 = vmax.xlane.f32.xlu0 %v4062
  %v4064 = vpop.xlane.xlu0 %4063
  %v4065 = vsel %vm1231, %v3862, -inf
  %4066 = vmax.xlane.f32.xlu0 %v4065
  %v4067 = vpop.xlane.xlu0 %4066
  %v4068 = vsel %vm1231, %v3867, -inf
  %4069 = vmax.xlane.f32.xlu0 %v4068
  %v4070 = vpop.xlane.xlu0 %4069
  %v4071 = vsel %vm1231, %v3872, -inf
  %4072 = vmax.xlane.f32.xlu0 %v4071
  %v4073 = vpop.xlane.xlu0 %4072
  %v4074 = vsel %vm1231, %v3877, -inf
  %4075 = vmax.xlane.f32.xlu0 %v4074
  %v4076 = vpop.xlane.xlu0 %4075
  %v4077 = vsel %vm1231, %v3882, -inf
  %4078 = vmax.xlane.f32.xlu0 %v4077
  %v4079 = vpop.xlane.xlu0 %4078
  %v4080 = vsel %vm1231, %v3887, -inf
  %4081 = vmax.xlane.f32.xlu0 %v4080
  %v4082 = vpop.xlane.xlu0 %4081
  %vm4083 = vcmp.eq.f32.partialorder %v3812, %v4037
  %vm4084 = vcmp.eq.f32.partialorder %v3817, %v4040
  %vm4085 = vcmp.eq.f32.partialorder %v3822, %v4043
  %vm4086 = vcmp.eq.f32.partialorder %v3827, %v4046
  %vm4087 = vcmp.eq.f32.partialorder %v3832, %v4049
  %vm4088 = vcmp.eq.f32.partialorder %v3837, %v4052
  %vm4089 = vcmp.eq.f32.partialorder %v3842, %v4055
  %vm4090 = vcmp.eq.f32.partialorder %v3847, %v4058
  %vm4091 = vcmp.eq.f32.partialorder %v3852, %v4061
  %vm4092 = vcmp.eq.f32.partialorder %v3857, %v4064
  %vm4093 = vcmp.eq.f32.partialorder %v3862, %v4067
  %vm4094 = vcmp.eq.f32.partialorder %v3867, %v4070
  %vm4095 = vcmp.eq.f32.partialorder %v3872, %v4073
  %vm4096 = vcmp.eq.f32.partialorder %v3877, %v4076
  %vm4097 = vcmp.eq.f32.partialorder %v3882, %v4079
  %vm4098 = vcmp.eq.f32.partialorder %v3887, %v4082
  %v4099 = vsel %vm4083, %v255, 10
  %v4100 = vsel %vm4084, %v255, 10
  %v4101 = vsel %vm4085, %v255, 10
  %v4102 = vsel %vm4086, %v255, 10
  %v4103 = vsel %vm4087, %v255, 10
  %v4104 = vsel %vm4088, %v255, 10
  %v4105 = vsel %vm4089, %v255, 10
  %v4106 = vsel %vm4090, %v255, 10
  %v4107 = vsel %vm4091, %v255, 10
  %v4108 = vsel %vm4092, %v255, 10
  %v4109 = vsel %vm4093, %v255, 10
  %v4110 = vsel %vm4094, %v255, 10
  %v4111 = vsel %vm4095, %v255, 10
  %v4112 = vsel %vm4096, %v255, 10
  %v4113 = vsel %vm4097, %v255, 10
  %v4114 = vsel %vm4098, %v255, 10
  %v4115 = vsel %vm1231, %v4099, 2147483647
  %v4116 = vand.u32 %v4115, 65535
  %v4117 = vshra.s32 %v4115, 16
  %v4118 = vcvt.s32.f32 %v4116
  %v4119 = vcvt.s32.f32 %v4117
  %4120 = vmin.xlane.f32.xlu0 %v4119
  %v4121 = vpop.xlane.xlu0 %4120
  %vm4122 = vcmp.eq.f32.partialorder %v4119, %v4121
  %v4123 = vsel %vm4122, %v4118, inf
  %4124 = vmin.xlane.f32.xlu0 %v4123
  %v4125 = vpop.xlane.xlu0 %4124
  %v4126 = vcvt.f32.s32 %v4125
  %v4127 = vcvt.f32.s32 %v4121
  %v4128 = vshll.u32 %v4127, 16
  %v4129 = vadd.s32 %v4128, %v4126
  %v4130 = vsel %vm1231, %v4100, 2147483647
  %v4131 = vand.u32 %v4130, 65535
  %v4132 = vshra.s32 %v4130, 16
  %v4133 = vcvt.s32.f32 %v4131
  %v4134 = vcvt.s32.f32 %v4132
  %4135 = vmin.xlane.f32.xlu0 %v4134
  %v4136 = vpop.xlane.xlu0 %4135
  %vm4137 = vcmp.eq.f32.partialorder %v4134, %v4136
  %v4138 = vsel %vm4137, %v4133, inf
  %4139 = vmin.xlane.f32.xlu0 %v4138
  %v4140 = vpop.xlane.xlu0 %4139
  %v4141 = vcvt.f32.s32 %v4140
  %v4142 = vcvt.f32.s32 %v4136
  %v4143 = vshll.u32 %v4142, 16
  %v4144 = vadd.s32 %v4143, %v4141
  %v4145 = vsel %vm1231, %v4101, 2147483647
  %v4146 = vand.u32 %v4145, 65535
  %v4147 = vshra.s32 %v4145, 16
  %v4148 = vcvt.s32.f32 %v4146
  %v4149 = vcvt.s32.f32 %v4147
  %4150 = vmin.xlane.f32.xlu0 %v4149
  %v4151 = vpop.xlane.xlu0 %4150
  %vm4152 = vcmp.eq.f32.partialorder %v4149, %v4151
  %v4153 = vsel %vm4152, %v4148, inf
  %4154 = vmin.xlane.f32.xlu0 %v4153
  %v4155 = vpop.xlane.xlu0 %4154
  %v4156 = vcvt.f32.s32 %v4155
  %v4157 = vcvt.f32.s32 %v4151
  %v4158 = vshll.u32 %v4157, 16
  %v4159 = vadd.s32 %v4158, %v4156
  %v4160 = vsel %vm1231, %v4102, 2147483647
  %v4161 = vand.u32 %v4160, 65535
  %v4162 = vshra.s32 %v4160, 16
  %v4163 = vcvt.s32.f32 %v4161
  %v4164 = vcvt.s32.f32 %v4162
  %4165 = vmin.xlane.f32.xlu0 %v4164
  %v4166 = vpop.xlane.xlu0 %4165
  %vm4167 = vcmp.eq.f32.partialorder %v4164, %v4166
  %v4168 = vsel %vm4167, %v4163, inf
  %4169 = vmin.xlane.f32.xlu0 %v4168
  %v4170 = vpop.xlane.xlu0 %4169
  %v4171 = vcvt.f32.s32 %v4170
  %v4172 = vcvt.f32.s32 %v4166
  %v4173 = vshll.u32 %v4172, 16
  %v4174 = vadd.s32 %v4173, %v4171
  %v4175 = vsel %vm1231, %v4103, 2147483647
  %v4176 = vand.u32 %v4175, 65535
  %v4177 = vshra.s32 %v4175, 16
  %v4178 = vcvt.s32.f32 %v4176
  %v4179 = vcvt.s32.f32 %v4177
  %4180 = vmin.xlane.f32.xlu0 %v4179
  %v4181 = vpop.xlane.xlu0 %4180
  %vm4182 = vcmp.eq.f32.partialorder %v4179, %v4181
  %v4183 = vsel %vm4182, %v4178, inf
  %4184 = vmin.xlane.f32.xlu0 %v4183
  %v4185 = vpop.xlane.xlu0 %4184
  %v4186 = vcvt.f32.s32 %v4185
  %v4187 = vcvt.f32.s32 %v4181
  %v4188 = vshll.u32 %v4187, 16
  %v4189 = vadd.s32 %v4188, %v4186
  %v4190 = vsel %vm1231, %v4104, 2147483647
  %v4191 = vand.u32 %v4190, 65535
  %v4192 = vshra.s32 %v4190, 16
  %v4193 = vcvt.s32.f32 %v4191
  %v4194 = vcvt.s32.f32 %v4192
  %4195 = vmin.xlane.f32.xlu0 %v4194
  %v4196 = vpop.xlane.xlu0 %4195
  %vm4197 = vcmp.eq.f32.partialorder %v4194, %v4196
  %v4198 = vsel %vm4197, %v4193, inf
  %4199 = vmin.xlane.f32.xlu0 %v4198
  %v4200 = vpop.xlane.xlu0 %4199
  %v4201 = vcvt.f32.s32 %v4200
  %v4202 = vcvt.f32.s32 %v4196
  %v4203 = vshll.u32 %v4202, 16
  %v4204 = vadd.s32 %v4203, %v4201
  %v4205 = vsel %vm1231, %v4105, 2147483647
  %v4206 = vand.u32 %v4205, 65535
  %v4207 = vshra.s32 %v4205, 16
  %v4208 = vcvt.s32.f32 %v4206
  %v4209 = vcvt.s32.f32 %v4207
  %4210 = vmin.xlane.f32.xlu0 %v4209
  %v4211 = vpop.xlane.xlu0 %4210
  %vm4212 = vcmp.eq.f32.partialorder %v4209, %v4211
  %v4213 = vsel %vm4212, %v4208, inf
  %4214 = vmin.xlane.f32.xlu0 %v4213
  %v4215 = vpop.xlane.xlu0 %4214
  %v4216 = vcvt.f32.s32 %v4215
  %v4217 = vcvt.f32.s32 %v4211
  %v4218 = vshll.u32 %v4217, 16
  %v4219 = vadd.s32 %v4218, %v4216
  %v4220 = vsel %vm1231, %v4106, 2147483647
  %v4221 = vand.u32 %v4220, 65535
  %v4222 = vshra.s32 %v4220, 16
  %v4223 = vcvt.s32.f32 %v4221
  %v4224 = vcvt.s32.f32 %v4222
  %4225 = vmin.xlane.f32.xlu0 %v4224
  %v4226 = vpop.xlane.xlu0 %4225
  %vm4227 = vcmp.eq.f32.partialorder %v4224, %v4226
  %v4228 = vsel %vm4227, %v4223, inf
  %4229 = vmin.xlane.f32.xlu0 %v4228
  %v4230 = vpop.xlane.xlu0 %4229
  %v4231 = vcvt.f32.s32 %v4230
  %v4232 = vcvt.f32.s32 %v4226
  %v4233 = vshll.u32 %v4232, 16
  %v4234 = vadd.s32 %v4233, %v4231
  %v4235 = vsel %vm1231, %v4107, 2147483647
  %v4236 = vand.u32 %v4235, 65535
  %v4237 = vshra.s32 %v4235, 16
  %v4238 = vcvt.s32.f32 %v4236
  %v4239 = vcvt.s32.f32 %v4237
  %4240 = vmin.xlane.f32.xlu0 %v4239
  %v4241 = vpop.xlane.xlu0 %4240
  %vm4242 = vcmp.eq.f32.partialorder %v4239, %v4241
  %v4243 = vsel %vm4242, %v4238, inf
  %4244 = vmin.xlane.f32.xlu0 %v4243
  %v4245 = vpop.xlane.xlu0 %4244
  %v4246 = vcvt.f32.s32 %v4245
  %v4247 = vcvt.f32.s32 %v4241
  %v4248 = vshll.u32 %v4247, 16
  %v4249 = vadd.s32 %v4248, %v4246
  %v4250 = vsel %vm1231, %v4108, 2147483647
  %v4251 = vand.u32 %v4250, 65535
  %v4252 = vshra.s32 %v4250, 16
  %v4253 = vcvt.s32.f32 %v4251
  %v4254 = vcvt.s32.f32 %v4252
  %4255 = vmin.xlane.f32.xlu0 %v4254
  %v4256 = vpop.xlane.xlu0 %4255
  %vm4257 = vcmp.eq.f32.partialorder %v4254, %v4256
  %v4258 = vsel %vm4257, %v4253, inf
  %4259 = vmin.xlane.f32.xlu0 %v4258
  %v4260 = vpop.xlane.xlu0 %4259
  %v4261 = vcvt.f32.s32 %v4260
  %v4262 = vcvt.f32.s32 %v4256
  %v4263 = vshll.u32 %v4262, 16
  %v4264 = vadd.s32 %v4263, %v4261
  %v4265 = vsel %vm1231, %v4109, 2147483647
  %v4266 = vand.u32 %v4265, 65535
  %v4267 = vshra.s32 %v4265, 16
  %v4268 = vcvt.s32.f32 %v4266
  %v4269 = vcvt.s32.f32 %v4267
  %4270 = vmin.xlane.f32.xlu0 %v4269
  %v4271 = vpop.xlane.xlu0 %4270
  %vm4272 = vcmp.eq.f32.partialorder %v4269, %v4271
  %v4273 = vsel %vm4272, %v4268, inf
  %4274 = vmin.xlane.f32.xlu0 %v4273
  %v4275 = vpop.xlane.xlu0 %4274
  %v4276 = vcvt.f32.s32 %v4275
  %v4277 = vcvt.f32.s32 %v4271
  %v4278 = vshll.u32 %v4277, 16
  %v4279 = vadd.s32 %v4278, %v4276
  %v4280 = vsel %vm1231, %v4110, 2147483647
  %v4281 = vand.u32 %v4280, 65535
  %v4282 = vshra.s32 %v4280, 16
  %v4283 = vcvt.s32.f32 %v4281
  %v4284 = vcvt.s32.f32 %v4282
  %4285 = vmin.xlane.f32.xlu0 %v4284
  %v4286 = vpop.xlane.xlu0 %4285
  %vm4287 = vcmp.eq.f32.partialorder %v4284, %v4286
  %v4288 = vsel %vm4287, %v4283, inf
  %4289 = vmin.xlane.f32.xlu0 %v4288
  %v4290 = vpop.xlane.xlu0 %4289
  %v4291 = vcvt.f32.s32 %v4290
  %v4292 = vcvt.f32.s32 %v4286
  %v4293 = vshll.u32 %v4292, 16
  %v4294 = vadd.s32 %v4293, %v4291
  %v4295 = vsel %vm1231, %v4111, 2147483647
  %v4296 = vand.u32 %v4295, 65535
  %v4297 = vshra.s32 %v4295, 16
  %v4298 = vcvt.s32.f32 %v4296
  %v4299 = vcvt.s32.f32 %v4297
  %4300 = vmin.xlane.f32.xlu0 %v4299
  %v4301 = vpop.xlane.xlu0 %4300
  %vm4302 = vcmp.eq.f32.partialorder %v4299, %v4301
  %v4303 = vsel %vm4302, %v4298, inf
  %4304 = vmin.xlane.f32.xlu0 %v4303
  %v4305 = vpop.xlane.xlu0 %4304
  %v4306 = vcvt.f32.s32 %v4305
  %v4307 = vcvt.f32.s32 %v4301
  %v4308 = vshll.u32 %v4307, 16
  %v4309 = vadd.s32 %v4308, %v4306
  %v4310 = vsel %vm1231, %v4112, 2147483647
  %v4311 = vand.u32 %v4310, 65535
  %v4312 = vshra.s32 %v4310, 16
  %v4313 = vcvt.s32.f32 %v4311
  %v4314 = vcvt.s32.f32 %v4312
  %4315 = vmin.xlane.f32.xlu0 %v4314
  %v4316 = vpop.xlane.xlu0 %4315
  %vm4317 = vcmp.eq.f32.partialorder %v4314, %v4316
  %v4318 = vsel %vm4317, %v4313, inf
  %4319 = vmin.xlane.f32.xlu0 %v4318
  %v4320 = vpop.xlane.xlu0 %4319
  %v4321 = vcvt.f32.s32 %v4320
  %v4322 = vcvt.f32.s32 %v4316
  %v4323 = vshll.u32 %v4322, 16
  %v4324 = vadd.s32 %v4323, %v4321
  %v4325 = vsel %vm1231, %v4113, 2147483647
  %v4326 = vand.u32 %v4325, 65535
  %v4327 = vshra.s32 %v4325, 16
  %v4328 = vcvt.s32.f32 %v4326
  %v4329 = vcvt.s32.f32 %v4327
  %4330 = vmin.xlane.f32.xlu0 %v4329
  %v4331 = vpop.xlane.xlu0 %4330
  %vm4332 = vcmp.eq.f32.partialorder %v4329, %v4331
  %v4333 = vsel %vm4332, %v4328, inf
  %4334 = vmin.xlane.f32.xlu0 %v4333
  %v4335 = vpop.xlane.xlu0 %4334
  %v4336 = vcvt.f32.s32 %v4335
  %v4337 = vcvt.f32.s32 %v4331
  %v4338 = vshll.u32 %v4337, 16
  %v4339 = vadd.s32 %v4338, %v4336
  %v4340 = vsel %vm1231, %v4114, 2147483647
  %v4341 = vand.u32 %v4340, 65535
  %v4342 = vshra.s32 %v4340, 16
  %v4343 = vcvt.s32.f32 %v4341
  %v4344 = vcvt.s32.f32 %v4342
  %4345 = vmin.xlane.f32.xlu0 %v4344
  %v4346 = vpop.xlane.xlu0 %4345
  %vm4347 = vcmp.eq.f32.partialorder %v4344, %v4346
  %v4348 = vsel %vm4347, %v4343, inf
  %4349 = vmin.xlane.f32.xlu0 %v4348
  %v4350 = vpop.xlane.xlu0 %4349
  %v4351 = vcvt.f32.s32 %v4350
  %v4352 = vcvt.f32.s32 %v4346
  %v4353 = vshll.u32 %v4352, 16
  %v4354 = vadd.s32 %v4353, %v4351
  %vm4355 = vcmp.eq.s32.totalorder %v255, %v4129
  %vm4356 = vcmp.eq.s32.totalorder %v255, %v4144
  %vm4357 = vcmp.eq.s32.totalorder %v255, %v4159
  %vm4358 = vcmp.eq.s32.totalorder %v255, %v4174
  %vm4359 = vcmp.eq.s32.totalorder %v255, %v4189
  %vm4360 = vcmp.eq.s32.totalorder %v255, %v4204
  %vm4361 = vcmp.eq.s32.totalorder %v255, %v4219
  %vm4362 = vcmp.eq.s32.totalorder %v255, %v4234
  %vm4363 = vcmp.eq.s32.totalorder %v255, %v4249
  %vm4364 = vcmp.eq.s32.totalorder %v255, %v4264
  %vm4365 = vcmp.eq.s32.totalorder %v255, %v4279
  %vm4366 = vcmp.eq.s32.totalorder %v255, %v4294
  %vm4367 = vcmp.eq.s32.totalorder %v255, %v4309
  %vm4368 = vcmp.eq.s32.totalorder %v255, %v4324
  %vm4369 = vcmp.eq.s32.totalorder %v255, %v4339
  %vm4370 = vcmp.eq.s32.totalorder %v255, %v4354
  %v4371 = vsel %vm4355, 1, 0
  %v4372 = vsel %vm4356, 1, 0
  %v4373 = vsel %vm4357, 1, 0
  %v4374 = vsel %vm4358, 1, 0
  %v4375 = vsel %vm4359, 1, 0
  %v4376 = vsel %vm4360, 1, 0
  %v4377 = vsel %vm4361, 1, 0
  %v4378 = vsel %vm4362, 1, 0
  %v4379 = vsel %vm4363, 1, 0
  %v4380 = vsel %vm4364, 1, 0
  %v4381 = vsel %vm4365, 1, 0
  %v4382 = vsel %vm4366, 1, 0
  %v4383 = vsel %vm4367, 1, 0
  %v4384 = vsel %vm4368, 1, 0
  %v4385 = vsel %vm4369, 1, 0
  %v4386 = vsel %vm4370, 1, 0
  %v4387 = vcvt.s32.f32 %v4371
  %v4388 = vcvt.s32.f32 %v4372
  %v4389 = vcvt.s32.f32 %v4373
  %v4390 = vcvt.s32.f32 %v4374
  %v4391 = vcvt.s32.f32 %v4375
  %v4392 = vcvt.s32.f32 %v4376
  %v4393 = vcvt.s32.f32 %v4377
  %v4394 = vcvt.s32.f32 %v4378
  %v4395 = vcvt.s32.f32 %v4379
  %v4396 = vcvt.s32.f32 %v4380
  %v4397 = vcvt.s32.f32 %v4381
  %v4398 = vcvt.s32.f32 %v4382
  %v4399 = vcvt.s32.f32 %v4383
  %v4400 = vcvt.s32.f32 %v4384
  %v4401 = vcvt.s32.f32 %v4385
  %v4402 = vcvt.s32.f32 %v4386
  %v4404 = vsel %vm1231, %v4387, 0
  %v4407 = vsel %vm1231, %v4388, 0
  %v4410 = vsel %vm1231, %v4389, 0
  %v4413 = vsel %vm1231, %v4390, 0
  %v4416 = vsel %vm1231, %v4391, 0
  %v4419 = vsel %vm1231, %v4392, 0
  %v4422 = vsel %vm1231, %v4393, 0
  %v4425 = vsel %vm1231, %v4394, 0
  %v4428 = vsel %vm1231, %v4395, 0
  %v4431 = vsel %vm1231, %v4396, 0
  %v4434 = vsel %vm1231, %v4397, 0
  %v4437 = vsel %vm1231, %v4398, 0
  %v4440 = vsel %vm1231, %v4399, 0
  %v4443 = vsel %vm1231, %v4400, 0
  %v4446 = vsel %vm1231, %v4401, 0
  %v4449 = vsel %vm1231, %v4402, 0
  %4451 = vmatprep.subr.mxu0 0.0
  %4452 = vmatpush1.msra.mxu0 %v1600
  %4453 = vmatprep.subr.mxu0 0.0
  %4454 = vmatpush1.msra.mxu0 %v1659
  %4455 = vmatprep.subr.mxu0 0.0
  %4456 = vmatpush1.msra.mxu0 0.0
  %4457 = vmatprep.subr.mxu0 0.0
  %4458 = vmatpush1.msra.mxu0 0.0
  %4459 = vmatprep.subr.mxu0 0.0
  %4460 = vmatpush1.msra.mxu0 0.0
  %4461 = vmatprep.subr.mxu0 0.0
  %4462 = vmatpush1.msra.mxu0 0.0
  %4463 = vmatprep.subr.mxu0 0.0
  %4464 = vmatpush1.msra.mxu0 0.0
  %4465 = vmatprep.subr.mxu0 0.0
  %4466 = vmatpush1.msra.mxu0 0.0
  %4467 = vmatprep.subr.mxu0 0.0
  %4468 = vmatpush1.msra.mxu0 0.0
  %4469 = vmatprep.subr.mxu0 0.0
  %4470 = vmatpush1.msra.mxu0 0.0
  %4471 = vmatprep.subr.mxu0 0.0
  %4472 = vmatpush1.msra.mxu0 0.0
  %4473 = vmatprep.subr.mxu0 0.0
  %4474 = vmatpush1.msra.mxu0 0.0
  %4475 = vmatprep.subr.mxu0 0.0
  %4476 = vmatpush1.msra.mxu0 0.0
  %4477 = vmatprep.subr.mxu0 0.0
  %4478 = vmatpush1.msra.mxu0 0.0
  %4479 = vmatprep.subr.mxu0 0.0
  %4480 = vmatpush1.msra.mxu0 0.0
  %4481 = vmatprep.subr.mxu0 0.0
  %4482 = vmatpush1.msra.mxu0 0.0
  %4483 = vmatprep.subr.mxu0 0.0
  %4484 = vmatpush1.msra.mxu0 0.0
  %4485 = vmatprep.subr.mxu0 0.0
  %4486 = vmatpush1.msra.mxu0 0.0
  %4487 = vmatprep.subr.mxu0 0.0
  %4488 = vmatpush1.msra.mxu0 0.0
  %4489 = vmatprep.subr.mxu0 0.0
  %4490 = vmatpush1.msra.mxu0 0.0
  %4491 = vmatprep.subr.mxu0 0.0
  %4492 = vmatpush1.msra.mxu0 0.0
  %4493 = vmatprep.subr.mxu0 0.0
  %4494 = vmatpush1.msra.mxu0 0.0
  %4495 = vmatprep.subr.mxu0 0.0
  %4496 = vmatpush1.msra.mxu0 0.0
  %4497 = vmatprep.subr.mxu0 0.0
  %4498 = vmatpush1.msra.mxu0 0.0
  %4499 = vmatprep.subr.mxu0 0.0
  %4500 = vmatpush1.msra.mxu0 0.0
  %4501 = vmatprep.subr.mxu0 0.0
  %4502 = vmatpush1.msra.mxu0 0.0
  %4503 = vmatprep.subr.mxu0 0.0
  %4504 = vmatpush1.msra.mxu0 0.0
  %4505 = vmatprep.subr.mxu0 0.0
  %4506 = vmatpush1.msra.mxu0 0.0
  %4507 = vmatprep.subr.mxu0 0.0
  %4508 = vmatpush1.msra.mxu0 0.0
  %4509 = vmatprep.subr.mxu0 0.0
  %4510 = vmatpush1.msra.mxu0 0.0
  %4511 = vmatprep.subr.mxu0 0.0
  %4512 = vmatpush1.msra.mxu0 0.0
  %4513 = vmatprep.subr.mxu0 0.0
  %4514 = vmatpush1.msra.mxu0 0.0
  %4515 = vmatprep.mubr.f32.mxu0 0.0
  %4516 = vmatmul.mubr.f32.gmra.mrb[0].mxu0 %v4404
  %v4517 = vpop.f32.mrb[0].mxu0
  %v4518 = vadd.f32 %v1607, %v4517
  %v4519 = vpop.f32.mrb[0].mxu0
  %4520 = vmatprep.mubr.f32.mxu0 0.0
  %4521 = vmatmul.mubr.f32.gmra.mrb[0].mxu0 %v4407
  %v4522 = vpop.f32.mrb[0].mxu0
  %v4523 = vadd.f32 %v1607, %v4522
  %v4524 = vpop.f32.mrb[0].mxu0
  %4525 = vmatprep.mubr.f32.mxu0 0.0
  %4526 = vmatmul.mubr.f32.gmra.mrb[0].mxu0 %v4410
  %v4527 = vpop.f32.mrb[0].mxu0
  %v4528 = vadd.f32 %v1607, %v4527
  %v4529 = vpop.f32.mrb[0].mxu0
  %4530 = vmatprep.mubr.f32.mxu0 0.0
  %4531 = vmatmul.mubr.f32.gmra.mrb[0].mxu0 %v4413
  %v4532 = vpop.f32.mrb[0].mxu0
  %v4533 = vadd.f32 %v1607, %v4532
  %v4534 = vpop.f32.mrb[0].mxu0
  %4535 = vmatprep.mubr.f32.mxu0 0.0
  %4536 = vmatmul.mubr.f32.gmra.mrb[0].mxu0 %v4416
  %v4537 = vpop.f32.mrb[0].mxu0
  %v4538 = vadd.f32 %v1607, %v4537
  %v4539 = vpop.f32.mrb[0].mxu0
  %4540 = vmatprep.mubr.f32.mxu0 0.0
  %4541 = vmatmul.mubr.f32.gmra.mrb[0].mxu0 %v4419
  %v4542 = vpop.f32.mrb[0].mxu0
  %v4543 = vadd.f32 %v1607, %v4542
  %v4544 = vpop.f32.mrb[0].mxu0
  %4545 = vmatprep.mubr.f32.mxu0 0.0
  %4546 = vmatmul.mubr.f32.gmra.mrb[0].mxu0 %v4422
  %v4547 = vpop.f32.mrb[0].mxu0
  %v4548 = vadd.f32 %v1607, %v4547
  %v4549 = vpop.f32.mrb[0].mxu0
  %4550 = vmatprep.mubr.f32.mxu0 0.0
  %4551 = vmatmul.mubr.f32.gmra.mrb[0].mxu0 %v4425
  %v4552 = vpop.f32.mrb[0].mxu0
  %v4553 = vadd.f32 %v1607, %v4552
  %v4554 = vpop.f32.mrb[0].mxu0
  %4555 = vmatprep.mubr.f32.mxu0 0.0
  %4556 = vmatmul.mubr.f32.gmra.mrb[0].mxu0 %v4428
  %v4557 = vpop.f32.mrb[0].mxu0
  %v4558 = vadd.f32 %v1607, %v4557
  %v4559 = vpop.f32.mrb[0].mxu0
  %4560 = vmatprep.mubr.f32.mxu0 0.0
  %4561 = vmatmul.mubr.f32.gmra.mrb[0].mxu0 %v4431
  %v4562 = vpop.f32.mrb[0].mxu0
  %v4563 = vadd.f32 %v1607, %v4562
  %v4564 = vpop.f32.mrb[0].mxu0
  %4565 = vmatprep.mubr.f32.mxu0 0.0
  %4566 = vmatmul.mubr.f32.gmra.mrb[0].mxu0 %v4434
  %v4567 = vpop.f32.mrb[0].mxu0
  %v4568 = vadd.f32 %v1607, %v4567
  %v4569 = vpop.f32.mrb[0].mxu0
  %4570 = vmatprep.mubr.f32.mxu0 0.0
  %4571 = vmatmul.mubr.f32.gmra.mrb[0].mxu0 %v4437
  %v4572 = vpop.f32.mrb[0].mxu0
  %v4573 = vadd.f32 %v1607, %v4572
  %v4574 = vpop.f32.mrb[0].mxu0
  %4575 = vmatprep.mubr.f32.mxu0 0.0
  %4576 = vmatmul.mubr.f32.gmra.mrb[0].mxu0 %v4440
  %v4577 = vpop.f32.mrb[0].mxu0
  %v4578 = vadd.f32 %v1607, %v4577
  %v4579 = vpop.f32.mrb[0].mxu0
  %4580 = vmatprep.mubr.f32.mxu0 0.0
  %4581 = vmatmul.mubr.f32.gmra.mrb[0].mxu0 %v4443
  %v4582 = vpop.f32.mrb[0].mxu0
  %v4583 = vadd.f32 %v1607, %v4582
  %v4584 = vpop.f32.mrb[0].mxu0
  %4585 = vmatprep.mubr.f32.mxu0 0.0
  %4586 = vmatmul.mubr.f32.gmra.mrb[0].mxu0 %v4446
  %v4587 = vpop.f32.mrb[0].mxu0
  %v4588 = vadd.f32 %v1607, %v4587
  %v4589 = vpop.f32.mrb[0].mxu0
  %4590 = vmatprep.mubr.f32.mxu0 0.0
  %4591 = vmatmul.mubr.f32.gmra.mrb[0].mxu0 %v4449
  %v4592 = vpop.f32.mrb[0].mxu0
  %v4593 = vadd.f32 %v1607, %v4592
  %v4594 = vpop.f32.mrb[0].mxu0
  %4595 = vdwg.mxu0
  %v4596 = vadd.f32 %v4518, %v3957
  %v4597 = vadd.f32 %v4523, %v3962
  %v4598 = vadd.f32 %v4528, %v3967
  %v4599 = vadd.f32 %v4533, %v3972
  %v4600 = vadd.f32 %v4538, %v3977
  %v4601 = vadd.f32 %v4543, %v3982
  %v4602 = vadd.f32 %v4548, %v3987
  %v4603 = vadd.f32 %v4553, %v3992
  %v4604 = vadd.f32 %v4558, %v3997
  %v4605 = vadd.f32 %v4563, %v4002
  %v4606 = vadd.f32 %v4568, %v4007
  %v4607 = vadd.f32 %v4573, %v4012
  %v4608 = vadd.f32 %v4578, %v4017
  %v4609 = vadd.f32 %v4583, %v4022
  %v4610 = vadd.f32 %v4588, %v4027
  %v4611 = vadd.f32 %v4593, %v4032
  %v4612 = vxor.u32 %v4596, 2147483648
  %v4613 = vxor.u32 %v4597, 2147483648
  %v4614 = vxor.u32 %v4598, 2147483648
  %v4615 = vxor.u32 %v4599, 2147483648
  %v4616 = vxor.u32 %v4600, 2147483648
  %v4617 = vxor.u32 %v4601, 2147483648
  %v4618 = vxor.u32 %v4602, 2147483648
  %v4619 = vxor.u32 %v4603, 2147483648
  %v4620 = vxor.u32 %v4604, 2147483648
  %v4621 = vxor.u32 %v4605, 2147483648
  %v4622 = vxor.u32 %v4606, 2147483648
  %v4623 = vxor.u32 %v4607, 2147483648
  %v4624 = vxor.u32 %v4608, 2147483648
  %v4625 = vxor.u32 %v4609, 2147483648
  %v4626 = vxor.u32 %v4610, 2147483648
  %v4627 = vxor.u32 %v4611, 2147483648
  %v4628 = vmul.f32 %v4612, 1.442695
  %v4629 = vpow.pop %v4628
  %v4630 = vmul.f32 %v4613, 1.442695
  %v4631 = vpow.pop %v4630
  %v4632 = vmul.f32 %v4614, 1.442695
  %v4633 = vpow.pop %v4632
  %v4634 = vmul.f32 %v4615, 1.442695
  %v4635 = vpow.pop %v4634
  %v4636 = vmul.f32 %v4616, 1.442695
  %v4637 = vpow.pop %v4636
  %v4638 = vmul.f32 %v4617, 1.442695
  %v4639 = vpow.pop %v4638
  %v4640 = vmul.f32 %v4618, 1.442695
  %v4641 = vpow.pop %v4640
  %v4642 = vmul.f32 %v4619, 1.442695
  %v4643 = vpow.pop %v4642
  %v4644 = vmul.f32 %v4620, 1.442695
  %v4645 = vpow.pop %v4644
  %v4646 = vmul.f32 %v4621, 1.442695
  %v4647 = vpow.pop %v4646
  %v4648 = vmul.f32 %v4622, 1.442695
  %v4649 = vpow.pop %v4648
  %v4650 = vmul.f32 %v4623, 1.442695
  %v4651 = vpow.pop %v4650
  %v4652 = vmul.f32 %v4624, 1.442695
  %v4653 = vpow.pop %v4652
  %v4654 = vmul.f32 %v4625, 1.442695
  %v4655 = vpow.pop %v4654
  %v4656 = vmul.f32 %v4626, 1.442695
  %v4657 = vpow.pop %v4656
  %v4658 = vmul.f32 %v4627, 1.442695
  %v4659 = vpow.pop %v4658
  %v4660 = vadd.f32 %v4629, 1.0
  %v4661 = vadd.f32 %v4631, 1.0
  %v4662 = vadd.f32 %v4633, 1.0
  %v4663 = vadd.f32 %v4635, 1.0
  %v4664 = vadd.f32 %v4637, 1.0
  %v4665 = vadd.f32 %v4639, 1.0
  %v4666 = vadd.f32 %v4641, 1.0
  %v4667 = vadd.f32 %v4643, 1.0
  %v4668 = vadd.f32 %v4645, 1.0
  %v4669 = vadd.f32 %v4647, 1.0
  %v4670 = vadd.f32 %v4649, 1.0
  %v4671 = vadd.f32 %v4651, 1.0
  %v4672 = vadd.f32 %v4653, 1.0
  %v4673 = vadd.f32 %v4655, 1.0
  %v4674 = vadd.f32 %v4657, 1.0
  %v4675 = vadd.f32 %v4659, 1.0
  %v4676 = vrcp.pop %v4660
  %v4677 = vmul.f32 1.0, %v4676
  %v4678 = vrcp.pop %v4661
  %v4679 = vmul.f32 1.0, %v4678
  %v4680 = vrcp.pop %v4662
  %v4681 = vmul.f32 1.0, %v4680
  %v4682 = vrcp.pop %v4663
  %v4683 = vmul.f32 1.0, %v4682
  %v4684 = vrcp.pop %v4664
  %v4685 = vmul.f32 1.0, %v4684
  %v4686 = vrcp.pop %v4665
  %v4687 = vmul.f32 1.0, %v4686
  %v4688 = vrcp.pop %v4666
  %v4689 = vmul.f32 1.0, %v4688
  %v4690 = vrcp.pop %v4667
  %v4691 = vmul.f32 1.0, %v4690
  %v4692 = vrcp.pop %v4668
  %v4693 = vmul.f32 1.0, %v4692
  %v4694 = vrcp.pop %v4669
  %v4695 = vmul.f32 1.0, %v4694
  %v4696 = vrcp.pop %v4670
  %v4697 = vmul.f32 1.0, %v4696
  %v4698 = vrcp.pop %v4671
  %v4699 = vmul.f32 1.0, %v4698
  %v4700 = vrcp.pop %v4672
  %v4701 = vmul.f32 1.0, %v4700
  %v4702 = vrcp.pop %v4673
  %v4703 = vmul.f32 1.0, %v4702
  %v4704 = vrcp.pop %v4674
  %v4705 = vmul.f32 1.0, %v4704
  %v4706 = vrcp.pop %v4675
  %v4707 = vmul.f32 1.0, %v4706
  %4724 = vrot.lane.b32.xlu0 %v3957, 64
  %v4725 = vpop.permute.xlu0 %4724
  %4726 = vrot.lane.b32.xlu0 %v3962, 64
  %v4727 = vpop.permute.xlu0 %4726
  %4728 = vrot.lane.b32.xlu0 %v3967, 64
  %v4729 = vpop.permute.xlu0 %4728
  %4730 = vrot.lane.b32.xlu0 %v3972, 64
  %v4731 = vpop.permute.xlu0 %4730
  %4732 = vrot.lane.b32.xlu0 %v3977, 64
  %v4733 = vpop.permute.xlu0 %4732
  %4734 = vrot.lane.b32.xlu0 %v3982, 64
  %v4735 = vpop.permute.xlu0 %4734
  %4736 = vrot.lane.b32.xlu0 %v3987, 64
  %v4737 = vpop.permute.xlu0 %4736
  %4738 = vrot.lane.b32.xlu0 %v3992, 64
  %v4739 = vpop.permute.xlu0 %4738
  %4740 = vrot.lane.b32.xlu0 %v3997, 64
  %v4741 = vpop.permute.xlu0 %4740
  %4742 = vrot.lane.b32.xlu0 %v4002, 64
  %v4743 = vpop.permute.xlu0 %4742
  %4744 = vrot.lane.b32.xlu0 %v4007, 64
  %v4745 = vpop.permute.xlu0 %4744
  %4746 = vrot.lane.b32.xlu0 %v4012, 64
  %v4747 = vpop.permute.xlu0 %4746
  %4748 = vrot.lane.b32.xlu0 %v4017, 64
  %v4749 = vpop.permute.xlu0 %4748
  %4750 = vrot.lane.b32.xlu0 %v4022, 64
  %v4751 = vpop.permute.xlu0 %4750
  %4752 = vrot.lane.b32.xlu0 %v4027, 64
  %v4753 = vpop.permute.xlu0 %4752
  %4754 = vrot.lane.b32.xlu0 %v4032, 64
  %v4755 = vpop.permute.xlu0 %4754
  %v4772 = vmul.f32 %v4677, %v4725
  %v4773 = vmul.f32 %v4679, %v4727
  %v4774 = vmul.f32 %v4681, %v4729
  %v4775 = vmul.f32 %v4683, %v4731
  %v4776 = vmul.f32 %v4685, %v4733
  %v4777 = vmul.f32 %v4687, %v4735
  %v4778 = vmul.f32 %v4689, %v4737
  %v4779 = vmul.f32 %v4691, %v4739
  %v4780 = vmul.f32 %v4693, %v4741
  %v4781 = vmul.f32 %v4695, %v4743
  %v4782 = vmul.f32 %v4697, %v4745
  %v4783 = vmul.f32 %v4699, %v4747
  %v4784 = vmul.f32 %v4701, %v4749
  %v4785 = vmul.f32 %v4703, %v4751
  %v4786 = vmul.f32 %v4705, %v4753
  %v4787 = vmul.f32 %v4707, %v4755
  %4804 = vrot.lane.b32.xlu0 %v4772, 64
  %v4805 = vpop.permute.xlu0 %4804
  %4806 = vrot.lane.b32.xlu0 %v4773, 64
  %v4807 = vpop.permute.xlu0 %4806
  %4808 = vrot.lane.b32.xlu0 %v4774, 64
  %v4809 = vpop.permute.xlu0 %4808
  %4810 = vrot.lane.b32.xlu0 %v4775, 64
  %v4811 = vpop.permute.xlu0 %4810
  %4812 = vrot.lane.b32.xlu0 %v4776, 64
  %v4813 = vpop.permute.xlu0 %4812
  %4814 = vrot.lane.b32.xlu0 %v4777, 64
  %v4815 = vpop.permute.xlu0 %4814
  %4816 = vrot.lane.b32.xlu0 %v4778, 64
  %v4817 = vpop.permute.xlu0 %4816
  %4818 = vrot.lane.b32.xlu0 %v4779, 64
  %v4819 = vpop.permute.xlu0 %4818
  %4820 = vrot.lane.b32.xlu0 %v4780, 64
  %v4821 = vpop.permute.xlu0 %4820
  %4822 = vrot.lane.b32.xlu0 %v4781, 64
  %v4823 = vpop.permute.xlu0 %4822
  %4824 = vrot.lane.b32.xlu0 %v4782, 64
  %v4825 = vpop.permute.xlu0 %4824
  %4826 = vrot.lane.b32.xlu0 %v4783, 64
  %v4827 = vpop.permute.xlu0 %4826
  %4828 = vrot.lane.b32.xlu0 %v4784, 64
  %v4829 = vpop.permute.xlu0 %4828
  %4830 = vrot.lane.b32.xlu0 %v4785, 64
  %v4831 = vpop.permute.xlu0 %4830
  %4832 = vrot.lane.b32.xlu0 %v4786, 64
  %v4833 = vpop.permute.xlu0 %4832
  %4834 = vrot.lane.b32.xlu0 %v4787, 64
  %v4835 = vpop.permute.xlu0 %4834
  %v4852 = vadd.f32 %v4518, %v4805
  %v4853 = vadd.f32 %v4523, %v4807
  %v4854 = vadd.f32 %v4528, %v4809
  %v4855 = vadd.f32 %v4533, %v4811
  %v4856 = vadd.f32 %v4538, %v4813
  %v4857 = vadd.f32 %v4543, %v4815
  %v4858 = vadd.f32 %v4548, %v4817
  %v4859 = vadd.f32 %v4553, %v4819
  %v4860 = vadd.f32 %v4558, %v4821
  %v4861 = vadd.f32 %v4563, %v4823
  %v4862 = vadd.f32 %v4568, %v4825
  %v4863 = vadd.f32 %v4573, %v4827
  %v4864 = vadd.f32 %v4578, %v4829
  %v4865 = vadd.f32 %v4583, %v4831
  %v4866 = vadd.f32 %v4588, %v4833
  %v4867 = vadd.f32 %v4593, %v4835
  %v4868 = vtanh.pop %v4852
  %v4869 = vtanh.pop %v4853
  %v4870 = vtanh.pop %v4854
  %v4871 = vtanh.pop %v4855
  %v4872 = vtanh.pop %v4856
  %v4873 = vtanh.pop %v4857
  %v4874 = vtanh.pop %v4858
  %v4875 = vtanh.pop %v4859
  %v4876 = vtanh.pop %v4860
  %v4877 = vtanh.pop %v4861
  %v4878 = vtanh.pop %v4862
  %v4879 = vtanh.pop %v4863
  %v4880 = vtanh.pop %v4864
  %v4881 = vtanh.pop %v4865
  %v4882 = vtanh.pop %v4866
  %v4883 = vtanh.pop %v4867
  %v4884 = vsub.f32 %v3649, %v4868
  %v4885 = vsub.f32 %v3650, %v4869
  %v4886 = vsub.f32 %v3651, %v4870
  %v4887 = vsub.f32 %v3652, %v4871
  %v4888 = vsub.f32 %v3653, %v4872
  %v4889 = vsub.f32 %v3654, %v4873
  %v4890 = vsub.f32 %v3655, %v4874
  %v4891 = vsub.f32 %v3656, %v4875
  %v4892 = vsub.f32 %v3657, %v4876
  %v4893 = vsub.f32 %v3658, %v4877
  %v4894 = vsub.f32 %v3659, %v4878
  %v4895 = vsub.f32 %v3660, %v4879
  %v4896 = vsub.f32 %v3661, %v4880
  %v4897 = vsub.f32 %v3662, %v4881
  %v4898 = vsub.f32 %v3663, %v4882
  %v4899 = vsub.f32 %v3664, %v4883
  %4916 = vrot.lane.b32.xlu0 %v4884, 96
  %v4917 = vpop.permute.xlu0 %4916
  %4918 = vrot.lane.b32.xlu0 %v4885, 96
  %v4919 = vpop.permute.xlu0 %4918
  %4920 = vrot.lane.b32.xlu0 %v4886, 96
  %v4921 = vpop.permute.xlu0 %4920
  %4922 = vrot.lane.b32.xlu0 %v4887, 96
  %v4923 = vpop.permute.xlu0 %4922
  %4924 = vrot.lane.b32.xlu0 %v4888, 96
  %v4925 = vpop.permute.xlu0 %4924
  %4926 = vrot.lane.b32.xlu0 %v4889, 96
  %v4927 = vpop.permute.xlu0 %4926
  %4928 = vrot.lane.b32.xlu0 %v4890, 96
  %v4929 = vpop.permute.xlu0 %4928
  %4930 = vrot.lane.b32.xlu0 %v4891, 96
  %v4931 = vpop.permute.xlu0 %4930
  %4932 = vrot.lane.b32.xlu0 %v4892, 96
  %v4933 = vpop.permute.xlu0 %4932
  %4934 = vrot.lane.b32.xlu0 %v4893, 96
  %v4935 = vpop.permute.xlu0 %4934
  %4936 = vrot.lane.b32.xlu0 %v4894, 96
  %v4937 = vpop.permute.xlu0 %4936
  %4938 = vrot.lane.b32.xlu0 %v4895, 96
  %v4939 = vpop.permute.xlu0 %4938
  %4940 = vrot.lane.b32.xlu0 %v4896, 96
  %v4941 = vpop.permute.xlu0 %4940
  %4942 = vrot.lane.b32.xlu0 %v4897, 96
  %v4943 = vpop.permute.xlu0 %4942
  %4944 = vrot.lane.b32.xlu0 %v4898, 96
  %v4945 = vpop.permute.xlu0 %4944
  %4946 = vrot.lane.b32.xlu0 %v4899, 96
  %v4947 = vpop.permute.xlu0 %4946
  %v4964 = vmul.f32 %v4677, %v4917
  %v4965 = vmul.f32 %v4679, %v4919
  %v4966 = vmul.f32 %v4681, %v4921
  %v4967 = vmul.f32 %v4683, %v4923
  %v4968 = vmul.f32 %v4685, %v4925
  %v4969 = vmul.f32 %v4687, %v4927
  %v4970 = vmul.f32 %v4689, %v4929
  %v4971 = vmul.f32 %v4691, %v4931
  %v4972 = vmul.f32 %v4693, %v4933
  %v4973 = vmul.f32 %v4695, %v4935
  %v4974 = vmul.f32 %v4697, %v4937
  %v4975 = vmul.f32 %v4699, %v4939
  %v4976 = vmul.f32 %v4701, %v4941
  %v4977 = vmul.f32 %v4703, %v4943
  %v4978 = vmul.f32 %v4705, %v4945
  %v4979 = vmul.f32 %v4707, %v4947
  %4996 = vrot.lane.b32.xlu0 %v4964, 32
  %v4997 = vpop.permute.xlu0 %4996
  %4998 = vrot.lane.b32.xlu0 %v4965, 32
  %v4999 = vpop.permute.xlu0 %4998
  %5000 = vrot.lane.b32.xlu0 %v4966, 32
  %v5001 = vpop.permute.xlu0 %5000
  %5002 = vrot.lane.b32.xlu0 %v4967, 32
  %v5003 = vpop.permute.xlu0 %5002
  %5004 = vrot.lane.b32.xlu0 %v4968, 32
  %v5005 = vpop.permute.xlu0 %5004
  %5006 = vrot.lane.b32.xlu0 %v4969, 32
  %v5007 = vpop.permute.xlu0 %5006
  %5008 = vrot.lane.b32.xlu0 %v4970, 32
  %v5009 = vpop.permute.xlu0 %5008
  %5010 = vrot.lane.b32.xlu0 %v4971, 32
  %v5011 = vpop.permute.xlu0 %5010
  %5012 = vrot.lane.b32.xlu0 %v4972, 32
  %v5013 = vpop.permute.xlu0 %5012
  %5014 = vrot.lane.b32.xlu0 %v4973, 32
  %v5015 = vpop.permute.xlu0 %5014
  %5016 = vrot.lane.b32.xlu0 %v4974, 32
  %v5017 = vpop.permute.xlu0 %5016
  %5018 = vrot.lane.b32.xlu0 %v4975, 32
  %v5019 = vpop.permute.xlu0 %5018
  %5020 = vrot.lane.b32.xlu0 %v4976, 32
  %v5021 = vpop.permute.xlu0 %5020
  %5022 = vrot.lane.b32.xlu0 %v4977, 32
  %v5023 = vpop.permute.xlu0 %5022
  %5024 = vrot.lane.b32.xlu0 %v4978, 32
  %v5025 = vpop.permute.xlu0 %5024
  %5026 = vrot.lane.b32.xlu0 %v4979, 32
  %v5027 = vpop.permute.xlu0 %5026
  %v5044 = vadd.f32 %v4868, %v4997
  %v5045 = vadd.f32 %v4869, %v4999
  %v5046 = vadd.f32 %v4870, %v5001
  %v5047 = vadd.f32 %v4871, %v5003
  %v5048 = vadd.f32 %v4872, %v5005
  %v5049 = vadd.f32 %v4873, %v5007
  %v5050 = vadd.f32 %v4874, %v5009
  %v5051 = vadd.f32 %v4875, %v5011
  %v5052 = vadd.f32 %v4876, %v5013
  %v5053 = vadd.f32 %v4877, %v5015
  %v5054 = vadd.f32 %v4878, %v5017
  %v5055 = vadd.f32 %v4879, %v5019
  %v5056 = vadd.f32 %v4880, %v5021
  %v5057 = vadd.f32 %v4881, %v5023
  %v5058 = vadd.f32 %v4882, %v5025
  %v5059 = vadd.f32 %v4883, %v5027
  %5076 = vrot.lane.b32.xlu0 %v5044, 64
  %v5077 = vpop.permute.xlu0 %5076
  %5078 = vrot.lane.b32.xlu0 %v5045, 64
  %v5079 = vpop.permute.xlu0 %5078
  %5080 = vrot.lane.b32.xlu0 %v5046, 64
  %v5081 = vpop.permute.xlu0 %5080
  %5082 = vrot.lane.b32.xlu0 %v5047, 64
  %v5083 = vpop.permute.xlu0 %5082
  %5084 = vrot.lane.b32.xlu0 %v5048, 64
  %v5085 = vpop.permute.xlu0 %5084
  %5086 = vrot.lane.b32.xlu0 %v5049, 64
  %v5087 = vpop.permute.xlu0 %5086
  %5088 = vrot.lane.b32.xlu0 %v5050, 64
  %v5089 = vpop.permute.xlu0 %5088
  %5090 = vrot.lane.b32.xlu0 %v5051, 64
  %v5091 = vpop.permute.xlu0 %5090
  %5092 = vrot.lane.b32.xlu0 %v5052, 64
  %v5093 = vpop.permute.xlu0 %5092
  %5094 = vrot.lane.b32.xlu0 %v5053, 64
  %v5095 = vpop.permute.xlu0 %5094
  %5096 = vrot.lane.b32.xlu0 %v5054, 64
  %v5097 = vpop.permute.xlu0 %5096
  %5098 = vrot.lane.b32.xlu0 %v5055, 64
  %v5099 = vpop.permute.xlu0 %5098
  %5100 = vrot.lane.b32.xlu0 %v5056, 64
  %v5101 = vpop.permute.xlu0 %5100
  %5102 = vrot.lane.b32.xlu0 %v5057, 64
  %v5103 = vpop.permute.xlu0 %5102
  %5104 = vrot.lane.b32.xlu0 %v5058, 64
  %v5105 = vpop.permute.xlu0 %5104
  %5106 = vrot.lane.b32.xlu0 %v5059, 64
  %v5107 = vpop.permute.xlu0 %5106
  %v5108 = vsel %vm897, %v5077, 0
  %v5110 = vsel %vm897, %v5079, 0
  %v5112 = vsel %vm897, %v5081, 0
  %v5114 = vsel %vm897, %v5083, 0
  %v5116 = vsel %vm897, %v5085, 0
  %v5118 = vsel %vm897, %v5087, 0
  %v5120 = vsel %vm897, %v5089, 0
  %v5122 = vsel %vm897, %v5091, 0
  %v5124 = vsel %vm897, %v5093, 0
  %v5126 = vsel %vm897, %v5095, 0
  %v5128 = vsel %vm897, %v5097, 0
  %v5130 = vsel %vm897, %v5099, 0
  %v5132 = vsel %vm897, %v5101, 0
  %v5134 = vsel %vm897, %v5103, 0
  %v5136 = vsel %vm897, %v5105, 0
  %v5138 = vsel %vm897, %v5107, 0
  %5140 = vmatprep.subr.mxu0 0.0
  %5141 = vmatpush1.msra.mxu0 %v838
  %5142 = vmatprep.subr.mxu0 0.0
  %5143 = vmatpush1.msra.mxu0 %v839
  %5144 = vmatprep.subr.mxu0 0.0
  %5145 = vmatpush1.msra.mxu0 %v840
  %5146 = vmatprep.subr.mxu0 0.0
  %5147 = vmatpush1.msra.mxu0 %v841
  %5148 = vmatprep.subr.mxu0 0.0
  %5149 = vmatpush1.msra.mxu0 0.0
  %5150 = vmatprep.subr.mxu0 0.0
  %5151 = vmatpush1.msra.mxu0 0.0
  %5152 = vmatprep.subr.mxu0 0.0
  %5153 = vmatpush1.msra.mxu0 0.0
  %5154 = vmatprep.subr.mxu0 0.0
  %5155 = vmatpush1.msra.mxu0 0.0
  %5156 = vmatprep.subr.mxu0 0.0
  %5157 = vmatpush1.msra.mxu0 0.0
  %5158 = vmatprep.subr.mxu0 0.0
  %5159 = vmatpush1.msra.mxu0 0.0
  %5160 = vmatprep.subr.mxu0 0.0
  %5161 = vmatpush1.msra.mxu0 0.0
  %5162 = vmatprep.subr.mxu0 0.0
  %5163 = vmatpush1.msra.mxu0 0.0
  %5164 = vmatprep.subr.mxu0 0.0
  %5165 = vmatpush1.msra.mxu0 0.0
  %5166 = vmatprep.subr.mxu0 0.0
  %5167 = vmatpush1.msra.mxu0 0.0
  %5168 = vmatprep.subr.mxu0 0.0
  %5169 = vmatpush1.msra.mxu0 0.0
  %5170 = vmatprep.subr.mxu0 0.0
  %5171 = vmatpush1.msra.mxu0 0.0
  %5172 = vmatprep.subr.mxu0 0.0
  %5173 = vmatpush1.msra.mxu0 0.0
  %5174 = vmatprep.subr.mxu0 0.0
  %5175 = vmatpush1.msra.mxu0 0.0
  %5176 = vmatprep.subr.mxu0 0.0
  %5177 = vmatpush1.msra.mxu0 0.0
  %5178 = vmatprep.subr.mxu0 0.0
  %5179 = vmatpush1.msra.mxu0 0.0
  %5180 = vmatprep.subr.mxu0 0.0
  %5181 = vmatpush1.msra.mxu0 0.0
  %5182 = vmatprep.subr.mxu0 0.0
  %5183 = vmatpush1.msra.mxu0 0.0
  %5184 = vmatprep.subr.mxu0 0.0
  %5185 = vmatpush1.msra.mxu0 0.0
  %5186 = vmatprep.subr.mxu0 0.0
  %5187 = vmatpush1.msra.mxu0 0.0
  %5188 = vmatprep.subr.mxu0 0.0
  %5189 = vmatpush1.msra.mxu0 0.0
  %5190 = vmatprep.subr.mxu0 0.0
  %5191 = vmatpush1.msra.mxu0 0.0
  %5192 = vmatprep.subr.mxu0 0.0
  %5193 = vmatpush1.msra.mxu0 0.0
  %5194 = vmatprep.subr.mxu0 0.0
  %5195 = vmatpush1.msra.mxu0 0.0
  %5196 = vmatprep.subr.mxu0 0.0
  %5197 = vmatpush1.msra.mxu0 0.0
  %5198 = vmatprep.subr.mxu0 0.0
  %5199 = vmatpush1.msra.mxu0 0.0
  %5200 = vmatprep.subr.mxu0 0.0
  %5201 = vmatpush1.msra.mxu0 0.0
  %5202 = vmatprep.subr.mxu0 0.0
  %5203 = vmatpush1.msra.mxu0 0.0
  %5204 = vmatprep.mubr.f32.mxu0 0.0
  %5205 = vmatmul.mubr.f32.gmra.mrb[0].mxu0 %v5108
  %v5206 = vpop.f32.mrb[0].mxu0
  %v5207 = vadd.f32 %v847, %v5206
  %v5208 = vpop.f32.mrb[0].mxu0
  %5209 = vmatprep.mubr.f32.mxu0 0.0
  %5210 = vmatmul.mubr.f32.gmra.mrb[0].mxu0 %v5110
  %v5211 = vpop.f32.mrb[0].mxu0
  %v5212 = vadd.f32 %v847, %v5211
  %v5213 = vpop.f32.mrb[0].mxu0
  %5214 = vmatprep.mubr.f32.mxu0 0.0
  %5215 = vmatmul.mubr.f32.gmra.mrb[0].mxu0 %v5112
  %v5216 = vpop.f32.mrb[0].mxu0
  %v5217 = vadd.f32 %v847, %v5216
  %v5218 = vpop.f32.mrb[0].mxu0
  %5219 = vmatprep.mubr.f32.mxu0 0.0
  %5220 = vmatmul.mubr.f32.gmra.mrb[0].mxu0 %v5114
  %v5221 = vpop.f32.mrb[0].mxu0
  %v5222 = vadd.f32 %v847, %v5221
  %v5223 = vpop.f32.mrb[0].mxu0
  %5224 = vmatprep.mubr.f32.mxu0 0.0
  %5225 = vmatmul.mubr.f32.gmra.mrb[0].mxu0 %v5116
  %v5226 = vpop.f32.mrb[0].mxu0
  %v5227 = vadd.f32 %v847, %v5226
  %v5228 = vpop.f32.mrb[0].mxu0
  %5229 = vmatprep.mubr.f32.mxu0 0.0
  %5230 = vmatmul.mubr.f32.gmra.mrb[0].mxu0 %v5118
  %v5231 = vpop.f32.mrb[0].mxu0
  %v5232 = vadd.f32 %v847, %v5231
  %v5233 = vpop.f32.mrb[0].mxu0
  %5234 = vmatprep.mubr.f32.mxu0 0.0
  %5235 = vmatmul.mubr.f32.gmra.mrb[0].mxu0 %v5120
  %v5236 = vpop.f32.mrb[0].mxu0
  %v5237 = vadd.f32 %v847, %v5236
  %v5238 = vpop.f32.mrb[0].mxu0
  %5239 = vmatprep.mubr.f32.mxu0 0.0
  %5240 = vmatmul.mubr.f32.gmra.mrb[0].mxu0 %v5122
  %v5241 = vpop.f32.mrb[0].mxu0
  %v5242 = vadd.f32 %v847, %v5241
  %v5243 = vpop.f32.mrb[0].mxu0
  %5244 = vmatprep.mubr.f32.mxu0 0.0
  %5245 = vmatmul.mubr.f32.gmra.mrb[0].mxu0 %v5124
  %v5246 = vpop.f32.mrb[0].mxu0
  %v5247 = vadd.f32 %v847, %v5246
  %v5248 = vpop.f32.mrb[0].mxu0
  %5249 = vmatprep.mubr.f32.mxu0 0.0
  %5250 = vmatmul.mubr.f32.gmra.mrb[0].mxu0 %v5126
  %v5251 = vpop.f32.mrb[0].mxu0
  %v5252 = vadd.f32 %v847, %v5251
  %v5253 = vpop.f32.mrb[0].mxu0
  %5254 = vmatprep.mubr.f32.mxu0 0.0
  %5255 = vmatmul.mubr.f32.gmra.mrb[0].mxu0 %v5128
  %v5256 = vpop.f32.mrb[0].mxu0
  %v5257 = vadd.f32 %v847, %v5256
  %v5258 = vpop.f32.mrb[0].mxu0
  %5259 = vmatprep.mubr.f32.mxu0 0.0
  %5260 = vmatmul.mubr.f32.gmra.mrb[0].mxu0 %v5130
  %v5261 = vpop.f32.mrb[0].mxu0
  %v5262 = vadd.f32 %v847, %v5261
  %v5263 = vpop.f32.mrb[0].mxu0
  %5264 = vmatprep.mubr.f32.mxu0 0.0
  %5265 = vmatmul.mubr.f32.gmra.mrb[0].mxu0 %v5132
  %v5266 = vpop.f32.mrb[0].mxu0
  %v5267 = vadd.f32 %v847, %v5266
  %v5268 = vpop.f32.mrb[0].mxu0
  %5269 = vmatprep.mubr.f32.mxu0 0.0
  %5270 = vmatmul.mubr.f32.gmra.mrb[0].mxu0 %v5134
  %v5271 = vpop.f32.mrb[0].mxu0
  %v5272 = vadd.f32 %v847, %v5271
  %v5273 = vpop.f32.mrb[0].mxu0
  %5274 = vmatprep.mubr.f32.mxu0 0.0
  %5275 = vmatmul.mubr.f32.gmra.mrb[0].mxu0 %v5136
  %v5276 = vpop.f32.mrb[0].mxu0
  %v5277 = vadd.f32 %v847, %v5276
  %v5278 = vpop.f32.mrb[0].mxu0
  %5279 = vmatprep.mubr.f32.mxu0 0.0
  %5280 = vmatmul.mubr.f32.gmra.mrb[0].mxu0 %v5138
  %v5281 = vpop.f32.mrb[0].mxu0
  %v5282 = vadd.f32 %v847, %v5281
  %v5283 = vpop.f32.mrb[0].mxu0
  %5284 = vdwg.mxu0
  %5285 = vmatprep.subr.mxu0 0.0
  %5286 = vmatpush1.msra.mxu0 %v1075
  %5287 = vmatprep.subr.mxu0 0.0
  %5288 = vmatpush1.msra.mxu0 %v1076
  %5289 = vmatprep.subr.mxu0 0.0
  %5290 = vmatpush1.msra.mxu0 %v1077
  %5291 = vmatprep.subr.mxu0 0.0
  %5292 = vmatpush1.msra.mxu0 %v1078
  %5293 = vmatprep.subr.mxu0 0.0
  %5294 = vmatpush1.msra.mxu0 0.0
  %5295 = vmatprep.subr.mxu0 0.0
  %5296 = vmatpush1.msra.mxu0 0.0
  %5297 = vmatprep.subr.mxu0 0.0
  %5298 = vmatpush1.msra.mxu0 0.0
  %5299 = vmatprep.subr.mxu0 0.0
  %5300 = vmatpush1.msra.mxu0 0.0
  %5301 = vmatprep.subr.mxu0 0.0
  %5302 = vmatpush1.msra.mxu0 0.0
  %5303 = vmatprep.subr.mxu0 0.0
  %5304 = vmatpush1.msra.mxu0 0.0
  %5305 = vmatprep.subr.mxu0 0.0
  %5306 = vmatpush1.msra.mxu0 0.0
  %5307 = vmatprep.subr.mxu0 0.0
  %5308 = vmatpush1.msra.mxu0 0.0
  %5309 = vmatprep.subr.mxu0 0.0
  %5310 = vmatpush1.msra.mxu0 0.0
  %5311 = vmatprep.subr.mxu0 0.0
  %5312 = vmatpush1.msra.mxu0 0.0
  %5313 = vmatprep.subr.mxu0 0.0
  %5314 = vmatpush1.msra.mxu0 0.0
  %5315 = vmatprep.subr.mxu0 0.0
  %5316 = vmatpush1.msra.mxu0 0.0
  %5317 = vmatprep.subr.mxu0 0.0
  %5318 = vmatpush1.msra.mxu0 0.0
  %5319 = vmatprep.subr.mxu0 0.0
  %5320 = vmatpush1.msra.mxu0 0.0
  %5321 = vmatprep.subr.mxu0 0.0
  %5322 = vmatpush1.msra.mxu0 0.0
  %5323 = vmatprep.subr.mxu0 0.0
  %5324 = vmatpush1.msra.mxu0 0.0
  %5325 = vmatprep.subr.mxu0 0.0
  %5326 = vmatpush1.msra.mxu0 0.0
  %5327 = vmatprep.subr.mxu0 0.0
  %5328 = vmatpush1.msra.mxu0 0.0
  %5329 = vmatprep.subr.mxu0 0.0
  %5330 = vmatpush1.msra.mxu0 0.0
  %5331 = vmatprep.subr.mxu0 0.0
  %5332 = vmatpush1.msra.mxu0 0.0
  %5333 = vmatprep.subr.mxu0 0.0
  %5334 = vmatpush1.msra.mxu0 0.0
  %5335 = vmatprep.subr.mxu0 0.0
  %5336 = vmatpush1.msra.mxu0 0.0
  %5337 = vmatprep.subr.mxu0 0.0
  %5338 = vmatpush1.msra.mxu0 0.0
  %5339 = vmatprep.subr.mxu0 0.0
  %5340 = vmatpush1.msra.mxu0 0.0
  %5341 = vmatprep.subr.mxu0 0.0
  %5342 = vmatpush1.msra.mxu0 0.0
  %5343 = vmatprep.subr.mxu0 0.0
  %5344 = vmatpush1.msra.mxu0 0.0
  %5345 = vmatprep.subr.mxu0 0.0
  %5346 = vmatpush1.msra.mxu0 0.0
  %5347 = vmatprep.subr.mxu0 0.0
  %5348 = vmatpush1.msra.mxu0 0.0
  %5349 = vmatprep.mubr.f32.mxu0 0.0
  %5350 = vmatmul.mubr.f32.gmra.mrb[0].mxu0 %v5108
  %v5351 = vpop.f32.mrb[0].mxu0
  %v5352 = vadd.f32 %v1084, %v5351
  %v5353 = vpop.f32.mrb[0].mxu0
  %5354 = vmatprep.mubr.f32.mxu0 0.0
  %5355 = vmatmul.mubr.f32.gmra.mrb[0].mxu0 %v5110
  %v5356 = vpop.f32.mrb[0].mxu0
  %v5357 = vadd.f32 %v1084, %v5356
  %v5358 = vpop.f32.mrb[0].mxu0
  %5359 = vmatprep.mubr.f32.mxu0 0.0
  %5360 = vmatmul.mubr.f32.gmra.mrb[0].mxu0 %v5112
  %v5361 = vpop.f32.mrb[0].mxu0
  %v5362 = vadd.f32 %v1084, %v5361
  %v5363 = vpop.f32.mrb[0].mxu0
  %5364 = vmatprep.mubr.f32.mxu0 0.0
  %5365 = vmatmul.mubr.f32.gmra.mrb[0].mxu0 %v5114
  %v5366 = vpop.f32.mrb[0].mxu0
  %v5367 = vadd.f32 %v1084, %v5366
  %v5368 = vpop.f32.mrb[0].mxu0
  %5369 = vmatprep.mubr.f32.mxu0 0.0
  %5370 = vmatmul.mubr.f32.gmra.mrb[0].mxu0 %v5116
  %v5371 = vpop.f32.mrb[0].mxu0
  %v5372 = vadd.f32 %v1084, %v5371
  %v5373 = vpop.f32.mrb[0].mxu0
  %5374 = vmatprep.mubr.f32.mxu0 0.0
  %5375 = vmatmul.mubr.f32.gmra.mrb[0].mxu0 %v5118
  %v5376 = vpop.f32.mrb[0].mxu0
  %v5377 = vadd.f32 %v1084, %v5376
  %v5378 = vpop.f32.mrb[0].mxu0
  %5379 = vmatprep.mubr.f32.mxu0 0.0
  %5380 = vmatmul.mubr.f32.gmra.mrb[0].mxu0 %v5120
  %v5381 = vpop.f32.mrb[0].mxu0
  %v5382 = vadd.f32 %v1084, %v5381
  %v5383 = vpop.f32.mrb[0].mxu0
  %5384 = vmatprep.mubr.f32.mxu0 0.0
  %5385 = vmatmul.mubr.f32.gmra.mrb[0].mxu0 %v5122
  %v5386 = vpop.f32.mrb[0].mxu0
  %v5387 = vadd.f32 %v1084, %v5386
  %v5388 = vpop.f32.mrb[0].mxu0
  %5389 = vmatprep.mubr.f32.mxu0 0.0
  %5390 = vmatmul.mubr.f32.gmra.mrb[0].mxu0 %v5124
  %v5391 = vpop.f32.mrb[0].mxu0
  %v5392 = vadd.f32 %v1084, %v5391
  %v5393 = vpop.f32.mrb[0].mxu0
  %5394 = vmatprep.mubr.f32.mxu0 0.0
  %5395 = vmatmul.mubr.f32.gmra.mrb[0].mxu0 %v5126
  %v5396 = vpop.f32.mrb[0].mxu0
  %v5397 = vadd.f32 %v1084, %v5396
  %v5398 = vpop.f32.mrb[0].mxu0
  %5399 = vmatprep.mubr.f32.mxu0 0.0
  %5400 = vmatmul.mubr.f32.gmra.mrb[0].mxu0 %v5128
  %v5401 = vpop.f32.mrb[0].mxu0
  %v5402 = vadd.f32 %v1084, %v5401
  %v5403 = vpop.f32.mrb[0].mxu0
  %5404 = vmatprep.mubr.f32.mxu0 0.0
  %5405 = vmatmul.mubr.f32.gmra.mrb[0].mxu0 %v5130
  %v5406 = vpop.f32.mrb[0].mxu0
  %v5407 = vadd.f32 %v1084, %v5406
  %v5408 = vpop.f32.mrb[0].mxu0
  %5409 = vmatprep.mubr.f32.mxu0 0.0
  %5410 = vmatmul.mubr.f32.gmra.mrb[0].mxu0 %v5132
  %v5411 = vpop.f32.mrb[0].mxu0
  %v5412 = vadd.f32 %v1084, %v5411
  %v5413 = vpop.f32.mrb[0].mxu0
  %5414 = vmatprep.mubr.f32.mxu0 0.0
  %5415 = vmatmul.mubr.f32.gmra.mrb[0].mxu0 %v5134
  %v5416 = vpop.f32.mrb[0].mxu0
  %v5417 = vadd.f32 %v1084, %v5416
  %v5418 = vpop.f32.mrb[0].mxu0
  %5419 = vmatprep.mubr.f32.mxu0 0.0
  %5420 = vmatmul.mubr.f32.gmra.mrb[0].mxu0 %v5136
  %v5421 = vpop.f32.mrb[0].mxu0
  %v5422 = vadd.f32 %v1084, %v5421
  %v5423 = vpop.f32.mrb[0].mxu0
  %5424 = vmatprep.mubr.f32.mxu0 0.0
  %5425 = vmatmul.mubr.f32.gmra.mrb[0].mxu0 %v5138
  %v5426 = vpop.f32.mrb[0].mxu0
  %v5427 = vadd.f32 %v1084, %v5426
  %v5428 = vpop.f32.mrb[0].mxu0
  %5429 = vdwg.mxu0
  %v5430 = vsel %vm1231, %v5207, -inf
  %5431 = vmax.xlane.f32.xlu0 %v5430
  %v5432 = vpop.xlane.xlu0 %5431
  %v5433 = vsel %vm1231, %v5212, -inf
  %5434 = vmax.xlane.f32.xlu0 %v5433
  %v5435 = vpop.xlane.xlu0 %5434
  %v5436 = vsel %vm1231, %v5217, -inf
  %5437 = vmax.xlane.f32.xlu0 %v5436
  %v5438 = vpop.xlane.xlu0 %5437
  %v5439 = vsel %vm1231, %v5222, -inf
  %5440 = vmax.xlane.f32.xlu0 %v5439
  %v5441 = vpop.xlane.xlu0 %5440
  %v5442 = vsel %vm1231, %v5227, -inf
  %5443 = vmax.xlane.f32.xlu0 %v5442
  %v5444 = vpop.xlane.xlu0 %5443
  %v5445 = vsel %vm1231, %v5232, -inf
  %5446 = vmax.xlane.f32.xlu0 %v5445
  %v5447 = vpop.xlane.xlu0 %5446
  %v5448 = vsel %vm1231, %v5237, -inf
  %5449 = vmax.xlane.f32.xlu0 %v5448
  %v5450 = vpop.xlane.xlu0 %5449
  %v5451 = vsel %vm1231, %v5242, -inf
  %5452 = vmax.xlane.f32.xlu0 %v5451
  %v5453 = vpop.xlane.xlu0 %5452
  %v5454 = vsel %vm1231, %v5247, -inf
  %5455 = vmax.xlane.f32.xlu0 %v5454
  %v5456 = vpop.xlane.xlu0 %5455
  %v5457 = vsel %vm1231, %v5252, -inf
  %5458 = vmax.xlane.f32.xlu0 %v5457
  %v5459 = vpop.xlane.xlu0 %5458
  %v5460 = vsel %vm1231, %v5257, -inf
  %5461 = vmax.xlane.f32.xlu0 %v5460
  %v5462 = vpop.xlane.xlu0 %5461
  %v5463 = vsel %vm1231, %v5262, -inf
  %5464 = vmax.xlane.f32.xlu0 %v5463
  %v5465 = vpop.xlane.xlu0 %5464
  %v5466 = vsel %vm1231, %v5267, -inf
  %5467 = vmax.xlane.f32.xlu0 %v5466
  %v5468 = vpop.xlane.xlu0 %5467
  %v5469 = vsel %vm1231, %v5272, -inf
  %5470 = vmax.xlane.f32.xlu0 %v5469
  %v5471 = vpop.xlane.xlu0 %5470
  %v5472 = vsel %vm1231, %v5277, -inf
  %5473 = vmax.xlane.f32.xlu0 %v5472
  %v5474 = vpop.xlane.xlu0 %5473
  %v5475 = vsel %vm1231, %v5282, -inf
  %5476 = vmax.xlane.f32.xlu0 %v5475
  %v5477 = vpop.xlane.xlu0 %5476
  %vm5478 = vcmp.eq.f32.partialorder %v5207, %v5432
  %vm5479 = vcmp.eq.f32.partialorder %v5212, %v5435
  %vm5480 = vcmp.eq.f32.partialorder %v5217, %v5438
  %vm5481 = vcmp.eq.f32.partialorder %v5222, %v5441
  %vm5482 = vcmp.eq.f32.partialorder %v5227, %v5444
  %vm5483 = vcmp.eq.f32.partialorder %v5232, %v5447
  %vm5484 = vcmp.eq.f32.partialorder %v5237, %v5450
  %vm5485 = vcmp.eq.f32.partialorder %v5242, %v5453
  %vm5486 = vcmp.eq.f32.partialorder %v5247, %v5456
  %vm5487 = vcmp.eq.f32.partialorder %v5252, %v5459
  %vm5488 = vcmp.eq.f32.partialorder %v5257, %v5462
  %vm5489 = vcmp.eq.f32.partialorder %v5262, %v5465
  %vm5490 = vcmp.eq.f32.partialorder %v5267, %v5468
  %vm5491 = vcmp.eq.f32.partialorder %v5272, %v5471
  %vm5492 = vcmp.eq.f32.partialorder %v5277, %v5474
  %vm5493 = vcmp.eq.f32.partialorder %v5282, %v5477
  %v5494 = vsel %vm5478, %v255, 10
  %v5495 = vsel %vm5479, %v255, 10
  %v5496 = vsel %vm5480, %v255, 10
  %v5497 = vsel %vm5481, %v255, 10
  %v5498 = vsel %vm5482, %v255, 10
  %v5499 = vsel %vm5483, %v255, 10
  %v5500 = vsel %vm5484, %v255, 10
  %v5501 = vsel %vm5485, %v255, 10
  %v5502 = vsel %vm5486, %v255, 10
  %v5503 = vsel %vm5487, %v255, 10
  %v5504 = vsel %vm5488, %v255, 10
  %v5505 = vsel %vm5489, %v255, 10
  %v5506 = vsel %vm5490, %v255, 10
  %v5507 = vsel %vm5491, %v255, 10
  %v5508 = vsel %vm5492, %v255, 10
  %v5509 = vsel %vm5493, %v255, 10
  %v5510 = vsel %vm1231, %v5494, 2147483647
  %v5511 = vand.u32 %v5510, 65535
  %v5512 = vshra.s32 %v5510, 16
  %v5513 = vcvt.s32.f32 %v5511
  %v5514 = vcvt.s32.f32 %v5512
  %5515 = vmin.xlane.f32.xlu0 %v5514
  %v5516 = vpop.xlane.xlu0 %5515
  %vm5517 = vcmp.eq.f32.partialorder %v5514, %v5516
  %v5518 = vsel %vm5517, %v5513, inf
  %5519 = vmin.xlane.f32.xlu0 %v5518
  %v5520 = vpop.xlane.xlu0 %5519
  %v5521 = vcvt.f32.s32 %v5520
  %v5522 = vcvt.f32.s32 %v5516
  %v5523 = vshll.u32 %v5522, 16
  %v5524 = vadd.s32 %v5523, %v5521
  %v5525 = vsel %vm1231, %v5495, 2147483647
  %v5526 = vand.u32 %v5525, 65535
  %v5527 = vshra.s32 %v5525, 16
  %v5528 = vcvt.s32.f32 %v5526
  %v5529 = vcvt.s32.f32 %v5527
  %5530 = vmin.xlane.f32.xlu0 %v5529
  %v5531 = vpop.xlane.xlu0 %5530
  %vm5532 = vcmp.eq.f32.partialorder %v5529, %v5531
  %v5533 = vsel %vm5532, %v5528, inf
  %5534 = vmin.xlane.f32.xlu0 %v5533
  %v5535 = vpop.xlane.xlu0 %5534
  %v5536 = vcvt.f32.s32 %v5535
  %v5537 = vcvt.f32.s32 %v5531
  %v5538 = vshll.u32 %v5537, 16
  %v5539 = vadd.s32 %v5538, %v5536
  %v5540 = vsel %vm1231, %v5496, 2147483647
  %v5541 = vand.u32 %v5540, 65535
  %v5542 = vshra.s32 %v5540, 16
  %v5543 = vcvt.s32.f32 %v5541
  %v5544 = vcvt.s32.f32 %v5542
  %5545 = vmin.xlane.f32.xlu0 %v5544
  %v5546 = vpop.xlane.xlu0 %5545
  %vm5547 = vcmp.eq.f32.partialorder %v5544, %v5546
  %v5548 = vsel %vm5547, %v5543, inf
  %5549 = vmin.xlane.f32.xlu0 %v5548
  %v5550 = vpop.xlane.xlu0 %5549
  %v5551 = vcvt.f32.s32 %v5550
  %v5552 = vcvt.f32.s32 %v5546
  %v5553 = vshll.u32 %v5552, 16
  %v5554 = vadd.s32 %v5553, %v5551
  %v5555 = vsel %vm1231, %v5497, 2147483647
  %v5556 = vand.u32 %v5555, 65535
  %v5557 = vshra.s32 %v5555, 16
  %v5558 = vcvt.s32.f32 %v5556
  %v5559 = vcvt.s32.f32 %v5557
  %5560 = vmin.xlane.f32.xlu0 %v5559
  %v5561 = vpop.xlane.xlu0 %5560
  %vm5562 = vcmp.eq.f32.partialorder %v5559, %v5561
  %v5563 = vsel %vm5562, %v5558, inf
  %5564 = vmin.xlane.f32.xlu0 %v5563
  %v5565 = vpop.xlane.xlu0 %5564
  %v5566 = vcvt.f32.s32 %v5565
  %v5567 = vcvt.f32.s32 %v5561
  %v5568 = vshll.u32 %v5567, 16
  %v5569 = vadd.s32 %v5568, %v5566
  %v5570 = vsel %vm1231, %v5498, 2147483647
  %v5571 = vand.u32 %v5570, 65535
  %v5572 = vshra.s32 %v5570, 16
  %v5573 = vcvt.s32.f32 %v5571
  %v5574 = vcvt.s32.f32 %v5572
  %5575 = vmin.xlane.f32.xlu0 %v5574
  %v5576 = vpop.xlane.xlu0 %5575
  %vm5577 = vcmp.eq.f32.partialorder %v5574, %v5576
  %v5578 = vsel %vm5577, %v5573, inf
  %5579 = vmin.xlane.f32.xlu0 %v5578
  %v5580 = vpop.xlane.xlu0 %5579
  %v5581 = vcvt.f32.s32 %v5580
  %v5582 = vcvt.f32.s32 %v5576
  %v5583 = vshll.u32 %v5582, 16
  %v5584 = vadd.s32 %v5583, %v5581
  %v5585 = vsel %vm1231, %v5499, 2147483647
  %v5586 = vand.u32 %v5585, 65535
  %v5587 = vshra.s32 %v5585, 16
  %v5588 = vcvt.s32.f32 %v5586
  %v5589 = vcvt.s32.f32 %v5587
  %5590 = vmin.xlane.f32.xlu0 %v5589
  %v5591 = vpop.xlane.xlu0 %5590
  %vm5592 = vcmp.eq.f32.partialorder %v5589, %v5591
  %v5593 = vsel %vm5592, %v5588, inf
  %5594 = vmin.xlane.f32.xlu0 %v5593
  %v5595 = vpop.xlane.xlu0 %5594
  %v5596 = vcvt.f32.s32 %v5595
  %v5597 = vcvt.f32.s32 %v5591
  %v5598 = vshll.u32 %v5597, 16
  %v5599 = vadd.s32 %v5598, %v5596
  %v5600 = vsel %vm1231, %v5500, 2147483647
  %v5601 = vand.u32 %v5600, 65535
  %v5602 = vshra.s32 %v5600, 16
  %v5603 = vcvt.s32.f32 %v5601
  %v5604 = vcvt.s32.f32 %v5602
  %5605 = vmin.xlane.f32.xlu0 %v5604
  %v5606 = vpop.xlane.xlu0 %5605
  %vm5607 = vcmp.eq.f32.partialorder %v5604, %v5606
  %v5608 = vsel %vm5607, %v5603, inf
  %5609 = vmin.xlane.f32.xlu0 %v5608
  %v5610 = vpop.xlane.xlu0 %5609
  %v5611 = vcvt.f32.s32 %v5610
  %v5612 = vcvt.f32.s32 %v5606
  %v5613 = vshll.u32 %v5612, 16
  %v5614 = vadd.s32 %v5613, %v5611
  %v5615 = vsel %vm1231, %v5501, 2147483647
  %v5616 = vand.u32 %v5615, 65535
  %v5617 = vshra.s32 %v5615, 16
  %v5618 = vcvt.s32.f32 %v5616
  %v5619 = vcvt.s32.f32 %v5617
  %5620 = vmin.xlane.f32.xlu0 %v5619
  %v5621 = vpop.xlane.xlu0 %5620
  %vm5622 = vcmp.eq.f32.partialorder %v5619, %v5621
  %v5623 = vsel %vm5622, %v5618, inf
  %5624 = vmin.xlane.f32.xlu0 %v5623
  %v5625 = vpop.xlane.xlu0 %5624
  %v5626 = vcvt.f32.s32 %v5625
  %v5627 = vcvt.f32.s32 %v5621
  %v5628 = vshll.u32 %v5627, 16
  %v5629 = vadd.s32 %v5628, %v5626
  %v5630 = vsel %vm1231, %v5502, 2147483647
  %v5631 = vand.u32 %v5630, 65535
  %v5632 = vshra.s32 %v5630, 16
  %v5633 = vcvt.s32.f32 %v5631
  %v5634 = vcvt.s32.f32 %v5632
  %5635 = vmin.xlane.f32.xlu0 %v5634
  %v5636 = vpop.xlane.xlu0 %5635
  %vm5637 = vcmp.eq.f32.partialorder %v5634, %v5636
  %v5638 = vsel %vm5637, %v5633, inf
  %5639 = vmin.xlane.f32.xlu0 %v5638
  %v5640 = vpop.xlane.xlu0 %5639
  %v5641 = vcvt.f32.s32 %v5640
  %v5642 = vcvt.f32.s32 %v5636
  %v5643 = vshll.u32 %v5642, 16
  %v5644 = vadd.s32 %v5643, %v5641
  %v5645 = vsel %vm1231, %v5503, 2147483647
  %v5646 = vand.u32 %v5645, 65535
  %v5647 = vshra.s32 %v5645, 16
  %v5648 = vcvt.s32.f32 %v5646
  %v5649 = vcvt.s32.f32 %v5647
  %5650 = vmin.xlane.f32.xlu0 %v5649
  %v5651 = vpop.xlane.xlu0 %5650
  %vm5652 = vcmp.eq.f32.partialorder %v5649, %v5651
  %v5653 = vsel %vm5652, %v5648, inf
  %5654 = vmin.xlane.f32.xlu0 %v5653
  %v5655 = vpop.xlane.xlu0 %5654
  %v5656 = vcvt.f32.s32 %v5655
  %v5657 = vcvt.f32.s32 %v5651
  %v5658 = vshll.u32 %v5657, 16
  %v5659 = vadd.s32 %v5658, %v5656
  %v5660 = vsel %vm1231, %v5504, 2147483647
  %v5661 = vand.u32 %v5660, 65535
  %v5662 = vshra.s32 %v5660, 16
  %v5663 = vcvt.s32.f32 %v5661
  %v5664 = vcvt.s32.f32 %v5662
  %5665 = vmin.xlane.f32.xlu0 %v5664
  %v5666 = vpop.xlane.xlu0 %5665
  %vm5667 = vcmp.eq.f32.partialorder %v5664, %v5666
  %v5668 = vsel %vm5667, %v5663, inf
  %5669 = vmin.xlane.f32.xlu0 %v5668
  %v5670 = vpop.xlane.xlu0 %5669
  %v5671 = vcvt.f32.s32 %v5670
  %v5672 = vcvt.f32.s32 %v5666
  %v5673 = vshll.u32 %v5672, 16
  %v5674 = vadd.s32 %v5673, %v5671
  %v5675 = vsel %vm1231, %v5505, 2147483647
  %v5676 = vand.u32 %v5675, 65535
  %v5677 = vshra.s32 %v5675, 16
  %v5678 = vcvt.s32.f32 %v5676
  %v5679 = vcvt.s32.f32 %v5677
  %5680 = vmin.xlane.f32.xlu0 %v5679
  %v5681 = vpop.xlane.xlu0 %5680
  %vm5682 = vcmp.eq.f32.partialorder %v5679, %v5681
  %v5683 = vsel %vm5682, %v5678, inf
  %5684 = vmin.xlane.f32.xlu0 %v5683
  %v5685 = vpop.xlane.xlu0 %5684
  %v5686 = vcvt.f32.s32 %v5685
  %v5687 = vcvt.f32.s32 %v5681
  %v5688 = vshll.u32 %v5687, 16
  %v5689 = vadd.s32 %v5688, %v5686
  %v5690 = vsel %vm1231, %v5506, 2147483647
  %v5691 = vand.u32 %v5690, 65535
  %v5692 = vshra.s32 %v5690, 16
  %v5693 = vcvt.s32.f32 %v5691
  %v5694 = vcvt.s32.f32 %v5692
  %5695 = vmin.xlane.f32.xlu0 %v5694
  %v5696 = vpop.xlane.xlu0 %5695
  %vm5697 = vcmp.eq.f32.partialorder %v5694, %v5696
  %v5698 = vsel %vm5697, %v5693, inf
  %5699 = vmin.xlane.f32.xlu0 %v5698
  %v5700 = vpop.xlane.xlu0 %5699
  %v5701 = vcvt.f32.s32 %v5700
  %v5702 = vcvt.f32.s32 %v5696
  %v5703 = vshll.u32 %v5702, 16
  %v5704 = vadd.s32 %v5703, %v5701
  %v5705 = vsel %vm1231, %v5507, 2147483647
  %v5706 = vand.u32 %v5705, 65535
  %v5707 = vshra.s32 %v5705, 16
  %v5708 = vcvt.s32.f32 %v5706
  %v5709 = vcvt.s32.f32 %v5707
  %5710 = vmin.xlane.f32.xlu0 %v5709
  %v5711 = vpop.xlane.xlu0 %5710
  %vm5712 = vcmp.eq.f32.partialorder %v5709, %v5711
  %v5713 = vsel %vm5712, %v5708, inf
  %5714 = vmin.xlane.f32.xlu0 %v5713
  %v5715 = vpop.xlane.xlu0 %5714
  %v5716 = vcvt.f32.s32 %v5715
  %v5717 = vcvt.f32.s32 %v5711
  %v5718 = vshll.u32 %v5717, 16
  %v5719 = vadd.s32 %v5718, %v5716
  %v5720 = vsel %vm1231, %v5508, 2147483647
  %v5721 = vand.u32 %v5720, 65535
  %v5722 = vshra.s32 %v5720, 16
  %v5723 = vcvt.s32.f32 %v5721
  %v5724 = vcvt.s32.f32 %v5722
  %5725 = vmin.xlane.f32.xlu0 %v5724
  %v5726 = vpop.xlane.xlu0 %5725
  %vm5727 = vcmp.eq.f32.partialorder %v5724, %v5726
  %v5728 = vsel %vm5727, %v5723, inf
  %5729 = vmin.xlane.f32.xlu0 %v5728
  %v5730 = vpop.xlane.xlu0 %5729
  %v5731 = vcvt.f32.s32 %v5730
  %v5732 = vcvt.f32.s32 %v5726
  %v5733 = vshll.u32 %v5732, 16
  %v5734 = vadd.s32 %v5733, %v5731
  %v5735 = vsel %vm1231, %v5509, 2147483647
  %v5736 = vand.u32 %v5735, 65535
  %v5737 = vshra.s32 %v5735, 16
  %v5738 = vcvt.s32.f32 %v5736
  %v5739 = vcvt.s32.f32 %v5737
  %5740 = vmin.xlane.f32.xlu0 %v5739
  %v5741 = vpop.xlane.xlu0 %5740
  %vm5742 = vcmp.eq.f32.partialorder %v5739, %v5741
  %v5743 = vsel %vm5742, %v5738, inf
  %5744 = vmin.xlane.f32.xlu0 %v5743
  %v5745 = vpop.xlane.xlu0 %5744
  %v5746 = vcvt.f32.s32 %v5745
  %v5747 = vcvt.f32.s32 %v5741
  %v5748 = vshll.u32 %v5747, 16
  %v5749 = vadd.s32 %v5748, %v5746
  %vm5750 = vcmp.eq.s32.totalorder %v255, %v5524
  %vm5751 = vcmp.eq.s32.totalorder %v255, %v5539
  %vm5752 = vcmp.eq.s32.totalorder %v255, %v5554
  %vm5753 = vcmp.eq.s32.totalorder %v255, %v5569
  %vm5754 = vcmp.eq.s32.totalorder %v255, %v5584
  %vm5755 = vcmp.eq.s32.totalorder %v255, %v5599
  %vm5756 = vcmp.eq.s32.totalorder %v255, %v5614
  %vm5757 = vcmp.eq.s32.totalorder %v255, %v5629
  %vm5758 = vcmp.eq.s32.totalorder %v255, %v5644
  %vm5759 = vcmp.eq.s32.totalorder %v255, %v5659
  %vm5760 = vcmp.eq.s32.totalorder %v255, %v5674
  %vm5761 = vcmp.eq.s32.totalorder %v255, %v5689
  %vm5762 = vcmp.eq.s32.totalorder %v255, %v5704
  %vm5763 = vcmp.eq.s32.totalorder %v255, %v5719
  %vm5764 = vcmp.eq.s32.totalorder %v255, %v5734
  %vm5765 = vcmp.eq.s32.totalorder %v255, %v5749
  %v5766 = vsel %vm5750, 1, 0
  %v5767 = vsel %vm5751, 1, 0
  %v5768 = vsel %vm5752, 1, 0
  %v5769 = vsel %vm5753, 1, 0
  %v5770 = vsel %vm5754, 1, 0
  %v5771 = vsel %vm5755, 1, 0
  %v5772 = vsel %vm5756, 1, 0
  %v5773 = vsel %vm5757, 1, 0
  %v5774 = vsel %vm5758, 1, 0
  %v5775 = vsel %vm5759, 1, 0
  %v5776 = vsel %vm5760, 1, 0
  %v5777 = vsel %vm5761, 1, 0
  %v5778 = vsel %vm5762, 1, 0
  %v5779 = vsel %vm5763, 1, 0
  %v5780 = vsel %vm5764, 1, 0
  %v5781 = vsel %vm5765, 1, 0
  %v5782 = vcvt.s32.f32 %v5766
  %v5783 = vcvt.s32.f32 %v5767
  %v5784 = vcvt.s32.f32 %v5768
  %v5785 = vcvt.s32.f32 %v5769
  %v5786 = vcvt.s32.f32 %v5770
  %v5787 = vcvt.s32.f32 %v5771
  %v5788 = vcvt.s32.f32 %v5772
  %v5789 = vcvt.s32.f32 %v5773
  %v5790 = vcvt.s32.f32 %v5774
  %v5791 = vcvt.s32.f32 %v5775
  %v5792 = vcvt.s32.f32 %v5776
  %v5793 = vcvt.s32.f32 %v5777
  %v5794 = vcvt.s32.f32 %v5778
  %v5795 = vcvt.s32.f32 %v5779
  %v5796 = vcvt.s32.f32 %v5780
  %v5797 = vcvt.s32.f32 %v5781
  %v5799 = vsel %vm1231, %v5782, 0
  %v5802 = vsel %vm1231, %v5783, 0
  %v5805 = vsel %vm1231, %v5784, 0
  %v5808 = vsel %vm1231, %v5785, 0
  %v5811 = vsel %vm1231, %v5786, 0
  %v5814 = vsel %vm1231, %v5787, 0
  %v5817 = vsel %vm1231, %v5788, 0
  %v5820 = vsel %vm1231, %v5789, 0
  %v5823 = vsel %vm1231, %v5790, 0
  %v5826 = vsel %vm1231, %v5791, 0
  %v5829 = vsel %vm1231, %v5792, 0
  %v5832 = vsel %vm1231, %v5793, 0
  %v5835 = vsel %vm1231, %v5794, 0
  %v5838 = vsel %vm1231, %v5795, 0
  %v5841 = vsel %vm1231, %v5796, 0
  %v5844 = vsel %vm1231, %v5797, 0
  %5846 = vmatprep.subr.mxu0 0.0
  %5847 = vmatpush1.msra.mxu0 %v1600
  %5848 = vmatprep.subr.mxu0 0.0
  %5849 = vmatpush1.msra.mxu0 %v1659
  %5850 = vmatprep.subr.mxu0 0.0
  %5851 = vmatpush1.msra.mxu0 0.0
  %5852 = vmatprep.subr.mxu0 0.0
  %5853 = vmatpush1.msra.mxu0 0.0
  %5854 = vmatprep.subr.mxu0 0.0
  %5855 = vmatpush1.msra.mxu0 0.0
  %5856 = vmatprep.subr.mxu0 0.0
  %5857 = vmatpush1.msra.mxu0 0.0
  %5858 = vmatprep.subr.mxu0 0.0
  %5859 = vmatpush1.msra.mxu0 0.0
  %5860 = vmatprep.subr.mxu0 0.0
  %5861 = vmatpush1.msra.mxu0 0.0
  %5862 = vmatprep.subr.mxu0 0.0
  %5863 = vmatpush1.msra.mxu0 0.0
  %5864 = vmatprep.subr.mxu0 0.0
  %5865 = vmatpush1.msra.mxu0 0.0
  %5866 = vmatprep.subr.mxu0 0.0
  %5867 = vmatpush1.msra.mxu0 0.0
  %5868 = vmatprep.subr.mxu0 0.0
  %5869 = vmatpush1.msra.mxu0 0.0
  %5870 = vmatprep.subr.mxu0 0.0
  %5871 = vmatpush1.msra.mxu0 0.0
  %5872 = vmatprep.subr.mxu0 0.0
  %5873 = vmatpush1.msra.mxu0 0.0
  %5874 = vmatprep.subr.mxu0 0.0
  %5875 = vmatpush1.msra.mxu0 0.0
  %5876 = vmatprep.subr.mxu0 0.0
  %5877 = vmatpush1.msra.mxu0 0.0
  %5878 = vmatprep.subr.mxu0 0.0
  %5879 = vmatpush1.msra.mxu0 0.0
  %5880 = vmatprep.subr.mxu0 0.0
  %5881 = vmatpush1.msra.mxu0 0.0
  %5882 = vmatprep.subr.mxu0 0.0
  %5883 = vmatpush1.msra.mxu0 0.0
  %5884 = vmatprep.subr.mxu0 0.0
  %5885 = vmatpush1.msra.mxu0 0.0
  %5886 = vmatprep.subr.mxu0 0.0
  %5887 = vmatpush1.msra.mxu0 0.0
  %5888 = vmatprep.subr.mxu0 0.0
  %5889 = vmatpush1.msra.mxu0 0.0
  %5890 = vmatprep.subr.mxu0 0.0
  %5891 = vmatpush1.msra.mxu0 0.0
  %5892 = vmatprep.subr.mxu0 0.0
  %5893 = vmatpush1.msra.mxu0 0.0
  %5894 = vmatprep.subr.mxu0 0.0
  %5895 = vmatpush1.msra.mxu0 0.0
  %5896 = vmatprep.subr.mxu0 0.0
  %5897 = vmatpush1.msra.mxu0 0.0
  %5898 = vmatprep.subr.mxu0 0.0
  %5899 = vmatpush1.msra.mxu0 0.0
  %5900 = vmatprep.subr.mxu0 0.0
  %5901 = vmatpush1.msra.mxu0 0.0
  %5902 = vmatprep.subr.mxu0 0.0
  %5903 = vmatpush1.msra.mxu0 0.0
  %5904 = vmatprep.subr.mxu0 0.0
  %5905 = vmatpush1.msra.mxu0 0.0
  %5906 = vmatprep.subr.mxu0 0.0
  %5907 = vmatpush1.msra.mxu0 0.0
  %5908 = vmatprep.subr.mxu0 0.0
  %5909 = vmatpush1.msra.mxu0 0.0
  %5910 = vmatprep.mubr.f32.mxu0 0.0
  %5911 = vmatmul.mubr.f32.gmra.mrb[0].mxu0 %v5799
  %v5912 = vpop.f32.mrb[0].mxu0
  %v5913 = vadd.f32 %v1607, %v5912
  %v5914 = vpop.f32.mrb[0].mxu0
  %5915 = vmatprep.mubr.f32.mxu0 0.0
  %5916 = vmatmul.mubr.f32.gmra.mrb[0].mxu0 %v5802
  %v5917 = vpop.f32.mrb[0].mxu0
  %v5918 = vadd.f32 %v1607, %v5917
  %v5919 = vpop.f32.mrb[0].mxu0
  %5920 = vmatprep.mubr.f32.mxu0 0.0
  %5921 = vmatmul.mubr.f32.gmra.mrb[0].mxu0 %v5805
  %v5922 = vpop.f32.mrb[0].mxu0
  %v5923 = vadd.f32 %v1607, %v5922
  %v5924 = vpop.f32.mrb[0].mxu0
  %5925 = vmatprep.mubr.f32.mxu0 0.0
  %5926 = vmatmul.mubr.f32.gmra.mrb[0].mxu0 %v5808
  %v5927 = vpop.f32.mrb[0].mxu0
  %v5928 = vadd.f32 %v1607, %v5927
  %v5929 = vpop.f32.mrb[0].mxu0
  %5930 = vmatprep.mubr.f32.mxu0 0.0
  %5931 = vmatmul.mubr.f32.gmra.mrb[0].mxu0 %v5811
  %v5932 = vpop.f32.mrb[0].mxu0
  %v5933 = vadd.f32 %v1607, %v5932
  %v5934 = vpop.f32.mrb[0].mxu0
  %5935 = vmatprep.mubr.f32.mxu0 0.0
  %5936 = vmatmul.mubr.f32.gmra.mrb[0].mxu0 %v5814
  %v5937 = vpop.f32.mrb[0].mxu0
  %v5938 = vadd.f32 %v1607, %v5937
  %v5939 = vpop.f32.mrb[0].mxu0
  %5940 = vmatprep.mubr.f32.mxu0 0.0
  %5941 = vmatmul.mubr.f32.gmra.mrb[0].mxu0 %v5817
  %v5942 = vpop.f32.mrb[0].mxu0
  %v5943 = vadd.f32 %v1607, %v5942
  %v5944 = vpop.f32.mrb[0].mxu0
  %5945 = vmatprep.mubr.f32.mxu0 0.0
  %5946 = vmatmul.mubr.f32.gmra.mrb[0].mxu0 %v5820
  %v5947 = vpop.f32.mrb[0].mxu0
  %v5948 = vadd.f32 %v1607, %v5947
  %v5949 = vpop.f32.mrb[0].mxu0
  %5950 = vmatprep.mubr.f32.mxu0 0.0
  %5951 = vmatmul.mubr.f32.gmra.mrb[0].mxu0 %v5823
  %v5952 = vpop.f32.mrb[0].mxu0
  %v5953 = vadd.f32 %v1607, %v5952
  %v5954 = vpop.f32.mrb[0].mxu0
  %5955 = vmatprep.mubr.f32.mxu0 0.0
  %5956 = vmatmul.mubr.f32.gmra.mrb[0].mxu0 %v5826
  %v5957 = vpop.f32.mrb[0].mxu0
  %v5958 = vadd.f32 %v1607, %v5957
  %v5959 = vpop.f32.mrb[0].mxu0
  %5960 = vmatprep.mubr.f32.mxu0 0.0
  %5961 = vmatmul.mubr.f32.gmra.mrb[0].mxu0 %v5829
  %v5962 = vpop.f32.mrb[0].mxu0
  %v5963 = vadd.f32 %v1607, %v5962
  %v5964 = vpop.f32.mrb[0].mxu0
  %5965 = vmatprep.mubr.f32.mxu0 0.0
  %5966 = vmatmul.mubr.f32.gmra.mrb[0].mxu0 %v5832
  %v5967 = vpop.f32.mrb[0].mxu0
  %v5968 = vadd.f32 %v1607, %v5967
  %v5969 = vpop.f32.mrb[0].mxu0
  %5970 = vmatprep.mubr.f32.mxu0 0.0
  %5971 = vmatmul.mubr.f32.gmra.mrb[0].mxu0 %v5835
  %v5972 = vpop.f32.mrb[0].mxu0
  %v5973 = vadd.f32 %v1607, %v5972
  %v5974 = vpop.f32.mrb[0].mxu0
  %5975 = vmatprep.mubr.f32.mxu0 0.0
  %5976 = vmatmul.mubr.f32.gmra.mrb[0].mxu0 %v5838
  %v5977 = vpop.f32.mrb[0].mxu0
  %v5978 = vadd.f32 %v1607, %v5977
  %v5979 = vpop.f32.mrb[0].mxu0
  %5980 = vmatprep.mubr.f32.mxu0 0.0
  %5981 = vmatmul.mubr.f32.gmra.mrb[0].mxu0 %v5841
  %v5982 = vpop.f32.mrb[0].mxu0
  %v5983 = vadd.f32 %v1607, %v5982
  %v5984 = vpop.f32.mrb[0].mxu0
  %5985 = vmatprep.mubr.f32.mxu0 0.0
  %5986 = vmatmul.mubr.f32.gmra.mrb[0].mxu0 %v5844
  %v5987 = vpop.f32.mrb[0].mxu0
  %v5988 = vadd.f32 %v1607, %v5987
  %v5989 = vpop.f32.mrb[0].mxu0
  %5990 = vdwg.mxu0
  %v5991 = vadd.f32 %v5913, %v5352
  %v5992 = vadd.f32 %v5918, %v5357
  %v5993 = vadd.f32 %v5923, %v5362
  %v5994 = vadd.f32 %v5928, %v5367
  %v5995 = vadd.f32 %v5933, %v5372
  %v5996 = vadd.f32 %v5938, %v5377
  %v5997 = vadd.f32 %v5943, %v5382
  %v5998 = vadd.f32 %v5948, %v5387
  %v5999 = vadd.f32 %v5953, %v5392
  %v6000 = vadd.f32 %v5958, %v5397
  %v6001 = vadd.f32 %v5963, %v5402
  %v6002 = vadd.f32 %v5968, %v5407
  %v6003 = vadd.f32 %v5973, %v5412
  %v6004 = vadd.f32 %v5978, %v5417
  %v6005 = vadd.f32 %v5983, %v5422
  %v6006 = vadd.f32 %v5988, %v5427
  %v6007 = vxor.u32 %v5991, 2147483648
  %v6008 = vxor.u32 %v5992, 2147483648
  %v6009 = vxor.u32 %v5993, 2147483648
  %v6010 = vxor.u32 %v5994, 2147483648
  %v6011 = vxor.u32 %v5995, 2147483648
  %v6012 = vxor.u32 %v5996, 2147483648
  %v6013 = vxor.u32 %v5997, 2147483648
  %v6014 = vxor.u32 %v5998, 2147483648
  %v6015 = vxor.u32 %v5999, 2147483648
  %v6016 = vxor.u32 %v6000, 2147483648
  %v6017 = vxor.u32 %v6001, 2147483648
  %v6018 = vxor.u32 %v6002, 2147483648
  %v6019 = vxor.u32 %v6003, 2147483648
  %v6020 = vxor.u32 %v6004, 2147483648
  %v6021 = vxor.u32 %v6005, 2147483648
  %v6022 = vxor.u32 %v6006, 2147483648
  %v6023 = vmul.f32 %v6007, 1.442695
  %v6024 = vpow.pop %v6023
  %v6025 = vmul.f32 %v6008, 1.442695
  %v6026 = vpow.pop %v6025
  %v6027 = vmul.f32 %v6009, 1.442695
  %v6028 = vpow.pop %v6027
  %v6029 = vmul.f32 %v6010, 1.442695
  %v6030 = vpow.pop %v6029
  %v6031 = vmul.f32 %v6011, 1.442695
  %v6032 = vpow.pop %v6031
  %v6033 = vmul.f32 %v6012, 1.442695
  %v6034 = vpow.pop %v6033
  %v6035 = vmul.f32 %v6013, 1.442695
  %v6036 = vpow.pop %v6035
  %v6037 = vmul.f32 %v6014, 1.442695
  %v6038 = vpow.pop %v6037
  %v6039 = vmul.f32 %v6015, 1.442695
  %v6040 = vpow.pop %v6039
  %v6041 = vmul.f32 %v6016, 1.442695
  %v6042 = vpow.pop %v6041
  %v6043 = vmul.f32 %v6017, 1.442695
  %v6044 = vpow.pop %v6043
  %v6045 = vmul.f32 %v6018, 1.442695
  %v6046 = vpow.pop %v6045
  %v6047 = vmul.f32 %v6019, 1.442695
  %v6048 = vpow.pop %v6047
  %v6049 = vmul.f32 %v6020, 1.442695
  %v6050 = vpow.pop %v6049
  %v6051 = vmul.f32 %v6021, 1.442695
  %v6052 = vpow.pop %v6051
  %v6053 = vmul.f32 %v6022, 1.442695
  %v6054 = vpow.pop %v6053
  %v6055 = vadd.f32 %v6024, 1.0
  %v6056 = vadd.f32 %v6026, 1.0
  %v6057 = vadd.f32 %v6028, 1.0
  %v6058 = vadd.f32 %v6030, 1.0
  %v6059 = vadd.f32 %v6032, 1.0
  %v6060 = vadd.f32 %v6034, 1.0
  %v6061 = vadd.f32 %v6036, 1.0
  %v6062 = vadd.f32 %v6038, 1.0
  %v6063 = vadd.f32 %v6040, 1.0
  %v6064 = vadd.f32 %v6042, 1.0
  %v6065 = vadd.f32 %v6044, 1.0
  %v6066 = vadd.f32 %v6046, 1.0
  %v6067 = vadd.f32 %v6048, 1.0
  %v6068 = vadd.f32 %v6050, 1.0
  %v6069 = vadd.f32 %v6052, 1.0
  %v6070 = vadd.f32 %v6054, 1.0
  %v6071 = vrcp.pop %v6055
  %v6072 = vmul.f32 1.0, %v6071
  %v6073 = vrcp.pop %v6056
  %v6074 = vmul.f32 1.0, %v6073
  %v6075 = vrcp.pop %v6057
  %v6076 = vmul.f32 1.0, %v6075
  %v6077 = vrcp.pop %v6058
  %v6078 = vmul.f32 1.0, %v6077
  %v6079 = vrcp.pop %v6059
  %v6080 = vmul.f32 1.0, %v6079
  %v6081 = vrcp.pop %v6060
  %v6082 = vmul.f32 1.0, %v6081
  %v6083 = vrcp.pop %v6061
  %v6084 = vmul.f32 1.0, %v6083
  %v6085 = vrcp.pop %v6062
  %v6086 = vmul.f32 1.0, %v6085
  %v6087 = vrcp.pop %v6063
  %v6088 = vmul.f32 1.0, %v6087
  %v6089 = vrcp.pop %v6064
  %v6090 = vmul.f32 1.0, %v6089
  %v6091 = vrcp.pop %v6065
  %v6092 = vmul.f32 1.0, %v6091
  %v6093 = vrcp.pop %v6066
  %v6094 = vmul.f32 1.0, %v6093
  %v6095 = vrcp.pop %v6067
  %v6096 = vmul.f32 1.0, %v6095
  %v6097 = vrcp.pop %v6068
  %v6098 = vmul.f32 1.0, %v6097
  %v6099 = vrcp.pop %v6069
  %v6100 = vmul.f32 1.0, %v6099
  %v6101 = vrcp.pop %v6070
  %v6102 = vmul.f32 1.0, %v6101
  %6119 = vrot.lane.b32.xlu0 %v5352, 64
  %v6120 = vpop.permute.xlu0 %6119
  %6121 = vrot.lane.b32.xlu0 %v5357, 64
  %v6122 = vpop.permute.xlu0 %6121
  %6123 = vrot.lane.b32.xlu0 %v5362, 64
  %v6124 = vpop.permute.xlu0 %6123
  %6125 = vrot.lane.b32.xlu0 %v5367, 64
  %v6126 = vpop.permute.xlu0 %6125
  %6127 = vrot.lane.b32.xlu0 %v5372, 64
  %v6128 = vpop.permute.xlu0 %6127
  %6129 = vrot.lane.b32.xlu0 %v5377, 64
  %v6130 = vpop.permute.xlu0 %6129
  %6131 = vrot.lane.b32.xlu0 %v5382, 64
  %v6132 = vpop.permute.xlu0 %6131
  %6133 = vrot.lane.b32.xlu0 %v5387, 64
  %v6134 = vpop.permute.xlu0 %6133
  %6135 = vrot.lane.b32.xlu0 %v5392, 64
  %v6136 = vpop.permute.xlu0 %6135
  %6137 = vrot.lane.b32.xlu0 %v5397, 64
  %v6138 = vpop.permute.xlu0 %6137
  %6139 = vrot.lane.b32.xlu0 %v5402, 64
  %v6140 = vpop.permute.xlu0 %6139
  %6141 = vrot.lane.b32.xlu0 %v5407, 64
  %v6142 = vpop.permute.xlu0 %6141
  %6143 = vrot.lane.b32.xlu0 %v5412, 64
  %v6144 = vpop.permute.xlu0 %6143
  %6145 = vrot.lane.b32.xlu0 %v5417, 64
  %v6146 = vpop.permute.xlu0 %6145
  %6147 = vrot.lane.b32.xlu0 %v5422, 64
  %v6148 = vpop.permute.xlu0 %6147
  %6149 = vrot.lane.b32.xlu0 %v5427, 64
  %v6150 = vpop.permute.xlu0 %6149
  %v6167 = vmul.f32 %v6072, %v6120
  %v6168 = vmul.f32 %v6074, %v6122
  %v6169 = vmul.f32 %v6076, %v6124
  %v6170 = vmul.f32 %v6078, %v6126
  %v6171 = vmul.f32 %v6080, %v6128
  %v6172 = vmul.f32 %v6082, %v6130
  %v6173 = vmul.f32 %v6084, %v6132
  %v6174 = vmul.f32 %v6086, %v6134
  %v6175 = vmul.f32 %v6088, %v6136
  %v6176 = vmul.f32 %v6090, %v6138
  %v6177 = vmul.f32 %v6092, %v6140
  %v6178 = vmul.f32 %v6094, %v6142
  %v6179 = vmul.f32 %v6096, %v6144
  %v6180 = vmul.f32 %v6098, %v6146
  %v6181 = vmul.f32 %v6100, %v6148
  %v6182 = vmul.f32 %v6102, %v6150
  %6199 = vrot.lane.b32.xlu0 %v6167, 64
  %v6200 = vpop.permute.xlu0 %6199
  %6201 = vrot.lane.b32.xlu0 %v6168, 64
  %v6202 = vpop.permute.xlu0 %6201
  %6203 = vrot.lane.b32.xlu0 %v6169, 64
  %v6204 = vpop.permute.xlu0 %6203
  %6205 = vrot.lane.b32.xlu0 %v6170, 64
  %v6206 = vpop.permute.xlu0 %6205
  %6207 = vrot.lane.b32.xlu0 %v6171, 64
  %v6208 = vpop.permute.xlu0 %6207
  %6209 = vrot.lane.b32.xlu0 %v6172, 64
  %v6210 = vpop.permute.xlu0 %6209
  %6211 = vrot.lane.b32.xlu0 %v6173, 64
  %v6212 = vpop.permute.xlu0 %6211
  %6213 = vrot.lane.b32.xlu0 %v6174, 64
  %v6214 = vpop.permute.xlu0 %6213
  %6215 = vrot.lane.b32.xlu0 %v6175, 64
  %v6216 = vpop.permute.xlu0 %6215
  %6217 = vrot.lane.b32.xlu0 %v6176, 64
  %v6218 = vpop.permute.xlu0 %6217
  %6219 = vrot.lane.b32.xlu0 %v6177, 64
  %v6220 = vpop.permute.xlu0 %6219
  %6221 = vrot.lane.b32.xlu0 %v6178, 64
  %v6222 = vpop.permute.xlu0 %6221
  %6223 = vrot.lane.b32.xlu0 %v6179, 64
  %v6224 = vpop.permute.xlu0 %6223
  %6225 = vrot.lane.b32.xlu0 %v6180, 64
  %v6226 = vpop.permute.xlu0 %6225
  %6227 = vrot.lane.b32.xlu0 %v6181, 64
  %v6228 = vpop.permute.xlu0 %6227
  %6229 = vrot.lane.b32.xlu0 %v6182, 64
  %v6230 = vpop.permute.xlu0 %6229
  %v6247 = vadd.f32 %v5913, %v6200
  %v6248 = vadd.f32 %v5918, %v6202
  %v6249 = vadd.f32 %v5923, %v6204
  %v6250 = vadd.f32 %v5928, %v6206
  %v6251 = vadd.f32 %v5933, %v6208
  %v6252 = vadd.f32 %v5938, %v6210
  %v6253 = vadd.f32 %v5943, %v6212
  %v6254 = vadd.f32 %v5948, %v6214
  %v6255 = vadd.f32 %v5953, %v6216
  %v6256 = vadd.f32 %v5958, %v6218
  %v6257 = vadd.f32 %v5963, %v6220
  %v6258 = vadd.f32 %v5968, %v6222
  %v6259 = vadd.f32 %v5973, %v6224
  %v6260 = vadd.f32 %v5978, %v6226
  %v6261 = vadd.f32 %v5983, %v6228
  %v6262 = vadd.f32 %v5988, %v6230
  %v6263 = vtanh.pop %v6247
  %v6264 = vtanh.pop %v6248
  %v6265 = vtanh.pop %v6249
  %v6266 = vtanh.pop %v6250
  %v6267 = vtanh.pop %v6251
  %v6268 = vtanh.pop %v6252
  %v6269 = vtanh.pop %v6253
  %v6270 = vtanh.pop %v6254
  %v6271 = vtanh.pop %v6255
  %v6272 = vtanh.pop %v6256
  %v6273 = vtanh.pop %v6257
  %v6274 = vtanh.pop %v6258
  %v6275 = vtanh.pop %v6259
  %v6276 = vtanh.pop %v6260
  %v6277 = vtanh.pop %v6261
  %v6278 = vtanh.pop %v6262
  %v6279 = vsub.f32 %v5044, %v6263
  %v6280 = vsub.f32 %v5045, %v6264
  %v6281 = vsub.f32 %v5046, %v6265
  %v6282 = vsub.f32 %v5047, %v6266
  %v6283 = vsub.f32 %v5048, %v6267
  %v6284 = vsub.f32 %v5049, %v6268
  %v6285 = vsub.f32 %v5050, %v6269
  %v6286 = vsub.f32 %v5051, %v6270
  %v6287 = vsub.f32 %v5052, %v6271
  %v6288 = vsub.f32 %v5053, %v6272
  %v6289 = vsub.f32 %v5054, %v6273
  %v6290 = vsub.f32 %v5055, %v6274
  %v6291 = vsub.f32 %v5056, %v6275
  %v6292 = vsub.f32 %v5057, %v6276
  %v6293 = vsub.f32 %v5058, %v6277
  %v6294 = vsub.f32 %v5059, %v6278
  %6311 = vrot.lane.b32.xlu0 %v6279, 96
  %v6312 = vpop.permute.xlu0 %6311
  %6313 = vrot.lane.b32.xlu0 %v6280, 96
  %v6314 = vpop.permute.xlu0 %6313
  %6315 = vrot.lane.b32.xlu0 %v6281, 96
  %v6316 = vpop.permute.xlu0 %6315
  %6317 = vrot.lane.b32.xlu0 %v6282, 96
  %v6318 = vpop.permute.xlu0 %6317
  %6319 = vrot.lane.b32.xlu0 %v6283, 96
  %v6320 = vpop.permute.xlu0 %6319
  %6321 = vrot.lane.b32.xlu0 %v6284, 96
  %v6322 = vpop.permute.xlu0 %6321
  %6323 = vrot.lane.b32.xlu0 %v6285, 96
  %v6324 = vpop.permute.xlu0 %6323
  %6325 = vrot.lane.b32.xlu0 %v6286, 96
  %v6326 = vpop.permute.xlu0 %6325
  %6327 = vrot.lane.b32.xlu0 %v6287, 96
  %v6328 = vpop.permute.xlu0 %6327
  %6329 = vrot.lane.b32.xlu0 %v6288, 96
  %v6330 = vpop.permute.xlu0 %6329
  %6331 = vrot.lane.b32.xlu0 %v6289, 96
  %v6332 = vpop.permute.xlu0 %6331
  %6333 = vrot.lane.b32.xlu0 %v6290, 96
  %v6334 = vpop.permute.xlu0 %6333
  %6335 = vrot.lane.b32.xlu0 %v6291, 96
  %v6336 = vpop.permute.xlu0 %6335
  %6337 = vrot.lane.b32.xlu0 %v6292, 96
  %v6338 = vpop.permute.xlu0 %6337
  %6339 = vrot.lane.b32.xlu0 %v6293, 96
  %v6340 = vpop.permute.xlu0 %6339
  %6341 = vrot.lane.b32.xlu0 %v6294, 96
  %v6342 = vpop.permute.xlu0 %6341
  %v6359 = vmul.f32 %v6072, %v6312
  %v6360 = vmul.f32 %v6074, %v6314
  %v6361 = vmul.f32 %v6076, %v6316
  %v6362 = vmul.f32 %v6078, %v6318
  %v6363 = vmul.f32 %v6080, %v6320
  %v6364 = vmul.f32 %v6082, %v6322
  %v6365 = vmul.f32 %v6084, %v6324
  %v6366 = vmul.f32 %v6086, %v6326
  %v6367 = vmul.f32 %v6088, %v6328
  %v6368 = vmul.f32 %v6090, %v6330
  %v6369 = vmul.f32 %v6092, %v6332
  %v6370 = vmul.f32 %v6094, %v6334
  %v6371 = vmul.f32 %v6096, %v6336
  %v6372 = vmul.f32 %v6098, %v6338
  %v6373 = vmul.f32 %v6100, %v6340
  %v6374 = vmul.f32 %v6102, %v6342
  %6391 = vrot.lane.b32.xlu0 %v6359, 32
  %v6392 = vpop.permute.xlu0 %6391
  %6393 = vrot.lane.b32.xlu0 %v6360, 32
  %v6394 = vpop.permute.xlu0 %6393
  %6395 = vrot.lane.b32.xlu0 %v6361, 32
  %v6396 = vpop.permute.xlu0 %6395
  %6397 = vrot.lane.b32.xlu0 %v6362, 32
  %v6398 = vpop.permute.xlu0 %6397
  %6399 = vrot.lane.b32.xlu0 %v6363, 32
  %v6400 = vpop.permute.xlu0 %6399
  %6401 = vrot.lane.b32.xlu0 %v6364, 32
  %v6402 = vpop.permute.xlu0 %6401
  %6403 = vrot.lane.b32.xlu0 %v6365, 32
  %v6404 = vpop.permute.xlu0 %6403
  %6405 = vrot.lane.b32.xlu0 %v6366, 32
  %v6406 = vpop.permute.xlu0 %6405
  %6407 = vrot.lane.b32.xlu0 %v6367, 32
  %v6408 = vpop.permute.xlu0 %6407
  %6409 = vrot.lane.b32.xlu0 %v6368, 32
  %v6410 = vpop.permute.xlu0 %6409
  %6411 = vrot.lane.b32.xlu0 %v6369, 32
  %v6412 = vpop.permute.xlu0 %6411
  %6413 = vrot.lane.b32.xlu0 %v6370, 32
  %v6414 = vpop.permute.xlu0 %6413
  %6415 = vrot.lane.b32.xlu0 %v6371, 32
  %v6416 = vpop.permute.xlu0 %6415
  %6417 = vrot.lane.b32.xlu0 %v6372, 32
  %v6418 = vpop.permute.xlu0 %6417
  %6419 = vrot.lane.b32.xlu0 %v6373, 32
  %v6420 = vpop.permute.xlu0 %6419
  %6421 = vrot.lane.b32.xlu0 %v6374, 32
  %v6422 = vpop.permute.xlu0 %6421
  %v6439 = vadd.f32 %v6263, %v6392
  %v6440 = vadd.f32 %v6264, %v6394
  %v6441 = vadd.f32 %v6265, %v6396
  %v6442 = vadd.f32 %v6266, %v6398
  %v6443 = vadd.f32 %v6267, %v6400
  %v6444 = vadd.f32 %v6268, %v6402
  %v6445 = vadd.f32 %v6269, %v6404
  %v6446 = vadd.f32 %v6270, %v6406
  %v6447 = vadd.f32 %v6271, %v6408
  %v6448 = vadd.f32 %v6272, %v6410
  %v6449 = vadd.f32 %v6273, %v6412
  %v6450 = vadd.f32 %v6274, %v6414
  %v6451 = vadd.f32 %v6275, %v6416
  %v6452 = vadd.f32 %v6276, %v6418
  %v6453 = vadd.f32 %v6277, %v6420
  %v6454 = vadd.f32 %v6278, %v6422
  %6471 = vrot.lane.b32.xlu0 %v6439, 64
  %v6472 = vpop.permute.xlu0 %6471
  %6473 = vrot.lane.b32.xlu0 %v6440, 64
  %v6474 = vpop.permute.xlu0 %6473
  %6475 = vrot.lane.b32.xlu0 %v6441, 64
  %v6476 = vpop.permute.xlu0 %6475
  %6477 = vrot.lane.b32.xlu0 %v6442, 64
  %v6478 = vpop.permute.xlu0 %6477
  %6479 = vrot.lane.b32.xlu0 %v6443, 64
  %v6480 = vpop.permute.xlu0 %6479
  %6481 = vrot.lane.b32.xlu0 %v6444, 64
  %v6482 = vpop.permute.xlu0 %6481
  %6483 = vrot.lane.b32.xlu0 %v6445, 64
  %v6484 = vpop.permute.xlu0 %6483
  %6485 = vrot.lane.b32.xlu0 %v6446, 64
  %v6486 = vpop.permute.xlu0 %6485
  %6487 = vrot.lane.b32.xlu0 %v6447, 64
  %v6488 = vpop.permute.xlu0 %6487
  %6489 = vrot.lane.b32.xlu0 %v6448, 64
  %v6490 = vpop.permute.xlu0 %6489
  %6491 = vrot.lane.b32.xlu0 %v6449, 64
  %v6492 = vpop.permute.xlu0 %6491
  %6493 = vrot.lane.b32.xlu0 %v6450, 64
  %v6494 = vpop.permute.xlu0 %6493
  %6495 = vrot.lane.b32.xlu0 %v6451, 64
  %v6496 = vpop.permute.xlu0 %6495
  %6497 = vrot.lane.b32.xlu0 %v6452, 64
  %v6498 = vpop.permute.xlu0 %6497
  %6499 = vrot.lane.b32.xlu0 %v6453, 64
  %v6500 = vpop.permute.xlu0 %6499
  %6501 = vrot.lane.b32.xlu0 %v6454, 64
  %v6502 = vpop.permute.xlu0 %6501
  %v6503 = vsel %vm897, %v6472, 0
  %v6505 = vsel %vm897, %v6474, 0
  %v6507 = vsel %vm897, %v6476, 0
  %v6509 = vsel %vm897, %v6478, 0
  %v6511 = vsel %vm897, %v6480, 0
  %v6513 = vsel %vm897, %v6482, 0
  %v6515 = vsel %vm897, %v6484, 0
  %v6517 = vsel %vm897, %v6486, 0
  %v6519 = vsel %vm897, %v6488, 0
  %v6521 = vsel %vm897, %v6490, 0
  %v6523 = vsel %vm897, %v6492, 0
  %v6525 = vsel %vm897, %v6494, 0
  %v6527 = vsel %vm897, %v6496, 0
  %v6529 = vsel %vm897, %v6498, 0
  %v6531 = vsel %vm897, %v6500, 0
  %v6533 = vsel %vm897, %v6502, 0
  %6535 = vmatprep.subr.mxu0 0.0
  %6536 = vmatpush1.msra.mxu0 %v838
  %6537 = vmatprep.subr.mxu0 0.0
  %6538 = vmatpush1.msra.mxu0 %v839
  %6539 = vmatprep.subr.mxu0 0.0
  %6540 = vmatpush1.msra.mxu0 %v840
  %6541 = vmatprep.subr.mxu0 0.0
  %6542 = vmatpush1.msra.mxu0 %v841
  %6543 = vmatprep.subr.mxu0 0.0
  %6544 = vmatpush1.msra.mxu0 0.0
  %6545 = vmatprep.subr.mxu0 0.0
  %6546 = vmatpush1.msra.mxu0 0.0
  %6547 = vmatprep.subr.mxu0 0.0
  %6548 = vmatpush1.msra.mxu0 0.0
  %6549 = vmatprep.subr.mxu0 0.0
  %6550 = vmatpush1.msra.mxu0 0.0
  %6551 = vmatprep.subr.mxu0 0.0
  %6552 = vmatpush1.msra.mxu0 0.0
  %6553 = vmatprep.subr.mxu0 0.0
  %6554 = vmatpush1.msra.mxu0 0.0
  %6555 = vmatprep.subr.mxu0 0.0
  %6556 = vmatpush1.msra.mxu0 0.0
  %6557 = vmatprep.subr.mxu0 0.0
  %6558 = vmatpush1.msra.mxu0 0.0
  %6559 = vmatprep.subr.mxu0 0.0
  %6560 = vmatpush1.msra.mxu0 0.0
  %6561 = vmatprep.subr.mxu0 0.0
  %6562 = vmatpush1.msra.mxu0 0.0
  %6563 = vmatprep.subr.mxu0 0.0
  %6564 = vmatpush1.msra.mxu0 0.0
  %6565 = vmatprep.subr.mxu0 0.0
  %6566 = vmatpush1.msra.mxu0 0.0
  %6567 = vmatprep.subr.mxu0 0.0
  %6568 = vmatpush1.msra.mxu0 0.0
  %6569 = vmatprep.subr.mxu0 0.0
  %6570 = vmatpush1.msra.mxu0 0.0
  %6571 = vmatprep.subr.mxu0 0.0
  %6572 = vmatpush1.msra.mxu0 0.0
  %6573 = vmatprep.subr.mxu0 0.0
  %6574 = vmatpush1.msra.mxu0 0.0
  %6575 = vmatprep.subr.mxu0 0.0
  %6576 = vmatpush1.msra.mxu0 0.0
  %6577 = vmatprep.subr.mxu0 0.0
  %6578 = vmatpush1.msra.mxu0 0.0
  %6579 = vmatprep.subr.mxu0 0.0
  %6580 = vmatpush1.msra.mxu0 0.0
  %6581 = vmatprep.subr.mxu0 0.0
  %6582 = vmatpush1.msra.mxu0 0.0
  %6583 = vmatprep.subr.mxu0 0.0
  %6584 = vmatpush1.msra.mxu0 0.0
  %6585 = vmatprep.subr.mxu0 0.0
  %6586 = vmatpush1.msra.mxu0 0.0
  %6587 = vmatprep.subr.mxu0 0.0
  %6588 = vmatpush1.msra.mxu0 0.0
  %6589 = vmatprep.subr.mxu0 0.0
  %6590 = vmatpush1.msra.mxu0 0.0
  %6591 = vmatprep.subr.mxu0 0.0
  %6592 = vmatpush1.msra.mxu0 0.0
  %6593 = vmatprep.subr.mxu0 0.0
  %6594 = vmatpush1.msra.mxu0 0.0
  %6595 = vmatprep.subr.mxu0 0.0
  %6596 = vmatpush1.msra.mxu0 0.0
  %6597 = vmatprep.subr.mxu0 0.0
  %6598 = vmatpush1.msra.mxu0 0.0
  %6599 = vmatprep.mubr.f32.mxu0 0.0
  %6600 = vmatmul.mubr.f32.gmra.mrb[0].mxu0 %v6503
  %v6601 = vpop.f32.mrb[0].mxu0
  %v6602 = vadd.f32 %v847, %v6601
  %v6603 = vpop.f32.mrb[0].mxu0
  %6604 = vmatprep.mubr.f32.mxu0 0.0
  %6605 = vmatmul.mubr.f32.gmra.mrb[0].mxu0 %v6505
  %v6606 = vpop.f32.mrb[0].mxu0
  %v6607 = vadd.f32 %v847, %v6606
  %v6608 = vpop.f32.mrb[0].mxu0
  %6609 = vmatprep.mubr.f32.mxu0 0.0
  %6610 = vmatmul.mubr.f32.gmra.mrb[0].mxu0 %v6507
  %v6611 = vpop.f32.mrb[0].mxu0
  %v6612 = vadd.f32 %v847, %v6611
  %v6613 = vpop.f32.mrb[0].mxu0
  %6614 = vmatprep.mubr.f32.mxu0 0.0
  %6615 = vmatmul.mubr.f32.gmra.mrb[0].mxu0 %v6509
  %v6616 = vpop.f32.mrb[0].mxu0
  %v6617 = vadd.f32 %v847, %v6616
  %v6618 = vpop.f32.mrb[0].mxu0
  %6619 = vmatprep.mubr.f32.mxu0 0.0
  %6620 = vmatmul.mubr.f32.gmra.mrb[0].mxu0 %v6511
  %v6621 = vpop.f32.mrb[0].mxu0
  %v6622 = vadd.f32 %v847, %v6621
  %v6623 = vpop.f32.mrb[0].mxu0
  %6624 = vmatprep.mubr.f32.mxu0 0.0
  %6625 = vmatmul.mubr.f32.gmra.mrb[0].mxu0 %v6513
  %v6626 = vpop.f32.mrb[0].mxu0
  %v6627 = vadd.f32 %v847, %v6626
  %v6628 = vpop.f32.mrb[0].mxu0
  %6629 = vmatprep.mubr.f32.mxu0 0.0
  %6630 = vmatmul.mubr.f32.gmra.mrb[0].mxu0 %v6515
  %v6631 = vpop.f32.mrb[0].mxu0
  %v6632 = vadd.f32 %v847, %v6631
  %v6633 = vpop.f32.mrb[0].mxu0
  %6634 = vmatprep.mubr.f32.mxu0 0.0
  %6635 = vmatmul.mubr.f32.gmra.mrb[0].mxu0 %v6517
  %v6636 = vpop.f32.mrb[0].mxu0
  %v6637 = vadd.f32 %v847, %v6636
  %v6638 = vpop.f32.mrb[0].mxu0
  %6639 = vmatprep.mubr.f32.mxu0 0.0
  %6640 = vmatmul.mubr.f32.gmra.mrb[0].mxu0 %v6519
  %v6641 = vpop.f32.mrb[0].mxu0
  %v6642 = vadd.f32 %v847, %v6641
  %v6643 = vpop.f32.mrb[0].mxu0
  %6644 = vmatprep.mubr.f32.mxu0 0.0
  %6645 = vmatmul.mubr.f32.gmra.mrb[0].mxu0 %v6521
  %v6646 = vpop.f32.mrb[0].mxu0
  %v6647 = vadd.f32 %v847, %v6646
  %v6648 = vpop.f32.mrb[0].mxu0
  %6649 = vmatprep.mubr.f32.mxu0 0.0
  %6650 = vmatmul.mubr.f32.gmra.mrb[0].mxu0 %v6523
  %v6651 = vpop.f32.mrb[0].mxu0
  %v6652 = vadd.f32 %v847, %v6651
  %v6653 = vpop.f32.mrb[0].mxu0
  %6654 = vmatprep.mubr.f32.mxu0 0.0
  %6655 = vmatmul.mubr.f32.gmra.mrb[0].mxu0 %v6525
  %v6656 = vpop.f32.mrb[0].mxu0
  %v6657 = vadd.f32 %v847, %v6656
  %v6658 = vpop.f32.mrb[0].mxu0
  %6659 = vmatprep.mubr.f32.mxu0 0.0
  %6660 = vmatmul.mubr.f32.gmra.mrb[0].mxu0 %v6527
  %v6661 = vpop.f32.mrb[0].mxu0
  %v6662 = vadd.f32 %v847, %v6661
  %v6663 = vpop.f32.mrb[0].mxu0
  %6664 = vmatprep.mubr.f32.mxu0 0.0
  %6665 = vmatmul.mubr.f32.gmra.mrb[0].mxu0 %v6529
  %v6666 = vpop.f32.mrb[0].mxu0
  %v6667 = vadd.f32 %v847, %v6666
  %v6668 = vpop.f32.mrb[0].mxu0
  %6669 = vmatprep.mubr.f32.mxu0 0.0
  %6670 = vmatmul.mubr.f32.gmra.mrb[0].mxu0 %v6531
  %v6671 = vpop.f32.mrb[0].mxu0
  %v6672 = vadd.f32 %v847, %v6671
  %v6673 = vpop.f32.mrb[0].mxu0
  %6674 = vmatprep.mubr.f32.mxu0 0.0
  %6675 = vmatmul.mubr.f32.gmra.mrb[0].mxu0 %v6533
  %v6676 = vpop.f32.mrb[0].mxu0
  %v6677 = vadd.f32 %v847, %v6676
  %v6678 = vpop.f32.mrb[0].mxu0
  %6679 = vdwg.mxu0
  %6696 = vrot.lane.b32.xlu0 %v2417, 10
  %v6697 = vpop.permute.xlu0 %6696
  %6698 = vrot.lane.b32.xlu0 %v2422, 10
  %v6699 = vpop.permute.xlu0 %6698
  %6700 = vrot.lane.b32.xlu0 %v2427, 10
  %v6701 = vpop.permute.xlu0 %6700
  %6702 = vrot.lane.b32.xlu0 %v2432, 10
  %v6703 = vpop.permute.xlu0 %6702
  %6704 = vrot.lane.b32.xlu0 %v2437, 10
  %v6705 = vpop.permute.xlu0 %6704
  %6706 = vrot.lane.b32.xlu0 %v2442, 10
  %v6707 = vpop.permute.xlu0 %6706
  %6708 = vrot.lane.b32.xlu0 %v2447, 10
  %v6709 = vpop.permute.xlu0 %6708
  %6710 = vrot.lane.b32.xlu0 %v2452, 10
  %v6711 = vpop.permute.xlu0 %6710
  %6712 = vrot.lane.b32.xlu0 %v2457, 10
  %v6713 = vpop.permute.xlu0 %6712
  %6714 = vrot.lane.b32.xlu0 %v2462, 10
  %v6715 = vpop.permute.xlu0 %6714
  %6716 = vrot.lane.b32.xlu0 %v2467, 10
  %v6717 = vpop.permute.xlu0 %6716
  %6718 = vrot.lane.b32.xlu0 %v2472, 10
  %v6719 = vpop.permute.xlu0 %6718
  %6720 = vrot.lane.b32.xlu0 %v2477, 10
  %v6721 = vpop.permute.xlu0 %6720
  %6722 = vrot.lane.b32.xlu0 %v2482, 10
  %v6723 = vpop.permute.xlu0 %6722
  %6724 = vrot.lane.b32.xlu0 %v2487, 10
  %v6725 = vpop.permute.xlu0 %6724
  %6726 = vrot.lane.b32.xlu0 %v2492, 10
  %v6727 = vpop.permute.xlu0 %6726
  %6760 = vrot.lane.b32.xlu0 %v3812, 20
  %v6761 = vpop.permute.xlu0 %6760
  %6762 = vrot.lane.b32.xlu0 %v3817, 20
  %v6763 = vpop.permute.xlu0 %6762
  %6764 = vrot.lane.b32.xlu0 %v3822, 20
  %v6765 = vpop.permute.xlu0 %6764
  %6766 = vrot.lane.b32.xlu0 %v3827, 20
  %v6767 = vpop.permute.xlu0 %6766
  %6768 = vrot.lane.b32.xlu0 %v3832, 20
  %v6769 = vpop.permute.xlu0 %6768
  %6770 = vrot.lane.b32.xlu0 %v3837, 20
  %v6771 = vpop.permute.xlu0 %6770
  %6772 = vrot.lane.b32.xlu0 %v3842, 20
  %v6773 = vpop.permute.xlu0 %6772
  %6774 = vrot.lane.b32.xlu0 %v3847, 20
  %v6775 = vpop.permute.xlu0 %6774
  %6776 = vrot.lane.b32.xlu0 %v3852, 20
  %v6777 = vpop.permute.xlu0 %6776
  %6778 = vrot.lane.b32.xlu0 %v3857, 20
  %v6779 = vpop.permute.xlu0 %6778
  %6780 = vrot.lane.b32.xlu0 %v3862, 20
  %v6781 = vpop.permute.xlu0 %6780
  %6782 = vrot.lane.b32.xlu0 %v3867, 20
  %v6783 = vpop.permute.xlu0 %6782
  %6784 = vrot.lane.b32.xlu0 %v3872, 20
  %v6785 = vpop.permute.xlu0 %6784
  %6786 = vrot.lane.b32.xlu0 %v3877, 20
  %v6787 = vpop.permute.xlu0 %6786
  %6788 = vrot.lane.b32.xlu0 %v3882, 20
  %v6789 = vpop.permute.xlu0 %6788
  %6790 = vrot.lane.b32.xlu0 %v3887, 20
  %v6791 = vpop.permute.xlu0 %6790
  %6824 = vrot.lane.b32.xlu0 %v5207, 30
  %v6825 = vpop.permute.xlu0 %6824
  %6826 = vrot.lane.b32.xlu0 %v5212, 30
  %v6827 = vpop.permute.xlu0 %6826
  %6828 = vrot.lane.b32.xlu0 %v5217, 30
  %v6829 = vpop.permute.xlu0 %6828
  %6830 = vrot.lane.b32.xlu0 %v5222, 30
  %v6831 = vpop.permute.xlu0 %6830
  %6832 = vrot.lane.b32.xlu0 %v5227, 30
  %v6833 = vpop.permute.xlu0 %6832
  %6834 = vrot.lane.b32.xlu0 %v5232, 30
  %v6835 = vpop.permute.xlu0 %6834
  %6836 = vrot.lane.b32.xlu0 %v5237, 30
  %v6837 = vpop.permute.xlu0 %6836
  %6838 = vrot.lane.b32.xlu0 %v5242, 30
  %v6839 = vpop.permute.xlu0 %6838
  %6840 = vrot.lane.b32.xlu0 %v5247, 30
  %v6841 = vpop.permute.xlu0 %6840
  %6842 = vrot.lane.b32.xlu0 %v5252, 30
  %v6843 = vpop.permute.xlu0 %6842
  %6844 = vrot.lane.b32.xlu0 %v5257, 30
  %v6845 = vpop.permute.xlu0 %6844
  %6846 = vrot.lane.b32.xlu0 %v5262, 30
  %v6847 = vpop.permute.xlu0 %6846
  %6848 = vrot.lane.b32.xlu0 %v5267, 30
  %v6849 = vpop.permute.xlu0 %6848
  %6850 = vrot.lane.b32.xlu0 %v5272, 30
  %v6851 = vpop.permute.xlu0 %6850
  %6852 = vrot.lane.b32.xlu0 %v5277, 30
  %v6853 = vpop.permute.xlu0 %6852
  %6854 = vrot.lane.b32.xlu0 %v5282, 30
  %v6855 = vpop.permute.xlu0 %6854
  %6888 = vrot.lane.b32.xlu0 %v6602, 40
  %v6889 = vpop.permute.xlu0 %6888
  %6890 = vrot.lane.b32.xlu0 %v6607, 40
  %v6891 = vpop.permute.xlu0 %6890
  %6892 = vrot.lane.b32.xlu0 %v6612, 40
  %v6893 = vpop.permute.xlu0 %6892
  %6894 = vrot.lane.b32.xlu0 %v6617, 40
  %v6895 = vpop.permute.xlu0 %6894
  %6896 = vrot.lane.b32.xlu0 %v6622, 40
  %v6897 = vpop.permute.xlu0 %6896
  %6898 = vrot.lane.b32.xlu0 %v6627, 40
  %v6899 = vpop.permute.xlu0 %6898
  %6900 = vrot.lane.b32.xlu0 %v6632, 40
  %v6901 = vpop.permute.xlu0 %6900
  %6902 = vrot.lane.b32.xlu0 %v6637, 40
  %v6903 = vpop.permute.xlu0 %6902
  %6904 = vrot.lane.b32.xlu0 %v6642, 40
  %v6905 = vpop.permute.xlu0 %6904
  %6906 = vrot.lane.b32.xlu0 %v6647, 40
  %v6907 = vpop.permute.xlu0 %6906
  %6908 = vrot.lane.b32.xlu0 %v6652, 40
  %v6909 = vpop.permute.xlu0 %6908
  %6910 = vrot.lane.b32.xlu0 %v6657, 40
  %v6911 = vpop.permute.xlu0 %6910
  %6912 = vrot.lane.b32.xlu0 %v6662, 40
  %v6913 = vpop.permute.xlu0 %6912
  %6914 = vrot.lane.b32.xlu0 %v6667, 40
  %v6915 = vpop.permute.xlu0 %6914
  %6916 = vrot.lane.b32.xlu0 %v6672, 40
  %v6917 = vpop.permute.xlu0 %6916
  %6918 = vrot.lane.b32.xlu0 %v6677, 40
  %v6919 = vpop.permute.xlu0 %6918
  %v6936 = vsel %vm1231, %v997, %v6697
  %v6937 = vsel %vm1231, %v1002, %v6699
  %v6938 = vsel %vm1231, %v1007, %v6701
  %v6939 = vsel %vm1231, %v1012, %v6703
  %v6940 = vsel %vm1231, %v1017, %v6705
  %v6941 = vsel %vm1231, %v1022, %v6707
  %v6942 = vsel %vm1231, %v1027, %v6709
  %v6943 = vsel %vm1231, %v1032, %v6711
  %v6944 = vsel %vm1231, %v1037, %v6713
  %v6945 = vsel %vm1231, %v1042, %v6715
  %v6946 = vsel %vm1231, %v1047, %v6717
  %v6947 = vsel %vm1231, %v1052, %v6719
  %v6948 = vsel %vm1231, %v1057, %v6721
  %v6949 = vsel %vm1231, %v1062, %v6723
  %v6950 = vsel %vm1231, %v1067, %v6725
  %v6951 = vsel %vm1231, %v1072, %v6727
  %vm6952 = vcmask 162816
  %v6953 = vsel %vm6952, %v6936, %v6761
  %v6954 = vsel %vm6952, %v6937, %v6763
  %v6955 = vsel %vm6952, %v6938, %v6765
  %v6956 = vsel %vm6952, %v6939, %v6767
  %v6957 = vsel %vm6952, %v6940, %v6769
  %v6958 = vsel %vm6952, %v6941, %v6771
  %v6959 = vsel %vm6952, %v6942, %v6773
  %v6960 = vsel %vm6952, %v6943, %v6775
  %v6961 = vsel %vm6952, %v6944, %v6777
  %v6962 = vsel %vm6952, %v6945, %v6779
  %v6963 = vsel %vm6952, %v6946, %v6781
  %v6964 = vsel %vm6952, %v6947, %v6783
  %v6965 = vsel %vm6952, %v6948, %v6785
  %v6966 = vsel %vm6952, %v6949, %v6787
  %v6967 = vsel %vm6952, %v6950, %v6789
  %v6968 = vsel %vm6952, %v6951, %v6791
  %vm6969 = vcmask 244736
  %v6970 = vsel %vm6969, %v6953, %v6825
  %v6971 = vsel %vm6969, %v6954, %v6827
  %v6972 = vsel %vm6969, %v6955, %v6829
  %v6973 = vsel %vm6969, %v6956, %v6831
  %v6974 = vsel %vm6969, %v6957, %v6833
  %v6975 = vsel %vm6969, %v6958, %v6835
  %v6976 = vsel %vm6969, %v6959, %v6837
  %v6977 = vsel %vm6969, %v6960, %v6839
  %v6978 = vsel %vm6969, %v6961, %v6841
  %v6979 = vsel %vm6969, %v6962, %v6843
  %v6980 = vsel %vm6969, %v6963, %v6845
  %v6981 = vsel %vm6969, %v6964, %v6847
  %v6982 = vsel %vm6969, %v6965, %v6849
  %v6983 = vsel %vm6969, %v6966, %v6851
  %v6984 = vsel %vm6969, %v6967, %v6853
  %v6985 = vsel %vm6969, %v6968, %v6855
  %vm6986 = vcmask 326656
  %v6987 = vsel %vm6986, %v6970, %v6889
  %v6988 = vsel %vm6986, %v6971, %v6891
  %v6989 = vsel %vm6986, %v6972, %v6893
  %v6990 = vsel %vm6986, %v6973, %v6895
  %v6991 = vsel %vm6986, %v6974, %v6897
  %v6992 = vsel %vm6986, %v6975, %v6899
  %v6993 = vsel %vm6986, %v6976, %v6901
  %v6994 = vsel %vm6986, %v6977, %v6903
  %v6995 = vsel %vm6986, %v6978, %v6905
  %v6996 = vsel %vm6986, %v6979, %v6907
  %v6997 = vsel %vm6986, %v6980, %v6909
  %v6998 = vsel %vm6986, %v6981, %v6911
  %v6999 = vsel %vm6986, %v6982, %v6913
  %v7000 = vsel %vm6986, %v6983, %v6915
  %v7001 = vsel %vm6986, %v6984, %v6917
  %v7002 = vsel %vm6986, %v6985, %v6919
  %vm7003 = vcmask 408576
  %7004 = vst.msk [vmem:[%s10] sm:$0xff] %vm7003, %v6987
  %7005 = vst.msk [vmem:[%s10 + $0x8] sm:$0xff] %vm7003, %v6988
  %7006 = vst.msk [vmem:[%s10 + $0x10] sm:$0xff] %vm7003, %v6989
  %7007 = vst.msk [vmem:[%s10 + $0x18] sm:$0xff] %vm7003, %v6990
  %7008 = vst.msk [vmem:[%s10 + $0x20] sm:$0xff] %vm7003, %v6991
  %7009 = vst.msk [vmem:[%s10 + $0x28] sm:$0xff] %vm7003, %v6992
  %7010 = vst.msk [vmem:[%s10 + $0x30] sm:$0xff] %vm7003, %v6993
  %7011 = vst.msk [vmem:[%s10 + $0x38] sm:$0xff] %vm7003, %v6994
  %7012 = vst.msk [vmem:[%s10 + $0x40] sm:$0xff] %vm7003, %v6995
  %7013 = vst.msk [vmem:[%s10 + $0x48] sm:$0xff] %vm7003, %v6996
  %7014 = vst.msk [vmem:[%s10 + $0x50] sm:$0xff] %vm7003, %v6997
  %7015 = vst.msk [vmem:[%s10 + $0x58] sm:$0xff] %vm7003, %v6998
  %7016 = vst.msk [vmem:[%s10 + $0x60] sm:$0xff] %vm7003, %v6999
  %7017 = vst.msk [vmem:[%s10 + $0x68] sm:$0xff] %vm7003, %v7000
  %7018 = vst.msk [vmem:[%s10 + $0x70] sm:$0xff] %vm7003, %v7001
  %7019 = vst.msk [vmem:[%s10 + $0x78] sm:$0xff] %vm7003, %v7002
  // Predicated region
  $region42: #{orig_sender_deterministic_pallas.1} parent=0 // pred_check
    _
  $region43: #{orig_sender_deterministic_pallas.1} parent=0 // pred_check_branch
    %7021 = sbr.rel (0) target = $region45
  $region44: #{orig_sender_deterministic_pallas.1} parent=0 // pred_region
    _
  $region45: #{orig_sender_deterministic_pallas.1} parent=0 // pred_fallthru
    _
  // Predicated region
  $region46: #{orig_sender_deterministic_pallas.1} parent=0 // pred_check
    _
  $region47: #{orig_sender_deterministic_pallas.1} parent=0 // pred_check_branch
    %7023 = sbr.rel (0) target = $region49
  $region48: #{orig_sender_deterministic_pallas.1} parent=0 // pred_region
    _
  $region49: #{orig_sender_deterministic_pallas.1} parent=0 // pred_fallthru
    _

</llo_original>
